<compile_context>
chip_gen: v6e
topology: v6e:2x2x1
jax: 0.10.0
libtpu: 0.0.40
codegen_flags: <defaults>
</compile_context>

<pallas_src>
import math

import jax
import jax.numpy as jnp
from jax.experimental import pallas as pl
from jax.experimental.pallas import tpu as pltpu


def _round_up(n: int, m: int) -> int:
    return ((n + m - 1) // m) * m


# ---------------------------------------------------------------------------
# Pallas kernel: one batch tile of the Actor forward (3 matmuls + relu + sigmoid)
# ---------------------------------------------------------------------------
def _make_actor_kernel(max_action: float):
    def actor_kernel(x_ref, w1_ref, b1_ref, w2_ref, b2_ref, w3_ref, b3_ref, o_ref):
        hi = jax.lax.Precision.HIGHEST
        x = x_ref[...]
        # fc1 + relu
        h1 = jnp.dot(x, w1_ref[...], preferred_element_type=jnp.float32,
                     precision=hi) + b1_ref[...]
        h1 = jnp.maximum(h1, 0.0)
        # fc2 + relu
        h2 = jnp.dot(h1, w2_ref[...], preferred_element_type=jnp.float32,
                     precision=hi) + b2_ref[...]
        h2 = jnp.maximum(h2, 0.0)
        # fc3 + sigmoid, scaled by max_action
        logits = jnp.dot(h2, w3_ref[...], preferred_element_type=jnp.float32,
                         precision=hi) + b3_ref[...]
        o_ref[...] = (max_action * jax.nn.sigmoid(logits)).astype(o_ref.dtype)

    return actor_kernel


# ---------------------------------------------------------------------------
# Tile selection: minimum number of grid steps, VMEM-safe, megacore-friendly
# ---------------------------------------------------------------------------
def _lane_padded_row_bytes(cols: int) -> int:
    # f32 VMEM blocks are padded to 128 lanes along the minor dim.
    return _round_up(max(cols, 1), 128) * 4


def _choose_batch_tile(B: int, obs_dim: int, act_dim: int,
                       vmem_budget_bytes: int = 8 << 20):
    """Pick (TB, steps) with the fewest grid steps that fit the VMEM budget.

    Per-step pipelined working set (lane-padded, double-buffered x + out):
      2 * TB * (pad128(obs_dim) + pad128(act_dim)) * 4 bytes.
    8 MiB keeps us well under v5e's 16 MiB default scoped VMEM and leaves the
    (tiny) resident weights plenty of headroom on v7x's 64 MiB physical VMEM.
    """
    per_row = 2 * (_lane_padded_row_bytes(obs_dim) + _lane_padded_row_bytes(act_dim))
    tb_cap = max(8, (vmem_budget_bytes // per_row) // 8 * 8)

    b8 = _round_up(B, 8)
    steps = pl.cdiv(b8, tb_cap)
    if steps > 1 and steps % 2 == 1:
        # Even step count -> balanced 2-way split across TensorCores on v7x.
        steps += 1
    TB = _round_up(pl.cdiv(B, steps), 8)
    TB = min(TB, tb_cap)
    # Guarantee coverage (cdiv + round_up above always does, but be explicit).
    while TB * steps < B:
        steps += 1
    return TB, steps


# ---------------------------------------------------------------------------
# Wrapper: single pallas_call, batch-tiled grid, VMEM-resident weights
# ---------------------------------------------------------------------------
def actor_forward(x, params, max_action: float):
    """x: (B, obs_dim) float32. params: dict of (in, out) weights and (1, out) biases."""
    w1, b1 = params["w1"], params["b1"]   # (obs, h),  (1, h)
    w2, b2 = params["w2"], params["b2"]   # (h,  h1),  (1, h1)
    w3, b3 = params["w3"], params["b3"]   # (h1, act), (1, act)

    B, obs_dim = x.shape
    hid = w1.shape[1]
    hid1 = w2.shape[1]
    act_dim = w3.shape[1]

    TB, steps = _choose_batch_tile(B, obs_dim, act_dim)
    Bp = TB * steps
    if Bp != B:
        # With minimal-step tiling the remainder is at most TB-1 rows (typically <8);
        # padded rows produce sigmoid(b3) garbage and are sliced off below.
        x = jnp.pad(x, ((0, Bp - B), (0, 0)))

    vmem = pltpu.MemorySpace.VMEM
    # Constant index_map -> block stays resident in VMEM across grid steps
    # (DMA'd once, never re-fetched).
    resident = lambda a: pl.BlockSpec(a.shape, lambda i: (0,) * a.ndim,
                                      memory_space=vmem)

    flops = 2 * B * (obs_dim * hid + hid * hid1 + hid1 * act_dim)
    bytes_accessed = 4 * (B * obs_dim + B * act_dim
                          + obs_dim * hid + hid
                          + hid * hid1 + hid1
                          + hid1 * act_dim + act_dim)
    cost = pl.CostEstimate(flops=flops,
                           transcendentals=B * act_dim,      # sigmoid
                           bytes_accessed=bytes_accessed)

    out = pl.pallas_call(
        _make_actor_kernel(max_action),
        out_shape=jax.ShapeDtypeStruct((Bp, act_dim), jnp.float32),
        grid=(steps,),
        in_specs=[
            pl.BlockSpec((TB, obs_dim), lambda i: (i, 0), memory_space=vmem),
            resident(w1), resident(b1),
            resident(w2), resident(b2),
            resident(w3), resident(b3),
        ],
        out_specs=pl.BlockSpec((TB, act_dim), lambda i: (i, 0), memory_space=vmem),
        compiler_params=pltpu.CompilerParams(
            dimension_semantics=("parallel",)),  # megacore split when steps > 1
        cost_estimate=cost,
    )(x, w1, b1, w2, b2, w3, b3)

    return out[:B] if Bp != B else out


# ---------------------------------------------------------------------------
# Deterministic parameter init (orthogonal weights, zero biases), like
# orthogonal_init() in the PyTorch module.
# ---------------------------------------------------------------------------
def orthogonal(key, out_features, in_features, gain=1.0):
    # Mirror torch.nn.init.orthogonal_: random normal -> QR -> sign fix.
    rows, cols = out_features, in_features
    flat = jax.random.normal(key, (max(rows, cols), min(rows, cols)), dtype=jnp.float32)
    q, r = jnp.linalg.qr(flat)
    q = q * jnp.sign(jnp.diag(r))[None, :]
    if rows < cols:
        q = q.T
    return gain * q[:rows, :cols]   # (out_features, in_features), PyTorch layout


def init_actor_params(key, obs_dim, hidden_dim, hidden_dim1, action_dim):
    k1, k2, k3 = jax.random.split(key, 3)
    w1_pt = orthogonal(k1, hidden_dim, obs_dim)        # (h, obs)
    w2_pt = orthogonal(k2, hidden_dim1, hidden_dim)    # (h1, h)
    w3_pt = orthogonal(k3, action_dim, hidden_dim1)    # (act, h1)
    return {
        # transpose to (in, out) for the kernel's x @ W convention
        "w1": w1_pt.T, "b1": jnp.zeros((1, hidden_dim), jnp.float32),
        "w2": w2_pt.T, "b2": jnp.zeros((1, hidden_dim1), jnp.float32),
        "w3": w3_pt.T, "b3": jnp.zeros((1, action_dim), jnp.float32),
    }


def reference_forward(x, params, max_action):
    hi = jax.lax.Precision.HIGHEST
    h1 = jnp.maximum(jnp.dot(x, params["w1"], precision=hi) + params["b1"], 0.0)
    h2 = jnp.maximum(jnp.dot(h1, params["w2"], precision=hi) + params["b2"], 0.0)
    return max_action * jax.nn.sigmoid(jnp.dot(h2, params["w3"], precision=hi) + params["b3"])


if __name__ == "__main__":
    # Shapes implied by the Actor module:
    #   obs_dim_n[agent_id]=16, hidden_dim=32, hidden_dim1=32, action_dim_n[agent_id]=8
    # B=300 now resolves to a single grid step (TB=304, 4 padded rows).
    B, OBS, H, H1, ACT = 300, 16, 32, 32, 8
    MAX_ACTION = 1.0

    key = jax.random.PRNGKey(0)
    kx, kp = jax.random.split(key)
    x = jax.random.normal(kx, (B, OBS), dtype=jnp.float32)
    params = init_actor_params(kp, OBS, H, H1, ACT)

    out = actor_forward(x, params, MAX_ACTION)
    out = jax.block_until_ready(out)

    ref = reference_forward(x, params, MAX_ACTION)
    assert out.shape == (B, ACT)
    assert jnp.allclose(out, ref, atol=1e-5, rtol=1e-5), "mismatch vs pure-JAX reference"

    print("KERNEL_OK")
</pallas_src>

<mosaic_0001>
module attributes {stable_mosaic.version = 11 : i64} {
  func.func @actor_kernel(%arg0: i32, %arg1: memref<304x16xf32, #tpu.memory_space<vmem>>, %arg2: memref<16x32xf32, #tpu.memory_space<vmem>>, %arg3: memref<1x32xf32, #tpu.memory_space<vmem>>, %arg4: memref<32x32xf32, #tpu.memory_space<vmem>>, %arg5: memref<1x32xf32, #tpu.memory_space<vmem>>, %arg6: memref<32x8xf32, #tpu.memory_space<vmem>>, %arg7: memref<1x8xf32, #tpu.memory_space<vmem>>, %arg8: memref<304x8xf32, #tpu.memory_space<vmem>>) attributes {dimension_semantics = [#tpu.dimension_semantics<parallel>], iteration_bounds = array<i64: 1>, scalar_prefetch = 0 : i64, scratch_operands = 0 : i64, tpu.core_type = #tpu.core_type<tc>, window_params = [{transform_indices = @transform_0, window_bounds = array<i64: 304, 16>}, {pipeline_mode = #tpu.pipeline_mode<synchronous>, transform_indices = @transform_1, window_bounds = array<i64: 16, 32>}, {pipeline_mode = #tpu.pipeline_mode<synchronous>, transform_indices = @transform_2, window_bounds = array<i64: 1, 32>}, {pipeline_mode = #tpu.pipeline_mode<synchronous>, transform_indices = @transform_3, window_bounds = array<i64: 32, 32>}, {pipeline_mode = #tpu.pipeline_mode<synchronous>, transform_indices = @transform_4, window_bounds = array<i64: 1, 32>}, {pipeline_mode = #tpu.pipeline_mode<synchronous>, transform_indices = @transform_5, window_bounds = array<i64: 32, 8>}, {pipeline_mode = #tpu.pipeline_mode<synchronous>, transform_indices = @transform_6, window_bounds = array<i64: 1, 8>}, {transform_indices = @transform_7, window_bounds = array<i64: 304, 8>}]} {
    %c0 = arith.constant 0 : index
    %c0_0 = arith.constant 0 : index
    %0 = vector.load %arg1[%c0, %c0_0] : memref<304x16xf32, #tpu.memory_space<vmem>>, vector<304x16xf32>
    %c0_1 = arith.constant 0 : index
    %c0_2 = arith.constant 0 : index
    %1 = vector.load %arg2[%c0_1, %c0_2] : memref<16x32xf32, #tpu.memory_space<vmem>>, vector<16x32xf32>
    %cst = arith.constant dense<0.000000e+00> : vector<304x32xf32>
    %2 = tpu.matmul %0, %1, %cst {dimension_numbers = #tpu.dot_dimension_numbers<[1], [0], [0], [1], [0, 0, 1, 1], [], []>, precision = #tpu.contract_precision<fp32>} : vector<304x16xf32>, vector<16x32xf32>, vector<304x32xf32> -> vector<304x32xf32>
    %c0_3 = arith.constant 0 : index
    %c0_4 = arith.constant 0 : index
    %3 = vector.load %arg3[%c0_3, %c0_4] : memref<1x32xf32, #tpu.memory_space<vmem>>, vector<1x32xf32>
    %4 = vector.broadcast %3 : vector<1x32xf32> to vector<304x32xf32>
    %5 = arith.addf %2, %4 : vector<304x32xf32>
    %cst_5 = arith.constant 0.000000e+00 : f32
    %6 = vector.broadcast %cst_5 : f32 to vector<304x32xf32>
    %7 = arith.maximumf %5, %6 : vector<304x32xf32>
    %c0_6 = arith.constant 0 : index
    %c0_7 = arith.constant 0 : index
    %8 = vector.load %arg4[%c0_6, %c0_7] : memref<32x32xf32, #tpu.memory_space<vmem>>, vector<32x32xf32>
    %cst_8 = arith.constant dense<0.000000e+00> : vector<304x32xf32>
    %9 = tpu.matmul %7, %8, %cst_8 {dimension_numbers = #tpu.dot_dimension_numbers<[1], [0], [0], [1], [0, 0, 1, 1], [], []>, precision = #tpu.contract_precision<fp32>} : vector<304x32xf32>, vector<32x32xf32>, vector<304x32xf32> -> vector<304x32xf32>
    %c0_9 = arith.constant 0 : index
    %c0_10 = arith.constant 0 : index
    %10 = vector.load %arg5[%c0_9, %c0_10] : memref<1x32xf32, #tpu.memory_space<vmem>>, vector<1x32xf32>
    %11 = vector.broadcast %10 : vector<1x32xf32> to vector<304x32xf32>
    %12 = arith.addf %9, %11 : vector<304x32xf32>
    %cst_11 = arith.constant 0.000000e+00 : f32
    %13 = vector.broadcast %cst_11 : f32 to vector<304x32xf32>
    %14 = arith.maximumf %12, %13 : vector<304x32xf32>
    %c0_12 = arith.constant 0 : index
    %c0_13 = arith.constant 0 : index
    %15 = vector.load %arg6[%c0_12, %c0_13] : memref<32x8xf32, #tpu.memory_space<vmem>>, vector<32x8xf32>
    %cst_14 = arith.constant dense<0.000000e+00> : vector<304x8xf32>
    %16 = tpu.matmul %14, %15, %cst_14 {dimension_numbers = #tpu.dot_dimension_numbers<[1], [0], [0], [1], [0, 0, 1, 1], [], []>, precision = #tpu.contract_precision<fp32>} : vector<304x32xf32>, vector<32x8xf32>, vector<304x8xf32> -> vector<304x8xf32>
    %c0_15 = arith.constant 0 : index
    %c0_16 = arith.constant 0 : index
    %17 = vector.load %arg7[%c0_15, %c0_16] : memref<1x8xf32, #tpu.memory_space<vmem>>, vector<1x8xf32>
    %18 = vector.broadcast %17 : vector<1x8xf32> to vector<304x8xf32>
    %19 = arith.addf %16, %18 : vector<304x8xf32>
    %20 = arith.negf %19 : vector<304x8xf32>
    %21 = math.exp %20 : vector<304x8xf32>
    %cst_17 = arith.constant 1.000000e+00 : f32
    %22 = vector.broadcast %cst_17 : f32 to vector<304x8xf32>
    %23 = arith.addf %22, %21 : vector<304x8xf32>
    %24 = arith.divf %22, %23 : vector<304x8xf32>
    %cst_18 = arith.constant 1.000000e+00 : f32
    %25 = vector.broadcast %cst_18 : f32 to vector<304x8xf32>
    %26 = arith.mulf %25, %24 : vector<304x8xf32>
    %c0_19 = arith.constant 0 : index
    %c0_20 = arith.constant 0 : index
    %27 = vector.load %arg8[%c0_19, %c0_20] : memref<304x8xf32, #tpu.memory_space<vmem>>, vector<304x8xf32>
    tpu.vector_store %arg8[%c0_19, %c0_20], %26 {strides = array<i32>} : memref<304x8xf32, #tpu.memory_space<vmem>>, vector<304x8xf32>,
    return
  }
  func.func @transform_0(%arg0: i32) -> (i32, i32) {
    %c0_i32 = arith.constant 0 : i32
    %c0_i32_0 = arith.constant 0 : i32
    return %arg0, %c0_i32 : i32, i32
  }
  func.func @transform_1(%arg0: i32) -> (i32, i32) {
    %c0_i32 = arith.constant 0 : i32
    %c0_i32_0 = arith.constant 0 : i32
    %c0_i32_1 = arith.constant 0 : i32
    return %c0_i32, %c0_i32_0 : i32, i32
  }
  func.func @transform_2(%arg0: i32) -> (i32, i32) {
    %c0_i32 = arith.constant 0 : i32
    %c0_i32_0 = arith.constant 0 : i32
    %c0_i32_1 = arith.constant 0 : i32
    return %c0_i32, %c0_i32_0 : i32, i32
  }
  func.func @transform_3(%arg0: i32) -> (i32, i32) {
    %c0_i32 = arith.constant 0 : i32
    %c0_i32_0 = arith.constant 0 : i32
    %c0_i32_1 = arith.constant 0 : i32
    return %c0_i32, %c0_i32_0 : i32, i32
  }
  func.func @transform_4(%arg0: i32) -> (i32, i32) {
    %c0_i32 = arith.constant 0 : i32
    %c0_i32_0 = arith.constant 0 : i32
    %c0_i32_1 = arith.constant 0 : i32
    return %c0_i32, %c0_i32_0 : i32, i32
  }
  func.func @transform_5(%arg0: i32) -> (i32, i32) {
    %c0_i32 = arith.constant 0 : i32
    %c0_i32_0 = arith.constant 0 : i32
    %c0_i32_1 = arith.constant 0 : i32
    return %c0_i32, %c0_i32_0 : i32, i32
  }
  func.func @transform_6(%arg0: i32) -> (i32, i32) {
    %c0_i32 = arith.constant 0 : i32
    %c0_i32_0 = arith.constant 0 : i32
    %c0_i32_1 = arith.constant 0 : i32
    return %c0_i32, %c0_i32_0 : i32, i32
  }
  func.func @transform_7(%arg0: i32) -> (i32, i32) {
    %c0_i32 = arith.constant 0 : i32
    %c0_i32_0 = arith.constant 0 : i32
    return %arg0, %c0_i32 : i32, i32
  }
}

</mosaic_0001>

<llo_original>
// kernel: tpu_custom_call.1
$region0: #{tpu_custom_call.1}
  #allocation0 [shape = 'u32[]', space=smem, size = 0x4, offset = 0x4, fixed_abs, tag = 'smem constant byte address 0x4 - core index']
  #allocation1 [shape = 'u32[144,128]{1,0:T(1,128)}', space=vmem, size = 0x12000, scoped, tag = 'internal scratch']
  %s0 = inlined_call_operand.vmem [shape: f32[304,16], index: 0, kind: input, shape index: {}]
  %s1 = inlined_call_operand.vmem [shape: f32[16,32], index: 1, kind: input, shape index: {}]
  %s2 = inlined_call_operand.vmem [shape: f32[1,32], index: 2, kind: input, shape index: {}]
  %s3 = inlined_call_operand.vmem [shape: f32[32,32], index: 3, kind: input, shape index: {}]
  %s4 = inlined_call_operand.vmem [shape: f32[1,32], index: 4, kind: input, shape index: {}]
  %s5 = inlined_call_operand.vmem [shape: f32[32,8], index: 5, kind: input, shape index: {}]
  %s6 = inlined_call_operand.vmem [shape: f32[1,8], index: 6, kind: input, shape index: {}]
  %s7 = inlined_call_operand.vmem [shape: f32[304,8], index: 7, kind: output, shape index: {}]
  %s8 = sld [smem:[#allocation0]]
  $region38: #{tpu_custom_call.1} parent=0
    _
  %s10 = ssub.s32 1, %s8
  %s11 = scalar_select 0, %s10, %s8
  // Predicated region
  $region2: #{tpu_custom_call.1} parent=0 // pred_check
    _
  $region3: #{tpu_custom_call.1} parent=0 // pred_check_branch
    %13 = sbr.rel (0) target = $region5
  $region4: #{tpu_custom_call.1} parent=0 // pred_region
    _
  $region5: #{tpu_custom_call.1} parent=0 // pred_fallthru
    _
  // Predicated region
  $region6: #{tpu_custom_call.1} parent=0 // pred_check
    _
  $region7: #{tpu_custom_call.1} parent=0 // pred_check_branch
    %15 = sbr.rel (0) target = $region9
  $region8: #{tpu_custom_call.1} parent=0 // pred_region
    _
  $region9: #{tpu_custom_call.1} parent=0 // pred_fallthru
    _
  // Predicated region
  $region10: #{tpu_custom_call.1} parent=0 // pred_check
    _
  $region11: #{tpu_custom_call.1} parent=0 // pred_check_branch
    %17 = sbr.rel (0) target = $region13
  $region12: #{tpu_custom_call.1} parent=0 // pred_region
    _
  $region13: #{tpu_custom_call.1} parent=0 // pred_fallthru
    _
  // Predicated region
  $region14: #{tpu_custom_call.1} parent=0 // pred_check
    _
  $region15: #{tpu_custom_call.1} parent=0 // pred_check_branch
    %19 = sbr.rel (0) target = $region17
  $region16: #{tpu_custom_call.1} parent=0 // pred_region
    _
  $region17: #{tpu_custom_call.1} parent=0 // pred_fallthru
    _
  // Predicated region
  $region18: #{tpu_custom_call.1} parent=0 // pred_check
    _
  $region19: #{tpu_custom_call.1} parent=0 // pred_check_branch
    %21 = sbr.rel (0) target = $region21
  $region20: #{tpu_custom_call.1} parent=0 // pred_region
    _
  $region21: #{tpu_custom_call.1} parent=0 // pred_fallthru
    _
  // Predicated region
  $region22: #{tpu_custom_call.1} parent=0 // pred_check
    _
  $region23: #{tpu_custom_call.1} parent=0 // pred_check_branch
    %23 = sbr.rel (0) target = $region25
  $region24: #{tpu_custom_call.1} parent=0 // pred_region
    _
  $region25: #{tpu_custom_call.1} parent=0 // pred_fallthru
    _
  // Predicated region
  $region26: #{tpu_custom_call.1} parent=0 // pred_check
    _
  $region27: #{tpu_custom_call.1} parent=0 // pred_check_branch
    %25 = sbr.rel (0) target = $region29
  $region28: #{tpu_custom_call.1} parent=0 // pred_region
    _
  $region29: #{tpu_custom_call.1} parent=0 // pred_fallthru
    _
  %v26 = vld [vmem:[%s0] sm:$0xff]
  %v27 = vld [vmem:[%s0 + $0x8] sm:$0xff]
  %v28 = vld [vmem:[%s0 + $0x10] sm:$0xff]
  %v29 = vld [vmem:[%s0 + $0x18] sm:$0xff]
  %v30 = vld [vmem:[%s0 + $0x20] sm:$0xff]
  %v31 = vld [vmem:[%s0 + $0x28] sm:$0xff]
  %v32 = vld [vmem:[%s0 + $0x30] sm:$0xff]
  %v33 = vld [vmem:[%s0 + $0x38] sm:$0xff]
  %v34 = vld [vmem:[%s0 + $0x40] sm:$0xff]
  %v35 = vld [vmem:[%s0 + $0x48] sm:$0xff]
  %v36 = vld [vmem:[%s0 + $0x50] sm:$0xff]
  %v37 = vld [vmem:[%s0 + $0x58] sm:$0xff]
  %v38 = vld [vmem:[%s0 + $0x60] sm:$0xff]
  %v39 = vld [vmem:[%s0 + $0x68] sm:$0xff]
  %v40 = vld [vmem:[%s0 + $0x70] sm:$0xff]
  %v41 = vld [vmem:[%s0 + $0x78] sm:$0xff]
  %v42 = vld [vmem:[%s0 + $0x80] sm:$0xff]
  %v43 = vld [vmem:[%s0 + $0x88] sm:$0xff]
  %v44 = vld [vmem:[%s0 + $0x90] sm:$0xff]
  %v45 = vld [vmem:[%s0 + $0x98] sm:$0xff]
  %v46 = vld [vmem:[%s0 + $0xa0] sm:$0xff]
  %v47 = vld [vmem:[%s0 + $0xa8] sm:$0xff]
  %v48 = vld [vmem:[%s0 + $0xb0] sm:$0xff]
  %v49 = vld [vmem:[%s0 + $0xb8] sm:$0xff]
  %v50 = vld [vmem:[%s0 + $0xc0] sm:$0xff]
  %v51 = vld [vmem:[%s0 + $0xc8] sm:$0xff]
  %v52 = vld [vmem:[%s0 + $0xd0] sm:$0xff]
  %v53 = vld [vmem:[%s0 + $0xd8] sm:$0xff]
  %v54 = vld [vmem:[%s0 + $0xe0] sm:$0xff]
  %v55 = vld [vmem:[%s0 + $0xe8] sm:$0xff]
  %v56 = vld [vmem:[%s0 + $0xf0] sm:$0xff]
  %v57 = vld [vmem:[%s0 + $0xf8] sm:$0xff]
  %v58 = vld [vmem:[%s0 + $0x100] sm:$0xff]
  %v59 = vld [vmem:[%s0 + $0x108] sm:$0xff]
  %v60 = vld [vmem:[%s0 + $0x110] sm:$0xff]
  %v61 = vld [vmem:[%s0 + $0x118] sm:$0xff]
  %v62 = vld [vmem:[%s0 + $0x120] sm:$0xff]
  %v63 = vld [vmem:[%s0 + $0x128] sm:$0xff]
  %v64 = vld [vmem:[%s1] sm:$0xff]
  %v65 = vld [vmem:[%s1 + $0x8] sm:$0xff]
  %v66 = vld [vmem:[%s2] sm:$0x1]
  %v68 = vlaneseq
  %v69 = vshrl.u32 %v68, 7
  %v70 = vsub.s32 0, %v69
  %v71 = vrot.slane %v66, %v70
  %vm73 = vcmask 130048
  %v75 = vsel %vm73, %v26, 0
  %v78 = vsel %vm73, %v27, 0
  %v81 = vsel %vm73, %v28, 0
  %v84 = vsel %vm73, %v29, 0
  %v87 = vsel %vm73, %v30, 0
  %v90 = vsel %vm73, %v31, 0
  %v93 = vsel %vm73, %v32, 0
  %v96 = vsel %vm73, %v33, 0
  %v99 = vsel %vm73, %v34, 0
  %v102 = vsel %vm73, %v35, 0
  %v105 = vsel %vm73, %v36, 0
  %v108 = vsel %vm73, %v37, 0
  %v111 = vsel %vm73, %v38, 0
  %v114 = vsel %vm73, %v39, 0
  %v117 = vsel %vm73, %v40, 0
  %v120 = vsel %vm73, %v41, 0
  %v123 = vsel %vm73, %v42, 0
  %v126 = vsel %vm73, %v43, 0
  %v129 = vsel %vm73, %v44, 0
  %v132 = vsel %vm73, %v45, 0
  %v135 = vsel %vm73, %v46, 0
  %v138 = vsel %vm73, %v47, 0
  %v141 = vsel %vm73, %v48, 0
  %v144 = vsel %vm73, %v49, 0
  %v147 = vsel %vm73, %v50, 0
  %v150 = vsel %vm73, %v51, 0
  %v153 = vsel %vm73, %v52, 0
  %v156 = vsel %vm73, %v53, 0
  %v159 = vsel %vm73, %v54, 0
  %v162 = vsel %vm73, %v55, 0
  %v165 = vsel %vm73, %v56, 0
  %v168 = vsel %vm73, %v57, 0
  %v171 = vsel %vm73, %v58, 0
  %v174 = vsel %vm73, %v59, 0
  %v177 = vsel %vm73, %v60, 0
  %v180 = vsel %vm73, %v61, 0
  %v183 = vsel %vm73, %v62, 0
  %v186 = vsel %vm73, %v63, 0
  %188 = vmatprep.subr.mxu0 0.0
  %189 = vmatpush1.msra.mxu0 0.0
  %190 = vmatprep.subr.mxu0 0.0
  %191 = vmatpush1.msra.mxu0 0.0
  %192 = vmatprep.subr.mxu0 0.0
  %193 = vmatpush1.msra.mxu0 0.0
  %194 = vmatprep.subr.mxu0 0.0
  %195 = vmatpush1.msra.mxu0 0.0
  %196 = vmatprep.subr.mxu0 0.0
  %197 = vmatpush1.msra.mxu0 0.0
  %198 = vmatprep.subr.mxu0 0.0
  %199 = vmatpush1.msra.mxu0 0.0
  %200 = vmatprep.subr.mxu0 0.0
  %201 = vmatpush1.msra.mxu0 0.0
  %202 = vmatprep.subr.mxu0 0.0
  %203 = vmatpush1.msra.mxu0 0.0
  %204 = vmatprep.subr.mxu0 0.0
  %205 = vmatpush1.msra.mxu0 0.0
  %206 = vmatprep.subr.mxu0 0.0
  %207 = vmatpush1.msra.mxu0 0.0
  %208 = vmatprep.subr.mxu0 0.0
  %209 = vmatpush1.msra.mxu0 0.0
  %210 = vmatprep.subr.mxu0 0.0
  %211 = vmatpush1.msra.mxu0 0.0
  %212 = vmatprep.subr.mxu0 0.0
  %213 = vmatpush1.msra.mxu0 0.0
  %214 = vmatprep.subr.mxu0 0.0
  %215 = vmatpush1.msra.mxu0 0.0
  %216 = vmatprep.subr.mxu0 0.0
  %v217 = vand.u32 %v65, 4294901760
  %218 = vmatpush1.msra.mxu0 %v217
  %219 = vmatprep.subr.mxu0 0.0
  %v220 = vand.u32 %v64, 4294901760
  %221 = vmatpush1.msra.mxu0 %v220
  %222 = vmatprep.subr.mxu0 0.0
  %223 = vmatpush2.msra.mxu0 0.0
  %224 = vmatprep.subr.mxu0 0.0
  %225 = vmatpush2.msra.mxu0 0.0
  %226 = vmatprep.subr.mxu0 0.0
  %227 = vmatpush2.msra.mxu0 0.0
  %228 = vmatprep.subr.mxu0 0.0
  %229 = vmatpush2.msra.mxu0 0.0
  %230 = vmatprep.subr.mxu0 0.0
  %231 = vmatpush2.msra.mxu0 0.0
  %232 = vmatprep.subr.mxu0 0.0
  %233 = vmatpush2.msra.mxu0 0.0
  %234 = vmatprep.subr.mxu0 0.0
  %235 = vmatpush2.msra.mxu0 0.0
  %236 = vmatprep.subr.mxu0 0.0
  %237 = vmatpush2.msra.mxu0 0.0
  %238 = vmatprep.subr.mxu0 0.0
  %239 = vmatpush2.msra.mxu0 0.0
  %240 = vmatprep.subr.mxu0 0.0
  %241 = vmatpush2.msra.mxu0 0.0
  %242 = vmatprep.subr.mxu0 0.0
  %243 = vmatpush2.msra.mxu0 0.0
  %244 = vmatprep.subr.mxu0 0.0
  %245 = vmatpush2.msra.mxu0 0.0
  %246 = vmatprep.subr.mxu0 0.0
  %247 = vmatpush2.msra.mxu0 0.0
  %248 = vmatprep.subr.mxu0 0.0
  %249 = vmatpush2.msra.mxu0 0.0
  %250 = vmatprep.subr.mxu0 0.0
  %251 = vmatpush2.msra.mxu0 0.0
  %252 = vmatprep.subr.mxu0 0.0
  %253 = vmatpush2.msra.mxu0 0.0
  %254 = vmatprep.mubr.f32.mxu0 0.0
  %v255 = vand.u32 %v75, 4294901760
  %v256 = vsub.f32 %v75, %v255
  %v257 = vand.u32 %v256, 4294901760
  %v258 = vsub.f32 %v256, %v257
  %v259 = vand.u32 %v258, 4294901760
  %260 = vmatmul.mubr.f32.gmra.mxu0 %v259
  %v261 = vpop.f32.mrf.mxu0
  %v262 = vadd.f32 %v71, %v261
  %v263 = vpop.f32.mrf.mxu0
  %264 = vmatprep.mubr.f32.mxu0 0.0
  %v265 = vand.u32 %v78, 4294901760
  %v266 = vsub.f32 %v78, %v265
  %v267 = vand.u32 %v266, 4294901760
  %v268 = vsub.f32 %v266, %v267
  %v269 = vand.u32 %v268, 4294901760
  %270 = vmatmul.mubr.f32.gmra.mxu0 %v269
  %v271 = vpop.f32.mrf.mxu0
  %v272 = vadd.f32 %v71, %v271
  %v273 = vpop.f32.mrf.mxu0
  %274 = vmatprep.mubr.f32.mxu0 0.0
  %v275 = vand.u32 %v81, 4294901760
  %v276 = vsub.f32 %v81, %v275
  %v277 = vand.u32 %v276, 4294901760
  %v278 = vsub.f32 %v276, %v277
  %v279 = vand.u32 %v278, 4294901760
  %280 = vmatmul.mubr.f32.gmra.mxu0 %v279
  %v281 = vpop.f32.mrf.mxu0
  %v282 = vadd.f32 %v71, %v281
  %v283 = vpop.f32.mrf.mxu0
  %284 = vmatprep.mubr.f32.mxu0 0.0
  %v285 = vand.u32 %v84, 4294901760
  %v286 = vsub.f32 %v84, %v285
  %v287 = vand.u32 %v286, 4294901760
  %v288 = vsub.f32 %v286, %v287
  %v289 = vand.u32 %v288, 4294901760
  %290 = vmatmul.mubr.f32.gmra.mxu0 %v289
  %v291 = vpop.f32.mrf.mxu0
  %v292 = vadd.f32 %v71, %v291
  %v293 = vpop.f32.mrf.mxu0
  %294 = vmatprep.mubr.f32.mxu0 0.0
  %v295 = vand.u32 %v87, 4294901760
  %v296 = vsub.f32 %v87, %v295
  %v297 = vand.u32 %v296, 4294901760
  %v298 = vsub.f32 %v296, %v297
  %v299 = vand.u32 %v298, 4294901760
  %300 = vmatmul.mubr.f32.gmra.mxu0 %v299
  %v301 = vpop.f32.mrf.mxu0
  %v302 = vadd.f32 %v71, %v301
  %v303 = vpop.f32.mrf.mxu0
  %304 = vmatprep.mubr.f32.mxu0 0.0
  %v305 = vand.u32 %v90, 4294901760
  %v306 = vsub.f32 %v90, %v305
  %v307 = vand.u32 %v306, 4294901760
  %v308 = vsub.f32 %v306, %v307
  %v309 = vand.u32 %v308, 4294901760
  %310 = vmatmul.mubr.f32.gmra.mxu0 %v309
  %v311 = vpop.f32.mrf.mxu0
  %v312 = vadd.f32 %v71, %v311
  %v313 = vpop.f32.mrf.mxu0
  %314 = vmatprep.mubr.f32.mxu0 0.0
  %v315 = vand.u32 %v93, 4294901760
  %v316 = vsub.f32 %v93, %v315
  %v317 = vand.u32 %v316, 4294901760
  %v318 = vsub.f32 %v316, %v317
  %v319 = vand.u32 %v318, 4294901760
  %320 = vmatmul.mubr.f32.gmra.mxu0 %v319
  %v321 = vpop.f32.mrf.mxu0
  %v322 = vadd.f32 %v71, %v321
  %v323 = vpop.f32.mrf.mxu0
  %324 = vmatprep.mubr.f32.mxu0 0.0
  %v325 = vand.u32 %v96, 4294901760
  %v326 = vsub.f32 %v96, %v325
  %v327 = vand.u32 %v326, 4294901760
  %v328 = vsub.f32 %v326, %v327
  %v329 = vand.u32 %v328, 4294901760
  %330 = vmatmul.mubr.f32.gmra.mxu0 %v329
  %v331 = vpop.f32.mrf.mxu0
  %v332 = vadd.f32 %v71, %v331
  %v333 = vpop.f32.mrf.mxu0
  %334 = vmatprep.mubr.f32.mxu0 0.0
  %v335 = vand.u32 %v99, 4294901760
  %v336 = vsub.f32 %v99, %v335
  %v337 = vand.u32 %v336, 4294901760
  %v338 = vsub.f32 %v336, %v337
  %v339 = vand.u32 %v338, 4294901760
  %340 = vmatmul.mubr.f32.gmra.mxu0 %v339
  %v341 = vpop.f32.mrf.mxu0
  %v342 = vadd.f32 %v71, %v341
  %v343 = vpop.f32.mrf.mxu0
  %344 = vmatprep.mubr.f32.mxu0 0.0
  %v345 = vand.u32 %v102, 4294901760
  %v346 = vsub.f32 %v102, %v345
  %v347 = vand.u32 %v346, 4294901760
  %v348 = vsub.f32 %v346, %v347
  %v349 = vand.u32 %v348, 4294901760
  %350 = vmatmul.mubr.f32.gmra.mxu0 %v349
  %v351 = vpop.f32.mrf.mxu0
  %v352 = vadd.f32 %v71, %v351
  %v353 = vpop.f32.mrf.mxu0
  %354 = vmatprep.mubr.f32.mxu0 0.0
  %v355 = vand.u32 %v105, 4294901760
  %v356 = vsub.f32 %v105, %v355
  %v357 = vand.u32 %v356, 4294901760
  %v358 = vsub.f32 %v356, %v357
  %v359 = vand.u32 %v358, 4294901760
  %360 = vmatmul.mubr.f32.gmra.mxu0 %v359
  %v361 = vpop.f32.mrf.mxu0
  %v362 = vadd.f32 %v71, %v361
  %v363 = vpop.f32.mrf.mxu0
  %364 = vmatprep.mubr.f32.mxu0 0.0
  %v365 = vand.u32 %v108, 4294901760
  %v366 = vsub.f32 %v108, %v365
  %v367 = vand.u32 %v366, 4294901760
  %v368 = vsub.f32 %v366, %v367
  %v369 = vand.u32 %v368, 4294901760
  %370 = vmatmul.mubr.f32.gmra.mxu0 %v369
  %v371 = vpop.f32.mrf.mxu0
  %v372 = vadd.f32 %v71, %v371
  %v373 = vpop.f32.mrf.mxu0
  %374 = vmatprep.mubr.f32.mxu0 0.0
  %v375 = vand.u32 %v111, 4294901760
  %v376 = vsub.f32 %v111, %v375
  %v377 = vand.u32 %v376, 4294901760
  %v378 = vsub.f32 %v376, %v377
  %v379 = vand.u32 %v378, 4294901760
  %380 = vmatmul.mubr.f32.gmra.mxu0 %v379
  %v381 = vpop.f32.mrf.mxu0
  %v382 = vadd.f32 %v71, %v381
  %v383 = vpop.f32.mrf.mxu0
  %384 = vmatprep.mubr.f32.mxu0 0.0
  %v385 = vand.u32 %v114, 4294901760
  %v386 = vsub.f32 %v114, %v385
  %v387 = vand.u32 %v386, 4294901760
  %v388 = vsub.f32 %v386, %v387
  %v389 = vand.u32 %v388, 4294901760
  %390 = vmatmul.mubr.f32.gmra.mxu0 %v389
  %v391 = vpop.f32.mrf.mxu0
  %v392 = vadd.f32 %v71, %v391
  %v393 = vpop.f32.mrf.mxu0
  %394 = vmatprep.mubr.f32.mxu0 0.0
  %v395 = vand.u32 %v117, 4294901760
  %v396 = vsub.f32 %v117, %v395
  %v397 = vand.u32 %v396, 4294901760
  %v398 = vsub.f32 %v396, %v397
  %v399 = vand.u32 %v398, 4294901760
  %400 = vmatmul.mubr.f32.gmra.mxu0 %v399
  %v401 = vpop.f32.mrf.mxu0
  %v402 = vadd.f32 %v71, %v401
  %v403 = vpop.f32.mrf.mxu0
  %404 = vmatprep.mubr.f32.mxu0 0.0
  %v405 = vand.u32 %v120, 4294901760
  %v406 = vsub.f32 %v120, %v405
  %v407 = vand.u32 %v406, 4294901760
  %v408 = vsub.f32 %v406, %v407
  %v409 = vand.u32 %v408, 4294901760
  %410 = vmatmul.mubr.f32.gmra.mxu0 %v409
  %v411 = vpop.f32.mrf.mxu0
  %v412 = vadd.f32 %v71, %v411
  %v413 = vpop.f32.mrf.mxu0
  %414 = vmatprep.mubr.f32.mxu0 0.0
  %v415 = vand.u32 %v123, 4294901760
  %v416 = vsub.f32 %v123, %v415
  %v417 = vand.u32 %v416, 4294901760
  %v418 = vsub.f32 %v416, %v417
  %v419 = vand.u32 %v418, 4294901760
  %420 = vmatmul.mubr.f32.gmra.mxu0 %v419
  %v421 = vpop.f32.mrf.mxu0
  %v422 = vadd.f32 %v71, %v421
  %v423 = vpop.f32.mrf.mxu0
  %424 = vmatprep.mubr.f32.mxu0 0.0
  %v425 = vand.u32 %v126, 4294901760
  %v426 = vsub.f32 %v126, %v425
  %v427 = vand.u32 %v426, 4294901760
  %v428 = vsub.f32 %v426, %v427
  %v429 = vand.u32 %v428, 4294901760
  %430 = vmatmul.mubr.f32.gmra.mxu0 %v429
  %v431 = vpop.f32.mrf.mxu0
  %v432 = vadd.f32 %v71, %v431
  %v433 = vpop.f32.mrf.mxu0
  %434 = vmatprep.mubr.f32.mxu0 0.0
  %v435 = vand.u32 %v129, 4294901760
  %v436 = vsub.f32 %v129, %v435
  %v437 = vand.u32 %v436, 4294901760
  %v438 = vsub.f32 %v436, %v437
  %v439 = vand.u32 %v438, 4294901760
  %440 = vmatmul.mubr.f32.gmra.mxu0 %v439
  %v441 = vpop.f32.mrf.mxu0
  %v442 = vadd.f32 %v71, %v441
  %v443 = vpop.f32.mrf.mxu0
  %444 = vmatprep.mubr.f32.mxu0 0.0
  %v445 = vand.u32 %v132, 4294901760
  %v446 = vsub.f32 %v132, %v445
  %v447 = vand.u32 %v446, 4294901760
  %v448 = vsub.f32 %v446, %v447
  %v449 = vand.u32 %v448, 4294901760
  %450 = vmatmul.mubr.f32.gmra.mxu0 %v449
  %v451 = vpop.f32.mrf.mxu0
  %v452 = vadd.f32 %v71, %v451
  %v453 = vpop.f32.mrf.mxu0
  %454 = vmatprep.mubr.f32.mxu0 0.0
  %v455 = vand.u32 %v135, 4294901760
  %v456 = vsub.f32 %v135, %v455
  %v457 = vand.u32 %v456, 4294901760
  %v458 = vsub.f32 %v456, %v457
  %v459 = vand.u32 %v458, 4294901760
  %460 = vmatmul.mubr.f32.gmra.mxu0 %v459
  %v461 = vpop.f32.mrf.mxu0
  %v462 = vadd.f32 %v71, %v461
  %v463 = vpop.f32.mrf.mxu0
  %464 = vmatprep.mubr.f32.mxu0 0.0
  %v465 = vand.u32 %v138, 4294901760
  %v466 = vsub.f32 %v138, %v465
  %v467 = vand.u32 %v466, 4294901760
  %v468 = vsub.f32 %v466, %v467
  %v469 = vand.u32 %v468, 4294901760
  %470 = vmatmul.mubr.f32.gmra.mxu0 %v469
  %v471 = vpop.f32.mrf.mxu0
  %v472 = vadd.f32 %v71, %v471
  %v473 = vpop.f32.mrf.mxu0
  %474 = vmatprep.mubr.f32.mxu0 0.0
  %v475 = vand.u32 %v141, 4294901760
  %v476 = vsub.f32 %v141, %v475
  %v477 = vand.u32 %v476, 4294901760
  %v478 = vsub.f32 %v476, %v477
  %v479 = vand.u32 %v478, 4294901760
  %480 = vmatmul.mubr.f32.gmra.mxu0 %v479
  %v481 = vpop.f32.mrf.mxu0
  %v482 = vadd.f32 %v71, %v481
  %v483 = vpop.f32.mrf.mxu0
  %484 = vmatprep.mubr.f32.mxu0 0.0
  %v485 = vand.u32 %v144, 4294901760
  %v486 = vsub.f32 %v144, %v485
  %v487 = vand.u32 %v486, 4294901760
  %v488 = vsub.f32 %v486, %v487
  %v489 = vand.u32 %v488, 4294901760
  %490 = vmatmul.mubr.f32.gmra.mxu0 %v489
  %v491 = vpop.f32.mrf.mxu0
  %v492 = vadd.f32 %v71, %v491
  %v493 = vpop.f32.mrf.mxu0
  %494 = vmatprep.mubr.f32.mxu0 0.0
  %v495 = vand.u32 %v147, 4294901760
  %v496 = vsub.f32 %v147, %v495
  %v497 = vand.u32 %v496, 4294901760
  %v498 = vsub.f32 %v496, %v497
  %v499 = vand.u32 %v498, 4294901760
  %500 = vmatmul.mubr.f32.gmra.mxu0 %v499
  %v501 = vpop.f32.mrf.mxu0
  %v502 = vadd.f32 %v71, %v501
  %v503 = vpop.f32.mrf.mxu0
  %504 = vmatprep.mubr.f32.mxu0 0.0
  %v505 = vand.u32 %v150, 4294901760
  %v506 = vsub.f32 %v150, %v505
  %v507 = vand.u32 %v506, 4294901760
  %v508 = vsub.f32 %v506, %v507
  %v509 = vand.u32 %v508, 4294901760
  %510 = vmatmul.mubr.f32.gmra.mxu0 %v509
  %v511 = vpop.f32.mrf.mxu0
  %v512 = vadd.f32 %v71, %v511
  %v513 = vpop.f32.mrf.mxu0
  %514 = vmatprep.mubr.f32.mxu0 0.0
  %v515 = vand.u32 %v153, 4294901760
  %v516 = vsub.f32 %v153, %v515
  %v517 = vand.u32 %v516, 4294901760
  %v518 = vsub.f32 %v516, %v517
  %v519 = vand.u32 %v518, 4294901760
  %520 = vmatmul.mubr.f32.gmra.mxu0 %v519
  %v521 = vpop.f32.mrf.mxu0
  %v522 = vadd.f32 %v71, %v521
  %v523 = vpop.f32.mrf.mxu0
  %524 = vmatprep.mubr.f32.mxu0 0.0
  %v525 = vand.u32 %v156, 4294901760
  %v526 = vsub.f32 %v156, %v525
  %v527 = vand.u32 %v526, 4294901760
  %v528 = vsub.f32 %v526, %v527
  %v529 = vand.u32 %v528, 4294901760
  %530 = vmatmul.mubr.f32.gmra.mxu0 %v529
  %v531 = vpop.f32.mrf.mxu0
  %v532 = vadd.f32 %v71, %v531
  %v533 = vpop.f32.mrf.mxu0
  %534 = vmatprep.mubr.f32.mxu0 0.0
  %v535 = vand.u32 %v159, 4294901760
  %v536 = vsub.f32 %v159, %v535
  %v537 = vand.u32 %v536, 4294901760
  %v538 = vsub.f32 %v536, %v537
  %v539 = vand.u32 %v538, 4294901760
  %540 = vmatmul.mubr.f32.gmra.mxu0 %v539
  %v541 = vpop.f32.mrf.mxu0
  %v542 = vadd.f32 %v71, %v541
  %v543 = vpop.f32.mrf.mxu0
  %544 = vmatprep.mubr.f32.mxu0 0.0
  %v545 = vand.u32 %v162, 4294901760
  %v546 = vsub.f32 %v162, %v545
  %v547 = vand.u32 %v546, 4294901760
  %v548 = vsub.f32 %v546, %v547
  %v549 = vand.u32 %v548, 4294901760
  %550 = vmatmul.mubr.f32.gmra.mxu0 %v549
  %v551 = vpop.f32.mrf.mxu0
  %v552 = vadd.f32 %v71, %v551
  %v553 = vpop.f32.mrf.mxu0
  %554 = vmatprep.mubr.f32.mxu0 0.0
  %v555 = vand.u32 %v165, 4294901760
  %v556 = vsub.f32 %v165, %v555
  %v557 = vand.u32 %v556, 4294901760
  %v558 = vsub.f32 %v556, %v557
  %v559 = vand.u32 %v558, 4294901760
  %560 = vmatmul.mubr.f32.gmra.mxu0 %v559
  %v561 = vpop.f32.mrf.mxu0
  %v562 = vadd.f32 %v71, %v561
  %v563 = vpop.f32.mrf.mxu0
  %564 = vmatprep.mubr.f32.mxu0 0.0
  %v565 = vand.u32 %v168, 4294901760
  %v566 = vsub.f32 %v168, %v565
  %v567 = vand.u32 %v566, 4294901760
  %v568 = vsub.f32 %v566, %v567
  %v569 = vand.u32 %v568, 4294901760
  %570 = vmatmul.mubr.f32.gmra.mxu0 %v569
  %v571 = vpop.f32.mrf.mxu0
  %v572 = vadd.f32 %v71, %v571
  %v573 = vpop.f32.mrf.mxu0
  %574 = vmatprep.mubr.f32.mxu0 0.0
  %v575 = vand.u32 %v171, 4294901760
  %v576 = vsub.f32 %v171, %v575
  %v577 = vand.u32 %v576, 4294901760
  %v578 = vsub.f32 %v576, %v577
  %v579 = vand.u32 %v578, 4294901760
  %580 = vmatmul.mubr.f32.gmra.mxu0 %v579
  %v581 = vpop.f32.mrf.mxu0
  %v582 = vadd.f32 %v71, %v581
  %v583 = vpop.f32.mrf.mxu0
  %584 = vmatprep.mubr.f32.mxu0 0.0
  %v585 = vand.u32 %v174, 4294901760
  %v586 = vsub.f32 %v174, %v585
  %v587 = vand.u32 %v586, 4294901760
  %v588 = vsub.f32 %v586, %v587
  %v589 = vand.u32 %v588, 4294901760
  %590 = vmatmul.mubr.f32.gmra.mxu0 %v589
  %v591 = vpop.f32.mrf.mxu0
  %v592 = vadd.f32 %v71, %v591
  %v593 = vpop.f32.mrf.mxu0
  %594 = vmatprep.mubr.f32.mxu0 0.0
  %v595 = vand.u32 %v177, 4294901760
  %v596 = vsub.f32 %v177, %v595
  %v597 = vand.u32 %v596, 4294901760
  %v598 = vsub.f32 %v596, %v597
  %v599 = vand.u32 %v598, 4294901760
  %600 = vmatmul.mubr.f32.gmra.mxu0 %v599
  %v601 = vpop.f32.mrf.mxu0
  %v602 = vadd.f32 %v71, %v601
  %v603 = vpop.f32.mrf.mxu0
  %604 = vmatprep.mubr.f32.mxu0 0.0
  %v605 = vand.u32 %v180, 4294901760
  %v606 = vsub.f32 %v180, %v605
  %v607 = vand.u32 %v606, 4294901760
  %v608 = vsub.f32 %v606, %v607
  %v609 = vand.u32 %v608, 4294901760
  %610 = vmatmul.mubr.f32.gmra.mxu0 %v609
  %v611 = vpop.f32.mrf.mxu0
  %v612 = vadd.f32 %v71, %v611
  %v613 = vpop.f32.mrf.mxu0
  %614 = vmatprep.mubr.f32.mxu0 0.0
  %v615 = vand.u32 %v183, 4294901760
  %v616 = vsub.f32 %v183, %v615
  %v617 = vand.u32 %v616, 4294901760
  %v618 = vsub.f32 %v616, %v617
  %v619 = vand.u32 %v618, 4294901760
  %620 = vmatmul.mubr.f32.gmra.mxu0 %v619
  %v621 = vpop.f32.mrf.mxu0
  %v622 = vadd.f32 %v71, %v621
  %v623 = vpop.f32.mrf.mxu0
  %624 = vmatprep.mubr.f32.mxu0 0.0
  %v625 = vand.u32 %v186, 4294901760
  %v626 = vsub.f32 %v186, %v625
  %v627 = vand.u32 %v626, 4294901760
  %v628 = vsub.f32 %v626, %v627
  %v629 = vand.u32 %v628, 4294901760
  %630 = vmatmul.mubr.f32.gmra.mxu0 %v629
  %v631 = vpop.f32.mrf.mxu0
  %v632 = vadd.f32 %v71, %v631
  %v633 = vpop.f32.mrf.mxu0
  %634 = vdwg.mxu0
  %635 = vmatprep.subr.mxu0 0.0
  %636 = vmatpush1.msra.mxu0 0.0
  %637 = vmatprep.subr.mxu0 0.0
  %638 = vmatpush1.msra.mxu0 0.0
  %639 = vmatprep.subr.mxu0 0.0
  %640 = vmatpush1.msra.mxu0 0.0
  %641 = vmatprep.subr.mxu0 0.0
  %642 = vmatpush1.msra.mxu0 0.0
  %643 = vmatprep.subr.mxu0 0.0
  %644 = vmatpush1.msra.mxu0 0.0
  %645 = vmatprep.subr.mxu0 0.0
  %646 = vmatpush1.msra.mxu0 0.0
  %647 = vmatprep.subr.mxu0 0.0
  %648 = vmatpush1.msra.mxu0 0.0
  %649 = vmatprep.subr.mxu0 0.0
  %650 = vmatpush1.msra.mxu0 0.0
  %651 = vmatprep.subr.mxu0 0.0
  %652 = vmatpush1.msra.mxu0 0.0
  %653 = vmatprep.subr.mxu0 0.0
  %654 = vmatpush1.msra.mxu0 0.0
  %655 = vmatprep.subr.mxu0 0.0
  %656 = vmatpush1.msra.mxu0 0.0
  %657 = vmatprep.subr.mxu0 0.0
  %658 = vmatpush1.msra.mxu0 0.0
  %659 = vmatprep.subr.mxu0 0.0
  %660 = vmatpush1.msra.mxu0 0.0
  %661 = vmatprep.subr.mxu0 0.0
  %662 = vmatpush1.msra.mxu0 0.0
  %663 = vmatprep.subr.mxu0 0.0
  %v664 = vand.u32 %v65, 4294901760
  %v665 = vsub.f32 %v65, %v664
  %v666 = vand.u32 %v665, 4294901760
  %v667 = vsub.f32 %v665, %v666
  %v668 = vand.u32 %v667, 4294901760
  %669 = vmatpush1.msra.mxu0 %v668
  %670 = vmatprep.subr.mxu0 0.0
  %v671 = vand.u32 %v64, 4294901760
  %v672 = vsub.f32 %v64, %v671
  %v673 = vand.u32 %v672, 4294901760
  %v674 = vsub.f32 %v672, %v673
  %v675 = vand.u32 %v674, 4294901760
  %676 = vmatpush1.msra.mxu0 %v675
  %677 = vmatprep.subr.mxu0 0.0
  %678 = vmatpush2.msra.mxu0 0.0
  %679 = vmatprep.subr.mxu0 0.0
  %680 = vmatpush2.msra.mxu0 0.0
  %681 = vmatprep.subr.mxu0 0.0
  %682 = vmatpush2.msra.mxu0 0.0
  %683 = vmatprep.subr.mxu0 0.0
  %684 = vmatpush2.msra.mxu0 0.0
  %685 = vmatprep.subr.mxu0 0.0
  %686 = vmatpush2.msra.mxu0 0.0
  %687 = vmatprep.subr.mxu0 0.0
  %688 = vmatpush2.msra.mxu0 0.0
  %689 = vmatprep.subr.mxu0 0.0
  %690 = vmatpush2.msra.mxu0 0.0
  %691 = vmatprep.subr.mxu0 0.0
  %692 = vmatpush2.msra.mxu0 0.0
  %693 = vmatprep.subr.mxu0 0.0
  %694 = vmatpush2.msra.mxu0 0.0
  %695 = vmatprep.subr.mxu0 0.0
  %696 = vmatpush2.msra.mxu0 0.0
  %697 = vmatprep.subr.mxu0 0.0
  %698 = vmatpush2.msra.mxu0 0.0
  %699 = vmatprep.subr.mxu0 0.0
  %700 = vmatpush2.msra.mxu0 0.0
  %701 = vmatprep.subr.mxu0 0.0
  %702 = vmatpush2.msra.mxu0 0.0
  %703 = vmatprep.subr.mxu0 0.0
  %704 = vmatpush2.msra.mxu0 0.0
  %705 = vmatprep.subr.mxu0 0.0
  %706 = vmatpush2.msra.mxu0 0.0
  %707 = vmatprep.subr.mxu0 0.0
  %708 = vmatpush2.msra.mxu0 0.0
  %709 = vmatprep.mubr.f32.mxu0 0.0
  %v710 = vand.u32 %v75, 4294901760
  %711 = vmatmul.mubr.f32.gmra.mxu0 %v710
  %v712 = vpop.f32.mrf.mxu0
  %v713 = vadd.f32 %v262, %v712
  %v714 = vpop.f32.mrf.mxu0
  %715 = vmatprep.mubr.f32.mxu0 0.0
  %v716 = vand.u32 %v78, 4294901760
  %717 = vmatmul.mubr.f32.gmra.mxu0 %v716
  %v718 = vpop.f32.mrf.mxu0
  %v719 = vadd.f32 %v272, %v718
  %v720 = vpop.f32.mrf.mxu0
  %721 = vmatprep.mubr.f32.mxu0 0.0
  %v722 = vand.u32 %v81, 4294901760
  %723 = vmatmul.mubr.f32.gmra.mxu0 %v722
  %v724 = vpop.f32.mrf.mxu0
  %v725 = vadd.f32 %v282, %v724
  %v726 = vpop.f32.mrf.mxu0
  %727 = vmatprep.mubr.f32.mxu0 0.0
  %v728 = vand.u32 %v84, 4294901760
  %729 = vmatmul.mubr.f32.gmra.mxu0 %v728
  %v730 = vpop.f32.mrf.mxu0
  %v731 = vadd.f32 %v292, %v730
  %v732 = vpop.f32.mrf.mxu0
  %733 = vmatprep.mubr.f32.mxu0 0.0
  %v734 = vand.u32 %v87, 4294901760
  %735 = vmatmul.mubr.f32.gmra.mxu0 %v734
  %v736 = vpop.f32.mrf.mxu0
  %v737 = vadd.f32 %v302, %v736
  %v738 = vpop.f32.mrf.mxu0
  %739 = vmatprep.mubr.f32.mxu0 0.0
  %v740 = vand.u32 %v90, 4294901760
  %741 = vmatmul.mubr.f32.gmra.mxu0 %v740
  %v742 = vpop.f32.mrf.mxu0
  %v743 = vadd.f32 %v312, %v742
  %v744 = vpop.f32.mrf.mxu0
  %745 = vmatprep.mubr.f32.mxu0 0.0
  %v746 = vand.u32 %v93, 4294901760
  %747 = vmatmul.mubr.f32.gmra.mxu0 %v746
  %v748 = vpop.f32.mrf.mxu0
  %v749 = vadd.f32 %v322, %v748
  %v750 = vpop.f32.mrf.mxu0
  %751 = vmatprep.mubr.f32.mxu0 0.0
  %v752 = vand.u32 %v96, 4294901760
  %753 = vmatmul.mubr.f32.gmra.mxu0 %v752
  %v754 = vpop.f32.mrf.mxu0
  %v755 = vadd.f32 %v332, %v754
  %v756 = vpop.f32.mrf.mxu0
  %757 = vmatprep.mubr.f32.mxu0 0.0
  %v758 = vand.u32 %v99, 4294901760
  %759 = vmatmul.mubr.f32.gmra.mxu0 %v758
  %v760 = vpop.f32.mrf.mxu0
  %v761 = vadd.f32 %v342, %v760
  %v762 = vpop.f32.mrf.mxu0
  %763 = vmatprep.mubr.f32.mxu0 0.0
  %v764 = vand.u32 %v102, 4294901760
  %765 = vmatmul.mubr.f32.gmra.mxu0 %v764
  %v766 = vpop.f32.mrf.mxu0
  %v767 = vadd.f32 %v352, %v766
  %v768 = vpop.f32.mrf.mxu0
  %769 = vmatprep.mubr.f32.mxu0 0.0
  %v770 = vand.u32 %v105, 4294901760
  %771 = vmatmul.mubr.f32.gmra.mxu0 %v770
  %v772 = vpop.f32.mrf.mxu0
  %v773 = vadd.f32 %v362, %v772
  %v774 = vpop.f32.mrf.mxu0
  %775 = vmatprep.mubr.f32.mxu0 0.0
  %v776 = vand.u32 %v108, 4294901760
  %777 = vmatmul.mubr.f32.gmra.mxu0 %v776
  %v778 = vpop.f32.mrf.mxu0
  %v779 = vadd.f32 %v372, %v778
  %v780 = vpop.f32.mrf.mxu0
  %781 = vmatprep.mubr.f32.mxu0 0.0
  %v782 = vand.u32 %v111, 4294901760
  %783 = vmatmul.mubr.f32.gmra.mxu0 %v782
  %v784 = vpop.f32.mrf.mxu0
  %v785 = vadd.f32 %v382, %v784
  %v786 = vpop.f32.mrf.mxu0
  %787 = vmatprep.mubr.f32.mxu0 0.0
  %v788 = vand.u32 %v114, 4294901760
  %789 = vmatmul.mubr.f32.gmra.mxu0 %v788
  %v790 = vpop.f32.mrf.mxu0
  %v791 = vadd.f32 %v392, %v790
  %v792 = vpop.f32.mrf.mxu0
  %793 = vmatprep.mubr.f32.mxu0 0.0
  %v794 = vand.u32 %v117, 4294901760
  %795 = vmatmul.mubr.f32.gmra.mxu0 %v794
  %v796 = vpop.f32.mrf.mxu0
  %v797 = vadd.f32 %v402, %v796
  %v798 = vpop.f32.mrf.mxu0
  %799 = vmatprep.mubr.f32.mxu0 0.0
  %v800 = vand.u32 %v120, 4294901760
  %801 = vmatmul.mubr.f32.gmra.mxu0 %v800
  %v802 = vpop.f32.mrf.mxu0
  %v803 = vadd.f32 %v412, %v802
  %v804 = vpop.f32.mrf.mxu0
  %805 = vmatprep.mubr.f32.mxu0 0.0
  %v806 = vand.u32 %v123, 4294901760
  %807 = vmatmul.mubr.f32.gmra.mxu0 %v806
  %v808 = vpop.f32.mrf.mxu0
  %v809 = vadd.f32 %v422, %v808
  %v810 = vpop.f32.mrf.mxu0
  %811 = vmatprep.mubr.f32.mxu0 0.0
  %v812 = vand.u32 %v126, 4294901760
  %813 = vmatmul.mubr.f32.gmra.mxu0 %v812
  %v814 = vpop.f32.mrf.mxu0
  %v815 = vadd.f32 %v432, %v814
  %v816 = vpop.f32.mrf.mxu0
  %817 = vmatprep.mubr.f32.mxu0 0.0
  %v818 = vand.u32 %v129, 4294901760
  %819 = vmatmul.mubr.f32.gmra.mxu0 %v818
  %v820 = vpop.f32.mrf.mxu0
  %v821 = vadd.f32 %v442, %v820
  %v822 = vpop.f32.mrf.mxu0
  %823 = vmatprep.mubr.f32.mxu0 0.0
  %v824 = vand.u32 %v132, 4294901760
  %825 = vmatmul.mubr.f32.gmra.mxu0 %v824
  %v826 = vpop.f32.mrf.mxu0
  %v827 = vadd.f32 %v452, %v826
  %v828 = vpop.f32.mrf.mxu0
  %829 = vmatprep.mubr.f32.mxu0 0.0
  %v830 = vand.u32 %v135, 4294901760
  %831 = vmatmul.mubr.f32.gmra.mxu0 %v830
  %v832 = vpop.f32.mrf.mxu0
  %v833 = vadd.f32 %v462, %v832
  %v834 = vpop.f32.mrf.mxu0
  %835 = vmatprep.mubr.f32.mxu0 0.0
  %v836 = vand.u32 %v138, 4294901760
  %837 = vmatmul.mubr.f32.gmra.mxu0 %v836
  %v838 = vpop.f32.mrf.mxu0
  %v839 = vadd.f32 %v472, %v838
  %v840 = vpop.f32.mrf.mxu0
  %841 = vmatprep.mubr.f32.mxu0 0.0
  %v842 = vand.u32 %v141, 4294901760
  %843 = vmatmul.mubr.f32.gmra.mxu0 %v842
  %v844 = vpop.f32.mrf.mxu0
  %v845 = vadd.f32 %v482, %v844
  %v846 = vpop.f32.mrf.mxu0
  %847 = vmatprep.mubr.f32.mxu0 0.0
  %v848 = vand.u32 %v144, 4294901760
  %849 = vmatmul.mubr.f32.gmra.mxu0 %v848
  %v850 = vpop.f32.mrf.mxu0
  %v851 = vadd.f32 %v492, %v850
  %v852 = vpop.f32.mrf.mxu0
  %853 = vmatprep.mubr.f32.mxu0 0.0
  %v854 = vand.u32 %v147, 4294901760
  %855 = vmatmul.mubr.f32.gmra.mxu0 %v854
  %v856 = vpop.f32.mrf.mxu0
  %v857 = vadd.f32 %v502, %v856
  %v858 = vpop.f32.mrf.mxu0
  %859 = vmatprep.mubr.f32.mxu0 0.0
  %v860 = vand.u32 %v150, 4294901760
  %861 = vmatmul.mubr.f32.gmra.mxu0 %v860
  %v862 = vpop.f32.mrf.mxu0
  %v863 = vadd.f32 %v512, %v862
  %v864 = vpop.f32.mrf.mxu0
  %865 = vmatprep.mubr.f32.mxu0 0.0
  %v866 = vand.u32 %v153, 4294901760
  %867 = vmatmul.mubr.f32.gmra.mxu0 %v866
  %v868 = vpop.f32.mrf.mxu0
  %v869 = vadd.f32 %v522, %v868
  %v870 = vpop.f32.mrf.mxu0
  %871 = vmatprep.mubr.f32.mxu0 0.0
  %v872 = vand.u32 %v156, 4294901760
  %873 = vmatmul.mubr.f32.gmra.mxu0 %v872
  %v874 = vpop.f32.mrf.mxu0
  %v875 = vadd.f32 %v532, %v874
  %v876 = vpop.f32.mrf.mxu0
  %877 = vmatprep.mubr.f32.mxu0 0.0
  %v878 = vand.u32 %v159, 4294901760
  %879 = vmatmul.mubr.f32.gmra.mxu0 %v878
  %v880 = vpop.f32.mrf.mxu0
  %v881 = vadd.f32 %v542, %v880
  %v882 = vpop.f32.mrf.mxu0
  %883 = vmatprep.mubr.f32.mxu0 0.0
  %v884 = vand.u32 %v162, 4294901760
  %885 = vmatmul.mubr.f32.gmra.mxu0 %v884
  %v886 = vpop.f32.mrf.mxu0
  %v887 = vadd.f32 %v552, %v886
  %v888 = vpop.f32.mrf.mxu0
  %889 = vmatprep.mubr.f32.mxu0 0.0
  %v890 = vand.u32 %v165, 4294901760
  %891 = vmatmul.mubr.f32.gmra.mxu0 %v890
  %v892 = vpop.f32.mrf.mxu0
  %v893 = vadd.f32 %v562, %v892
  %v894 = vpop.f32.mrf.mxu0
  %895 = vmatprep.mubr.f32.mxu0 0.0
  %v896 = vand.u32 %v168, 4294901760
  %897 = vmatmul.mubr.f32.gmra.mxu0 %v896
  %v898 = vpop.f32.mrf.mxu0
  %v899 = vadd.f32 %v572, %v898
  %v900 = vpop.f32.mrf.mxu0
  %901 = vmatprep.mubr.f32.mxu0 0.0
  %v902 = vand.u32 %v171, 4294901760
  %903 = vmatmul.mubr.f32.gmra.mxu0 %v902
  %v904 = vpop.f32.mrf.mxu0
  %v905 = vadd.f32 %v582, %v904
  %v906 = vpop.f32.mrf.mxu0
  %907 = vmatprep.mubr.f32.mxu0 0.0
  %v908 = vand.u32 %v174, 4294901760
  %909 = vmatmul.mubr.f32.gmra.mxu0 %v908
  %v910 = vpop.f32.mrf.mxu0
  %v911 = vadd.f32 %v592, %v910
  %v912 = vpop.f32.mrf.mxu0
  %913 = vmatprep.mubr.f32.mxu0 0.0
  %v914 = vand.u32 %v177, 4294901760
  %915 = vmatmul.mubr.f32.gmra.mxu0 %v914
  %v916 = vpop.f32.mrf.mxu0
  %v917 = vadd.f32 %v602, %v916
  %v918 = vpop.f32.mrf.mxu0
  %919 = vmatprep.mubr.f32.mxu0 0.0
  %v920 = vand.u32 %v180, 4294901760
  %921 = vmatmul.mubr.f32.gmra.mxu0 %v920
  %v922 = vpop.f32.mrf.mxu0
  %v923 = vadd.f32 %v612, %v922
  %v924 = vpop.f32.mrf.mxu0
  %925 = vmatprep.mubr.f32.mxu0 0.0
  %v926 = vand.u32 %v183, 4294901760
  %927 = vmatmul.mubr.f32.gmra.mxu0 %v926
  %v928 = vpop.f32.mrf.mxu0
  %v929 = vadd.f32 %v622, %v928
  %v930 = vpop.f32.mrf.mxu0
  %931 = vmatprep.mubr.f32.mxu0 0.0
  %v932 = vand.u32 %v186, 4294901760
  %933 = vmatmul.mubr.f32.gmra.mxu0 %v932
  %v934 = vpop.f32.mrf.mxu0
  %v935 = vadd.f32 %v632, %v934
  %v936 = vpop.f32.mrf.mxu0
  %937 = vdwg.mxu0
  %938 = vmatprep.subr.mxu0 0.0
  %939 = vmatpush1.msra.mxu0 0.0
  %940 = vmatprep.subr.mxu0 0.0
  %941 = vmatpush1.msra.mxu0 0.0
  %942 = vmatprep.subr.mxu0 0.0
  %943 = vmatpush1.msra.mxu0 0.0
  %944 = vmatprep.subr.mxu0 0.0
  %945 = vmatpush1.msra.mxu0 0.0
  %946 = vmatprep.subr.mxu0 0.0
  %947 = vmatpush1.msra.mxu0 0.0
  %948 = vmatprep.subr.mxu0 0.0
  %949 = vmatpush1.msra.mxu0 0.0
  %950 = vmatprep.subr.mxu0 0.0
  %951 = vmatpush1.msra.mxu0 0.0
  %952 = vmatprep.subr.mxu0 0.0
  %953 = vmatpush1.msra.mxu0 0.0
  %954 = vmatprep.subr.mxu0 0.0
  %955 = vmatpush1.msra.mxu0 0.0
  %956 = vmatprep.subr.mxu0 0.0
  %957 = vmatpush1.msra.mxu0 0.0
  %958 = vmatprep.subr.mxu0 0.0
  %959 = vmatpush1.msra.mxu0 0.0
  %960 = vmatprep.subr.mxu0 0.0
  %961 = vmatpush1.msra.mxu0 0.0
  %962 = vmatprep.subr.mxu0 0.0
  %963 = vmatpush1.msra.mxu0 0.0
  %964 = vmatprep.subr.mxu0 0.0
  %965 = vmatpush1.msra.mxu0 0.0
  %966 = vmatprep.subr.mxu0 0.0
  %v967 = vand.u32 %v65, 4294901760
  %v968 = vsub.f32 %v65, %v967
  %969 = vmatpush1.msra.mxu0 %v968
  %970 = vmatprep.subr.mxu0 0.0
  %v971 = vand.u32 %v64, 4294901760
  %v972 = vsub.f32 %v64, %v971
  %973 = vmatpush1.msra.mxu0 %v972
  %974 = vmatprep.subr.mxu0 0.0
  %975 = vmatpush2.msra.mxu0 0.0
  %976 = vmatprep.subr.mxu0 0.0
  %977 = vmatpush2.msra.mxu0 0.0
  %978 = vmatprep.subr.mxu0 0.0
  %979 = vmatpush2.msra.mxu0 0.0
  %980 = vmatprep.subr.mxu0 0.0
  %981 = vmatpush2.msra.mxu0 0.0
  %982 = vmatprep.subr.mxu0 0.0
  %983 = vmatpush2.msra.mxu0 0.0
  %984 = vmatprep.subr.mxu0 0.0
  %985 = vmatpush2.msra.mxu0 0.0
  %986 = vmatprep.subr.mxu0 0.0
  %987 = vmatpush2.msra.mxu0 0.0
  %988 = vmatprep.subr.mxu0 0.0
  %989 = vmatpush2.msra.mxu0 0.0
  %990 = vmatprep.subr.mxu0 0.0
  %991 = vmatpush2.msra.mxu0 0.0
  %992 = vmatprep.subr.mxu0 0.0
  %993 = vmatpush2.msra.mxu0 0.0
  %994 = vmatprep.subr.mxu0 0.0
  %995 = vmatpush2.msra.mxu0 0.0
  %996 = vmatprep.subr.mxu0 0.0
  %997 = vmatpush2.msra.mxu0 0.0
  %998 = vmatprep.subr.mxu0 0.0
  %999 = vmatpush2.msra.mxu0 0.0
  %1000 = vmatprep.subr.mxu0 0.0
  %1001 = vmatpush2.msra.mxu0 0.0
  %1002 = vmatprep.subr.mxu0 0.0
  %1003 = vmatpush2.msra.mxu0 0.0
  %1004 = vmatprep.subr.mxu0 0.0
  %1005 = vmatpush2.msra.mxu0 0.0
  %1006 = vmatprep.mubr.f32.mxu0 0.0
  %v1007 = vand.u32 %v75, 4294901760
  %v1008 = vsub.f32 %v75, %v1007
  %1009 = vmatmul.mubr.f32.gmra.mxu0 %v1008
  %v1010 = vpop.f32.mrf.mxu0
  %v1011 = vadd.f32 %v713, %v1010
  %v1012 = vpop.f32.mrf.mxu0
  %1013 = vmatprep.mubr.f32.mxu0 0.0
  %v1014 = vand.u32 %v78, 4294901760
  %v1015 = vsub.f32 %v78, %v1014
  %1016 = vmatmul.mubr.f32.gmra.mxu0 %v1015
  %v1017 = vpop.f32.mrf.mxu0
  %v1018 = vadd.f32 %v719, %v1017
  %v1019 = vpop.f32.mrf.mxu0
  %1020 = vmatprep.mubr.f32.mxu0 0.0
  %v1021 = vand.u32 %v81, 4294901760
  %v1022 = vsub.f32 %v81, %v1021
  %1023 = vmatmul.mubr.f32.gmra.mxu0 %v1022
  %v1024 = vpop.f32.mrf.mxu0
  %v1025 = vadd.f32 %v725, %v1024
  %v1026 = vpop.f32.mrf.mxu0
  %1027 = vmatprep.mubr.f32.mxu0 0.0
  %v1028 = vand.u32 %v84, 4294901760
  %v1029 = vsub.f32 %v84, %v1028
  %1030 = vmatmul.mubr.f32.gmra.mxu0 %v1029
  %v1031 = vpop.f32.mrf.mxu0
  %v1032 = vadd.f32 %v731, %v1031
  %v1033 = vpop.f32.mrf.mxu0
  %1034 = vmatprep.mubr.f32.mxu0 0.0
  %v1035 = vand.u32 %v87, 4294901760
  %v1036 = vsub.f32 %v87, %v1035
  %1037 = vmatmul.mubr.f32.gmra.mxu0 %v1036
  %v1038 = vpop.f32.mrf.mxu0
  %v1039 = vadd.f32 %v737, %v1038
  %v1040 = vpop.f32.mrf.mxu0
  %1041 = vmatprep.mubr.f32.mxu0 0.0
  %v1042 = vand.u32 %v90, 4294901760
  %v1043 = vsub.f32 %v90, %v1042
  %1044 = vmatmul.mubr.f32.gmra.mxu0 %v1043
  %v1045 = vpop.f32.mrf.mxu0
  %v1046 = vadd.f32 %v743, %v1045
  %v1047 = vpop.f32.mrf.mxu0
  %1048 = vmatprep.mubr.f32.mxu0 0.0
  %v1049 = vand.u32 %v93, 4294901760
  %v1050 = vsub.f32 %v93, %v1049
  %1051 = vmatmul.mubr.f32.gmra.mxu0 %v1050
  %v1052 = vpop.f32.mrf.mxu0
  %v1053 = vadd.f32 %v749, %v1052
  %v1054 = vpop.f32.mrf.mxu0
  %1055 = vmatprep.mubr.f32.mxu0 0.0
  %v1056 = vand.u32 %v96, 4294901760
  %v1057 = vsub.f32 %v96, %v1056
  %1058 = vmatmul.mubr.f32.gmra.mxu0 %v1057
  %v1059 = vpop.f32.mrf.mxu0
  %v1060 = vadd.f32 %v755, %v1059
  %v1061 = vpop.f32.mrf.mxu0
  %1062 = vmatprep.mubr.f32.mxu0 0.0
  %v1063 = vand.u32 %v99, 4294901760
  %v1064 = vsub.f32 %v99, %v1063
  %1065 = vmatmul.mubr.f32.gmra.mxu0 %v1064
  %v1066 = vpop.f32.mrf.mxu0
  %v1067 = vadd.f32 %v761, %v1066
  %v1068 = vpop.f32.mrf.mxu0
  %1069 = vmatprep.mubr.f32.mxu0 0.0
  %v1070 = vand.u32 %v102, 4294901760
  %v1071 = vsub.f32 %v102, %v1070
  %1072 = vmatmul.mubr.f32.gmra.mxu0 %v1071
  %v1073 = vpop.f32.mrf.mxu0
  %v1074 = vadd.f32 %v767, %v1073
  %v1075 = vpop.f32.mrf.mxu0
  %1076 = vmatprep.mubr.f32.mxu0 0.0
  %v1077 = vand.u32 %v105, 4294901760
  %v1078 = vsub.f32 %v105, %v1077
  %1079 = vmatmul.mubr.f32.gmra.mxu0 %v1078
  %v1080 = vpop.f32.mrf.mxu0
  %v1081 = vadd.f32 %v773, %v1080
  %v1082 = vpop.f32.mrf.mxu0
  %1083 = vmatprep.mubr.f32.mxu0 0.0
  %v1084 = vand.u32 %v108, 4294901760
  %v1085 = vsub.f32 %v108, %v1084
  %1086 = vmatmul.mubr.f32.gmra.mxu0 %v1085
  %v1087 = vpop.f32.mrf.mxu0
  %v1088 = vadd.f32 %v779, %v1087
  %v1089 = vpop.f32.mrf.mxu0
  %1090 = vmatprep.mubr.f32.mxu0 0.0
  %v1091 = vand.u32 %v111, 4294901760
  %v1092 = vsub.f32 %v111, %v1091
  %1093 = vmatmul.mubr.f32.gmra.mxu0 %v1092
  %v1094 = vpop.f32.mrf.mxu0
  %v1095 = vadd.f32 %v785, %v1094
  %v1096 = vpop.f32.mrf.mxu0
  %1097 = vmatprep.mubr.f32.mxu0 0.0
  %v1098 = vand.u32 %v114, 4294901760
  %v1099 = vsub.f32 %v114, %v1098
  %1100 = vmatmul.mubr.f32.gmra.mxu0 %v1099
  %v1101 = vpop.f32.mrf.mxu0
  %v1102 = vadd.f32 %v791, %v1101
  %v1103 = vpop.f32.mrf.mxu0
  %1104 = vmatprep.mubr.f32.mxu0 0.0
  %v1105 = vand.u32 %v117, 4294901760
  %v1106 = vsub.f32 %v117, %v1105
  %1107 = vmatmul.mubr.f32.gmra.mxu0 %v1106
  %v1108 = vpop.f32.mrf.mxu0
  %v1109 = vadd.f32 %v797, %v1108
  %v1110 = vpop.f32.mrf.mxu0
  %1111 = vmatprep.mubr.f32.mxu0 0.0
  %v1112 = vand.u32 %v120, 4294901760
  %v1113 = vsub.f32 %v120, %v1112
  %1114 = vmatmul.mubr.f32.gmra.mxu0 %v1113
  %v1115 = vpop.f32.mrf.mxu0
  %v1116 = vadd.f32 %v803, %v1115
  %v1117 = vpop.f32.mrf.mxu0
  %1118 = vmatprep.mubr.f32.mxu0 0.0
  %v1119 = vand.u32 %v123, 4294901760
  %v1120 = vsub.f32 %v123, %v1119
  %1121 = vmatmul.mubr.f32.gmra.mxu0 %v1120
  %v1122 = vpop.f32.mrf.mxu0
  %v1123 = vadd.f32 %v809, %v1122
  %v1124 = vpop.f32.mrf.mxu0
  %1125 = vmatprep.mubr.f32.mxu0 0.0
  %v1126 = vand.u32 %v126, 4294901760
  %v1127 = vsub.f32 %v126, %v1126
  %1128 = vmatmul.mubr.f32.gmra.mxu0 %v1127
  %v1129 = vpop.f32.mrf.mxu0
  %v1130 = vadd.f32 %v815, %v1129
  %v1131 = vpop.f32.mrf.mxu0
  %1132 = vmatprep.mubr.f32.mxu0 0.0
  %v1133 = vand.u32 %v129, 4294901760
  %v1134 = vsub.f32 %v129, %v1133
  %1135 = vmatmul.mubr.f32.gmra.mxu0 %v1134
  %v1136 = vpop.f32.mrf.mxu0
  %v1137 = vadd.f32 %v821, %v1136
  %v1138 = vpop.f32.mrf.mxu0
  %1139 = vmatprep.mubr.f32.mxu0 0.0
  %v1140 = vand.u32 %v132, 4294901760
  %v1141 = vsub.f32 %v132, %v1140
  %1142 = vmatmul.mubr.f32.gmra.mxu0 %v1141
  %v1143 = vpop.f32.mrf.mxu0
  %v1144 = vadd.f32 %v827, %v1143
  %v1145 = vpop.f32.mrf.mxu0
  %1146 = vmatprep.mubr.f32.mxu0 0.0
  %v1147 = vand.u32 %v135, 4294901760
  %v1148 = vsub.f32 %v135, %v1147
  %1149 = vmatmul.mubr.f32.gmra.mxu0 %v1148
  %v1150 = vpop.f32.mrf.mxu0
  %v1151 = vadd.f32 %v833, %v1150
  %v1152 = vpop.f32.mrf.mxu0
  %1153 = vmatprep.mubr.f32.mxu0 0.0
  %v1154 = vand.u32 %v138, 4294901760
  %v1155 = vsub.f32 %v138, %v1154
  %1156 = vmatmul.mubr.f32.gmra.mxu0 %v1155
  %v1157 = vpop.f32.mrf.mxu0
  %v1158 = vadd.f32 %v839, %v1157
  %v1159 = vpop.f32.mrf.mxu0
  %1160 = vmatprep.mubr.f32.mxu0 0.0
  %v1161 = vand.u32 %v141, 4294901760
  %v1162 = vsub.f32 %v141, %v1161
  %1163 = vmatmul.mubr.f32.gmra.mxu0 %v1162
  %v1164 = vpop.f32.mrf.mxu0
  %v1165 = vadd.f32 %v845, %v1164
  %v1166 = vpop.f32.mrf.mxu0
  %1167 = vmatprep.mubr.f32.mxu0 0.0
  %v1168 = vand.u32 %v144, 4294901760
  %v1169 = vsub.f32 %v144, %v1168
  %1170 = vmatmul.mubr.f32.gmra.mxu0 %v1169
  %v1171 = vpop.f32.mrf.mxu0
  %v1172 = vadd.f32 %v851, %v1171
  %v1173 = vpop.f32.mrf.mxu0
  %1174 = vmatprep.mubr.f32.mxu0 0.0
  %v1175 = vand.u32 %v147, 4294901760
  %v1176 = vsub.f32 %v147, %v1175
  %1177 = vmatmul.mubr.f32.gmra.mxu0 %v1176
  %v1178 = vpop.f32.mrf.mxu0
  %v1179 = vadd.f32 %v857, %v1178
  %v1180 = vpop.f32.mrf.mxu0
  %1181 = vmatprep.mubr.f32.mxu0 0.0
  %v1182 = vand.u32 %v150, 4294901760
  %v1183 = vsub.f32 %v150, %v1182
  %1184 = vmatmul.mubr.f32.gmra.mxu0 %v1183
  %v1185 = vpop.f32.mrf.mxu0
  %v1186 = vadd.f32 %v863, %v1185
  %v1187 = vpop.f32.mrf.mxu0
  %1188 = vmatprep.mubr.f32.mxu0 0.0
  %v1189 = vand.u32 %v153, 4294901760
  %v1190 = vsub.f32 %v153, %v1189
  %1191 = vmatmul.mubr.f32.gmra.mxu0 %v1190
  %v1192 = vpop.f32.mrf.mxu0
  %v1193 = vadd.f32 %v869, %v1192
  %v1194 = vpop.f32.mrf.mxu0
  %1195 = vmatprep.mubr.f32.mxu0 0.0
  %v1196 = vand.u32 %v156, 4294901760
  %v1197 = vsub.f32 %v156, %v1196
  %1198 = vmatmul.mubr.f32.gmra.mxu0 %v1197
  %v1199 = vpop.f32.mrf.mxu0
  %v1200 = vadd.f32 %v875, %v1199
  %v1201 = vpop.f32.mrf.mxu0
  %1202 = vmatprep.mubr.f32.mxu0 0.0
  %v1203 = vand.u32 %v159, 4294901760
  %v1204 = vsub.f32 %v159, %v1203
  %1205 = vmatmul.mubr.f32.gmra.mxu0 %v1204
  %v1206 = vpop.f32.mrf.mxu0
  %v1207 = vadd.f32 %v881, %v1206
  %v1208 = vpop.f32.mrf.mxu0
  %1209 = vmatprep.mubr.f32.mxu0 0.0
  %v1210 = vand.u32 %v162, 4294901760
  %v1211 = vsub.f32 %v162, %v1210
  %1212 = vmatmul.mubr.f32.gmra.mxu0 %v1211
  %v1213 = vpop.f32.mrf.mxu0
  %v1214 = vadd.f32 %v887, %v1213
  %v1215 = vpop.f32.mrf.mxu0
  %1216 = vmatprep.mubr.f32.mxu0 0.0
  %v1217 = vand.u32 %v165, 4294901760
  %v1218 = vsub.f32 %v165, %v1217
  %1219 = vmatmul.mubr.f32.gmra.mxu0 %v1218
  %v1220 = vpop.f32.mrf.mxu0
  %v1221 = vadd.f32 %v893, %v1220
  %v1222 = vpop.f32.mrf.mxu0
  %1223 = vmatprep.mubr.f32.mxu0 0.0
  %v1224 = vand.u32 %v168, 4294901760
  %v1225 = vsub.f32 %v168, %v1224
  %1226 = vmatmul.mubr.f32.gmra.mxu0 %v1225
  %v1227 = vpop.f32.mrf.mxu0
  %v1228 = vadd.f32 %v899, %v1227
  %v1229 = vpop.f32.mrf.mxu0
  %1230 = vmatprep.mubr.f32.mxu0 0.0
  %v1231 = vand.u32 %v171, 4294901760
  %v1232 = vsub.f32 %v171, %v1231
  %1233 = vmatmul.mubr.f32.gmra.mxu0 %v1232
  %v1234 = vpop.f32.mrf.mxu0
  %v1235 = vadd.f32 %v905, %v1234
  %v1236 = vpop.f32.mrf.mxu0
  %1237 = vmatprep.mubr.f32.mxu0 0.0
  %v1238 = vand.u32 %v174, 4294901760
  %v1239 = vsub.f32 %v174, %v1238
  %1240 = vmatmul.mubr.f32.gmra.mxu0 %v1239
  %v1241 = vpop.f32.mrf.mxu0
  %v1242 = vadd.f32 %v911, %v1241
  %v1243 = vpop.f32.mrf.mxu0
  %1244 = vmatprep.mubr.f32.mxu0 0.0
  %v1245 = vand.u32 %v177, 4294901760
  %v1246 = vsub.f32 %v177, %v1245
  %1247 = vmatmul.mubr.f32.gmra.mxu0 %v1246
  %v1248 = vpop.f32.mrf.mxu0
  %v1249 = vadd.f32 %v917, %v1248
  %v1250 = vpop.f32.mrf.mxu0
  %1251 = vmatprep.mubr.f32.mxu0 0.0
  %v1252 = vand.u32 %v180, 4294901760
  %v1253 = vsub.f32 %v180, %v1252
  %1254 = vmatmul.mubr.f32.gmra.mxu0 %v1253
  %v1255 = vpop.f32.mrf.mxu0
  %v1256 = vadd.f32 %v923, %v1255
  %v1257 = vpop.f32.mrf.mxu0
  %1258 = vmatprep.mubr.f32.mxu0 0.0
  %v1259 = vand.u32 %v183, 4294901760
  %v1260 = vsub.f32 %v183, %v1259
  %1261 = vmatmul.mubr.f32.gmra.mxu0 %v1260
  %v1262 = vpop.f32.mrf.mxu0
  %v1263 = vadd.f32 %v929, %v1262
  %v1264 = vpop.f32.mrf.mxu0
  %1265 = vmatprep.mubr.f32.mxu0 0.0
  %v1266 = vand.u32 %v186, 4294901760
  %v1267 = vsub.f32 %v186, %v1266
  %1268 = vmatmul.mubr.f32.gmra.mxu0 %v1267
  %v1269 = vpop.f32.mrf.mxu0
  %v1270 = vadd.f32 %v935, %v1269
  %v1271 = vpop.f32.mrf.mxu0
  %1272 = vdwg.mxu0
  %1273 = vmatprep.subr.mxu0 0.0
  %1274 = vmatpush1.msra.mxu0 0.0
  %1275 = vmatprep.subr.mxu0 0.0
  %1276 = vmatpush1.msra.mxu0 0.0
  %1277 = vmatprep.subr.mxu0 0.0
  %1278 = vmatpush1.msra.mxu0 0.0
  %1279 = vmatprep.subr.mxu0 0.0
  %1280 = vmatpush1.msra.mxu0 0.0
  %1281 = vmatprep.subr.mxu0 0.0
  %1282 = vmatpush1.msra.mxu0 0.0
  %1283 = vmatprep.subr.mxu0 0.0
  %1284 = vmatpush1.msra.mxu0 0.0
  %1285 = vmatprep.subr.mxu0 0.0
  %1286 = vmatpush1.msra.mxu0 0.0
  %1287 = vmatprep.subr.mxu0 0.0
  %1288 = vmatpush1.msra.mxu0 0.0
  %1289 = vmatprep.subr.mxu0 0.0
  %1290 = vmatpush1.msra.mxu0 0.0
  %1291 = vmatprep.subr.mxu0 0.0
  %1292 = vmatpush1.msra.mxu0 0.0
  %1293 = vmatprep.subr.mxu0 0.0
  %1294 = vmatpush1.msra.mxu0 0.0
  %1295 = vmatprep.subr.mxu0 0.0
  %1296 = vmatpush1.msra.mxu0 0.0
  %1297 = vmatprep.subr.mxu0 0.0
  %1298 = vmatpush1.msra.mxu0 0.0
  %1299 = vmatprep.subr.mxu0 0.0
  %1300 = vmatpush1.msra.mxu0 0.0
  %1301 = vmatprep.subr.mxu0 0.0
  %v1302 = vand.u32 %v65, 4294901760
  %1303 = vmatpush1.msra.mxu0 %v1302
  %1304 = vmatprep.subr.mxu0 0.0
  %v1305 = vand.u32 %v64, 4294901760
  %1306 = vmatpush1.msra.mxu0 %v1305
  %1307 = vmatprep.subr.mxu0 0.0
  %1308 = vmatpush2.msra.mxu0 0.0
  %1309 = vmatprep.subr.mxu0 0.0
  %1310 = vmatpush2.msra.mxu0 0.0
  %1311 = vmatprep.subr.mxu0 0.0
  %1312 = vmatpush2.msra.mxu0 0.0
  %1313 = vmatprep.subr.mxu0 0.0
  %1314 = vmatpush2.msra.mxu0 0.0
  %1315 = vmatprep.subr.mxu0 0.0
  %1316 = vmatpush2.msra.mxu0 0.0
  %1317 = vmatprep.subr.mxu0 0.0
  %1318 = vmatpush2.msra.mxu0 0.0
  %1319 = vmatprep.subr.mxu0 0.0
  %1320 = vmatpush2.msra.mxu0 0.0
  %1321 = vmatprep.subr.mxu0 0.0
  %1322 = vmatpush2.msra.mxu0 0.0
  %1323 = vmatprep.subr.mxu0 0.0
  %1324 = vmatpush2.msra.mxu0 0.0
  %1325 = vmatprep.subr.mxu0 0.0
  %1326 = vmatpush2.msra.mxu0 0.0
  %1327 = vmatprep.subr.mxu0 0.0
  %1328 = vmatpush2.msra.mxu0 0.0
  %1329 = vmatprep.subr.mxu0 0.0
  %1330 = vmatpush2.msra.mxu0 0.0
  %1331 = vmatprep.subr.mxu0 0.0
  %1332 = vmatpush2.msra.mxu0 0.0
  %1333 = vmatprep.subr.mxu0 0.0
  %1334 = vmatpush2.msra.mxu0 0.0
  %1335 = vmatprep.subr.mxu0 0.0
  %1336 = vmatpush2.msra.mxu0 0.0
  %1337 = vmatprep.subr.mxu0 0.0
  %1338 = vmatpush2.msra.mxu0 0.0
  %1339 = vmatprep.mubr.f32.mxu0 0.0
  %v1340 = vand.u32 %v75, 4294901760
  %v1341 = vsub.f32 %v75, %v1340
  %v1342 = vand.u32 %v1341, 4294901760
  %1343 = vmatmul.mubr.f32.gmra.mxu0 %v1342
  %v1344 = vpop.f32.mrf.mxu0
  %v1345 = vadd.f32 %v1011, %v1344
  %v1346 = vpop.f32.mrf.mxu0
  %1347 = vmatprep.mubr.f32.mxu0 0.0
  %v1348 = vand.u32 %v78, 4294901760
  %v1349 = vsub.f32 %v78, %v1348
  %v1350 = vand.u32 %v1349, 4294901760
  %1351 = vmatmul.mubr.f32.gmra.mxu0 %v1350
  %v1352 = vpop.f32.mrf.mxu0
  %v1353 = vadd.f32 %v1018, %v1352
  %v1354 = vpop.f32.mrf.mxu0
  %1355 = vmatprep.mubr.f32.mxu0 0.0
  %v1356 = vand.u32 %v81, 4294901760
  %v1357 = vsub.f32 %v81, %v1356
  %v1358 = vand.u32 %v1357, 4294901760
  %1359 = vmatmul.mubr.f32.gmra.mxu0 %v1358
  %v1360 = vpop.f32.mrf.mxu0
  %v1361 = vadd.f32 %v1025, %v1360
  %v1362 = vpop.f32.mrf.mxu0
  %1363 = vmatprep.mubr.f32.mxu0 0.0
  %v1364 = vand.u32 %v84, 4294901760
  %v1365 = vsub.f32 %v84, %v1364
  %v1366 = vand.u32 %v1365, 4294901760
  %1367 = vmatmul.mubr.f32.gmra.mxu0 %v1366
  %v1368 = vpop.f32.mrf.mxu0
  %v1369 = vadd.f32 %v1032, %v1368
  %v1370 = vpop.f32.mrf.mxu0
  %1371 = vmatprep.mubr.f32.mxu0 0.0
  %v1372 = vand.u32 %v87, 4294901760
  %v1373 = vsub.f32 %v87, %v1372
  %v1374 = vand.u32 %v1373, 4294901760
  %1375 = vmatmul.mubr.f32.gmra.mxu0 %v1374
  %v1376 = vpop.f32.mrf.mxu0
  %v1377 = vadd.f32 %v1039, %v1376
  %v1378 = vpop.f32.mrf.mxu0
  %1379 = vmatprep.mubr.f32.mxu0 0.0
  %v1380 = vand.u32 %v90, 4294901760
  %v1381 = vsub.f32 %v90, %v1380
  %v1382 = vand.u32 %v1381, 4294901760
  %1383 = vmatmul.mubr.f32.gmra.mxu0 %v1382
  %v1384 = vpop.f32.mrf.mxu0
  %v1385 = vadd.f32 %v1046, %v1384
  %v1386 = vpop.f32.mrf.mxu0
  %1387 = vmatprep.mubr.f32.mxu0 0.0
  %v1388 = vand.u32 %v93, 4294901760
  %v1389 = vsub.f32 %v93, %v1388
  %v1390 = vand.u32 %v1389, 4294901760
  %1391 = vmatmul.mubr.f32.gmra.mxu0 %v1390
  %v1392 = vpop.f32.mrf.mxu0
  %v1393 = vadd.f32 %v1053, %v1392
  %v1394 = vpop.f32.mrf.mxu0
  %1395 = vmatprep.mubr.f32.mxu0 0.0
  %v1396 = vand.u32 %v96, 4294901760
  %v1397 = vsub.f32 %v96, %v1396
  %v1398 = vand.u32 %v1397, 4294901760
  %1399 = vmatmul.mubr.f32.gmra.mxu0 %v1398
  %v1400 = vpop.f32.mrf.mxu0
  %v1401 = vadd.f32 %v1060, %v1400
  %v1402 = vpop.f32.mrf.mxu0
  %1403 = vmatprep.mubr.f32.mxu0 0.0
  %v1404 = vand.u32 %v99, 4294901760
  %v1405 = vsub.f32 %v99, %v1404
  %v1406 = vand.u32 %v1405, 4294901760
  %1407 = vmatmul.mubr.f32.gmra.mxu0 %v1406
  %v1408 = vpop.f32.mrf.mxu0
  %v1409 = vadd.f32 %v1067, %v1408
  %v1410 = vpop.f32.mrf.mxu0
  %1411 = vmatprep.mubr.f32.mxu0 0.0
  %v1412 = vand.u32 %v102, 4294901760
  %v1413 = vsub.f32 %v102, %v1412
  %v1414 = vand.u32 %v1413, 4294901760
  %1415 = vmatmul.mubr.f32.gmra.mxu0 %v1414
  %v1416 = vpop.f32.mrf.mxu0
  %v1417 = vadd.f32 %v1074, %v1416
  %v1418 = vpop.f32.mrf.mxu0
  %1419 = vmatprep.mubr.f32.mxu0 0.0
  %v1420 = vand.u32 %v105, 4294901760
  %v1421 = vsub.f32 %v105, %v1420
  %v1422 = vand.u32 %v1421, 4294901760
  %1423 = vmatmul.mubr.f32.gmra.mxu0 %v1422
  %v1424 = vpop.f32.mrf.mxu0
  %v1425 = vadd.f32 %v1081, %v1424
  %v1426 = vpop.f32.mrf.mxu0
  %1427 = vmatprep.mubr.f32.mxu0 0.0
  %v1428 = vand.u32 %v108, 4294901760
  %v1429 = vsub.f32 %v108, %v1428
  %v1430 = vand.u32 %v1429, 4294901760
  %1431 = vmatmul.mubr.f32.gmra.mxu0 %v1430
  %v1432 = vpop.f32.mrf.mxu0
  %v1433 = vadd.f32 %v1088, %v1432
  %v1434 = vpop.f32.mrf.mxu0
  %1435 = vmatprep.mubr.f32.mxu0 0.0
  %v1436 = vand.u32 %v111, 4294901760
  %v1437 = vsub.f32 %v111, %v1436
  %v1438 = vand.u32 %v1437, 4294901760
  %1439 = vmatmul.mubr.f32.gmra.mxu0 %v1438
  %v1440 = vpop.f32.mrf.mxu0
  %v1441 = vadd.f32 %v1095, %v1440
  %v1442 = vpop.f32.mrf.mxu0
  %1443 = vmatprep.mubr.f32.mxu0 0.0
  %v1444 = vand.u32 %v114, 4294901760
  %v1445 = vsub.f32 %v114, %v1444
  %v1446 = vand.u32 %v1445, 4294901760
  %1447 = vmatmul.mubr.f32.gmra.mxu0 %v1446
  %v1448 = vpop.f32.mrf.mxu0
  %v1449 = vadd.f32 %v1102, %v1448
  %v1450 = vpop.f32.mrf.mxu0
  %1451 = vmatprep.mubr.f32.mxu0 0.0
  %v1452 = vand.u32 %v117, 4294901760
  %v1453 = vsub.f32 %v117, %v1452
  %v1454 = vand.u32 %v1453, 4294901760
  %1455 = vmatmul.mubr.f32.gmra.mxu0 %v1454
  %v1456 = vpop.f32.mrf.mxu0
  %v1457 = vadd.f32 %v1109, %v1456
  %v1458 = vpop.f32.mrf.mxu0
  %1459 = vmatprep.mubr.f32.mxu0 0.0
  %v1460 = vand.u32 %v120, 4294901760
  %v1461 = vsub.f32 %v120, %v1460
  %v1462 = vand.u32 %v1461, 4294901760
  %1463 = vmatmul.mubr.f32.gmra.mxu0 %v1462
  %v1464 = vpop.f32.mrf.mxu0
  %v1465 = vadd.f32 %v1116, %v1464
  %v1466 = vpop.f32.mrf.mxu0
  %1467 = vmatprep.mubr.f32.mxu0 0.0
  %v1468 = vand.u32 %v123, 4294901760
  %v1469 = vsub.f32 %v123, %v1468
  %v1470 = vand.u32 %v1469, 4294901760
  %1471 = vmatmul.mubr.f32.gmra.mxu0 %v1470
  %v1472 = vpop.f32.mrf.mxu0
  %v1473 = vadd.f32 %v1123, %v1472
  %v1474 = vpop.f32.mrf.mxu0
  %1475 = vmatprep.mubr.f32.mxu0 0.0
  %v1476 = vand.u32 %v126, 4294901760
  %v1477 = vsub.f32 %v126, %v1476
  %v1478 = vand.u32 %v1477, 4294901760
  %1479 = vmatmul.mubr.f32.gmra.mxu0 %v1478
  %v1480 = vpop.f32.mrf.mxu0
  %v1481 = vadd.f32 %v1130, %v1480
  %v1482 = vpop.f32.mrf.mxu0
  %1483 = vmatprep.mubr.f32.mxu0 0.0
  %v1484 = vand.u32 %v129, 4294901760
  %v1485 = vsub.f32 %v129, %v1484
  %v1486 = vand.u32 %v1485, 4294901760
  %1487 = vmatmul.mubr.f32.gmra.mxu0 %v1486
  %v1488 = vpop.f32.mrf.mxu0
  %v1489 = vadd.f32 %v1137, %v1488
  %v1490 = vpop.f32.mrf.mxu0
  %1491 = vmatprep.mubr.f32.mxu0 0.0
  %v1492 = vand.u32 %v132, 4294901760
  %v1493 = vsub.f32 %v132, %v1492
  %v1494 = vand.u32 %v1493, 4294901760
  %1495 = vmatmul.mubr.f32.gmra.mxu0 %v1494
  %v1496 = vpop.f32.mrf.mxu0
  %v1497 = vadd.f32 %v1144, %v1496
  %v1498 = vpop.f32.mrf.mxu0
  %1499 = vmatprep.mubr.f32.mxu0 0.0
  %v1500 = vand.u32 %v135, 4294901760
  %v1501 = vsub.f32 %v135, %v1500
  %v1502 = vand.u32 %v1501, 4294901760
  %1503 = vmatmul.mubr.f32.gmra.mxu0 %v1502
  %v1504 = vpop.f32.mrf.mxu0
  %v1505 = vadd.f32 %v1151, %v1504
  %v1506 = vpop.f32.mrf.mxu0
  %1507 = vmatprep.mubr.f32.mxu0 0.0
  %v1508 = vand.u32 %v138, 4294901760
  %v1509 = vsub.f32 %v138, %v1508
  %v1510 = vand.u32 %v1509, 4294901760
  %1511 = vmatmul.mubr.f32.gmra.mxu0 %v1510
  %v1512 = vpop.f32.mrf.mxu0
  %v1513 = vadd.f32 %v1158, %v1512
  %v1514 = vpop.f32.mrf.mxu0
  %1515 = vmatprep.mubr.f32.mxu0 0.0
  %v1516 = vand.u32 %v141, 4294901760
  %v1517 = vsub.f32 %v141, %v1516
  %v1518 = vand.u32 %v1517, 4294901760
  %1519 = vmatmul.mubr.f32.gmra.mxu0 %v1518
  %v1520 = vpop.f32.mrf.mxu0
  %v1521 = vadd.f32 %v1165, %v1520
  %v1522 = vpop.f32.mrf.mxu0
  %1523 = vmatprep.mubr.f32.mxu0 0.0
  %v1524 = vand.u32 %v144, 4294901760
  %v1525 = vsub.f32 %v144, %v1524
  %v1526 = vand.u32 %v1525, 4294901760
  %1527 = vmatmul.mubr.f32.gmra.mxu0 %v1526
  %v1528 = vpop.f32.mrf.mxu0
  %v1529 = vadd.f32 %v1172, %v1528
  %v1530 = vpop.f32.mrf.mxu0
  %1531 = vmatprep.mubr.f32.mxu0 0.0
  %v1532 = vand.u32 %v147, 4294901760
  %v1533 = vsub.f32 %v147, %v1532
  %v1534 = vand.u32 %v1533, 4294901760
  %1535 = vmatmul.mubr.f32.gmra.mxu0 %v1534
  %v1536 = vpop.f32.mrf.mxu0
  %v1537 = vadd.f32 %v1179, %v1536
  %v1538 = vpop.f32.mrf.mxu0
  %1539 = vmatprep.mubr.f32.mxu0 0.0
  %v1540 = vand.u32 %v150, 4294901760
  %v1541 = vsub.f32 %v150, %v1540
  %v1542 = vand.u32 %v1541, 4294901760
  %1543 = vmatmul.mubr.f32.gmra.mxu0 %v1542
  %v1544 = vpop.f32.mrf.mxu0
  %v1545 = vadd.f32 %v1186, %v1544
  %v1546 = vpop.f32.mrf.mxu0
  %1547 = vmatprep.mubr.f32.mxu0 0.0
  %v1548 = vand.u32 %v153, 4294901760
  %v1549 = vsub.f32 %v153, %v1548
  %v1550 = vand.u32 %v1549, 4294901760
  %1551 = vmatmul.mubr.f32.gmra.mxu0 %v1550
  %v1552 = vpop.f32.mrf.mxu0
  %v1553 = vadd.f32 %v1193, %v1552
  %v1554 = vpop.f32.mrf.mxu0
  %1555 = vmatprep.mubr.f32.mxu0 0.0
  %v1556 = vand.u32 %v156, 4294901760
  %v1557 = vsub.f32 %v156, %v1556
  %v1558 = vand.u32 %v1557, 4294901760
  %1559 = vmatmul.mubr.f32.gmra.mxu0 %v1558
  %v1560 = vpop.f32.mrf.mxu0
  %v1561 = vadd.f32 %v1200, %v1560
  %v1562 = vpop.f32.mrf.mxu0
  %1563 = vmatprep.mubr.f32.mxu0 0.0
  %v1564 = vand.u32 %v159, 4294901760
  %v1565 = vsub.f32 %v159, %v1564
  %v1566 = vand.u32 %v1565, 4294901760
  %1567 = vmatmul.mubr.f32.gmra.mxu0 %v1566
  %v1568 = vpop.f32.mrf.mxu0
  %v1569 = vadd.f32 %v1207, %v1568
  %v1570 = vpop.f32.mrf.mxu0
  %1571 = vmatprep.mubr.f32.mxu0 0.0
  %v1572 = vand.u32 %v162, 4294901760
  %v1573 = vsub.f32 %v162, %v1572
  %v1574 = vand.u32 %v1573, 4294901760
  %1575 = vmatmul.mubr.f32.gmra.mxu0 %v1574
  %v1576 = vpop.f32.mrf.mxu0
  %v1577 = vadd.f32 %v1214, %v1576
  %v1578 = vpop.f32.mrf.mxu0
  %1579 = vmatprep.mubr.f32.mxu0 0.0
  %v1580 = vand.u32 %v165, 4294901760
  %v1581 = vsub.f32 %v165, %v1580
  %v1582 = vand.u32 %v1581, 4294901760
  %1583 = vmatmul.mubr.f32.gmra.mxu0 %v1582
  %v1584 = vpop.f32.mrf.mxu0
  %v1585 = vadd.f32 %v1221, %v1584
  %v1586 = vpop.f32.mrf.mxu0
  %1587 = vmatprep.mubr.f32.mxu0 0.0
  %v1588 = vand.u32 %v168, 4294901760
  %v1589 = vsub.f32 %v168, %v1588
  %v1590 = vand.u32 %v1589, 4294901760
  %1591 = vmatmul.mubr.f32.gmra.mxu0 %v1590
  %v1592 = vpop.f32.mrf.mxu0
  %v1593 = vadd.f32 %v1228, %v1592
  %v1594 = vpop.f32.mrf.mxu0
  %1595 = vmatprep.mubr.f32.mxu0 0.0
  %v1596 = vand.u32 %v171, 4294901760
  %v1597 = vsub.f32 %v171, %v1596
  %v1598 = vand.u32 %v1597, 4294901760
  %1599 = vmatmul.mubr.f32.gmra.mxu0 %v1598
  %v1600 = vpop.f32.mrf.mxu0
  %v1601 = vadd.f32 %v1235, %v1600
  %v1602 = vpop.f32.mrf.mxu0
  %1603 = vmatprep.mubr.f32.mxu0 0.0
  %v1604 = vand.u32 %v174, 4294901760
  %v1605 = vsub.f32 %v174, %v1604
  %v1606 = vand.u32 %v1605, 4294901760
  %1607 = vmatmul.mubr.f32.gmra.mxu0 %v1606
  %v1608 = vpop.f32.mrf.mxu0
  %v1609 = vadd.f32 %v1242, %v1608
  %v1610 = vpop.f32.mrf.mxu0
  %1611 = vmatprep.mubr.f32.mxu0 0.0
  %v1612 = vand.u32 %v177, 4294901760
  %v1613 = vsub.f32 %v177, %v1612
  %v1614 = vand.u32 %v1613, 4294901760
  %1615 = vmatmul.mubr.f32.gmra.mxu0 %v1614
  %v1616 = vpop.f32.mrf.mxu0
  %v1617 = vadd.f32 %v1249, %v1616
  %v1618 = vpop.f32.mrf.mxu0
  %1619 = vmatprep.mubr.f32.mxu0 0.0
  %v1620 = vand.u32 %v180, 4294901760
  %v1621 = vsub.f32 %v180, %v1620
  %v1622 = vand.u32 %v1621, 4294901760
  %1623 = vmatmul.mubr.f32.gmra.mxu0 %v1622
  %v1624 = vpop.f32.mrf.mxu0
  %v1625 = vadd.f32 %v1256, %v1624
  %v1626 = vpop.f32.mrf.mxu0
  %1627 = vmatprep.mubr.f32.mxu0 0.0
  %v1628 = vand.u32 %v183, 4294901760
  %v1629 = vsub.f32 %v183, %v1628
  %v1630 = vand.u32 %v1629, 4294901760
  %1631 = vmatmul.mubr.f32.gmra.mxu0 %v1630
  %v1632 = vpop.f32.mrf.mxu0
  %v1633 = vadd.f32 %v1263, %v1632
  %v1634 = vpop.f32.mrf.mxu0
  %1635 = vmatprep.mubr.f32.mxu0 0.0
  %v1636 = vand.u32 %v186, 4294901760
  %v1637 = vsub.f32 %v186, %v1636
  %v1638 = vand.u32 %v1637, 4294901760
  %1639 = vmatmul.mubr.f32.gmra.mxu0 %v1638
  %v1640 = vpop.f32.mrf.mxu0
  %v1641 = vadd.f32 %v1270, %v1640
  %v1642 = vpop.f32.mrf.mxu0
  %1643 = vdwg.mxu0
  %1644 = vmatprep.subr.mxu0 0.0
  %1645 = vmatpush1.msra.mxu0 0.0
  %1646 = vmatprep.subr.mxu0 0.0
  %1647 = vmatpush1.msra.mxu0 0.0
  %1648 = vmatprep.subr.mxu0 0.0
  %1649 = vmatpush1.msra.mxu0 0.0
  %1650 = vmatprep.subr.mxu0 0.0
  %1651 = vmatpush1.msra.mxu0 0.0
  %1652 = vmatprep.subr.mxu0 0.0
  %1653 = vmatpush1.msra.mxu0 0.0
  %1654 = vmatprep.subr.mxu0 0.0
  %1655 = vmatpush1.msra.mxu0 0.0
  %1656 = vmatprep.subr.mxu0 0.0
  %1657 = vmatpush1.msra.mxu0 0.0
  %1658 = vmatprep.subr.mxu0 0.0
  %1659 = vmatpush1.msra.mxu0 0.0
  %1660 = vmatprep.subr.mxu0 0.0
  %1661 = vmatpush1.msra.mxu0 0.0
  %1662 = vmatprep.subr.mxu0 0.0
  %1663 = vmatpush1.msra.mxu0 0.0
  %1664 = vmatprep.subr.mxu0 0.0
  %1665 = vmatpush1.msra.mxu0 0.0
  %1666 = vmatprep.subr.mxu0 0.0
  %1667 = vmatpush1.msra.mxu0 0.0
  %1668 = vmatprep.subr.mxu0 0.0
  %1669 = vmatpush1.msra.mxu0 0.0
  %1670 = vmatprep.subr.mxu0 0.0
  %1671 = vmatpush1.msra.mxu0 0.0
  %1672 = vmatprep.subr.mxu0 0.0
  %v1673 = vand.u32 %v65, 4294901760
  %v1674 = vsub.f32 %v65, %v1673
  %v1675 = vand.u32 %v1674, 4294901760
  %1676 = vmatpush1.msra.mxu0 %v1675
  %1677 = vmatprep.subr.mxu0 0.0
  %v1678 = vand.u32 %v64, 4294901760
  %v1679 = vsub.f32 %v64, %v1678
  %v1680 = vand.u32 %v1679, 4294901760
  %1681 = vmatpush1.msra.mxu0 %v1680
  %1682 = vmatprep.subr.mxu0 0.0
  %1683 = vmatpush2.msra.mxu0 0.0
  %1684 = vmatprep.subr.mxu0 0.0
  %1685 = vmatpush2.msra.mxu0 0.0
  %1686 = vmatprep.subr.mxu0 0.0
  %1687 = vmatpush2.msra.mxu0 0.0
  %1688 = vmatprep.subr.mxu0 0.0
  %1689 = vmatpush2.msra.mxu0 0.0
  %1690 = vmatprep.subr.mxu0 0.0
  %1691 = vmatpush2.msra.mxu0 0.0
  %1692 = vmatprep.subr.mxu0 0.0
  %1693 = vmatpush2.msra.mxu0 0.0
  %1694 = vmatprep.subr.mxu0 0.0
  %1695 = vmatpush2.msra.mxu0 0.0
  %1696 = vmatprep.subr.mxu0 0.0
  %1697 = vmatpush2.msra.mxu0 0.0
  %1698 = vmatprep.subr.mxu0 0.0
  %1699 = vmatpush2.msra.mxu0 0.0
  %1700 = vmatprep.subr.mxu0 0.0
  %1701 = vmatpush2.msra.mxu0 0.0
  %1702 = vmatprep.subr.mxu0 0.0
  %1703 = vmatpush2.msra.mxu0 0.0
  %1704 = vmatprep.subr.mxu0 0.0
  %1705 = vmatpush2.msra.mxu0 0.0
  %1706 = vmatprep.subr.mxu0 0.0
  %1707 = vmatpush2.msra.mxu0 0.0
  %1708 = vmatprep.subr.mxu0 0.0
  %1709 = vmatpush2.msra.mxu0 0.0
  %1710 = vmatprep.subr.mxu0 0.0
  %1711 = vmatpush2.msra.mxu0 0.0
  %1712 = vmatprep.subr.mxu0 0.0
  %1713 = vmatpush2.msra.mxu0 0.0
  %1714 = vmatprep.mubr.f32.mxu0 0.0
  %v1715 = vand.u32 %v75, 4294901760
  %1716 = vmatmul.mubr.f32.gmra.mxu0 %v1715
  %v1717 = vpop.f32.mrf.mxu0
  %v1718 = vadd.f32 %v1345, %v1717
  %v1719 = vpop.f32.mrf.mxu0
  %1720 = vmatprep.mubr.f32.mxu0 0.0
  %v1721 = vand.u32 %v78, 4294901760
  %1722 = vmatmul.mubr.f32.gmra.mxu0 %v1721
  %v1723 = vpop.f32.mrf.mxu0
  %v1724 = vadd.f32 %v1353, %v1723
  %v1725 = vpop.f32.mrf.mxu0
  %1726 = vmatprep.mubr.f32.mxu0 0.0
  %v1727 = vand.u32 %v81, 4294901760
  %1728 = vmatmul.mubr.f32.gmra.mxu0 %v1727
  %v1729 = vpop.f32.mrf.mxu0
  %v1730 = vadd.f32 %v1361, %v1729
  %v1731 = vpop.f32.mrf.mxu0
  %1732 = vmatprep.mubr.f32.mxu0 0.0
  %v1733 = vand.u32 %v84, 4294901760
  %1734 = vmatmul.mubr.f32.gmra.mxu0 %v1733
  %v1735 = vpop.f32.mrf.mxu0
  %v1736 = vadd.f32 %v1369, %v1735
  %v1737 = vpop.f32.mrf.mxu0
  %1738 = vmatprep.mubr.f32.mxu0 0.0
  %v1739 = vand.u32 %v87, 4294901760
  %1740 = vmatmul.mubr.f32.gmra.mxu0 %v1739
  %v1741 = vpop.f32.mrf.mxu0
  %v1742 = vadd.f32 %v1377, %v1741
  %v1743 = vpop.f32.mrf.mxu0
  %1744 = vmatprep.mubr.f32.mxu0 0.0
  %v1745 = vand.u32 %v90, 4294901760
  %1746 = vmatmul.mubr.f32.gmra.mxu0 %v1745
  %v1747 = vpop.f32.mrf.mxu0
  %v1748 = vadd.f32 %v1385, %v1747
  %v1749 = vpop.f32.mrf.mxu0
  %1750 = vmatprep.mubr.f32.mxu0 0.0
  %v1751 = vand.u32 %v93, 4294901760
  %1752 = vmatmul.mubr.f32.gmra.mxu0 %v1751
  %v1753 = vpop.f32.mrf.mxu0
  %v1754 = vadd.f32 %v1393, %v1753
  %v1755 = vpop.f32.mrf.mxu0
  %1756 = vmatprep.mubr.f32.mxu0 0.0
  %v1757 = vand.u32 %v96, 4294901760
  %1758 = vmatmul.mubr.f32.gmra.mxu0 %v1757
  %v1759 = vpop.f32.mrf.mxu0
  %v1760 = vadd.f32 %v1401, %v1759
  %v1761 = vpop.f32.mrf.mxu0
  %1762 = vmatprep.mubr.f32.mxu0 0.0
  %v1763 = vand.u32 %v99, 4294901760
  %1764 = vmatmul.mubr.f32.gmra.mxu0 %v1763
  %v1765 = vpop.f32.mrf.mxu0
  %v1766 = vadd.f32 %v1409, %v1765
  %v1767 = vpop.f32.mrf.mxu0
  %1768 = vmatprep.mubr.f32.mxu0 0.0
  %v1769 = vand.u32 %v102, 4294901760
  %1770 = vmatmul.mubr.f32.gmra.mxu0 %v1769
  %v1771 = vpop.f32.mrf.mxu0
  %v1772 = vadd.f32 %v1417, %v1771
  %v1773 = vpop.f32.mrf.mxu0
  %1774 = vmatprep.mubr.f32.mxu0 0.0
  %v1775 = vand.u32 %v105, 4294901760
  %1776 = vmatmul.mubr.f32.gmra.mxu0 %v1775
  %v1777 = vpop.f32.mrf.mxu0
  %v1778 = vadd.f32 %v1425, %v1777
  %v1779 = vpop.f32.mrf.mxu0
  %1780 = vmatprep.mubr.f32.mxu0 0.0
  %v1781 = vand.u32 %v108, 4294901760
  %1782 = vmatmul.mubr.f32.gmra.mxu0 %v1781
  %v1783 = vpop.f32.mrf.mxu0
  %v1784 = vadd.f32 %v1433, %v1783
  %v1785 = vpop.f32.mrf.mxu0
  %1786 = vmatprep.mubr.f32.mxu0 0.0
  %v1787 = vand.u32 %v111, 4294901760
  %1788 = vmatmul.mubr.f32.gmra.mxu0 %v1787
  %v1789 = vpop.f32.mrf.mxu0
  %v1790 = vadd.f32 %v1441, %v1789
  %v1791 = vpop.f32.mrf.mxu0
  %1792 = vmatprep.mubr.f32.mxu0 0.0
  %v1793 = vand.u32 %v114, 4294901760
  %1794 = vmatmul.mubr.f32.gmra.mxu0 %v1793
  %v1795 = vpop.f32.mrf.mxu0
  %v1796 = vadd.f32 %v1449, %v1795
  %v1797 = vpop.f32.mrf.mxu0
  %1798 = vmatprep.mubr.f32.mxu0 0.0
  %v1799 = vand.u32 %v117, 4294901760
  %1800 = vmatmul.mubr.f32.gmra.mxu0 %v1799
  %v1801 = vpop.f32.mrf.mxu0
  %v1802 = vadd.f32 %v1457, %v1801
  %v1803 = vpop.f32.mrf.mxu0
  %1804 = vmatprep.mubr.f32.mxu0 0.0
  %v1805 = vand.u32 %v120, 4294901760
  %1806 = vmatmul.mubr.f32.gmra.mxu0 %v1805
  %v1807 = vpop.f32.mrf.mxu0
  %v1808 = vadd.f32 %v1465, %v1807
  %v1809 = vpop.f32.mrf.mxu0
  %1810 = vmatprep.mubr.f32.mxu0 0.0
  %v1811 = vand.u32 %v123, 4294901760
  %1812 = vmatmul.mubr.f32.gmra.mxu0 %v1811
  %v1813 = vpop.f32.mrf.mxu0
  %v1814 = vadd.f32 %v1473, %v1813
  %v1815 = vpop.f32.mrf.mxu0
  %1816 = vmatprep.mubr.f32.mxu0 0.0
  %v1817 = vand.u32 %v126, 4294901760
  %1818 = vmatmul.mubr.f32.gmra.mxu0 %v1817
  %v1819 = vpop.f32.mrf.mxu0
  %v1820 = vadd.f32 %v1481, %v1819
  %v1821 = vpop.f32.mrf.mxu0
  %1822 = vmatprep.mubr.f32.mxu0 0.0
  %v1823 = vand.u32 %v129, 4294901760
  %1824 = vmatmul.mubr.f32.gmra.mxu0 %v1823
  %v1825 = vpop.f32.mrf.mxu0
  %v1826 = vadd.f32 %v1489, %v1825
  %v1827 = vpop.f32.mrf.mxu0
  %1828 = vmatprep.mubr.f32.mxu0 0.0
  %v1829 = vand.u32 %v132, 4294901760
  %1830 = vmatmul.mubr.f32.gmra.mxu0 %v1829
  %v1831 = vpop.f32.mrf.mxu0
  %v1832 = vadd.f32 %v1497, %v1831
  %v1833 = vpop.f32.mrf.mxu0
  %1834 = vmatprep.mubr.f32.mxu0 0.0
  %v1835 = vand.u32 %v135, 4294901760
  %1836 = vmatmul.mubr.f32.gmra.mxu0 %v1835
  %v1837 = vpop.f32.mrf.mxu0
  %v1838 = vadd.f32 %v1505, %v1837
  %v1839 = vpop.f32.mrf.mxu0
  %1840 = vmatprep.mubr.f32.mxu0 0.0
  %v1841 = vand.u32 %v138, 4294901760
  %1842 = vmatmul.mubr.f32.gmra.mxu0 %v1841
  %v1843 = vpop.f32.mrf.mxu0
  %v1844 = vadd.f32 %v1513, %v1843
  %v1845 = vpop.f32.mrf.mxu0
  %1846 = vmatprep.mubr.f32.mxu0 0.0
  %v1847 = vand.u32 %v141, 4294901760
  %1848 = vmatmul.mubr.f32.gmra.mxu0 %v1847
  %v1849 = vpop.f32.mrf.mxu0
  %v1850 = vadd.f32 %v1521, %v1849
  %v1851 = vpop.f32.mrf.mxu0
  %1852 = vmatprep.mubr.f32.mxu0 0.0
  %v1853 = vand.u32 %v144, 4294901760
  %1854 = vmatmul.mubr.f32.gmra.mxu0 %v1853
  %v1855 = vpop.f32.mrf.mxu0
  %v1856 = vadd.f32 %v1529, %v1855
  %v1857 = vpop.f32.mrf.mxu0
  %1858 = vmatprep.mubr.f32.mxu0 0.0
  %v1859 = vand.u32 %v147, 4294901760
  %1860 = vmatmul.mubr.f32.gmra.mxu0 %v1859
  %v1861 = vpop.f32.mrf.mxu0
  %v1862 = vadd.f32 %v1537, %v1861
  %v1863 = vpop.f32.mrf.mxu0
  %1864 = vmatprep.mubr.f32.mxu0 0.0
  %v1865 = vand.u32 %v150, 4294901760
  %1866 = vmatmul.mubr.f32.gmra.mxu0 %v1865
  %v1867 = vpop.f32.mrf.mxu0
  %v1868 = vadd.f32 %v1545, %v1867
  %v1869 = vpop.f32.mrf.mxu0
  %1870 = vmatprep.mubr.f32.mxu0 0.0
  %v1871 = vand.u32 %v153, 4294901760
  %1872 = vmatmul.mubr.f32.gmra.mxu0 %v1871
  %v1873 = vpop.f32.mrf.mxu0
  %v1874 = vadd.f32 %v1553, %v1873
  %v1875 = vpop.f32.mrf.mxu0
  %1876 = vmatprep.mubr.f32.mxu0 0.0
  %v1877 = vand.u32 %v156, 4294901760
  %1878 = vmatmul.mubr.f32.gmra.mxu0 %v1877
  %v1879 = vpop.f32.mrf.mxu0
  %v1880 = vadd.f32 %v1561, %v1879
  %v1881 = vpop.f32.mrf.mxu0
  %1882 = vmatprep.mubr.f32.mxu0 0.0
  %v1883 = vand.u32 %v159, 4294901760
  %1884 = vmatmul.mubr.f32.gmra.mxu0 %v1883
  %v1885 = vpop.f32.mrf.mxu0
  %v1886 = vadd.f32 %v1569, %v1885
  %v1887 = vpop.f32.mrf.mxu0
  %1888 = vmatprep.mubr.f32.mxu0 0.0
  %v1889 = vand.u32 %v162, 4294901760
  %1890 = vmatmul.mubr.f32.gmra.mxu0 %v1889
  %v1891 = vpop.f32.mrf.mxu0
  %v1892 = vadd.f32 %v1577, %v1891
  %v1893 = vpop.f32.mrf.mxu0
  %1894 = vmatprep.mubr.f32.mxu0 0.0
  %v1895 = vand.u32 %v165, 4294901760
  %1896 = vmatmul.mubr.f32.gmra.mxu0 %v1895
  %v1897 = vpop.f32.mrf.mxu0
  %v1898 = vadd.f32 %v1585, %v1897
  %v1899 = vpop.f32.mrf.mxu0
  %1900 = vmatprep.mubr.f32.mxu0 0.0
  %v1901 = vand.u32 %v168, 4294901760
  %1902 = vmatmul.mubr.f32.gmra.mxu0 %v1901
  %v1903 = vpop.f32.mrf.mxu0
  %v1904 = vadd.f32 %v1593, %v1903
  %v1905 = vpop.f32.mrf.mxu0
  %1906 = vmatprep.mubr.f32.mxu0 0.0
  %v1907 = vand.u32 %v171, 4294901760
  %1908 = vmatmul.mubr.f32.gmra.mxu0 %v1907
  %v1909 = vpop.f32.mrf.mxu0
  %v1910 = vadd.f32 %v1601, %v1909
  %v1911 = vpop.f32.mrf.mxu0
  %1912 = vmatprep.mubr.f32.mxu0 0.0
  %v1913 = vand.u32 %v174, 4294901760
  %1914 = vmatmul.mubr.f32.gmra.mxu0 %v1913
  %v1915 = vpop.f32.mrf.mxu0
  %v1916 = vadd.f32 %v1609, %v1915
  %v1917 = vpop.f32.mrf.mxu0
  %1918 = vmatprep.mubr.f32.mxu0 0.0
  %v1919 = vand.u32 %v177, 4294901760
  %1920 = vmatmul.mubr.f32.gmra.mxu0 %v1919
  %v1921 = vpop.f32.mrf.mxu0
  %v1922 = vadd.f32 %v1617, %v1921
  %v1923 = vpop.f32.mrf.mxu0
  %1924 = vmatprep.mubr.f32.mxu0 0.0
  %v1925 = vand.u32 %v180, 4294901760
  %1926 = vmatmul.mubr.f32.gmra.mxu0 %v1925
  %v1927 = vpop.f32.mrf.mxu0
  %v1928 = vadd.f32 %v1625, %v1927
  %v1929 = vpop.f32.mrf.mxu0
  %1930 = vmatprep.mubr.f32.mxu0 0.0
  %v1931 = vand.u32 %v183, 4294901760
  %1932 = vmatmul.mubr.f32.gmra.mxu0 %v1931
  %v1933 = vpop.f32.mrf.mxu0
  %v1934 = vadd.f32 %v1633, %v1933
  %v1935 = vpop.f32.mrf.mxu0
  %1936 = vmatprep.mubr.f32.mxu0 0.0
  %v1937 = vand.u32 %v186, 4294901760
  %1938 = vmatmul.mubr.f32.gmra.mxu0 %v1937
  %v1939 = vpop.f32.mrf.mxu0
  %v1940 = vadd.f32 %v1641, %v1939
  %v1941 = vpop.f32.mrf.mxu0
  %1942 = vdwg.mxu0
  %1943 = vmatprep.subr.mxu0 0.0
  %1944 = vmatpush1.msra.mxu0 0.0
  %1945 = vmatprep.subr.mxu0 0.0
  %1946 = vmatpush1.msra.mxu0 0.0
  %1947 = vmatprep.subr.mxu0 0.0
  %1948 = vmatpush1.msra.mxu0 0.0
  %1949 = vmatprep.subr.mxu0 0.0
  %1950 = vmatpush1.msra.mxu0 0.0
  %1951 = vmatprep.subr.mxu0 0.0
  %1952 = vmatpush1.msra.mxu0 0.0
  %1953 = vmatprep.subr.mxu0 0.0
  %1954 = vmatpush1.msra.mxu0 0.0
  %1955 = vmatprep.subr.mxu0 0.0
  %1956 = vmatpush1.msra.mxu0 0.0
  %1957 = vmatprep.subr.mxu0 0.0
  %1958 = vmatpush1.msra.mxu0 0.0
  %1959 = vmatprep.subr.mxu0 0.0
  %1960 = vmatpush1.msra.mxu0 0.0
  %1961 = vmatprep.subr.mxu0 0.0
  %1962 = vmatpush1.msra.mxu0 0.0
  %1963 = vmatprep.subr.mxu0 0.0
  %1964 = vmatpush1.msra.mxu0 0.0
  %1965 = vmatprep.subr.mxu0 0.0
  %1966 = vmatpush1.msra.mxu0 0.0
  %1967 = vmatprep.subr.mxu0 0.0
  %1968 = vmatpush1.msra.mxu0 0.0
  %1969 = vmatprep.subr.mxu0 0.0
  %1970 = vmatpush1.msra.mxu0 0.0
  %1971 = vmatprep.subr.mxu0 0.0
  %v1972 = vand.u32 %v65, 4294901760
  %1973 = vmatpush1.msra.mxu0 %v1972
  %1974 = vmatprep.subr.mxu0 0.0
  %v1975 = vand.u32 %v64, 4294901760
  %1976 = vmatpush1.msra.mxu0 %v1975
  %1977 = vmatprep.subr.mxu0 0.0
  %1978 = vmatpush2.msra.mxu0 0.0
  %1979 = vmatprep.subr.mxu0 0.0
  %1980 = vmatpush2.msra.mxu0 0.0
  %1981 = vmatprep.subr.mxu0 0.0
  %1982 = vmatpush2.msra.mxu0 0.0
  %1983 = vmatprep.subr.mxu0 0.0
  %1984 = vmatpush2.msra.mxu0 0.0
  %1985 = vmatprep.subr.mxu0 0.0
  %1986 = vmatpush2.msra.mxu0 0.0
  %1987 = vmatprep.subr.mxu0 0.0
  %1988 = vmatpush2.msra.mxu0 0.0
  %1989 = vmatprep.subr.mxu0 0.0
  %1990 = vmatpush2.msra.mxu0 0.0
  %1991 = vmatprep.subr.mxu0 0.0
  %1992 = vmatpush2.msra.mxu0 0.0
  %1993 = vmatprep.subr.mxu0 0.0
  %1994 = vmatpush2.msra.mxu0 0.0
  %1995 = vmatprep.subr.mxu0 0.0
  %1996 = vmatpush2.msra.mxu0 0.0
  %1997 = vmatprep.subr.mxu0 0.0
  %1998 = vmatpush2.msra.mxu0 0.0
  %1999 = vmatprep.subr.mxu0 0.0
  %2000 = vmatpush2.msra.mxu0 0.0
  %2001 = vmatprep.subr.mxu0 0.0
  %2002 = vmatpush2.msra.mxu0 0.0
  %2003 = vmatprep.subr.mxu0 0.0
  %2004 = vmatpush2.msra.mxu0 0.0
  %2005 = vmatprep.subr.mxu0 0.0
  %2006 = vmatpush2.msra.mxu0 0.0
  %2007 = vmatprep.subr.mxu0 0.0
  %2008 = vmatpush2.msra.mxu0 0.0
  %2009 = vmatprep.mubr.f32.mxu0 0.0
  %v2010 = vand.u32 %v75, 4294901760
  %2011 = vmatmul.mubr.f32.gmra.mxu0 %v2010
  %v2012 = vpop.f32.mrf.mxu0
  %v2013 = vadd.f32 %v1718, %v2012
  %v2014 = vpop.f32.mrf.mxu0
  %2015 = vmatprep.mubr.f32.mxu0 0.0
  %v2016 = vand.u32 %v78, 4294901760
  %2017 = vmatmul.mubr.f32.gmra.mxu0 %v2016
  %v2018 = vpop.f32.mrf.mxu0
  %v2019 = vadd.f32 %v1724, %v2018
  %v2020 = vpop.f32.mrf.mxu0
  %2021 = vmatprep.mubr.f32.mxu0 0.0
  %v2022 = vand.u32 %v81, 4294901760
  %2023 = vmatmul.mubr.f32.gmra.mxu0 %v2022
  %v2024 = vpop.f32.mrf.mxu0
  %v2025 = vadd.f32 %v1730, %v2024
  %v2026 = vpop.f32.mrf.mxu0
  %2027 = vmatprep.mubr.f32.mxu0 0.0
  %v2028 = vand.u32 %v84, 4294901760
  %2029 = vmatmul.mubr.f32.gmra.mxu0 %v2028
  %v2030 = vpop.f32.mrf.mxu0
  %v2031 = vadd.f32 %v1736, %v2030
  %v2032 = vpop.f32.mrf.mxu0
  %2033 = vmatprep.mubr.f32.mxu0 0.0
  %v2034 = vand.u32 %v87, 4294901760
  %2035 = vmatmul.mubr.f32.gmra.mxu0 %v2034
  %v2036 = vpop.f32.mrf.mxu0
  %v2037 = vadd.f32 %v1742, %v2036
  %v2038 = vpop.f32.mrf.mxu0
  %2039 = vmatprep.mubr.f32.mxu0 0.0
  %v2040 = vand.u32 %v90, 4294901760
  %2041 = vmatmul.mubr.f32.gmra.mxu0 %v2040
  %v2042 = vpop.f32.mrf.mxu0
  %v2043 = vadd.f32 %v1748, %v2042
  %v2044 = vpop.f32.mrf.mxu0
  %2045 = vmatprep.mubr.f32.mxu0 0.0
  %v2046 = vand.u32 %v93, 4294901760
  %2047 = vmatmul.mubr.f32.gmra.mxu0 %v2046
  %v2048 = vpop.f32.mrf.mxu0
  %v2049 = vadd.f32 %v1754, %v2048
  %v2050 = vpop.f32.mrf.mxu0
  %2051 = vmatprep.mubr.f32.mxu0 0.0
  %v2052 = vand.u32 %v96, 4294901760
  %2053 = vmatmul.mubr.f32.gmra.mxu0 %v2052
  %v2054 = vpop.f32.mrf.mxu0
  %v2055 = vadd.f32 %v1760, %v2054
  %v2056 = vpop.f32.mrf.mxu0
  %2057 = vmatprep.mubr.f32.mxu0 0.0
  %v2058 = vand.u32 %v99, 4294901760
  %2059 = vmatmul.mubr.f32.gmra.mxu0 %v2058
  %v2060 = vpop.f32.mrf.mxu0
  %v2061 = vadd.f32 %v1766, %v2060
  %v2062 = vpop.f32.mrf.mxu0
  %2063 = vmatprep.mubr.f32.mxu0 0.0
  %v2064 = vand.u32 %v102, 4294901760
  %2065 = vmatmul.mubr.f32.gmra.mxu0 %v2064
  %v2066 = vpop.f32.mrf.mxu0
  %v2067 = vadd.f32 %v1772, %v2066
  %v2068 = vpop.f32.mrf.mxu0
  %2069 = vmatprep.mubr.f32.mxu0 0.0
  %v2070 = vand.u32 %v105, 4294901760
  %2071 = vmatmul.mubr.f32.gmra.mxu0 %v2070
  %v2072 = vpop.f32.mrf.mxu0
  %v2073 = vadd.f32 %v1778, %v2072
  %v2074 = vpop.f32.mrf.mxu0
  %2075 = vmatprep.mubr.f32.mxu0 0.0
  %v2076 = vand.u32 %v108, 4294901760
  %2077 = vmatmul.mubr.f32.gmra.mxu0 %v2076
  %v2078 = vpop.f32.mrf.mxu0
  %v2079 = vadd.f32 %v1784, %v2078
  %v2080 = vpop.f32.mrf.mxu0
  %2081 = vmatprep.mubr.f32.mxu0 0.0
  %v2082 = vand.u32 %v111, 4294901760
  %2083 = vmatmul.mubr.f32.gmra.mxu0 %v2082
  %v2084 = vpop.f32.mrf.mxu0
  %v2085 = vadd.f32 %v1790, %v2084
  %v2086 = vpop.f32.mrf.mxu0
  %2087 = vmatprep.mubr.f32.mxu0 0.0
  %v2088 = vand.u32 %v114, 4294901760
  %2089 = vmatmul.mubr.f32.gmra.mxu0 %v2088
  %v2090 = vpop.f32.mrf.mxu0
  %v2091 = vadd.f32 %v1796, %v2090
  %v2092 = vpop.f32.mrf.mxu0
  %2093 = vmatprep.mubr.f32.mxu0 0.0
  %v2094 = vand.u32 %v117, 4294901760
  %2095 = vmatmul.mubr.f32.gmra.mxu0 %v2094
  %v2096 = vpop.f32.mrf.mxu0
  %v2097 = vadd.f32 %v1802, %v2096
  %v2098 = vpop.f32.mrf.mxu0
  %2099 = vmatprep.mubr.f32.mxu0 0.0
  %v2100 = vand.u32 %v120, 4294901760
  %2101 = vmatmul.mubr.f32.gmra.mxu0 %v2100
  %v2102 = vpop.f32.mrf.mxu0
  %v2103 = vadd.f32 %v1808, %v2102
  %v2104 = vpop.f32.mrf.mxu0
  %2105 = vmatprep.mubr.f32.mxu0 0.0
  %v2106 = vand.u32 %v123, 4294901760
  %2107 = vmatmul.mubr.f32.gmra.mxu0 %v2106
  %v2108 = vpop.f32.mrf.mxu0
  %v2109 = vadd.f32 %v1814, %v2108
  %v2110 = vpop.f32.mrf.mxu0
  %2111 = vmatprep.mubr.f32.mxu0 0.0
  %v2112 = vand.u32 %v126, 4294901760
  %2113 = vmatmul.mubr.f32.gmra.mxu0 %v2112
  %v2114 = vpop.f32.mrf.mxu0
  %v2115 = vadd.f32 %v1820, %v2114
  %v2116 = vpop.f32.mrf.mxu0
  %2117 = vmatprep.mubr.f32.mxu0 0.0
  %v2118 = vand.u32 %v129, 4294901760
  %2119 = vmatmul.mubr.f32.gmra.mxu0 %v2118
  %v2120 = vpop.f32.mrf.mxu0
  %v2121 = vadd.f32 %v1826, %v2120
  %v2122 = vpop.f32.mrf.mxu0
  %2123 = vmatprep.mubr.f32.mxu0 0.0
  %v2124 = vand.u32 %v132, 4294901760
  %2125 = vmatmul.mubr.f32.gmra.mxu0 %v2124
  %v2126 = vpop.f32.mrf.mxu0
  %v2127 = vadd.f32 %v1832, %v2126
  %v2128 = vpop.f32.mrf.mxu0
  %2129 = vmatprep.mubr.f32.mxu0 0.0
  %v2130 = vand.u32 %v135, 4294901760
  %2131 = vmatmul.mubr.f32.gmra.mxu0 %v2130
  %v2132 = vpop.f32.mrf.mxu0
  %v2133 = vadd.f32 %v1838, %v2132
  %v2134 = vpop.f32.mrf.mxu0
  %2135 = vmatprep.mubr.f32.mxu0 0.0
  %v2136 = vand.u32 %v138, 4294901760
  %2137 = vmatmul.mubr.f32.gmra.mxu0 %v2136
  %v2138 = vpop.f32.mrf.mxu0
  %v2139 = vadd.f32 %v1844, %v2138
  %v2140 = vpop.f32.mrf.mxu0
  %2141 = vmatprep.mubr.f32.mxu0 0.0
  %v2142 = vand.u32 %v141, 4294901760
  %2143 = vmatmul.mubr.f32.gmra.mxu0 %v2142
  %v2144 = vpop.f32.mrf.mxu0
  %v2145 = vadd.f32 %v1850, %v2144
  %v2146 = vpop.f32.mrf.mxu0
  %2147 = vmatprep.mubr.f32.mxu0 0.0
  %v2148 = vand.u32 %v144, 4294901760
  %2149 = vmatmul.mubr.f32.gmra.mxu0 %v2148
  %v2150 = vpop.f32.mrf.mxu0
  %v2151 = vadd.f32 %v1856, %v2150
  %v2152 = vpop.f32.mrf.mxu0
  %2153 = vmatprep.mubr.f32.mxu0 0.0
  %v2154 = vand.u32 %v147, 4294901760
  %2155 = vmatmul.mubr.f32.gmra.mxu0 %v2154
  %v2156 = vpop.f32.mrf.mxu0
  %v2157 = vadd.f32 %v1862, %v2156
  %v2158 = vpop.f32.mrf.mxu0
  %2159 = vmatprep.mubr.f32.mxu0 0.0
  %v2160 = vand.u32 %v150, 4294901760
  %2161 = vmatmul.mubr.f32.gmra.mxu0 %v2160
  %v2162 = vpop.f32.mrf.mxu0
  %v2163 = vadd.f32 %v1868, %v2162
  %v2164 = vpop.f32.mrf.mxu0
  %2165 = vmatprep.mubr.f32.mxu0 0.0
  %v2166 = vand.u32 %v153, 4294901760
  %2167 = vmatmul.mubr.f32.gmra.mxu0 %v2166
  %v2168 = vpop.f32.mrf.mxu0
  %v2169 = vadd.f32 %v1874, %v2168
  %v2170 = vpop.f32.mrf.mxu0
  %2171 = vmatprep.mubr.f32.mxu0 0.0
  %v2172 = vand.u32 %v156, 4294901760
  %2173 = vmatmul.mubr.f32.gmra.mxu0 %v2172
  %v2174 = vpop.f32.mrf.mxu0
  %v2175 = vadd.f32 %v1880, %v2174
  %v2176 = vpop.f32.mrf.mxu0
  %2177 = vmatprep.mubr.f32.mxu0 0.0
  %v2178 = vand.u32 %v159, 4294901760
  %2179 = vmatmul.mubr.f32.gmra.mxu0 %v2178
  %v2180 = vpop.f32.mrf.mxu0
  %v2181 = vadd.f32 %v1886, %v2180
  %v2182 = vpop.f32.mrf.mxu0
  %2183 = vmatprep.mubr.f32.mxu0 0.0
  %v2184 = vand.u32 %v162, 4294901760
  %2185 = vmatmul.mubr.f32.gmra.mxu0 %v2184
  %v2186 = vpop.f32.mrf.mxu0
  %v2187 = vadd.f32 %v1892, %v2186
  %v2188 = vpop.f32.mrf.mxu0
  %2189 = vmatprep.mubr.f32.mxu0 0.0
  %v2190 = vand.u32 %v165, 4294901760
  %2191 = vmatmul.mubr.f32.gmra.mxu0 %v2190
  %v2192 = vpop.f32.mrf.mxu0
  %v2193 = vadd.f32 %v1898, %v2192
  %v2194 = vpop.f32.mrf.mxu0
  %2195 = vmatprep.mubr.f32.mxu0 0.0
  %v2196 = vand.u32 %v168, 4294901760
  %2197 = vmatmul.mubr.f32.gmra.mxu0 %v2196
  %v2198 = vpop.f32.mrf.mxu0
  %v2199 = vadd.f32 %v1904, %v2198
  %v2200 = vpop.f32.mrf.mxu0
  %2201 = vmatprep.mubr.f32.mxu0 0.0
  %v2202 = vand.u32 %v171, 4294901760
  %2203 = vmatmul.mubr.f32.gmra.mxu0 %v2202
  %v2204 = vpop.f32.mrf.mxu0
  %v2205 = vadd.f32 %v1910, %v2204
  %v2206 = vpop.f32.mrf.mxu0
  %2207 = vmatprep.mubr.f32.mxu0 0.0
  %v2208 = vand.u32 %v174, 4294901760
  %2209 = vmatmul.mubr.f32.gmra.mxu0 %v2208
  %v2210 = vpop.f32.mrf.mxu0
  %v2211 = vadd.f32 %v1916, %v2210
  %v2212 = vpop.f32.mrf.mxu0
  %2213 = vmatprep.mubr.f32.mxu0 0.0
  %v2214 = vand.u32 %v177, 4294901760
  %2215 = vmatmul.mubr.f32.gmra.mxu0 %v2214
  %v2216 = vpop.f32.mrf.mxu0
  %v2217 = vadd.f32 %v1922, %v2216
  %v2218 = vpop.f32.mrf.mxu0
  %2219 = vmatprep.mubr.f32.mxu0 0.0
  %v2220 = vand.u32 %v180, 4294901760
  %2221 = vmatmul.mubr.f32.gmra.mxu0 %v2220
  %v2222 = vpop.f32.mrf.mxu0
  %v2223 = vadd.f32 %v1928, %v2222
  %v2224 = vpop.f32.mrf.mxu0
  %2225 = vmatprep.mubr.f32.mxu0 0.0
  %v2226 = vand.u32 %v183, 4294901760
  %2227 = vmatmul.mubr.f32.gmra.mxu0 %v2226
  %v2228 = vpop.f32.mrf.mxu0
  %v2229 = vadd.f32 %v1934, %v2228
  %v2230 = vpop.f32.mrf.mxu0
  %2231 = vmatprep.mubr.f32.mxu0 0.0
  %v2232 = vand.u32 %v186, 4294901760
  %2233 = vmatmul.mubr.f32.gmra.mxu0 %v2232
  %v2234 = vpop.f32.mrf.mxu0
  %v2235 = vadd.f32 %v1940, %v2234
  %v2236 = vpop.f32.mrf.mxu0
  %2237 = vdwg.mxu0
  %v2238 = vmax.f32 %v2013, 0.0
  %v2239 = vmax.f32 %v2019, 0.0
  %v2240 = vmax.f32 %v2025, 0.0
  %v2241 = vmax.f32 %v2031, 0.0
  %v2242 = vmax.f32 %v2037, 0.0
  %v2243 = vmax.f32 %v2043, 0.0
  %v2244 = vmax.f32 %v2049, 0.0
  %v2245 = vmax.f32 %v2055, 0.0
  %v2246 = vmax.f32 %v2061, 0.0
  %v2247 = vmax.f32 %v2067, 0.0
  %v2248 = vmax.f32 %v2073, 0.0
  %v2249 = vmax.f32 %v2079, 0.0
  %v2250 = vmax.f32 %v2085, 0.0
  %v2251 = vmax.f32 %v2091, 0.0
  %v2252 = vmax.f32 %v2097, 0.0
  %v2253 = vmax.f32 %v2103, 0.0
  %v2254 = vmax.f32 %v2109, 0.0
  %v2255 = vmax.f32 %v2115, 0.0
  %v2256 = vmax.f32 %v2121, 0.0
  %v2257 = vmax.f32 %v2127, 0.0
  %v2258 = vmax.f32 %v2133, 0.0
  %v2259 = vmax.f32 %v2139, 0.0
  %v2260 = vmax.f32 %v2145, 0.0
  %v2261 = vmax.f32 %v2151, 0.0
  %v2262 = vmax.f32 %v2157, 0.0
  %v2263 = vmax.f32 %v2163, 0.0
  %v2264 = vmax.f32 %v2169, 0.0
  %v2265 = vmax.f32 %v2175, 0.0
  %v2266 = vmax.f32 %v2181, 0.0
  %v2267 = vmax.f32 %v2187, 0.0
  %v2268 = vmax.f32 %v2193, 0.0
  %v2269 = vmax.f32 %v2199, 0.0
  %v2270 = vmax.f32 %v2205, 0.0
  %v2271 = vmax.f32 %v2211, 0.0
  %v2272 = vmax.f32 %v2217, 0.0
  %v2273 = vmax.f32 %v2223, 0.0
  %v2274 = vmax.f32 %v2229, 0.0
  %v2275 = vmax.f32 %v2235, 0.0
  %v2276 = vld [vmem:[%s3] sm:$0xff]
  %v2277 = vld [vmem:[%s3 + $0x8] sm:$0xff]
  %v2278 = vld [vmem:[%s3 + $0x10] sm:$0xff]
  %v2279 = vld [vmem:[%s3 + $0x18] sm:$0xff]
  %v2280 = vld [vmem:[%s4] sm:$0x1]
  %v2282 = vlaneseq
  %v2283 = vshrl.u32 %v2282, 7
  %v2284 = vsub.s32 0, %v2283
  %v2285 = vrot.slane %v2280, %v2284
  %vm2287 = vcmask 261120
  %v2289 = vsel %vm2287, %v2238, 0
  %v2292 = vsel %vm2287, %v2239, 0
  %v2295 = vsel %vm2287, %v2240, 0
  %v2298 = vsel %vm2287, %v2241, 0
  %v2301 = vsel %vm2287, %v2242, 0
  %v2304 = vsel %vm2287, %v2243, 0
  %v2307 = vsel %vm2287, %v2244, 0
  %v2310 = vsel %vm2287, %v2245, 0
  %v2313 = vsel %vm2287, %v2246, 0
  %v2316 = vsel %vm2287, %v2247, 0
  %v2319 = vsel %vm2287, %v2248, 0
  %v2322 = vsel %vm2287, %v2249, 0
  %v2325 = vsel %vm2287, %v2250, 0
  %v2328 = vsel %vm2287, %v2251, 0
  %v2331 = vsel %vm2287, %v2252, 0
  %v2334 = vsel %vm2287, %v2253, 0
  %v2337 = vsel %vm2287, %v2254, 0
  %v2340 = vsel %vm2287, %v2255, 0
  %v2343 = vsel %vm2287, %v2256, 0
  %v2346 = vsel %vm2287, %v2257, 0
  %v2349 = vsel %vm2287, %v2258, 0
  %v2352 = vsel %vm2287, %v2259, 0
  %v2355 = vsel %vm2287, %v2260, 0
  %v2358 = vsel %vm2287, %v2261, 0
  %v2361 = vsel %vm2287, %v2262, 0
  %v2364 = vsel %vm2287, %v2263, 0
  %v2367 = vsel %vm2287, %v2264, 0
  %v2370 = vsel %vm2287, %v2265, 0
  %v2373 = vsel %vm2287, %v2266, 0
  %v2376 = vsel %vm2287, %v2267, 0
  %v2379 = vsel %vm2287, %v2268, 0
  %v2382 = vsel %vm2287, %v2269, 0
  %v2385 = vsel %vm2287, %v2270, 0
  %v2388 = vsel %vm2287, %v2271, 0
  %v2391 = vsel %vm2287, %v2272, 0
  %v2394 = vsel %vm2287, %v2273, 0
  %v2397 = vsel %vm2287, %v2274, 0
  %v2400 = vsel %vm2287, %v2275, 0
  %2402 = vmatprep.subr.mxu0 0.0
  %2403 = vmatpush1.msra.mxu0 0.0
  %2404 = vmatprep.subr.mxu0 0.0
  %2405 = vmatpush1.msra.mxu0 0.0
  %2406 = vmatprep.subr.mxu0 0.0
  %2407 = vmatpush1.msra.mxu0 0.0
  %2408 = vmatprep.subr.mxu0 0.0
  %2409 = vmatpush1.msra.mxu0 0.0
  %2410 = vmatprep.subr.mxu0 0.0
  %2411 = vmatpush1.msra.mxu0 0.0
  %2412 = vmatprep.subr.mxu0 0.0
  %2413 = vmatpush1.msra.mxu0 0.0
  %2414 = vmatprep.subr.mxu0 0.0
  %2415 = vmatpush1.msra.mxu0 0.0
  %2416 = vmatprep.subr.mxu0 0.0
  %2417 = vmatpush1.msra.mxu0 0.0
  %2418 = vmatprep.subr.mxu0 0.0
  %2419 = vmatpush1.msra.mxu0 0.0
  %2420 = vmatprep.subr.mxu0 0.0
  %2421 = vmatpush1.msra.mxu0 0.0
  %2422 = vmatprep.subr.mxu0 0.0
  %2423 = vmatpush1.msra.mxu0 0.0
  %2424 = vmatprep.subr.mxu0 0.0
  %2425 = vmatpush1.msra.mxu0 0.0
  %2426 = vmatprep.subr.mxu0 0.0
  %v2427 = vand.u32 %v2279, 4294901760
  %2428 = vmatpush1.msra.mxu0 %v2427
  %2429 = vmatprep.subr.mxu0 0.0
  %v2430 = vand.u32 %v2278, 4294901760
  %2431 = vmatpush1.msra.mxu0 %v2430
  %2432 = vmatprep.subr.mxu0 0.0
  %v2433 = vand.u32 %v2277, 4294901760
  %2434 = vmatpush1.msra.mxu0 %v2433
  %2435 = vmatprep.subr.mxu0 0.0
  %v2436 = vand.u32 %v2276, 4294901760
  %2437 = vmatpush1.msra.mxu0 %v2436
  %2438 = vmatprep.subr.mxu0 0.0
  %2439 = vmatpush2.msra.mxu0 0.0
  %2440 = vmatprep.subr.mxu0 0.0
  %2441 = vmatpush2.msra.mxu0 0.0
  %2442 = vmatprep.subr.mxu0 0.0
  %2443 = vmatpush2.msra.mxu0 0.0
  %2444 = vmatprep.subr.mxu0 0.0
  %2445 = vmatpush2.msra.mxu0 0.0
  %2446 = vmatprep.subr.mxu0 0.0
  %2447 = vmatpush2.msra.mxu0 0.0
  %2448 = vmatprep.subr.mxu0 0.0
  %2449 = vmatpush2.msra.mxu0 0.0
  %2450 = vmatprep.subr.mxu0 0.0
  %2451 = vmatpush2.msra.mxu0 0.0
  %2452 = vmatprep.subr.mxu0 0.0
  %2453 = vmatpush2.msra.mxu0 0.0
  %2454 = vmatprep.subr.mxu0 0.0
  %2455 = vmatpush2.msra.mxu0 0.0
  %2456 = vmatprep.subr.mxu0 0.0
  %2457 = vmatpush2.msra.mxu0 0.0
  %2458 = vmatprep.subr.mxu0 0.0
  %2459 = vmatpush2.msra.mxu0 0.0
  %2460 = vmatprep.subr.mxu0 0.0
  %2461 = vmatpush2.msra.mxu0 0.0
  %2462 = vmatprep.subr.mxu0 0.0
  %2463 = vmatpush2.msra.mxu0 0.0
  %2464 = vmatprep.subr.mxu0 0.0
  %2465 = vmatpush2.msra.mxu0 0.0
  %2466 = vmatprep.subr.mxu0 0.0
  %2467 = vmatpush2.msra.mxu0 0.0
  %2468 = vmatprep.subr.mxu0 0.0
  %2469 = vmatpush2.msra.mxu0 0.0
  %2470 = vmatprep.mubr.f32.mxu0 0.0
  %v2471 = vand.u32 %v2289, 4294901760
  %v2472 = vsub.f32 %v2289, %v2471
  %v2473 = vand.u32 %v2472, 4294901760
  %v2474 = vsub.f32 %v2472, %v2473
  %v2475 = vand.u32 %v2474, 4294901760
  %2476 = vmatmul.mubr.f32.gmra.mxu0 %v2475
  %v2477 = vpop.f32.mrf.mxu0
  %v2478 = vadd.f32 %v2285, %v2477
  %v2479 = vpop.f32.mrf.mxu0
  %2480 = vmatprep.mubr.f32.mxu0 0.0
  %v2481 = vand.u32 %v2292, 4294901760
  %v2482 = vsub.f32 %v2292, %v2481
  %v2483 = vand.u32 %v2482, 4294901760
  %v2484 = vsub.f32 %v2482, %v2483
  %v2485 = vand.u32 %v2484, 4294901760
  %2486 = vmatmul.mubr.f32.gmra.mxu0 %v2485
  %v2487 = vpop.f32.mrf.mxu0
  %v2488 = vadd.f32 %v2285, %v2487
  %v2489 = vpop.f32.mrf.mxu0
  %2490 = vmatprep.mubr.f32.mxu0 0.0
  %v2491 = vand.u32 %v2295, 4294901760
  %v2492 = vsub.f32 %v2295, %v2491
  %v2493 = vand.u32 %v2492, 4294901760
  %v2494 = vsub.f32 %v2492, %v2493
  %v2495 = vand.u32 %v2494, 4294901760
  %2496 = vmatmul.mubr.f32.gmra.mxu0 %v2495
  %v2497 = vpop.f32.mrf.mxu0
  %v2498 = vadd.f32 %v2285, %v2497
  %v2499 = vpop.f32.mrf.mxu0
  %2500 = vmatprep.mubr.f32.mxu0 0.0
  %v2501 = vand.u32 %v2298, 4294901760
  %v2502 = vsub.f32 %v2298, %v2501
  %v2503 = vand.u32 %v2502, 4294901760
  %v2504 = vsub.f32 %v2502, %v2503
  %v2505 = vand.u32 %v2504, 4294901760
  %2506 = vmatmul.mubr.f32.gmra.mxu0 %v2505
  %v2507 = vpop.f32.mrf.mxu0
  %v2508 = vadd.f32 %v2285, %v2507
  %v2509 = vpop.f32.mrf.mxu0
  %2510 = vmatprep.mubr.f32.mxu0 0.0
  %v2511 = vand.u32 %v2301, 4294901760
  %v2512 = vsub.f32 %v2301, %v2511
  %v2513 = vand.u32 %v2512, 4294901760
  %v2514 = vsub.f32 %v2512, %v2513
  %v2515 = vand.u32 %v2514, 4294901760
  %2516 = vmatmul.mubr.f32.gmra.mxu0 %v2515
  %v2517 = vpop.f32.mrf.mxu0
  %v2518 = vadd.f32 %v2285, %v2517
  %v2519 = vpop.f32.mrf.mxu0
  %2520 = vmatprep.mubr.f32.mxu0 0.0
  %v2521 = vand.u32 %v2304, 4294901760
  %v2522 = vsub.f32 %v2304, %v2521
  %v2523 = vand.u32 %v2522, 4294901760
  %v2524 = vsub.f32 %v2522, %v2523
  %v2525 = vand.u32 %v2524, 4294901760
  %2526 = vmatmul.mubr.f32.gmra.mxu0 %v2525
  %v2527 = vpop.f32.mrf.mxu0
  %v2528 = vadd.f32 %v2285, %v2527
  %v2529 = vpop.f32.mrf.mxu0
  %2530 = vmatprep.mubr.f32.mxu0 0.0
  %v2531 = vand.u32 %v2307, 4294901760
  %v2532 = vsub.f32 %v2307, %v2531
  %v2533 = vand.u32 %v2532, 4294901760
  %v2534 = vsub.f32 %v2532, %v2533
  %v2535 = vand.u32 %v2534, 4294901760
  %2536 = vmatmul.mubr.f32.gmra.mxu0 %v2535
  %v2537 = vpop.f32.mrf.mxu0
  %v2538 = vadd.f32 %v2285, %v2537
  %v2539 = vpop.f32.mrf.mxu0
  %2540 = vmatprep.mubr.f32.mxu0 0.0
  %v2541 = vand.u32 %v2310, 4294901760
  %v2542 = vsub.f32 %v2310, %v2541
  %v2543 = vand.u32 %v2542, 4294901760
  %v2544 = vsub.f32 %v2542, %v2543
  %v2545 = vand.u32 %v2544, 4294901760
  %2546 = vmatmul.mubr.f32.gmra.mxu0 %v2545
  %v2547 = vpop.f32.mrf.mxu0
  %v2548 = vadd.f32 %v2285, %v2547
  %v2549 = vpop.f32.mrf.mxu0
  %2550 = vmatprep.mubr.f32.mxu0 0.0
  %v2551 = vand.u32 %v2313, 4294901760
  %v2552 = vsub.f32 %v2313, %v2551
  %v2553 = vand.u32 %v2552, 4294901760
  %v2554 = vsub.f32 %v2552, %v2553
  %v2555 = vand.u32 %v2554, 4294901760
  %2556 = vmatmul.mubr.f32.gmra.mxu0 %v2555
  %v2557 = vpop.f32.mrf.mxu0
  %v2558 = vadd.f32 %v2285, %v2557
  %v2559 = vpop.f32.mrf.mxu0
  %2560 = vmatprep.mubr.f32.mxu0 0.0
  %v2561 = vand.u32 %v2316, 4294901760
  %v2562 = vsub.f32 %v2316, %v2561
  %v2563 = vand.u32 %v2562, 4294901760
  %v2564 = vsub.f32 %v2562, %v2563
  %v2565 = vand.u32 %v2564, 4294901760
  %2566 = vmatmul.mubr.f32.gmra.mxu0 %v2565
  %v2567 = vpop.f32.mrf.mxu0
  %v2568 = vadd.f32 %v2285, %v2567
  %v2569 = vpop.f32.mrf.mxu0
  %2570 = vmatprep.mubr.f32.mxu0 0.0
  %v2571 = vand.u32 %v2319, 4294901760
  %v2572 = vsub.f32 %v2319, %v2571
  %v2573 = vand.u32 %v2572, 4294901760
  %v2574 = vsub.f32 %v2572, %v2573
  %v2575 = vand.u32 %v2574, 4294901760
  %2576 = vmatmul.mubr.f32.gmra.mxu0 %v2575
  %v2577 = vpop.f32.mrf.mxu0
  %v2578 = vadd.f32 %v2285, %v2577
  %v2579 = vpop.f32.mrf.mxu0
  %2580 = vmatprep.mubr.f32.mxu0 0.0
  %v2581 = vand.u32 %v2322, 4294901760
  %v2582 = vsub.f32 %v2322, %v2581
  %v2583 = vand.u32 %v2582, 4294901760
  %v2584 = vsub.f32 %v2582, %v2583
  %v2585 = vand.u32 %v2584, 4294901760
  %2586 = vmatmul.mubr.f32.gmra.mxu0 %v2585
  %v2587 = vpop.f32.mrf.mxu0
  %v2588 = vadd.f32 %v2285, %v2587
  %v2589 = vpop.f32.mrf.mxu0
  %2590 = vmatprep.mubr.f32.mxu0 0.0
  %v2591 = vand.u32 %v2325, 4294901760
  %v2592 = vsub.f32 %v2325, %v2591
  %v2593 = vand.u32 %v2592, 4294901760
  %v2594 = vsub.f32 %v2592, %v2593
  %v2595 = vand.u32 %v2594, 4294901760
  %2596 = vmatmul.mubr.f32.gmra.mxu0 %v2595
  %v2597 = vpop.f32.mrf.mxu0
  %v2598 = vadd.f32 %v2285, %v2597
  %v2599 = vpop.f32.mrf.mxu0
  %2600 = vmatprep.mubr.f32.mxu0 0.0
  %v2601 = vand.u32 %v2328, 4294901760
  %v2602 = vsub.f32 %v2328, %v2601
  %v2603 = vand.u32 %v2602, 4294901760
  %v2604 = vsub.f32 %v2602, %v2603
  %v2605 = vand.u32 %v2604, 4294901760
  %2606 = vmatmul.mubr.f32.gmra.mxu0 %v2605
  %v2607 = vpop.f32.mrf.mxu0
  %v2608 = vadd.f32 %v2285, %v2607
  %v2609 = vpop.f32.mrf.mxu0
  %2610 = vmatprep.mubr.f32.mxu0 0.0
  %v2611 = vand.u32 %v2331, 4294901760
  %v2612 = vsub.f32 %v2331, %v2611
  %v2613 = vand.u32 %v2612, 4294901760
  %v2614 = vsub.f32 %v2612, %v2613
  %v2615 = vand.u32 %v2614, 4294901760
  %2616 = vmatmul.mubr.f32.gmra.mxu0 %v2615
  %v2617 = vpop.f32.mrf.mxu0
  %v2618 = vadd.f32 %v2285, %v2617
  %v2619 = vpop.f32.mrf.mxu0
  %2620 = vmatprep.mubr.f32.mxu0 0.0
  %v2621 = vand.u32 %v2334, 4294901760
  %v2622 = vsub.f32 %v2334, %v2621
  %v2623 = vand.u32 %v2622, 4294901760
  %v2624 = vsub.f32 %v2622, %v2623
  %v2625 = vand.u32 %v2624, 4294901760
  %2626 = vmatmul.mubr.f32.gmra.mxu0 %v2625
  %v2627 = vpop.f32.mrf.mxu0
  %v2628 = vadd.f32 %v2285, %v2627
  %v2629 = vpop.f32.mrf.mxu0
  %2630 = vmatprep.mubr.f32.mxu0 0.0
  %v2631 = vand.u32 %v2337, 4294901760
  %v2632 = vsub.f32 %v2337, %v2631
  %v2633 = vand.u32 %v2632, 4294901760
  %v2634 = vsub.f32 %v2632, %v2633
  %v2635 = vand.u32 %v2634, 4294901760
  %2636 = vmatmul.mubr.f32.gmra.mxu0 %v2635
  %v2637 = vpop.f32.mrf.mxu0
  %v2638 = vadd.f32 %v2285, %v2637
  %v2639 = vpop.f32.mrf.mxu0
  %2640 = vmatprep.mubr.f32.mxu0 0.0
  %v2641 = vand.u32 %v2340, 4294901760
  %v2642 = vsub.f32 %v2340, %v2641
  %v2643 = vand.u32 %v2642, 4294901760
  %v2644 = vsub.f32 %v2642, %v2643
  %v2645 = vand.u32 %v2644, 4294901760
  %2646 = vmatmul.mubr.f32.gmra.mxu0 %v2645
  %v2647 = vpop.f32.mrf.mxu0
  %v2648 = vadd.f32 %v2285, %v2647
  %v2649 = vpop.f32.mrf.mxu0
  %2650 = vmatprep.mubr.f32.mxu0 0.0
  %v2651 = vand.u32 %v2343, 4294901760
  %v2652 = vsub.f32 %v2343, %v2651
  %v2653 = vand.u32 %v2652, 4294901760
  %v2654 = vsub.f32 %v2652, %v2653
  %v2655 = vand.u32 %v2654, 4294901760
  %2656 = vmatmul.mubr.f32.gmra.mxu0 %v2655
  %v2657 = vpop.f32.mrf.mxu0
  %v2658 = vadd.f32 %v2285, %v2657
  %v2659 = vpop.f32.mrf.mxu0
  %2660 = vmatprep.mubr.f32.mxu0 0.0
  %v2661 = vand.u32 %v2346, 4294901760
  %v2662 = vsub.f32 %v2346, %v2661
  %v2663 = vand.u32 %v2662, 4294901760
  %v2664 = vsub.f32 %v2662, %v2663
  %v2665 = vand.u32 %v2664, 4294901760
  %2666 = vmatmul.mubr.f32.gmra.mxu0 %v2665
  %v2667 = vpop.f32.mrf.mxu0
  %v2668 = vadd.f32 %v2285, %v2667
  %v2669 = vpop.f32.mrf.mxu0
  %2670 = vmatprep.mubr.f32.mxu0 0.0
  %v2671 = vand.u32 %v2349, 4294901760
  %v2672 = vsub.f32 %v2349, %v2671
  %v2673 = vand.u32 %v2672, 4294901760
  %v2674 = vsub.f32 %v2672, %v2673
  %v2675 = vand.u32 %v2674, 4294901760
  %2676 = vmatmul.mubr.f32.gmra.mxu0 %v2675
  %v2677 = vpop.f32.mrf.mxu0
  %v2678 = vadd.f32 %v2285, %v2677
  %v2679 = vpop.f32.mrf.mxu0
  %2680 = vmatprep.mubr.f32.mxu0 0.0
  %v2681 = vand.u32 %v2352, 4294901760
  %v2682 = vsub.f32 %v2352, %v2681
  %v2683 = vand.u32 %v2682, 4294901760
  %v2684 = vsub.f32 %v2682, %v2683
  %v2685 = vand.u32 %v2684, 4294901760
  %2686 = vmatmul.mubr.f32.gmra.mxu0 %v2685
  %v2687 = vpop.f32.mrf.mxu0
  %v2688 = vadd.f32 %v2285, %v2687
  %v2689 = vpop.f32.mrf.mxu0
  %2690 = vmatprep.mubr.f32.mxu0 0.0
  %v2691 = vand.u32 %v2355, 4294901760
  %v2692 = vsub.f32 %v2355, %v2691
  %v2693 = vand.u32 %v2692, 4294901760
  %v2694 = vsub.f32 %v2692, %v2693
  %v2695 = vand.u32 %v2694, 4294901760
  %2696 = vmatmul.mubr.f32.gmra.mxu0 %v2695
  %v2697 = vpop.f32.mrf.mxu0
  %v2698 = vadd.f32 %v2285, %v2697
  %v2699 = vpop.f32.mrf.mxu0
  %2700 = vmatprep.mubr.f32.mxu0 0.0
  %v2701 = vand.u32 %v2358, 4294901760
  %v2702 = vsub.f32 %v2358, %v2701
  %v2703 = vand.u32 %v2702, 4294901760
  %v2704 = vsub.f32 %v2702, %v2703
  %v2705 = vand.u32 %v2704, 4294901760
  %2706 = vmatmul.mubr.f32.gmra.mxu0 %v2705
  %v2707 = vpop.f32.mrf.mxu0
  %v2708 = vadd.f32 %v2285, %v2707
  %v2709 = vpop.f32.mrf.mxu0
  %2710 = vmatprep.mubr.f32.mxu0 0.0
  %v2711 = vand.u32 %v2361, 4294901760
  %v2712 = vsub.f32 %v2361, %v2711
  %v2713 = vand.u32 %v2712, 4294901760
  %v2714 = vsub.f32 %v2712, %v2713
  %v2715 = vand.u32 %v2714, 4294901760
  %2716 = vmatmul.mubr.f32.gmra.mxu0 %v2715
  %v2717 = vpop.f32.mrf.mxu0
  %v2718 = vadd.f32 %v2285, %v2717
  %v2719 = vpop.f32.mrf.mxu0
  %2720 = vmatprep.mubr.f32.mxu0 0.0
  %v2721 = vand.u32 %v2364, 4294901760
  %v2722 = vsub.f32 %v2364, %v2721
  %v2723 = vand.u32 %v2722, 4294901760
  %v2724 = vsub.f32 %v2722, %v2723
  %v2725 = vand.u32 %v2724, 4294901760
  %2726 = vmatmul.mubr.f32.gmra.mxu0 %v2725
  %v2727 = vpop.f32.mrf.mxu0
  %v2728 = vadd.f32 %v2285, %v2727
  %v2729 = vpop.f32.mrf.mxu0
  %2730 = vmatprep.mubr.f32.mxu0 0.0
  %v2731 = vand.u32 %v2367, 4294901760
  %v2732 = vsub.f32 %v2367, %v2731
  %v2733 = vand.u32 %v2732, 4294901760
  %v2734 = vsub.f32 %v2732, %v2733
  %v2735 = vand.u32 %v2734, 4294901760
  %2736 = vmatmul.mubr.f32.gmra.mxu0 %v2735
  %v2737 = vpop.f32.mrf.mxu0
  %v2738 = vadd.f32 %v2285, %v2737
  %v2739 = vpop.f32.mrf.mxu0
  %2740 = vmatprep.mubr.f32.mxu0 0.0
  %v2741 = vand.u32 %v2370, 4294901760
  %v2742 = vsub.f32 %v2370, %v2741
  %v2743 = vand.u32 %v2742, 4294901760
  %v2744 = vsub.f32 %v2742, %v2743
  %v2745 = vand.u32 %v2744, 4294901760
  %2746 = vmatmul.mubr.f32.gmra.mxu0 %v2745
  %v2747 = vpop.f32.mrf.mxu0
  %v2748 = vadd.f32 %v2285, %v2747
  %v2749 = vpop.f32.mrf.mxu0
  %2750 = vmatprep.mubr.f32.mxu0 0.0
  %v2751 = vand.u32 %v2373, 4294901760
  %v2752 = vsub.f32 %v2373, %v2751
  %v2753 = vand.u32 %v2752, 4294901760
  %v2754 = vsub.f32 %v2752, %v2753
  %v2755 = vand.u32 %v2754, 4294901760
  %2756 = vmatmul.mubr.f32.gmra.mxu0 %v2755
  %v2757 = vpop.f32.mrf.mxu0
  %v2758 = vadd.f32 %v2285, %v2757
  %v2759 = vpop.f32.mrf.mxu0
  %2760 = vmatprep.mubr.f32.mxu0 0.0
  %v2761 = vand.u32 %v2376, 4294901760
  %v2762 = vsub.f32 %v2376, %v2761
  %v2763 = vand.u32 %v2762, 4294901760
  %v2764 = vsub.f32 %v2762, %v2763
  %v2765 = vand.u32 %v2764, 4294901760
  %2766 = vmatmul.mubr.f32.gmra.mxu0 %v2765
  %v2767 = vpop.f32.mrf.mxu0
  %v2768 = vadd.f32 %v2285, %v2767
  %v2769 = vpop.f32.mrf.mxu0
  %2770 = vmatprep.mubr.f32.mxu0 0.0
  %v2771 = vand.u32 %v2379, 4294901760
  %v2772 = vsub.f32 %v2379, %v2771
  %v2773 = vand.u32 %v2772, 4294901760
  %v2774 = vsub.f32 %v2772, %v2773
  %v2775 = vand.u32 %v2774, 4294901760
  %2776 = vmatmul.mubr.f32.gmra.mxu0 %v2775
  %v2777 = vpop.f32.mrf.mxu0
  %v2778 = vadd.f32 %v2285, %v2777
  %v2779 = vpop.f32.mrf.mxu0
  %2780 = vmatprep.mubr.f32.mxu0 0.0
  %v2781 = vand.u32 %v2382, 4294901760
  %v2782 = vsub.f32 %v2382, %v2781
  %v2783 = vand.u32 %v2782, 4294901760
  %v2784 = vsub.f32 %v2782, %v2783
  %v2785 = vand.u32 %v2784, 4294901760
  %2786 = vmatmul.mubr.f32.gmra.mxu0 %v2785
  %v2787 = vpop.f32.mrf.mxu0
  %v2788 = vadd.f32 %v2285, %v2787
  %v2789 = vpop.f32.mrf.mxu0
  %2790 = vmatprep.mubr.f32.mxu0 0.0
  %v2791 = vand.u32 %v2385, 4294901760
  %v2792 = vsub.f32 %v2385, %v2791
  %v2793 = vand.u32 %v2792, 4294901760
  %v2794 = vsub.f32 %v2792, %v2793
  %v2795 = vand.u32 %v2794, 4294901760
  %2796 = vmatmul.mubr.f32.gmra.mxu0 %v2795
  %v2797 = vpop.f32.mrf.mxu0
  %v2798 = vadd.f32 %v2285, %v2797
  %v2799 = vpop.f32.mrf.mxu0
  %2800 = vmatprep.mubr.f32.mxu0 0.0
  %v2801 = vand.u32 %v2388, 4294901760
  %v2802 = vsub.f32 %v2388, %v2801
  %v2803 = vand.u32 %v2802, 4294901760
  %v2804 = vsub.f32 %v2802, %v2803
  %v2805 = vand.u32 %v2804, 4294901760
  %2806 = vmatmul.mubr.f32.gmra.mxu0 %v2805
  %v2807 = vpop.f32.mrf.mxu0
  %v2808 = vadd.f32 %v2285, %v2807
  %v2809 = vpop.f32.mrf.mxu0
  %2810 = vmatprep.mubr.f32.mxu0 0.0
  %v2811 = vand.u32 %v2391, 4294901760
  %v2812 = vsub.f32 %v2391, %v2811
  %v2813 = vand.u32 %v2812, 4294901760
  %v2814 = vsub.f32 %v2812, %v2813
  %v2815 = vand.u32 %v2814, 4294901760
  %2816 = vmatmul.mubr.f32.gmra.mxu0 %v2815
  %v2817 = vpop.f32.mrf.mxu0
  %v2818 = vadd.f32 %v2285, %v2817
  %v2819 = vpop.f32.mrf.mxu0
  %2820 = vmatprep.mubr.f32.mxu0 0.0
  %v2821 = vand.u32 %v2394, 4294901760
  %v2822 = vsub.f32 %v2394, %v2821
  %v2823 = vand.u32 %v2822, 4294901760
  %v2824 = vsub.f32 %v2822, %v2823
  %v2825 = vand.u32 %v2824, 4294901760
  %2826 = vmatmul.mubr.f32.gmra.mxu0 %v2825
  %v2827 = vpop.f32.mrf.mxu0
  %v2828 = vadd.f32 %v2285, %v2827
  %v2829 = vpop.f32.mrf.mxu0
  %2830 = vmatprep.mubr.f32.mxu0 0.0
  %v2831 = vand.u32 %v2397, 4294901760
  %v2832 = vsub.f32 %v2397, %v2831
  %v2833 = vand.u32 %v2832, 4294901760
  %v2834 = vsub.f32 %v2832, %v2833
  %v2835 = vand.u32 %v2834, 4294901760
  %2836 = vmatmul.mubr.f32.gmra.mxu0 %v2835
  %v2837 = vpop.f32.mrf.mxu0
  %v2838 = vadd.f32 %v2285, %v2837
  %v2839 = vpop.f32.mrf.mxu0
  %2840 = vmatprep.mubr.f32.mxu0 0.0
  %v2841 = vand.u32 %v2400, 4294901760
  %v2842 = vsub.f32 %v2400, %v2841
  %v2843 = vand.u32 %v2842, 4294901760
  %v2844 = vsub.f32 %v2842, %v2843
  %v2845 = vand.u32 %v2844, 4294901760
  %2846 = vmatmul.mubr.f32.gmra.mxu0 %v2845
  %v2847 = vpop.f32.mrf.mxu0
  %v2848 = vadd.f32 %v2285, %v2847
  %v2849 = vpop.f32.mrf.mxu0
  %2850 = vdwg.mxu0
  %2851 = vmatprep.subr.mxu0 0.0
  %2852 = vmatpush1.msra.mxu0 0.0
  %2853 = vmatprep.subr.mxu0 0.0
  %2854 = vmatpush1.msra.mxu0 0.0
  %2855 = vmatprep.subr.mxu0 0.0
  %2856 = vmatpush1.msra.mxu0 0.0
  %2857 = vmatprep.subr.mxu0 0.0
  %2858 = vmatpush1.msra.mxu0 0.0
  %2859 = vmatprep.subr.mxu0 0.0
  %2860 = vmatpush1.msra.mxu0 0.0
  %2861 = vmatprep.subr.mxu0 0.0
  %2862 = vmatpush1.msra.mxu0 0.0
  %2863 = vmatprep.subr.mxu0 0.0
  %2864 = vmatpush1.msra.mxu0 0.0
  %2865 = vmatprep.subr.mxu0 0.0
  %2866 = vmatpush1.msra.mxu0 0.0
  %2867 = vmatprep.subr.mxu0 0.0
  %2868 = vmatpush1.msra.mxu0 0.0
  %2869 = vmatprep.subr.mxu0 0.0
  %2870 = vmatpush1.msra.mxu0 0.0
  %2871 = vmatprep.subr.mxu0 0.0
  %2872 = vmatpush1.msra.mxu0 0.0
  %2873 = vmatprep.subr.mxu0 0.0
  %2874 = vmatpush1.msra.mxu0 0.0
  %2875 = vmatprep.subr.mxu0 0.0
  %v2876 = vand.u32 %v2279, 4294901760
  %v2877 = vsub.f32 %v2279, %v2876
  %v2878 = vand.u32 %v2877, 4294901760
  %v2879 = vsub.f32 %v2877, %v2878
  %v2880 = vand.u32 %v2879, 4294901760
  %2881 = vmatpush1.msra.mxu0 %v2880
  %2882 = vmatprep.subr.mxu0 0.0
  %v2883 = vand.u32 %v2278, 4294901760
  %v2884 = vsub.f32 %v2278, %v2883
  %v2885 = vand.u32 %v2884, 4294901760
  %v2886 = vsub.f32 %v2884, %v2885
  %v2887 = vand.u32 %v2886, 4294901760
  %2888 = vmatpush1.msra.mxu0 %v2887
  %2889 = vmatprep.subr.mxu0 0.0
  %v2890 = vand.u32 %v2277, 4294901760
  %v2891 = vsub.f32 %v2277, %v2890
  %v2892 = vand.u32 %v2891, 4294901760
  %v2893 = vsub.f32 %v2891, %v2892
  %v2894 = vand.u32 %v2893, 4294901760
  %2895 = vmatpush1.msra.mxu0 %v2894
  %2896 = vmatprep.subr.mxu0 0.0
  %v2897 = vand.u32 %v2276, 4294901760
  %v2898 = vsub.f32 %v2276, %v2897
  %v2899 = vand.u32 %v2898, 4294901760
  %v2900 = vsub.f32 %v2898, %v2899
  %v2901 = vand.u32 %v2900, 4294901760
  %2902 = vmatpush1.msra.mxu0 %v2901
  %2903 = vmatprep.subr.mxu0 0.0
  %2904 = vmatpush2.msra.mxu0 0.0
  %2905 = vmatprep.subr.mxu0 0.0
  %2906 = vmatpush2.msra.mxu0 0.0
  %2907 = vmatprep.subr.mxu0 0.0
  %2908 = vmatpush2.msra.mxu0 0.0
  %2909 = vmatprep.subr.mxu0 0.0
  %2910 = vmatpush2.msra.mxu0 0.0
  %2911 = vmatprep.subr.mxu0 0.0
  %2912 = vmatpush2.msra.mxu0 0.0
  %2913 = vmatprep.subr.mxu0 0.0
  %2914 = vmatpush2.msra.mxu0 0.0
  %2915 = vmatprep.subr.mxu0 0.0
  %2916 = vmatpush2.msra.mxu0 0.0
  %2917 = vmatprep.subr.mxu0 0.0
  %2918 = vmatpush2.msra.mxu0 0.0
  %2919 = vmatprep.subr.mxu0 0.0
  %2920 = vmatpush2.msra.mxu0 0.0
  %2921 = vmatprep.subr.mxu0 0.0
  %2922 = vmatpush2.msra.mxu0 0.0
  %2923 = vmatprep.subr.mxu0 0.0
  %2924 = vmatpush2.msra.mxu0 0.0
  %2925 = vmatprep.subr.mxu0 0.0
  %2926 = vmatpush2.msra.mxu0 0.0
  %2927 = vmatprep.subr.mxu0 0.0
  %2928 = vmatpush2.msra.mxu0 0.0
  %2929 = vmatprep.subr.mxu0 0.0
  %2930 = vmatpush2.msra.mxu0 0.0
  %2931 = vmatprep.subr.mxu0 0.0
  %2932 = vmatpush2.msra.mxu0 0.0
  %2933 = vmatprep.subr.mxu0 0.0
  %2934 = vmatpush2.msra.mxu0 0.0
  %2935 = vmatprep.mubr.f32.mxu0 0.0
  %v2936 = vand.u32 %v2289, 4294901760
  %2937 = vmatmul.mubr.f32.gmra.mxu0 %v2936
  %v2938 = vpop.f32.mrf.mxu0
  %v2939 = vadd.f32 %v2478, %v2938
  %v2940 = vpop.f32.mrf.mxu0
  %2941 = vmatprep.mubr.f32.mxu0 0.0
  %v2942 = vand.u32 %v2292, 4294901760
  %2943 = vmatmul.mubr.f32.gmra.mxu0 %v2942
  %v2944 = vpop.f32.mrf.mxu0
  %v2945 = vadd.f32 %v2488, %v2944
  %v2946 = vpop.f32.mrf.mxu0
  %2947 = vmatprep.mubr.f32.mxu0 0.0
  %v2948 = vand.u32 %v2295, 4294901760
  %2949 = vmatmul.mubr.f32.gmra.mxu0 %v2948
  %v2950 = vpop.f32.mrf.mxu0
  %v2951 = vadd.f32 %v2498, %v2950
  %v2952 = vpop.f32.mrf.mxu0
  %2953 = vmatprep.mubr.f32.mxu0 0.0
  %v2954 = vand.u32 %v2298, 4294901760
  %2955 = vmatmul.mubr.f32.gmra.mxu0 %v2954
  %v2956 = vpop.f32.mrf.mxu0
  %v2957 = vadd.f32 %v2508, %v2956
  %v2958 = vpop.f32.mrf.mxu0
  %2959 = vmatprep.mubr.f32.mxu0 0.0
  %v2960 = vand.u32 %v2301, 4294901760
  %2961 = vmatmul.mubr.f32.gmra.mxu0 %v2960
  %v2962 = vpop.f32.mrf.mxu0
  %v2963 = vadd.f32 %v2518, %v2962
  %v2964 = vpop.f32.mrf.mxu0
  %2965 = vmatprep.mubr.f32.mxu0 0.0
  %v2966 = vand.u32 %v2304, 4294901760
  %2967 = vmatmul.mubr.f32.gmra.mxu0 %v2966
  %v2968 = vpop.f32.mrf.mxu0
  %v2969 = vadd.f32 %v2528, %v2968
  %v2970 = vpop.f32.mrf.mxu0
  %2971 = vmatprep.mubr.f32.mxu0 0.0
  %v2972 = vand.u32 %v2307, 4294901760
  %2973 = vmatmul.mubr.f32.gmra.mxu0 %v2972
  %v2974 = vpop.f32.mrf.mxu0
  %v2975 = vadd.f32 %v2538, %v2974
  %v2976 = vpop.f32.mrf.mxu0
  %2977 = vmatprep.mubr.f32.mxu0 0.0
  %v2978 = vand.u32 %v2310, 4294901760
  %2979 = vmatmul.mubr.f32.gmra.mxu0 %v2978
  %v2980 = vpop.f32.mrf.mxu0
  %v2981 = vadd.f32 %v2548, %v2980
  %v2982 = vpop.f32.mrf.mxu0
  %2983 = vmatprep.mubr.f32.mxu0 0.0
  %v2984 = vand.u32 %v2313, 4294901760
  %2985 = vmatmul.mubr.f32.gmra.mxu0 %v2984
  %v2986 = vpop.f32.mrf.mxu0
  %v2987 = vadd.f32 %v2558, %v2986
  %v2988 = vpop.f32.mrf.mxu0
  %2989 = vmatprep.mubr.f32.mxu0 0.0
  %v2990 = vand.u32 %v2316, 4294901760
  %2991 = vmatmul.mubr.f32.gmra.mxu0 %v2990
  %v2992 = vpop.f32.mrf.mxu0
  %v2993 = vadd.f32 %v2568, %v2992
  %v2994 = vpop.f32.mrf.mxu0
  %2995 = vmatprep.mubr.f32.mxu0 0.0
  %v2996 = vand.u32 %v2319, 4294901760
  %2997 = vmatmul.mubr.f32.gmra.mxu0 %v2996
  %v2998 = vpop.f32.mrf.mxu0
  %v2999 = vadd.f32 %v2578, %v2998
  %v3000 = vpop.f32.mrf.mxu0
  %3001 = vmatprep.mubr.f32.mxu0 0.0
  %v3002 = vand.u32 %v2322, 4294901760
  %3003 = vmatmul.mubr.f32.gmra.mxu0 %v3002
  %v3004 = vpop.f32.mrf.mxu0
  %v3005 = vadd.f32 %v2588, %v3004
  %v3006 = vpop.f32.mrf.mxu0
  %3007 = vmatprep.mubr.f32.mxu0 0.0
  %v3008 = vand.u32 %v2325, 4294901760
  %3009 = vmatmul.mubr.f32.gmra.mxu0 %v3008
  %v3010 = vpop.f32.mrf.mxu0
  %v3011 = vadd.f32 %v2598, %v3010
  %v3012 = vpop.f32.mrf.mxu0
  %3013 = vmatprep.mubr.f32.mxu0 0.0
  %v3014 = vand.u32 %v2328, 4294901760
  %3015 = vmatmul.mubr.f32.gmra.mxu0 %v3014
  %v3016 = vpop.f32.mrf.mxu0
  %v3017 = vadd.f32 %v2608, %v3016
  %v3018 = vpop.f32.mrf.mxu0
  %3019 = vmatprep.mubr.f32.mxu0 0.0
  %v3020 = vand.u32 %v2331, 4294901760
  %3021 = vmatmul.mubr.f32.gmra.mxu0 %v3020
  %v3022 = vpop.f32.mrf.mxu0
  %v3023 = vadd.f32 %v2618, %v3022
  %v3024 = vpop.f32.mrf.mxu0
  %3025 = vmatprep.mubr.f32.mxu0 0.0
  %v3026 = vand.u32 %v2334, 4294901760
  %3027 = vmatmul.mubr.f32.gmra.mxu0 %v3026
  %v3028 = vpop.f32.mrf.mxu0
  %v3029 = vadd.f32 %v2628, %v3028
  %v3030 = vpop.f32.mrf.mxu0
  %3031 = vmatprep.mubr.f32.mxu0 0.0
  %v3032 = vand.u32 %v2337, 4294901760
  %3033 = vmatmul.mubr.f32.gmra.mxu0 %v3032
  %v3034 = vpop.f32.mrf.mxu0
  %v3035 = vadd.f32 %v2638, %v3034
  %v3036 = vpop.f32.mrf.mxu0
  %3037 = vmatprep.mubr.f32.mxu0 0.0
  %v3038 = vand.u32 %v2340, 4294901760
  %3039 = vmatmul.mubr.f32.gmra.mxu0 %v3038
  %v3040 = vpop.f32.mrf.mxu0
  %v3041 = vadd.f32 %v2648, %v3040
  %v3042 = vpop.f32.mrf.mxu0
  %3043 = vmatprep.mubr.f32.mxu0 0.0
  %v3044 = vand.u32 %v2343, 4294901760
  %3045 = vmatmul.mubr.f32.gmra.mxu0 %v3044
  %v3046 = vpop.f32.mrf.mxu0
  %v3047 = vadd.f32 %v2658, %v3046
  %v3048 = vpop.f32.mrf.mxu0
  %3049 = vmatprep.mubr.f32.mxu0 0.0
  %v3050 = vand.u32 %v2346, 4294901760
  %3051 = vmatmul.mubr.f32.gmra.mxu0 %v3050
  %v3052 = vpop.f32.mrf.mxu0
  %v3053 = vadd.f32 %v2668, %v3052
  %v3054 = vpop.f32.mrf.mxu0
  %3055 = vmatprep.mubr.f32.mxu0 0.0
  %v3056 = vand.u32 %v2349, 4294901760
  %3057 = vmatmul.mubr.f32.gmra.mxu0 %v3056
  %v3058 = vpop.f32.mrf.mxu0
  %v3059 = vadd.f32 %v2678, %v3058
  %v3060 = vpop.f32.mrf.mxu0
  %3061 = vmatprep.mubr.f32.mxu0 0.0
  %v3062 = vand.u32 %v2352, 4294901760
  %3063 = vmatmul.mubr.f32.gmra.mxu0 %v3062
  %v3064 = vpop.f32.mrf.mxu0
  %v3065 = vadd.f32 %v2688, %v3064
  %v3066 = vpop.f32.mrf.mxu0
  %3067 = vmatprep.mubr.f32.mxu0 0.0
  %v3068 = vand.u32 %v2355, 4294901760
  %3069 = vmatmul.mubr.f32.gmra.mxu0 %v3068
  %v3070 = vpop.f32.mrf.mxu0
  %v3071 = vadd.f32 %v2698, %v3070
  %v3072 = vpop.f32.mrf.mxu0
  %3073 = vmatprep.mubr.f32.mxu0 0.0
  %v3074 = vand.u32 %v2358, 4294901760
  %3075 = vmatmul.mubr.f32.gmra.mxu0 %v3074
  %v3076 = vpop.f32.mrf.mxu0
  %v3077 = vadd.f32 %v2708, %v3076
  %v3078 = vpop.f32.mrf.mxu0
  %3079 = vmatprep.mubr.f32.mxu0 0.0
  %v3080 = vand.u32 %v2361, 4294901760
  %3081 = vmatmul.mubr.f32.gmra.mxu0 %v3080
  %v3082 = vpop.f32.mrf.mxu0
  %v3083 = vadd.f32 %v2718, %v3082
  %v3084 = vpop.f32.mrf.mxu0
  %3085 = vmatprep.mubr.f32.mxu0 0.0
  %v3086 = vand.u32 %v2364, 4294901760
  %3087 = vmatmul.mubr.f32.gmra.mxu0 %v3086
  %v3088 = vpop.f32.mrf.mxu0
  %v3089 = vadd.f32 %v2728, %v3088
  %v3090 = vpop.f32.mrf.mxu0
  %3091 = vmatprep.mubr.f32.mxu0 0.0
  %v3092 = vand.u32 %v2367, 4294901760
  %3093 = vmatmul.mubr.f32.gmra.mxu0 %v3092
  %v3094 = vpop.f32.mrf.mxu0
  %v3095 = vadd.f32 %v2738, %v3094
  %v3096 = vpop.f32.mrf.mxu0
  %3097 = vmatprep.mubr.f32.mxu0 0.0
  %v3098 = vand.u32 %v2370, 4294901760
  %3099 = vmatmul.mubr.f32.gmra.mxu0 %v3098
  %v3100 = vpop.f32.mrf.mxu0
  %v3101 = vadd.f32 %v2748, %v3100
  %v3102 = vpop.f32.mrf.mxu0
  %3103 = vmatprep.mubr.f32.mxu0 0.0
  %v3104 = vand.u32 %v2373, 4294901760
  %3105 = vmatmul.mubr.f32.gmra.mxu0 %v3104
  %v3106 = vpop.f32.mrf.mxu0
  %v3107 = vadd.f32 %v2758, %v3106
  %v3108 = vpop.f32.mrf.mxu0
  %3109 = vmatprep.mubr.f32.mxu0 0.0
  %v3110 = vand.u32 %v2376, 4294901760
  %3111 = vmatmul.mubr.f32.gmra.mxu0 %v3110
  %v3112 = vpop.f32.mrf.mxu0
  %v3113 = vadd.f32 %v2768, %v3112
  %v3114 = vpop.f32.mrf.mxu0
  %3115 = vmatprep.mubr.f32.mxu0 0.0
  %v3116 = vand.u32 %v2379, 4294901760
  %3117 = vmatmul.mubr.f32.gmra.mxu0 %v3116
  %v3118 = vpop.f32.mrf.mxu0
  %v3119 = vadd.f32 %v2778, %v3118
  %v3120 = vpop.f32.mrf.mxu0
  %3121 = vmatprep.mubr.f32.mxu0 0.0
  %v3122 = vand.u32 %v2382, 4294901760
  %3123 = vmatmul.mubr.f32.gmra.mxu0 %v3122
  %v3124 = vpop.f32.mrf.mxu0
  %v3125 = vadd.f32 %v2788, %v3124
  %v3126 = vpop.f32.mrf.mxu0
  %3127 = vmatprep.mubr.f32.mxu0 0.0
  %v3128 = vand.u32 %v2385, 4294901760
  %3129 = vmatmul.mubr.f32.gmra.mxu0 %v3128
  %v3130 = vpop.f32.mrf.mxu0
  %v3131 = vadd.f32 %v2798, %v3130
  %v3132 = vpop.f32.mrf.mxu0
  %3133 = vmatprep.mubr.f32.mxu0 0.0
  %v3134 = vand.u32 %v2388, 4294901760
  %3135 = vmatmul.mubr.f32.gmra.mxu0 %v3134
  %v3136 = vpop.f32.mrf.mxu0
  %v3137 = vadd.f32 %v2808, %v3136
  %v3138 = vpop.f32.mrf.mxu0
  %3139 = vmatprep.mubr.f32.mxu0 0.0
  %v3140 = vand.u32 %v2391, 4294901760
  %3141 = vmatmul.mubr.f32.gmra.mxu0 %v3140
  %v3142 = vpop.f32.mrf.mxu0
  %v3143 = vadd.f32 %v2818, %v3142
  %v3144 = vpop.f32.mrf.mxu0
  %3145 = vmatprep.mubr.f32.mxu0 0.0
  %v3146 = vand.u32 %v2394, 4294901760
  %3147 = vmatmul.mubr.f32.gmra.mxu0 %v3146
  %v3148 = vpop.f32.mrf.mxu0
  %v3149 = vadd.f32 %v2828, %v3148
  %v3150 = vpop.f32.mrf.mxu0
  %3151 = vmatprep.mubr.f32.mxu0 0.0
  %v3152 = vand.u32 %v2397, 4294901760
  %3153 = vmatmul.mubr.f32.gmra.mxu0 %v3152
  %v3154 = vpop.f32.mrf.mxu0
  %v3155 = vadd.f32 %v2838, %v3154
  %v3156 = vpop.f32.mrf.mxu0
  %3157 = vmatprep.mubr.f32.mxu0 0.0
  %v3158 = vand.u32 %v2400, 4294901760
  %3159 = vmatmul.mubr.f32.gmra.mxu0 %v3158
  %v3160 = vpop.f32.mrf.mxu0
  %v3161 = vadd.f32 %v2848, %v3160
  %v3162 = vpop.f32.mrf.mxu0
  %3163 = vdwg.mxu0
  %3164 = vmatprep.subr.mxu0 0.0
  %3165 = vmatpush1.msra.mxu0 0.0
  %3166 = vmatprep.subr.mxu0 0.0
  %3167 = vmatpush1.msra.mxu0 0.0
  %3168 = vmatprep.subr.mxu0 0.0
  %3169 = vmatpush1.msra.mxu0 0.0
  %3170 = vmatprep.subr.mxu0 0.0
  %3171 = vmatpush1.msra.mxu0 0.0
  %3172 = vmatprep.subr.mxu0 0.0
  %3173 = vmatpush1.msra.mxu0 0.0
  %3174 = vmatprep.subr.mxu0 0.0
  %3175 = vmatpush1.msra.mxu0 0.0
  %3176 = vmatprep.subr.mxu0 0.0
  %3177 = vmatpush1.msra.mxu0 0.0
  %3178 = vmatprep.subr.mxu0 0.0
  %3179 = vmatpush1.msra.mxu0 0.0
  %3180 = vmatprep.subr.mxu0 0.0
  %3181 = vmatpush1.msra.mxu0 0.0
  %3182 = vmatprep.subr.mxu0 0.0
  %3183 = vmatpush1.msra.mxu0 0.0
  %3184 = vmatprep.subr.mxu0 0.0
  %3185 = vmatpush1.msra.mxu0 0.0
  %3186 = vmatprep.subr.mxu0 0.0
  %3187 = vmatpush1.msra.mxu0 0.0
  %3188 = vmatprep.subr.mxu0 0.0
  %v3189 = vand.u32 %v2279, 4294901760
  %v3190 = vsub.f32 %v2279, %v3189
  %3191 = vmatpush1.msra.mxu0 %v3190
  %3192 = vmatprep.subr.mxu0 0.0
  %v3193 = vand.u32 %v2278, 4294901760
  %v3194 = vsub.f32 %v2278, %v3193
  %3195 = vmatpush1.msra.mxu0 %v3194
  %3196 = vmatprep.subr.mxu0 0.0
  %v3197 = vand.u32 %v2277, 4294901760
  %v3198 = vsub.f32 %v2277, %v3197
  %3199 = vmatpush1.msra.mxu0 %v3198
  %3200 = vmatprep.subr.mxu0 0.0
  %v3201 = vand.u32 %v2276, 4294901760
  %v3202 = vsub.f32 %v2276, %v3201
  %3203 = vmatpush1.msra.mxu0 %v3202
  %3204 = vmatprep.subr.mxu0 0.0
  %3205 = vmatpush2.msra.mxu0 0.0
  %3206 = vmatprep.subr.mxu0 0.0
  %3207 = vmatpush2.msra.mxu0 0.0
  %3208 = vmatprep.subr.mxu0 0.0
  %3209 = vmatpush2.msra.mxu0 0.0
  %3210 = vmatprep.subr.mxu0 0.0
  %3211 = vmatpush2.msra.mxu0 0.0
  %3212 = vmatprep.subr.mxu0 0.0
  %3213 = vmatpush2.msra.mxu0 0.0
  %3214 = vmatprep.subr.mxu0 0.0
  %3215 = vmatpush2.msra.mxu0 0.0
  %3216 = vmatprep.subr.mxu0 0.0
  %3217 = vmatpush2.msra.mxu0 0.0
  %3218 = vmatprep.subr.mxu0 0.0
  %3219 = vmatpush2.msra.mxu0 0.0
  %3220 = vmatprep.subr.mxu0 0.0
  %3221 = vmatpush2.msra.mxu0 0.0
  %3222 = vmatprep.subr.mxu0 0.0
  %3223 = vmatpush2.msra.mxu0 0.0
  %3224 = vmatprep.subr.mxu0 0.0
  %3225 = vmatpush2.msra.mxu0 0.0
  %3226 = vmatprep.subr.mxu0 0.0
  %3227 = vmatpush2.msra.mxu0 0.0
  %3228 = vmatprep.subr.mxu0 0.0
  %3229 = vmatpush2.msra.mxu0 0.0
  %3230 = vmatprep.subr.mxu0 0.0
  %3231 = vmatpush2.msra.mxu0 0.0
  %3232 = vmatprep.subr.mxu0 0.0
  %3233 = vmatpush2.msra.mxu0 0.0
  %3234 = vmatprep.subr.mxu0 0.0
  %3235 = vmatpush2.msra.mxu0 0.0
  %3236 = vmatprep.mubr.f32.mxu0 0.0
  %v3237 = vand.u32 %v2289, 4294901760
  %v3238 = vsub.f32 %v2289, %v3237
  %3239 = vmatmul.mubr.f32.gmra.mxu0 %v3238
  %v3240 = vpop.f32.mrf.mxu0
  %v3241 = vadd.f32 %v2939, %v3240
  %v3242 = vpop.f32.mrf.mxu0
  %3243 = vmatprep.mubr.f32.mxu0 0.0
  %v3244 = vand.u32 %v2292, 4294901760
  %v3245 = vsub.f32 %v2292, %v3244
  %3246 = vmatmul.mubr.f32.gmra.mxu0 %v3245
  %v3247 = vpop.f32.mrf.mxu0
  %v3248 = vadd.f32 %v2945, %v3247
  %v3249 = vpop.f32.mrf.mxu0
  %3250 = vmatprep.mubr.f32.mxu0 0.0
  %v3251 = vand.u32 %v2295, 4294901760
  %v3252 = vsub.f32 %v2295, %v3251
  %3253 = vmatmul.mubr.f32.gmra.mxu0 %v3252
  %v3254 = vpop.f32.mrf.mxu0
  %v3255 = vadd.f32 %v2951, %v3254
  %v3256 = vpop.f32.mrf.mxu0
  %3257 = vmatprep.mubr.f32.mxu0 0.0
  %v3258 = vand.u32 %v2298, 4294901760
  %v3259 = vsub.f32 %v2298, %v3258
  %3260 = vmatmul.mubr.f32.gmra.mxu0 %v3259
  %v3261 = vpop.f32.mrf.mxu0
  %v3262 = vadd.f32 %v2957, %v3261
  %v3263 = vpop.f32.mrf.mxu0
  %3264 = vmatprep.mubr.f32.mxu0 0.0
  %v3265 = vand.u32 %v2301, 4294901760
  %v3266 = vsub.f32 %v2301, %v3265
  %3267 = vmatmul.mubr.f32.gmra.mxu0 %v3266
  %v3268 = vpop.f32.mrf.mxu0
  %v3269 = vadd.f32 %v2963, %v3268
  %v3270 = vpop.f32.mrf.mxu0
  %3271 = vmatprep.mubr.f32.mxu0 0.0
  %v3272 = vand.u32 %v2304, 4294901760
  %v3273 = vsub.f32 %v2304, %v3272
  %3274 = vmatmul.mubr.f32.gmra.mxu0 %v3273
  %v3275 = vpop.f32.mrf.mxu0
  %v3276 = vadd.f32 %v2969, %v3275
  %v3277 = vpop.f32.mrf.mxu0
  %3278 = vmatprep.mubr.f32.mxu0 0.0
  %v3279 = vand.u32 %v2307, 4294901760
  %v3280 = vsub.f32 %v2307, %v3279
  %3281 = vmatmul.mubr.f32.gmra.mxu0 %v3280
  %v3282 = vpop.f32.mrf.mxu0
  %v3283 = vadd.f32 %v2975, %v3282
  %v3284 = vpop.f32.mrf.mxu0
  %3285 = vmatprep.mubr.f32.mxu0 0.0
  %v3286 = vand.u32 %v2310, 4294901760
  %v3287 = vsub.f32 %v2310, %v3286
  %3288 = vmatmul.mubr.f32.gmra.mxu0 %v3287
  %v3289 = vpop.f32.mrf.mxu0
  %v3290 = vadd.f32 %v2981, %v3289
  %v3291 = vpop.f32.mrf.mxu0
  %3292 = vmatprep.mubr.f32.mxu0 0.0
  %v3293 = vand.u32 %v2313, 4294901760
  %v3294 = vsub.f32 %v2313, %v3293
  %3295 = vmatmul.mubr.f32.gmra.mxu0 %v3294
  %v3296 = vpop.f32.mrf.mxu0
  %v3297 = vadd.f32 %v2987, %v3296
  %v3298 = vpop.f32.mrf.mxu0
  %3299 = vmatprep.mubr.f32.mxu0 0.0
  %v3300 = vand.u32 %v2316, 4294901760
  %v3301 = vsub.f32 %v2316, %v3300
  %3302 = vmatmul.mubr.f32.gmra.mxu0 %v3301
  %v3303 = vpop.f32.mrf.mxu0
  %v3304 = vadd.f32 %v2993, %v3303
  %v3305 = vpop.f32.mrf.mxu0
  %3306 = vmatprep.mubr.f32.mxu0 0.0
  %v3307 = vand.u32 %v2319, 4294901760
  %v3308 = vsub.f32 %v2319, %v3307
  %3309 = vmatmul.mubr.f32.gmra.mxu0 %v3308
  %v3310 = vpop.f32.mrf.mxu0
  %v3311 = vadd.f32 %v2999, %v3310
  %v3312 = vpop.f32.mrf.mxu0
  %3313 = vmatprep.mubr.f32.mxu0 0.0
  %v3314 = vand.u32 %v2322, 4294901760
  %v3315 = vsub.f32 %v2322, %v3314
  %3316 = vmatmul.mubr.f32.gmra.mxu0 %v3315
  %v3317 = vpop.f32.mrf.mxu0
  %v3318 = vadd.f32 %v3005, %v3317
  %v3319 = vpop.f32.mrf.mxu0
  %3320 = vmatprep.mubr.f32.mxu0 0.0
  %v3321 = vand.u32 %v2325, 4294901760
  %v3322 = vsub.f32 %v2325, %v3321
  %3323 = vmatmul.mubr.f32.gmra.mxu0 %v3322
  %v3324 = vpop.f32.mrf.mxu0
  %v3325 = vadd.f32 %v3011, %v3324
  %v3326 = vpop.f32.mrf.mxu0
  %3327 = vmatprep.mubr.f32.mxu0 0.0
  %v3328 = vand.u32 %v2328, 4294901760
  %v3329 = vsub.f32 %v2328, %v3328
  %3330 = vmatmul.mubr.f32.gmra.mxu0 %v3329
  %v3331 = vpop.f32.mrf.mxu0
  %v3332 = vadd.f32 %v3017, %v3331
  %v3333 = vpop.f32.mrf.mxu0
  %3334 = vmatprep.mubr.f32.mxu0 0.0
  %v3335 = vand.u32 %v2331, 4294901760
  %v3336 = vsub.f32 %v2331, %v3335
  %3337 = vmatmul.mubr.f32.gmra.mxu0 %v3336
  %v3338 = vpop.f32.mrf.mxu0
  %v3339 = vadd.f32 %v3023, %v3338
  %v3340 = vpop.f32.mrf.mxu0
  %3341 = vmatprep.mubr.f32.mxu0 0.0
  %v3342 = vand.u32 %v2334, 4294901760
  %v3343 = vsub.f32 %v2334, %v3342
  %3344 = vmatmul.mubr.f32.gmra.mxu0 %v3343
  %v3345 = vpop.f32.mrf.mxu0
  %v3346 = vadd.f32 %v3029, %v3345
  %v3347 = vpop.f32.mrf.mxu0
  %3348 = vmatprep.mubr.f32.mxu0 0.0
  %v3349 = vand.u32 %v2337, 4294901760
  %v3350 = vsub.f32 %v2337, %v3349
  %3351 = vmatmul.mubr.f32.gmra.mxu0 %v3350
  %v3352 = vpop.f32.mrf.mxu0
  %v3353 = vadd.f32 %v3035, %v3352
  %v3354 = vpop.f32.mrf.mxu0
  %3355 = vmatprep.mubr.f32.mxu0 0.0
  %v3356 = vand.u32 %v2340, 4294901760
  %v3357 = vsub.f32 %v2340, %v3356
  %3358 = vmatmul.mubr.f32.gmra.mxu0 %v3357
  %v3359 = vpop.f32.mrf.mxu0
  %v3360 = vadd.f32 %v3041, %v3359
  %v3361 = vpop.f32.mrf.mxu0
  %3362 = vmatprep.mubr.f32.mxu0 0.0
  %v3363 = vand.u32 %v2343, 4294901760
  %v3364 = vsub.f32 %v2343, %v3363
  %3365 = vmatmul.mubr.f32.gmra.mxu0 %v3364
  %v3366 = vpop.f32.mrf.mxu0
  %v3367 = vadd.f32 %v3047, %v3366
  %v3368 = vpop.f32.mrf.mxu0
  %3369 = vmatprep.mubr.f32.mxu0 0.0
  %v3370 = vand.u32 %v2346, 4294901760
  %v3371 = vsub.f32 %v2346, %v3370
  %3372 = vmatmul.mubr.f32.gmra.mxu0 %v3371
  %v3373 = vpop.f32.mrf.mxu0
  %v3374 = vadd.f32 %v3053, %v3373
  %v3375 = vpop.f32.mrf.mxu0
  %3376 = vmatprep.mubr.f32.mxu0 0.0
  %v3377 = vand.u32 %v2349, 4294901760
  %v3378 = vsub.f32 %v2349, %v3377
  %3379 = vmatmul.mubr.f32.gmra.mxu0 %v3378
  %v3380 = vpop.f32.mrf.mxu0
  %v3381 = vadd.f32 %v3059, %v3380
  %v3382 = vpop.f32.mrf.mxu0
  %3383 = vmatprep.mubr.f32.mxu0 0.0
  %v3384 = vand.u32 %v2352, 4294901760
  %v3385 = vsub.f32 %v2352, %v3384
  %3386 = vmatmul.mubr.f32.gmra.mxu0 %v3385
  %v3387 = vpop.f32.mrf.mxu0
  %v3388 = vadd.f32 %v3065, %v3387
  %v3389 = vpop.f32.mrf.mxu0
  %3390 = vmatprep.mubr.f32.mxu0 0.0
  %v3391 = vand.u32 %v2355, 4294901760
  %v3392 = vsub.f32 %v2355, %v3391
  %3393 = vmatmul.mubr.f32.gmra.mxu0 %v3392
  %v3394 = vpop.f32.mrf.mxu0
  %v3395 = vadd.f32 %v3071, %v3394
  %v3396 = vpop.f32.mrf.mxu0
  %3397 = vmatprep.mubr.f32.mxu0 0.0
  %v3398 = vand.u32 %v2358, 4294901760
  %v3399 = vsub.f32 %v2358, %v3398
  %3400 = vmatmul.mubr.f32.gmra.mxu0 %v3399
  %v3401 = vpop.f32.mrf.mxu0
  %v3402 = vadd.f32 %v3077, %v3401
  %v3403 = vpop.f32.mrf.mxu0
  %3404 = vmatprep.mubr.f32.mxu0 0.0
  %v3405 = vand.u32 %v2361, 4294901760
  %v3406 = vsub.f32 %v2361, %v3405
  %3407 = vmatmul.mubr.f32.gmra.mxu0 %v3406
  %v3408 = vpop.f32.mrf.mxu0
  %v3409 = vadd.f32 %v3083, %v3408
  %v3410 = vpop.f32.mrf.mxu0
  %3411 = vmatprep.mubr.f32.mxu0 0.0
  %v3412 = vand.u32 %v2364, 4294901760
  %v3413 = vsub.f32 %v2364, %v3412
  %3414 = vmatmul.mubr.f32.gmra.mxu0 %v3413
  %v3415 = vpop.f32.mrf.mxu0
  %v3416 = vadd.f32 %v3089, %v3415
  %v3417 = vpop.f32.mrf.mxu0
  %3418 = vmatprep.mubr.f32.mxu0 0.0
  %v3419 = vand.u32 %v2367, 4294901760
  %v3420 = vsub.f32 %v2367, %v3419
  %3421 = vmatmul.mubr.f32.gmra.mxu0 %v3420
  %v3422 = vpop.f32.mrf.mxu0
  %v3423 = vadd.f32 %v3095, %v3422
  %v3424 = vpop.f32.mrf.mxu0
  %3425 = vmatprep.mubr.f32.mxu0 0.0
  %v3426 = vand.u32 %v2370, 4294901760
  %v3427 = vsub.f32 %v2370, %v3426
  %3428 = vmatmul.mubr.f32.gmra.mxu0 %v3427
  %v3429 = vpop.f32.mrf.mxu0
  %v3430 = vadd.f32 %v3101, %v3429
  %v3431 = vpop.f32.mrf.mxu0
  %3432 = vmatprep.mubr.f32.mxu0 0.0
  %v3433 = vand.u32 %v2373, 4294901760
  %v3434 = vsub.f32 %v2373, %v3433
  %3435 = vmatmul.mubr.f32.gmra.mxu0 %v3434
  %v3436 = vpop.f32.mrf.mxu0
  %v3437 = vadd.f32 %v3107, %v3436
  %v3438 = vpop.f32.mrf.mxu0
  %3439 = vmatprep.mubr.f32.mxu0 0.0
  %v3440 = vand.u32 %v2376, 4294901760
  %v3441 = vsub.f32 %v2376, %v3440
  %3442 = vmatmul.mubr.f32.gmra.mxu0 %v3441
  %v3443 = vpop.f32.mrf.mxu0
  %v3444 = vadd.f32 %v3113, %v3443
  %v3445 = vpop.f32.mrf.mxu0
  %3446 = vmatprep.mubr.f32.mxu0 0.0
  %v3447 = vand.u32 %v2379, 4294901760
  %v3448 = vsub.f32 %v2379, %v3447
  %3449 = vmatmul.mubr.f32.gmra.mxu0 %v3448
  %v3450 = vpop.f32.mrf.mxu0
  %v3451 = vadd.f32 %v3119, %v3450
  %v3452 = vpop.f32.mrf.mxu0
  %3453 = vmatprep.mubr.f32.mxu0 0.0
  %v3454 = vand.u32 %v2382, 4294901760
  %v3455 = vsub.f32 %v2382, %v3454
  %3456 = vmatmul.mubr.f32.gmra.mxu0 %v3455
  %v3457 = vpop.f32.mrf.mxu0
  %v3458 = vadd.f32 %v3125, %v3457
  %v3459 = vpop.f32.mrf.mxu0
  %3460 = vmatprep.mubr.f32.mxu0 0.0
  %v3461 = vand.u32 %v2385, 4294901760
  %v3462 = vsub.f32 %v2385, %v3461
  %3463 = vmatmul.mubr.f32.gmra.mxu0 %v3462
  %v3464 = vpop.f32.mrf.mxu0
  %v3465 = vadd.f32 %v3131, %v3464
  %v3466 = vpop.f32.mrf.mxu0
  %3467 = vmatprep.mubr.f32.mxu0 0.0
  %v3468 = vand.u32 %v2388, 4294901760
  %v3469 = vsub.f32 %v2388, %v3468
  %3470 = vmatmul.mubr.f32.gmra.mxu0 %v3469
  %v3471 = vpop.f32.mrf.mxu0
  %v3472 = vadd.f32 %v3137, %v3471
  %v3473 = vpop.f32.mrf.mxu0
  %3474 = vmatprep.mubr.f32.mxu0 0.0
  %v3475 = vand.u32 %v2391, 4294901760
  %v3476 = vsub.f32 %v2391, %v3475
  %3477 = vmatmul.mubr.f32.gmra.mxu0 %v3476
  %v3478 = vpop.f32.mrf.mxu0
  %v3479 = vadd.f32 %v3143, %v3478
  %v3480 = vpop.f32.mrf.mxu0
  %3481 = vmatprep.mubr.f32.mxu0 0.0
  %v3482 = vand.u32 %v2394, 4294901760
  %v3483 = vsub.f32 %v2394, %v3482
  %3484 = vmatmul.mubr.f32.gmra.mxu0 %v3483
  %v3485 = vpop.f32.mrf.mxu0
  %v3486 = vadd.f32 %v3149, %v3485
  %v3487 = vpop.f32.mrf.mxu0
  %3488 = vmatprep.mubr.f32.mxu0 0.0
  %v3489 = vand.u32 %v2397, 4294901760
  %v3490 = vsub.f32 %v2397, %v3489
  %3491 = vmatmul.mubr.f32.gmra.mxu0 %v3490
  %v3492 = vpop.f32.mrf.mxu0
  %v3493 = vadd.f32 %v3155, %v3492
  %v3494 = vpop.f32.mrf.mxu0
  %3495 = vmatprep.mubr.f32.mxu0 0.0
  %v3496 = vand.u32 %v2400, 4294901760
  %v3497 = vsub.f32 %v2400, %v3496
  %3498 = vmatmul.mubr.f32.gmra.mxu0 %v3497
  %v3499 = vpop.f32.mrf.mxu0
  %v3500 = vadd.f32 %v3161, %v3499
  %v3501 = vpop.f32.mrf.mxu0
  %3502 = vdwg.mxu0
  %3503 = vmatprep.subr.mxu0 0.0
  %3504 = vmatpush1.msra.mxu0 0.0
  %3505 = vmatprep.subr.mxu0 0.0
  %3506 = vmatpush1.msra.mxu0 0.0
  %3507 = vmatprep.subr.mxu0 0.0
  %3508 = vmatpush1.msra.mxu0 0.0
  %3509 = vmatprep.subr.mxu0 0.0
  %3510 = vmatpush1.msra.mxu0 0.0
  %3511 = vmatprep.subr.mxu0 0.0
  %3512 = vmatpush1.msra.mxu0 0.0
  %3513 = vmatprep.subr.mxu0 0.0
  %3514 = vmatpush1.msra.mxu0 0.0
  %3515 = vmatprep.subr.mxu0 0.0
  %3516 = vmatpush1.msra.mxu0 0.0
  %3517 = vmatprep.subr.mxu0 0.0
  %3518 = vmatpush1.msra.mxu0 0.0
  %3519 = vmatprep.subr.mxu0 0.0
  %3520 = vmatpush1.msra.mxu0 0.0
  %3521 = vmatprep.subr.mxu0 0.0
  %3522 = vmatpush1.msra.mxu0 0.0
  %3523 = vmatprep.subr.mxu0 0.0
  %3524 = vmatpush1.msra.mxu0 0.0
  %3525 = vmatprep.subr.mxu0 0.0
  %3526 = vmatpush1.msra.mxu0 0.0
  %3527 = vmatprep.subr.mxu0 0.0
  %v3528 = vand.u32 %v2279, 4294901760
  %3529 = vmatpush1.msra.mxu0 %v3528
  %3530 = vmatprep.subr.mxu0 0.0
  %v3531 = vand.u32 %v2278, 4294901760
  %3532 = vmatpush1.msra.mxu0 %v3531
  %3533 = vmatprep.subr.mxu0 0.0
  %v3534 = vand.u32 %v2277, 4294901760
  %3535 = vmatpush1.msra.mxu0 %v3534
  %3536 = vmatprep.subr.mxu0 0.0
  %v3537 = vand.u32 %v2276, 4294901760
  %3538 = vmatpush1.msra.mxu0 %v3537
  %3539 = vmatprep.subr.mxu0 0.0
  %3540 = vmatpush2.msra.mxu0 0.0
  %3541 = vmatprep.subr.mxu0 0.0
  %3542 = vmatpush2.msra.mxu0 0.0
  %3543 = vmatprep.subr.mxu0 0.0
  %3544 = vmatpush2.msra.mxu0 0.0
  %3545 = vmatprep.subr.mxu0 0.0
  %3546 = vmatpush2.msra.mxu0 0.0
  %3547 = vmatprep.subr.mxu0 0.0
  %3548 = vmatpush2.msra.mxu0 0.0
  %3549 = vmatprep.subr.mxu0 0.0
  %3550 = vmatpush2.msra.mxu0 0.0
  %3551 = vmatprep.subr.mxu0 0.0
  %3552 = vmatpush2.msra.mxu0 0.0
  %3553 = vmatprep.subr.mxu0 0.0
  %3554 = vmatpush2.msra.mxu0 0.0
  %3555 = vmatprep.subr.mxu0 0.0
  %3556 = vmatpush2.msra.mxu0 0.0
  %3557 = vmatprep.subr.mxu0 0.0
  %3558 = vmatpush2.msra.mxu0 0.0
  %3559 = vmatprep.subr.mxu0 0.0
  %3560 = vmatpush2.msra.mxu0 0.0
  %3561 = vmatprep.subr.mxu0 0.0
  %3562 = vmatpush2.msra.mxu0 0.0
  %3563 = vmatprep.subr.mxu0 0.0
  %3564 = vmatpush2.msra.mxu0 0.0
  %3565 = vmatprep.subr.mxu0 0.0
  %3566 = vmatpush2.msra.mxu0 0.0
  %3567 = vmatprep.subr.mxu0 0.0
  %3568 = vmatpush2.msra.mxu0 0.0
  %3569 = vmatprep.subr.mxu0 0.0
  %3570 = vmatpush2.msra.mxu0 0.0
  %3571 = vmatprep.mubr.f32.mxu0 0.0
  %v3572 = vand.u32 %v2289, 4294901760
  %v3573 = vsub.f32 %v2289, %v3572
  %v3574 = vand.u32 %v3573, 4294901760
  %3575 = vmatmul.mubr.f32.gmra.mxu0 %v3574
  %v3576 = vpop.f32.mrf.mxu0
  %v3577 = vadd.f32 %v3241, %v3576
  %v3578 = vpop.f32.mrf.mxu0
  %3579 = vmatprep.mubr.f32.mxu0 0.0
  %v3580 = vand.u32 %v2292, 4294901760
  %v3581 = vsub.f32 %v2292, %v3580
  %v3582 = vand.u32 %v3581, 4294901760
  %3583 = vmatmul.mubr.f32.gmra.mxu0 %v3582
  %v3584 = vpop.f32.mrf.mxu0
  %v3585 = vadd.f32 %v3248, %v3584
  %v3586 = vpop.f32.mrf.mxu0
  %3587 = vmatprep.mubr.f32.mxu0 0.0
  %v3588 = vand.u32 %v2295, 4294901760
  %v3589 = vsub.f32 %v2295, %v3588
  %v3590 = vand.u32 %v3589, 4294901760
  %3591 = vmatmul.mubr.f32.gmra.mxu0 %v3590
  %v3592 = vpop.f32.mrf.mxu0
  %v3593 = vadd.f32 %v3255, %v3592
  %v3594 = vpop.f32.mrf.mxu0
  %3595 = vmatprep.mubr.f32.mxu0 0.0
  %v3596 = vand.u32 %v2298, 4294901760
  %v3597 = vsub.f32 %v2298, %v3596
  %v3598 = vand.u32 %v3597, 4294901760
  %3599 = vmatmul.mubr.f32.gmra.mxu0 %v3598
  %v3600 = vpop.f32.mrf.mxu0
  %v3601 = vadd.f32 %v3262, %v3600
  %v3602 = vpop.f32.mrf.mxu0
  %3603 = vmatprep.mubr.f32.mxu0 0.0
  %v3604 = vand.u32 %v2301, 4294901760
  %v3605 = vsub.f32 %v2301, %v3604
  %v3606 = vand.u32 %v3605, 4294901760
  %3607 = vmatmul.mubr.f32.gmra.mxu0 %v3606
  %v3608 = vpop.f32.mrf.mxu0
  %v3609 = vadd.f32 %v3269, %v3608
  %v3610 = vpop.f32.mrf.mxu0
  %3611 = vmatprep.mubr.f32.mxu0 0.0
  %v3612 = vand.u32 %v2304, 4294901760
  %v3613 = vsub.f32 %v2304, %v3612
  %v3614 = vand.u32 %v3613, 4294901760
  %3615 = vmatmul.mubr.f32.gmra.mxu0 %v3614
  %v3616 = vpop.f32.mrf.mxu0
  %v3617 = vadd.f32 %v3276, %v3616
  %v3618 = vpop.f32.mrf.mxu0
  %3619 = vmatprep.mubr.f32.mxu0 0.0
  %v3620 = vand.u32 %v2307, 4294901760
  %v3621 = vsub.f32 %v2307, %v3620
  %v3622 = vand.u32 %v3621, 4294901760
  %3623 = vmatmul.mubr.f32.gmra.mxu0 %v3622
  %v3624 = vpop.f32.mrf.mxu0
  %v3625 = vadd.f32 %v3283, %v3624
  %v3626 = vpop.f32.mrf.mxu0
  %3627 = vmatprep.mubr.f32.mxu0 0.0
  %v3628 = vand.u32 %v2310, 4294901760
  %v3629 = vsub.f32 %v2310, %v3628
  %v3630 = vand.u32 %v3629, 4294901760
  %3631 = vmatmul.mubr.f32.gmra.mxu0 %v3630
  %v3632 = vpop.f32.mrf.mxu0
  %v3633 = vadd.f32 %v3290, %v3632
  %v3634 = vpop.f32.mrf.mxu0
  %3635 = vmatprep.mubr.f32.mxu0 0.0
  %v3636 = vand.u32 %v2313, 4294901760
  %v3637 = vsub.f32 %v2313, %v3636
  %v3638 = vand.u32 %v3637, 4294901760
  %3639 = vmatmul.mubr.f32.gmra.mxu0 %v3638
  %v3640 = vpop.f32.mrf.mxu0
  %v3641 = vadd.f32 %v3297, %v3640
  %v3642 = vpop.f32.mrf.mxu0
  %3643 = vmatprep.mubr.f32.mxu0 0.0
  %v3644 = vand.u32 %v2316, 4294901760
  %v3645 = vsub.f32 %v2316, %v3644
  %v3646 = vand.u32 %v3645, 4294901760
  %3647 = vmatmul.mubr.f32.gmra.mxu0 %v3646
  %v3648 = vpop.f32.mrf.mxu0
  %v3649 = vadd.f32 %v3304, %v3648
  %v3650 = vpop.f32.mrf.mxu0
  %3651 = vmatprep.mubr.f32.mxu0 0.0
  %v3652 = vand.u32 %v2319, 4294901760
  %v3653 = vsub.f32 %v2319, %v3652
  %v3654 = vand.u32 %v3653, 4294901760
  %3655 = vmatmul.mubr.f32.gmra.mxu0 %v3654
  %v3656 = vpop.f32.mrf.mxu0
  %v3657 = vadd.f32 %v3311, %v3656
  %v3658 = vpop.f32.mrf.mxu0
  %3659 = vmatprep.mubr.f32.mxu0 0.0
  %v3660 = vand.u32 %v2322, 4294901760
  %v3661 = vsub.f32 %v2322, %v3660
  %v3662 = vand.u32 %v3661, 4294901760
  %3663 = vmatmul.mubr.f32.gmra.mxu0 %v3662
  %v3664 = vpop.f32.mrf.mxu0
  %v3665 = vadd.f32 %v3318, %v3664
  %v3666 = vpop.f32.mrf.mxu0
  %3667 = vmatprep.mubr.f32.mxu0 0.0
  %v3668 = vand.u32 %v2325, 4294901760
  %v3669 = vsub.f32 %v2325, %v3668
  %v3670 = vand.u32 %v3669, 4294901760
  %3671 = vmatmul.mubr.f32.gmra.mxu0 %v3670
  %v3672 = vpop.f32.mrf.mxu0
  %v3673 = vadd.f32 %v3325, %v3672
  %v3674 = vpop.f32.mrf.mxu0
  %3675 = vmatprep.mubr.f32.mxu0 0.0
  %v3676 = vand.u32 %v2328, 4294901760
  %v3677 = vsub.f32 %v2328, %v3676
  %v3678 = vand.u32 %v3677, 4294901760
  %3679 = vmatmul.mubr.f32.gmra.mxu0 %v3678
  %v3680 = vpop.f32.mrf.mxu0
  %v3681 = vadd.f32 %v3332, %v3680
  %v3682 = vpop.f32.mrf.mxu0
  %3683 = vmatprep.mubr.f32.mxu0 0.0
  %v3684 = vand.u32 %v2331, 4294901760
  %v3685 = vsub.f32 %v2331, %v3684
  %v3686 = vand.u32 %v3685, 4294901760
  %3687 = vmatmul.mubr.f32.gmra.mxu0 %v3686
  %v3688 = vpop.f32.mrf.mxu0
  %v3689 = vadd.f32 %v3339, %v3688
  %v3690 = vpop.f32.mrf.mxu0
  %3691 = vmatprep.mubr.f32.mxu0 0.0
  %v3692 = vand.u32 %v2334, 4294901760
  %v3693 = vsub.f32 %v2334, %v3692
  %v3694 = vand.u32 %v3693, 4294901760
  %3695 = vmatmul.mubr.f32.gmra.mxu0 %v3694
  %v3696 = vpop.f32.mrf.mxu0
  %v3697 = vadd.f32 %v3346, %v3696
  %v3698 = vpop.f32.mrf.mxu0
  %3699 = vmatprep.mubr.f32.mxu0 0.0
  %v3700 = vand.u32 %v2337, 4294901760
  %v3701 = vsub.f32 %v2337, %v3700
  %v3702 = vand.u32 %v3701, 4294901760
  %3703 = vmatmul.mubr.f32.gmra.mxu0 %v3702
  %v3704 = vpop.f32.mrf.mxu0
  %v3705 = vadd.f32 %v3353, %v3704
  %v3706 = vpop.f32.mrf.mxu0
  %3707 = vmatprep.mubr.f32.mxu0 0.0
  %v3708 = vand.u32 %v2340, 4294901760
  %v3709 = vsub.f32 %v2340, %v3708
  %v3710 = vand.u32 %v3709, 4294901760
  %3711 = vmatmul.mubr.f32.gmra.mxu0 %v3710
  %v3712 = vpop.f32.mrf.mxu0
  %v3713 = vadd.f32 %v3360, %v3712
  %v3714 = vpop.f32.mrf.mxu0
  %3715 = vmatprep.mubr.f32.mxu0 0.0
  %v3716 = vand.u32 %v2343, 4294901760
  %v3717 = vsub.f32 %v2343, %v3716
  %v3718 = vand.u32 %v3717, 4294901760
  %3719 = vmatmul.mubr.f32.gmra.mxu0 %v3718
  %v3720 = vpop.f32.mrf.mxu0
  %v3721 = vadd.f32 %v3367, %v3720
  %v3722 = vpop.f32.mrf.mxu0
  %3723 = vmatprep.mubr.f32.mxu0 0.0
  %v3724 = vand.u32 %v2346, 4294901760
  %v3725 = vsub.f32 %v2346, %v3724
  %v3726 = vand.u32 %v3725, 4294901760
  %3727 = vmatmul.mubr.f32.gmra.mxu0 %v3726
  %v3728 = vpop.f32.mrf.mxu0
  %v3729 = vadd.f32 %v3374, %v3728
  %v3730 = vpop.f32.mrf.mxu0
  %3731 = vmatprep.mubr.f32.mxu0 0.0
  %v3732 = vand.u32 %v2349, 4294901760
  %v3733 = vsub.f32 %v2349, %v3732
  %v3734 = vand.u32 %v3733, 4294901760
  %3735 = vmatmul.mubr.f32.gmra.mxu0 %v3734
  %v3736 = vpop.f32.mrf.mxu0
  %v3737 = vadd.f32 %v3381, %v3736
  %v3738 = vpop.f32.mrf.mxu0
  %3739 = vmatprep.mubr.f32.mxu0 0.0
  %v3740 = vand.u32 %v2352, 4294901760
  %v3741 = vsub.f32 %v2352, %v3740
  %v3742 = vand.u32 %v3741, 4294901760
  %3743 = vmatmul.mubr.f32.gmra.mxu0 %v3742
  %v3744 = vpop.f32.mrf.mxu0
  %v3745 = vadd.f32 %v3388, %v3744
  %v3746 = vpop.f32.mrf.mxu0
  %3747 = vmatprep.mubr.f32.mxu0 0.0
  %v3748 = vand.u32 %v2355, 4294901760
  %v3749 = vsub.f32 %v2355, %v3748
  %v3750 = vand.u32 %v3749, 4294901760
  %3751 = vmatmul.mubr.f32.gmra.mxu0 %v3750
  %v3752 = vpop.f32.mrf.mxu0
  %v3753 = vadd.f32 %v3395, %v3752
  %v3754 = vpop.f32.mrf.mxu0
  %3755 = vmatprep.mubr.f32.mxu0 0.0
  %v3756 = vand.u32 %v2358, 4294901760
  %v3757 = vsub.f32 %v2358, %v3756
  %v3758 = vand.u32 %v3757, 4294901760
  %3759 = vmatmul.mubr.f32.gmra.mxu0 %v3758
  %v3760 = vpop.f32.mrf.mxu0
  %v3761 = vadd.f32 %v3402, %v3760
  %v3762 = vpop.f32.mrf.mxu0
  %3763 = vmatprep.mubr.f32.mxu0 0.0
  %v3764 = vand.u32 %v2361, 4294901760
  %v3765 = vsub.f32 %v2361, %v3764
  %v3766 = vand.u32 %v3765, 4294901760
  %3767 = vmatmul.mubr.f32.gmra.mxu0 %v3766
  %v3768 = vpop.f32.mrf.mxu0
  %v3769 = vadd.f32 %v3409, %v3768
  %v3770 = vpop.f32.mrf.mxu0
  %3771 = vmatprep.mubr.f32.mxu0 0.0
  %v3772 = vand.u32 %v2364, 4294901760
  %v3773 = vsub.f32 %v2364, %v3772
  %v3774 = vand.u32 %v3773, 4294901760
  %3775 = vmatmul.mubr.f32.gmra.mxu0 %v3774
  %v3776 = vpop.f32.mrf.mxu0
  %v3777 = vadd.f32 %v3416, %v3776
  %v3778 = vpop.f32.mrf.mxu0
  %3779 = vmatprep.mubr.f32.mxu0 0.0
  %v3780 = vand.u32 %v2367, 4294901760
  %v3781 = vsub.f32 %v2367, %v3780
  %v3782 = vand.u32 %v3781, 4294901760
  %3783 = vmatmul.mubr.f32.gmra.mxu0 %v3782
  %v3784 = vpop.f32.mrf.mxu0
  %v3785 = vadd.f32 %v3423, %v3784
  %v3786 = vpop.f32.mrf.mxu0
  %3787 = vmatprep.mubr.f32.mxu0 0.0
  %v3788 = vand.u32 %v2370, 4294901760
  %v3789 = vsub.f32 %v2370, %v3788
  %v3790 = vand.u32 %v3789, 4294901760
  %3791 = vmatmul.mubr.f32.gmra.mxu0 %v3790
  %v3792 = vpop.f32.mrf.mxu0
  %v3793 = vadd.f32 %v3430, %v3792
  %v3794 = vpop.f32.mrf.mxu0
  %3795 = vmatprep.mubr.f32.mxu0 0.0
  %v3796 = vand.u32 %v2373, 4294901760
  %v3797 = vsub.f32 %v2373, %v3796
  %v3798 = vand.u32 %v3797, 4294901760
  %3799 = vmatmul.mubr.f32.gmra.mxu0 %v3798
  %v3800 = vpop.f32.mrf.mxu0
  %v3801 = vadd.f32 %v3437, %v3800
  %v3802 = vpop.f32.mrf.mxu0
  %3803 = vmatprep.mubr.f32.mxu0 0.0
  %v3804 = vand.u32 %v2376, 4294901760
  %v3805 = vsub.f32 %v2376, %v3804
  %v3806 = vand.u32 %v3805, 4294901760
  %3807 = vmatmul.mubr.f32.gmra.mxu0 %v3806
  %v3808 = vpop.f32.mrf.mxu0
  %v3809 = vadd.f32 %v3444, %v3808
  %v3810 = vpop.f32.mrf.mxu0
  %3811 = vmatprep.mubr.f32.mxu0 0.0
  %v3812 = vand.u32 %v2379, 4294901760
  %v3813 = vsub.f32 %v2379, %v3812
  %v3814 = vand.u32 %v3813, 4294901760
  %3815 = vmatmul.mubr.f32.gmra.mxu0 %v3814
  %v3816 = vpop.f32.mrf.mxu0
  %v3817 = vadd.f32 %v3451, %v3816
  %v3818 = vpop.f32.mrf.mxu0
  %3819 = vmatprep.mubr.f32.mxu0 0.0
  %v3820 = vand.u32 %v2382, 4294901760
  %v3821 = vsub.f32 %v2382, %v3820
  %v3822 = vand.u32 %v3821, 4294901760
  %3823 = vmatmul.mubr.f32.gmra.mxu0 %v3822
  %v3824 = vpop.f32.mrf.mxu0
  %v3825 = vadd.f32 %v3458, %v3824
  %v3826 = vpop.f32.mrf.mxu0
  %3827 = vmatprep.mubr.f32.mxu0 0.0
  %v3828 = vand.u32 %v2385, 4294901760
  %v3829 = vsub.f32 %v2385, %v3828
  %v3830 = vand.u32 %v3829, 4294901760
  %3831 = vmatmul.mubr.f32.gmra.mxu0 %v3830
  %v3832 = vpop.f32.mrf.mxu0
  %v3833 = vadd.f32 %v3465, %v3832
  %v3834 = vpop.f32.mrf.mxu0
  %3835 = vmatprep.mubr.f32.mxu0 0.0
  %v3836 = vand.u32 %v2388, 4294901760
  %v3837 = vsub.f32 %v2388, %v3836
  %v3838 = vand.u32 %v3837, 4294901760
  %3839 = vmatmul.mubr.f32.gmra.mxu0 %v3838
  %v3840 = vpop.f32.mrf.mxu0
  %v3841 = vadd.f32 %v3472, %v3840
  %v3842 = vpop.f32.mrf.mxu0
  %3843 = vmatprep.mubr.f32.mxu0 0.0
  %v3844 = vand.u32 %v2391, 4294901760
  %v3845 = vsub.f32 %v2391, %v3844
  %v3846 = vand.u32 %v3845, 4294901760
  %3847 = vmatmul.mubr.f32.gmra.mxu0 %v3846
  %v3848 = vpop.f32.mrf.mxu0
  %v3849 = vadd.f32 %v3479, %v3848
  %v3850 = vpop.f32.mrf.mxu0
  %3851 = vmatprep.mubr.f32.mxu0 0.0
  %v3852 = vand.u32 %v2394, 4294901760
  %v3853 = vsub.f32 %v2394, %v3852
  %v3854 = vand.u32 %v3853, 4294901760
  %3855 = vmatmul.mubr.f32.gmra.mxu0 %v3854
  %v3856 = vpop.f32.mrf.mxu0
  %v3857 = vadd.f32 %v3486, %v3856
  %v3858 = vpop.f32.mrf.mxu0
  %3859 = vmatprep.mubr.f32.mxu0 0.0
  %v3860 = vand.u32 %v2397, 4294901760
  %v3861 = vsub.f32 %v2397, %v3860
  %v3862 = vand.u32 %v3861, 4294901760
  %3863 = vmatmul.mubr.f32.gmra.mxu0 %v3862
  %v3864 = vpop.f32.mrf.mxu0
  %v3865 = vadd.f32 %v3493, %v3864
  %v3866 = vpop.f32.mrf.mxu0
  %3867 = vmatprep.mubr.f32.mxu0 0.0
  %v3868 = vand.u32 %v2400, 4294901760
  %v3869 = vsub.f32 %v2400, %v3868
  %v3870 = vand.u32 %v3869, 4294901760
  %3871 = vmatmul.mubr.f32.gmra.mxu0 %v3870
  %v3872 = vpop.f32.mrf.mxu0
  %v3873 = vadd.f32 %v3500, %v3872
  %v3874 = vpop.f32.mrf.mxu0
  %3875 = vdwg.mxu0
  %3876 = vmatprep.subr.mxu0 0.0
  %3877 = vmatpush1.msra.mxu0 0.0
  %3878 = vmatprep.subr.mxu0 0.0
  %3879 = vmatpush1.msra.mxu0 0.0
  %3880 = vmatprep.subr.mxu0 0.0
  %3881 = vmatpush1.msra.mxu0 0.0
  %3882 = vmatprep.subr.mxu0 0.0
  %3883 = vmatpush1.msra.mxu0 0.0
  %3884 = vmatprep.subr.mxu0 0.0
  %3885 = vmatpush1.msra.mxu0 0.0
  %3886 = vmatprep.subr.mxu0 0.0
  %3887 = vmatpush1.msra.mxu0 0.0
  %3888 = vmatprep.subr.mxu0 0.0
  %3889 = vmatpush1.msra.mxu0 0.0
  %3890 = vmatprep.subr.mxu0 0.0
  %3891 = vmatpush1.msra.mxu0 0.0
  %3892 = vmatprep.subr.mxu0 0.0
  %3893 = vmatpush1.msra.mxu0 0.0
  %3894 = vmatprep.subr.mxu0 0.0
  %3895 = vmatpush1.msra.mxu0 0.0
  %3896 = vmatprep.subr.mxu0 0.0
  %3897 = vmatpush1.msra.mxu0 0.0
  %3898 = vmatprep.subr.mxu0 0.0
  %3899 = vmatpush1.msra.mxu0 0.0
  %3900 = vmatprep.subr.mxu0 0.0
  %v3901 = vand.u32 %v2279, 4294901760
  %v3902 = vsub.f32 %v2279, %v3901
  %v3903 = vand.u32 %v3902, 4294901760
  %3904 = vmatpush1.msra.mxu0 %v3903
  %3905 = vmatprep.subr.mxu0 0.0
  %v3906 = vand.u32 %v2278, 4294901760
  %v3907 = vsub.f32 %v2278, %v3906
  %v3908 = vand.u32 %v3907, 4294901760
  %3909 = vmatpush1.msra.mxu0 %v3908
  %3910 = vmatprep.subr.mxu0 0.0
  %v3911 = vand.u32 %v2277, 4294901760
  %v3912 = vsub.f32 %v2277, %v3911
  %v3913 = vand.u32 %v3912, 4294901760
  %3914 = vmatpush1.msra.mxu0 %v3913
  %3915 = vmatprep.subr.mxu0 0.0
  %v3916 = vand.u32 %v2276, 4294901760
  %v3917 = vsub.f32 %v2276, %v3916
  %v3918 = vand.u32 %v3917, 4294901760
  %3919 = vmatpush1.msra.mxu0 %v3918
  %3920 = vmatprep.subr.mxu0 0.0
  %3921 = vmatpush2.msra.mxu0 0.0
  %3922 = vmatprep.subr.mxu0 0.0
  %3923 = vmatpush2.msra.mxu0 0.0
  %3924 = vmatprep.subr.mxu0 0.0
  %3925 = vmatpush2.msra.mxu0 0.0
  %3926 = vmatprep.subr.mxu0 0.0
  %3927 = vmatpush2.msra.mxu0 0.0
  %3928 = vmatprep.subr.mxu0 0.0
  %3929 = vmatpush2.msra.mxu0 0.0
  %3930 = vmatprep.subr.mxu0 0.0
  %3931 = vmatpush2.msra.mxu0 0.0
  %3932 = vmatprep.subr.mxu0 0.0
  %3933 = vmatpush2.msra.mxu0 0.0
  %3934 = vmatprep.subr.mxu0 0.0
  %3935 = vmatpush2.msra.mxu0 0.0
  %3936 = vmatprep.subr.mxu0 0.0
  %3937 = vmatpush2.msra.mxu0 0.0
  %3938 = vmatprep.subr.mxu0 0.0
  %3939 = vmatpush2.msra.mxu0 0.0
  %3940 = vmatprep.subr.mxu0 0.0
  %3941 = vmatpush2.msra.mxu0 0.0
  %3942 = vmatprep.subr.mxu0 0.0
  %3943 = vmatpush2.msra.mxu0 0.0
  %3944 = vmatprep.subr.mxu0 0.0
  %3945 = vmatpush2.msra.mxu0 0.0
  %3946 = vmatprep.subr.mxu0 0.0
  %3947 = vmatpush2.msra.mxu0 0.0
  %3948 = vmatprep.subr.mxu0 0.0
  %3949 = vmatpush2.msra.mxu0 0.0
  %3950 = vmatprep.subr.mxu0 0.0
  %3951 = vmatpush2.msra.mxu0 0.0
  %3952 = vmatprep.mubr.f32.mxu0 0.0
  %v3953 = vand.u32 %v2289, 4294901760
  %3954 = vmatmul.mubr.f32.gmra.mxu0 %v3953
  %v3955 = vpop.f32.mrf.mxu0
  %v3956 = vadd.f32 %v3577, %v3955
  %v3957 = vpop.f32.mrf.mxu0
  %3958 = vmatprep.mubr.f32.mxu0 0.0
  %v3959 = vand.u32 %v2292, 4294901760
  %3960 = vmatmul.mubr.f32.gmra.mxu0 %v3959
  %v3961 = vpop.f32.mrf.mxu0
  %v3962 = vadd.f32 %v3585, %v3961
  %v3963 = vpop.f32.mrf.mxu0
  %3964 = vmatprep.mubr.f32.mxu0 0.0
  %v3965 = vand.u32 %v2295, 4294901760
  %3966 = vmatmul.mubr.f32.gmra.mxu0 %v3965
  %v3967 = vpop.f32.mrf.mxu0
  %v3968 = vadd.f32 %v3593, %v3967
  %v3969 = vpop.f32.mrf.mxu0
  %3970 = vmatprep.mubr.f32.mxu0 0.0
  %v3971 = vand.u32 %v2298, 4294901760
  %3972 = vmatmul.mubr.f32.gmra.mxu0 %v3971
  %v3973 = vpop.f32.mrf.mxu0
  %v3974 = vadd.f32 %v3601, %v3973
  %v3975 = vpop.f32.mrf.mxu0
  %3976 = vmatprep.mubr.f32.mxu0 0.0
  %v3977 = vand.u32 %v2301, 4294901760
  %3978 = vmatmul.mubr.f32.gmra.mxu0 %v3977
  %v3979 = vpop.f32.mrf.mxu0
  %v3980 = vadd.f32 %v3609, %v3979
  %v3981 = vpop.f32.mrf.mxu0
  %3982 = vmatprep.mubr.f32.mxu0 0.0
  %v3983 = vand.u32 %v2304, 4294901760
  %3984 = vmatmul.mubr.f32.gmra.mxu0 %v3983
  %v3985 = vpop.f32.mrf.mxu0
  %v3986 = vadd.f32 %v3617, %v3985
  %v3987 = vpop.f32.mrf.mxu0
  %3988 = vmatprep.mubr.f32.mxu0 0.0
  %v3989 = vand.u32 %v2307, 4294901760
  %3990 = vmatmul.mubr.f32.gmra.mxu0 %v3989
  %v3991 = vpop.f32.mrf.mxu0
  %v3992 = vadd.f32 %v3625, %v3991
  %v3993 = vpop.f32.mrf.mxu0
  %3994 = vmatprep.mubr.f32.mxu0 0.0
  %v3995 = vand.u32 %v2310, 4294901760
  %3996 = vmatmul.mubr.f32.gmra.mxu0 %v3995
  %v3997 = vpop.f32.mrf.mxu0
  %v3998 = vadd.f32 %v3633, %v3997
  %v3999 = vpop.f32.mrf.mxu0
  %4000 = vmatprep.mubr.f32.mxu0 0.0
  %v4001 = vand.u32 %v2313, 4294901760
  %4002 = vmatmul.mubr.f32.gmra.mxu0 %v4001
  %v4003 = vpop.f32.mrf.mxu0
  %v4004 = vadd.f32 %v3641, %v4003
  %v4005 = vpop.f32.mrf.mxu0
  %4006 = vmatprep.mubr.f32.mxu0 0.0
  %v4007 = vand.u32 %v2316, 4294901760
  %4008 = vmatmul.mubr.f32.gmra.mxu0 %v4007
  %v4009 = vpop.f32.mrf.mxu0
  %v4010 = vadd.f32 %v3649, %v4009
  %v4011 = vpop.f32.mrf.mxu0
  %4012 = vmatprep.mubr.f32.mxu0 0.0
  %v4013 = vand.u32 %v2319, 4294901760
  %4014 = vmatmul.mubr.f32.gmra.mxu0 %v4013
  %v4015 = vpop.f32.mrf.mxu0
  %v4016 = vadd.f32 %v3657, %v4015
  %v4017 = vpop.f32.mrf.mxu0
  %4018 = vmatprep.mubr.f32.mxu0 0.0
  %v4019 = vand.u32 %v2322, 4294901760
  %4020 = vmatmul.mubr.f32.gmra.mxu0 %v4019
  %v4021 = vpop.f32.mrf.mxu0
  %v4022 = vadd.f32 %v3665, %v4021
  %v4023 = vpop.f32.mrf.mxu0
  %4024 = vmatprep.mubr.f32.mxu0 0.0
  %v4025 = vand.u32 %v2325, 4294901760
  %4026 = vmatmul.mubr.f32.gmra.mxu0 %v4025
  %v4027 = vpop.f32.mrf.mxu0
  %v4028 = vadd.f32 %v3673, %v4027
  %v4029 = vpop.f32.mrf.mxu0
  %4030 = vmatprep.mubr.f32.mxu0 0.0
  %v4031 = vand.u32 %v2328, 4294901760
  %4032 = vmatmul.mubr.f32.gmra.mxu0 %v4031
  %v4033 = vpop.f32.mrf.mxu0
  %v4034 = vadd.f32 %v3681, %v4033
  %v4035 = vpop.f32.mrf.mxu0
  %4036 = vmatprep.mubr.f32.mxu0 0.0
  %v4037 = vand.u32 %v2331, 4294901760
  %4038 = vmatmul.mubr.f32.gmra.mxu0 %v4037
  %v4039 = vpop.f32.mrf.mxu0
  %v4040 = vadd.f32 %v3689, %v4039
  %v4041 = vpop.f32.mrf.mxu0
  %4042 = vmatprep.mubr.f32.mxu0 0.0
  %v4043 = vand.u32 %v2334, 4294901760
  %4044 = vmatmul.mubr.f32.gmra.mxu0 %v4043
  %v4045 = vpop.f32.mrf.mxu0
  %v4046 = vadd.f32 %v3697, %v4045
  %v4047 = vpop.f32.mrf.mxu0
  %4048 = vmatprep.mubr.f32.mxu0 0.0
  %v4049 = vand.u32 %v2337, 4294901760
  %4050 = vmatmul.mubr.f32.gmra.mxu0 %v4049
  %v4051 = vpop.f32.mrf.mxu0
  %v4052 = vadd.f32 %v3705, %v4051
  %v4053 = vpop.f32.mrf.mxu0
  %4054 = vmatprep.mubr.f32.mxu0 0.0
  %v4055 = vand.u32 %v2340, 4294901760
  %4056 = vmatmul.mubr.f32.gmra.mxu0 %v4055
  %v4057 = vpop.f32.mrf.mxu0
  %v4058 = vadd.f32 %v3713, %v4057
  %v4059 = vpop.f32.mrf.mxu0
  %4060 = vmatprep.mubr.f32.mxu0 0.0
  %v4061 = vand.u32 %v2343, 4294901760
  %4062 = vmatmul.mubr.f32.gmra.mxu0 %v4061
  %v4063 = vpop.f32.mrf.mxu0
  %v4064 = vadd.f32 %v3721, %v4063
  %v4065 = vpop.f32.mrf.mxu0
  %4066 = vmatprep.mubr.f32.mxu0 0.0
  %v4067 = vand.u32 %v2346, 4294901760
  %4068 = vmatmul.mubr.f32.gmra.mxu0 %v4067
  %v4069 = vpop.f32.mrf.mxu0
  %v4070 = vadd.f32 %v3729, %v4069
  %v4071 = vpop.f32.mrf.mxu0
  %4072 = vmatprep.mubr.f32.mxu0 0.0
  %v4073 = vand.u32 %v2349, 4294901760
  %4074 = vmatmul.mubr.f32.gmra.mxu0 %v4073
  %v4075 = vpop.f32.mrf.mxu0
  %v4076 = vadd.f32 %v3737, %v4075
  %v4077 = vpop.f32.mrf.mxu0
  %4078 = vmatprep.mubr.f32.mxu0 0.0
  %v4079 = vand.u32 %v2352, 4294901760
  %4080 = vmatmul.mubr.f32.gmra.mxu0 %v4079
  %v4081 = vpop.f32.mrf.mxu0
  %v4082 = vadd.f32 %v3745, %v4081
  %v4083 = vpop.f32.mrf.mxu0
  %4084 = vmatprep.mubr.f32.mxu0 0.0
  %v4085 = vand.u32 %v2355, 4294901760
  %4086 = vmatmul.mubr.f32.gmra.mxu0 %v4085
  %v4087 = vpop.f32.mrf.mxu0
  %v4088 = vadd.f32 %v3753, %v4087
  %v4089 = vpop.f32.mrf.mxu0
  %4090 = vmatprep.mubr.f32.mxu0 0.0
  %v4091 = vand.u32 %v2358, 4294901760
  %4092 = vmatmul.mubr.f32.gmra.mxu0 %v4091
  %v4093 = vpop.f32.mrf.mxu0
  %v4094 = vadd.f32 %v3761, %v4093
  %v4095 = vpop.f32.mrf.mxu0
  %4096 = vmatprep.mubr.f32.mxu0 0.0
  %v4097 = vand.u32 %v2361, 4294901760
  %4098 = vmatmul.mubr.f32.gmra.mxu0 %v4097
  %v4099 = vpop.f32.mrf.mxu0
  %v4100 = vadd.f32 %v3769, %v4099
  %v4101 = vpop.f32.mrf.mxu0
  %4102 = vmatprep.mubr.f32.mxu0 0.0
  %v4103 = vand.u32 %v2364, 4294901760
  %4104 = vmatmul.mubr.f32.gmra.mxu0 %v4103
  %v4105 = vpop.f32.mrf.mxu0
  %v4106 = vadd.f32 %v3777, %v4105
  %v4107 = vpop.f32.mrf.mxu0
  %4108 = vmatprep.mubr.f32.mxu0 0.0
  %v4109 = vand.u32 %v2367, 4294901760
  %4110 = vmatmul.mubr.f32.gmra.mxu0 %v4109
  %v4111 = vpop.f32.mrf.mxu0
  %v4112 = vadd.f32 %v3785, %v4111
  %v4113 = vpop.f32.mrf.mxu0
  %4114 = vmatprep.mubr.f32.mxu0 0.0
  %v4115 = vand.u32 %v2370, 4294901760
  %4116 = vmatmul.mubr.f32.gmra.mxu0 %v4115
  %v4117 = vpop.f32.mrf.mxu0
  %v4118 = vadd.f32 %v3793, %v4117
  %v4119 = vpop.f32.mrf.mxu0
  %4120 = vmatprep.mubr.f32.mxu0 0.0
  %v4121 = vand.u32 %v2373, 4294901760
  %4122 = vmatmul.mubr.f32.gmra.mxu0 %v4121
  %v4123 = vpop.f32.mrf.mxu0
  %v4124 = vadd.f32 %v3801, %v4123
  %v4125 = vpop.f32.mrf.mxu0
  %4126 = vmatprep.mubr.f32.mxu0 0.0
  %v4127 = vand.u32 %v2376, 4294901760
  %4128 = vmatmul.mubr.f32.gmra.mxu0 %v4127
  %v4129 = vpop.f32.mrf.mxu0
  %v4130 = vadd.f32 %v3809, %v4129
  %v4131 = vpop.f32.mrf.mxu0
  %4132 = vmatprep.mubr.f32.mxu0 0.0
  %v4133 = vand.u32 %v2379, 4294901760
  %4134 = vmatmul.mubr.f32.gmra.mxu0 %v4133
  %v4135 = vpop.f32.mrf.mxu0
  %v4136 = vadd.f32 %v3817, %v4135
  %v4137 = vpop.f32.mrf.mxu0
  %4138 = vmatprep.mubr.f32.mxu0 0.0
  %v4139 = vand.u32 %v2382, 4294901760
  %4140 = vmatmul.mubr.f32.gmra.mxu0 %v4139
  %v4141 = vpop.f32.mrf.mxu0
  %v4142 = vadd.f32 %v3825, %v4141
  %v4143 = vpop.f32.mrf.mxu0
  %4144 = vmatprep.mubr.f32.mxu0 0.0
  %v4145 = vand.u32 %v2385, 4294901760
  %4146 = vmatmul.mubr.f32.gmra.mxu0 %v4145
  %v4147 = vpop.f32.mrf.mxu0
  %v4148 = vadd.f32 %v3833, %v4147
  %v4149 = vpop.f32.mrf.mxu0
  %4150 = vmatprep.mubr.f32.mxu0 0.0
  %v4151 = vand.u32 %v2388, 4294901760
  %4152 = vmatmul.mubr.f32.gmra.mxu0 %v4151
  %v4153 = vpop.f32.mrf.mxu0
  %v4154 = vadd.f32 %v3841, %v4153
  %v4155 = vpop.f32.mrf.mxu0
  %4156 = vmatprep.mubr.f32.mxu0 0.0
  %v4157 = vand.u32 %v2391, 4294901760
  %4158 = vmatmul.mubr.f32.gmra.mxu0 %v4157
  %v4159 = vpop.f32.mrf.mxu0
  %v4160 = vadd.f32 %v3849, %v4159
  %v4161 = vpop.f32.mrf.mxu0
  %4162 = vmatprep.mubr.f32.mxu0 0.0
  %v4163 = vand.u32 %v2394, 4294901760
  %4164 = vmatmul.mubr.f32.gmra.mxu0 %v4163
  %v4165 = vpop.f32.mrf.mxu0
  %v4166 = vadd.f32 %v3857, %v4165
  %v4167 = vpop.f32.mrf.mxu0
  %4168 = vmatprep.mubr.f32.mxu0 0.0
  %v4169 = vand.u32 %v2397, 4294901760
  %4170 = vmatmul.mubr.f32.gmra.mxu0 %v4169
  %v4171 = vpop.f32.mrf.mxu0
  %v4172 = vadd.f32 %v3865, %v4171
  %v4173 = vpop.f32.mrf.mxu0
  %4174 = vmatprep.mubr.f32.mxu0 0.0
  %v4175 = vand.u32 %v2400, 4294901760
  %4176 = vmatmul.mubr.f32.gmra.mxu0 %v4175
  %v4177 = vpop.f32.mrf.mxu0
  %v4178 = vadd.f32 %v3873, %v4177
  %v4179 = vpop.f32.mrf.mxu0
  %4180 = vdwg.mxu0
  %4181 = vmatprep.subr.mxu0 0.0
  %4182 = vmatpush1.msra.mxu0 0.0
  %4183 = vmatprep.subr.mxu0 0.0
  %4184 = vmatpush1.msra.mxu0 0.0
  %4185 = vmatprep.subr.mxu0 0.0
  %4186 = vmatpush1.msra.mxu0 0.0
  %4187 = vmatprep.subr.mxu0 0.0
  %4188 = vmatpush1.msra.mxu0 0.0
  %4189 = vmatprep.subr.mxu0 0.0
  %4190 = vmatpush1.msra.mxu0 0.0
  %4191 = vmatprep.subr.mxu0 0.0
  %4192 = vmatpush1.msra.mxu0 0.0
  %4193 = vmatprep.subr.mxu0 0.0
  %4194 = vmatpush1.msra.mxu0 0.0
  %4195 = vmatprep.subr.mxu0 0.0
  %4196 = vmatpush1.msra.mxu0 0.0
  %4197 = vmatprep.subr.mxu0 0.0
  %4198 = vmatpush1.msra.mxu0 0.0
  %4199 = vmatprep.subr.mxu0 0.0
  %4200 = vmatpush1.msra.mxu0 0.0
  %4201 = vmatprep.subr.mxu0 0.0
  %4202 = vmatpush1.msra.mxu0 0.0
  %4203 = vmatprep.subr.mxu0 0.0
  %4204 = vmatpush1.msra.mxu0 0.0
  %4205 = vmatprep.subr.mxu0 0.0
  %v4206 = vand.u32 %v2279, 4294901760
  %4207 = vmatpush1.msra.mxu0 %v4206
  %4208 = vmatprep.subr.mxu0 0.0
  %v4209 = vand.u32 %v2278, 4294901760
  %4210 = vmatpush1.msra.mxu0 %v4209
  %4211 = vmatprep.subr.mxu0 0.0
  %v4212 = vand.u32 %v2277, 4294901760
  %4213 = vmatpush1.msra.mxu0 %v4212
  %4214 = vmatprep.subr.mxu0 0.0
  %v4215 = vand.u32 %v2276, 4294901760
  %4216 = vmatpush1.msra.mxu0 %v4215
  %4217 = vmatprep.subr.mxu0 0.0
  %4218 = vmatpush2.msra.mxu0 0.0
  %4219 = vmatprep.subr.mxu0 0.0
  %4220 = vmatpush2.msra.mxu0 0.0
  %4221 = vmatprep.subr.mxu0 0.0
  %4222 = vmatpush2.msra.mxu0 0.0
  %4223 = vmatprep.subr.mxu0 0.0
  %4224 = vmatpush2.msra.mxu0 0.0
  %4225 = vmatprep.subr.mxu0 0.0
  %4226 = vmatpush2.msra.mxu0 0.0
  %4227 = vmatprep.subr.mxu0 0.0
  %4228 = vmatpush2.msra.mxu0 0.0
  %4229 = vmatprep.subr.mxu0 0.0
  %4230 = vmatpush2.msra.mxu0 0.0
  %4231 = vmatprep.subr.mxu0 0.0
  %4232 = vmatpush2.msra.mxu0 0.0
  %4233 = vmatprep.subr.mxu0 0.0
  %4234 = vmatpush2.msra.mxu0 0.0
  %4235 = vmatprep.subr.mxu0 0.0
  %4236 = vmatpush2.msra.mxu0 0.0
  %4237 = vmatprep.subr.mxu0 0.0
  %4238 = vmatpush2.msra.mxu0 0.0
  %4239 = vmatprep.subr.mxu0 0.0
  %4240 = vmatpush2.msra.mxu0 0.0
  %4241 = vmatprep.subr.mxu0 0.0
  %4242 = vmatpush2.msra.mxu0 0.0
  %4243 = vmatprep.subr.mxu0 0.0
  %4244 = vmatpush2.msra.mxu0 0.0
  %4245 = vmatprep.subr.mxu0 0.0
  %4246 = vmatpush2.msra.mxu0 0.0
  %4247 = vmatprep.subr.mxu0 0.0
  %4248 = vmatpush2.msra.mxu0 0.0
  %4249 = vmatprep.mubr.f32.mxu0 0.0
  %v4250 = vand.u32 %v2289, 4294901760
  %4251 = vmatmul.mubr.f32.gmra.mxu0 %v4250
  %v4252 = vpop.f32.mrf.mxu0
  %v4253 = vadd.f32 %v3956, %v4252
  %v4254 = vpop.f32.mrf.mxu0
  %4255 = vmatprep.mubr.f32.mxu0 0.0
  %v4256 = vand.u32 %v2292, 4294901760
  %4257 = vmatmul.mubr.f32.gmra.mxu0 %v4256
  %v4258 = vpop.f32.mrf.mxu0
  %v4259 = vadd.f32 %v3962, %v4258
  %v4260 = vpop.f32.mrf.mxu0
  %4261 = vmatprep.mubr.f32.mxu0 0.0
  %v4262 = vand.u32 %v2295, 4294901760
  %4263 = vmatmul.mubr.f32.gmra.mxu0 %v4262
  %v4264 = vpop.f32.mrf.mxu0
  %v4265 = vadd.f32 %v3968, %v4264
  %v4266 = vpop.f32.mrf.mxu0
  %4267 = vmatprep.mubr.f32.mxu0 0.0
  %v4268 = vand.u32 %v2298, 4294901760
  %4269 = vmatmul.mubr.f32.gmra.mxu0 %v4268
  %v4270 = vpop.f32.mrf.mxu0
  %v4271 = vadd.f32 %v3974, %v4270
  %v4272 = vpop.f32.mrf.mxu0
  %4273 = vmatprep.mubr.f32.mxu0 0.0
  %v4274 = vand.u32 %v2301, 4294901760
  %4275 = vmatmul.mubr.f32.gmra.mxu0 %v4274
  %v4276 = vpop.f32.mrf.mxu0
  %v4277 = vadd.f32 %v3980, %v4276
  %v4278 = vpop.f32.mrf.mxu0
  %4279 = vmatprep.mubr.f32.mxu0 0.0
  %v4280 = vand.u32 %v2304, 4294901760
  %4281 = vmatmul.mubr.f32.gmra.mxu0 %v4280
  %v4282 = vpop.f32.mrf.mxu0
  %v4283 = vadd.f32 %v3986, %v4282
  %v4284 = vpop.f32.mrf.mxu0
  %4285 = vmatprep.mubr.f32.mxu0 0.0
  %v4286 = vand.u32 %v2307, 4294901760
  %4287 = vmatmul.mubr.f32.gmra.mxu0 %v4286
  %v4288 = vpop.f32.mrf.mxu0
  %v4289 = vadd.f32 %v3992, %v4288
  %v4290 = vpop.f32.mrf.mxu0
  %4291 = vmatprep.mubr.f32.mxu0 0.0
  %v4292 = vand.u32 %v2310, 4294901760
  %4293 = vmatmul.mubr.f32.gmra.mxu0 %v4292
  %v4294 = vpop.f32.mrf.mxu0
  %v4295 = vadd.f32 %v3998, %v4294
  %v4296 = vpop.f32.mrf.mxu0
  %4297 = vmatprep.mubr.f32.mxu0 0.0
  %v4298 = vand.u32 %v2313, 4294901760
  %4299 = vmatmul.mubr.f32.gmra.mxu0 %v4298
  %v4300 = vpop.f32.mrf.mxu0
  %v4301 = vadd.f32 %v4004, %v4300
  %v4302 = vpop.f32.mrf.mxu0
  %4303 = vmatprep.mubr.f32.mxu0 0.0
  %v4304 = vand.u32 %v2316, 4294901760
  %4305 = vmatmul.mubr.f32.gmra.mxu0 %v4304
  %v4306 = vpop.f32.mrf.mxu0
  %v4307 = vadd.f32 %v4010, %v4306
  %v4308 = vpop.f32.mrf.mxu0
  %4309 = vmatprep.mubr.f32.mxu0 0.0
  %v4310 = vand.u32 %v2319, 4294901760
  %4311 = vmatmul.mubr.f32.gmra.mxu0 %v4310
  %v4312 = vpop.f32.mrf.mxu0
  %v4313 = vadd.f32 %v4016, %v4312
  %v4314 = vpop.f32.mrf.mxu0
  %4315 = vmatprep.mubr.f32.mxu0 0.0
  %v4316 = vand.u32 %v2322, 4294901760
  %4317 = vmatmul.mubr.f32.gmra.mxu0 %v4316
  %v4318 = vpop.f32.mrf.mxu0
  %v4319 = vadd.f32 %v4022, %v4318
  %v4320 = vpop.f32.mrf.mxu0
  %4321 = vmatprep.mubr.f32.mxu0 0.0
  %v4322 = vand.u32 %v2325, 4294901760
  %4323 = vmatmul.mubr.f32.gmra.mxu0 %v4322
  %v4324 = vpop.f32.mrf.mxu0
  %v4325 = vadd.f32 %v4028, %v4324
  %v4326 = vpop.f32.mrf.mxu0
  %4327 = vmatprep.mubr.f32.mxu0 0.0
  %v4328 = vand.u32 %v2328, 4294901760
  %4329 = vmatmul.mubr.f32.gmra.mxu0 %v4328
  %v4330 = vpop.f32.mrf.mxu0
  %v4331 = vadd.f32 %v4034, %v4330
  %v4332 = vpop.f32.mrf.mxu0
  %4333 = vmatprep.mubr.f32.mxu0 0.0
  %v4334 = vand.u32 %v2331, 4294901760
  %4335 = vmatmul.mubr.f32.gmra.mxu0 %v4334
  %v4336 = vpop.f32.mrf.mxu0
  %v4337 = vadd.f32 %v4040, %v4336
  %v4338 = vpop.f32.mrf.mxu0
  %4339 = vmatprep.mubr.f32.mxu0 0.0
  %v4340 = vand.u32 %v2334, 4294901760
  %4341 = vmatmul.mubr.f32.gmra.mxu0 %v4340
  %v4342 = vpop.f32.mrf.mxu0
  %v4343 = vadd.f32 %v4046, %v4342
  %v4344 = vpop.f32.mrf.mxu0
  %4345 = vmatprep.mubr.f32.mxu0 0.0
  %v4346 = vand.u32 %v2337, 4294901760
  %4347 = vmatmul.mubr.f32.gmra.mxu0 %v4346
  %v4348 = vpop.f32.mrf.mxu0
  %v4349 = vadd.f32 %v4052, %v4348
  %v4350 = vpop.f32.mrf.mxu0
  %4351 = vmatprep.mubr.f32.mxu0 0.0
  %v4352 = vand.u32 %v2340, 4294901760
  %4353 = vmatmul.mubr.f32.gmra.mxu0 %v4352
  %v4354 = vpop.f32.mrf.mxu0
  %v4355 = vadd.f32 %v4058, %v4354
  %v4356 = vpop.f32.mrf.mxu0
  %4357 = vmatprep.mubr.f32.mxu0 0.0
  %v4358 = vand.u32 %v2343, 4294901760
  %4359 = vmatmul.mubr.f32.gmra.mxu0 %v4358
  %v4360 = vpop.f32.mrf.mxu0
  %v4361 = vadd.f32 %v4064, %v4360
  %v4362 = vpop.f32.mrf.mxu0
  %4363 = vmatprep.mubr.f32.mxu0 0.0
  %v4364 = vand.u32 %v2346, 4294901760
  %4365 = vmatmul.mubr.f32.gmra.mxu0 %v4364
  %v4366 = vpop.f32.mrf.mxu0
  %v4367 = vadd.f32 %v4070, %v4366
  %v4368 = vpop.f32.mrf.mxu0
  %4369 = vmatprep.mubr.f32.mxu0 0.0
  %v4370 = vand.u32 %v2349, 4294901760
  %4371 = vmatmul.mubr.f32.gmra.mxu0 %v4370
  %v4372 = vpop.f32.mrf.mxu0
  %v4373 = vadd.f32 %v4076, %v4372
  %v4374 = vpop.f32.mrf.mxu0
  %4375 = vmatprep.mubr.f32.mxu0 0.0
  %v4376 = vand.u32 %v2352, 4294901760
  %4377 = vmatmul.mubr.f32.gmra.mxu0 %v4376
  %v4378 = vpop.f32.mrf.mxu0
  %v4379 = vadd.f32 %v4082, %v4378
  %v4380 = vpop.f32.mrf.mxu0
  %4381 = vmatprep.mubr.f32.mxu0 0.0
  %v4382 = vand.u32 %v2355, 4294901760
  %4383 = vmatmul.mubr.f32.gmra.mxu0 %v4382
  %v4384 = vpop.f32.mrf.mxu0
  %v4385 = vadd.f32 %v4088, %v4384
  %v4386 = vpop.f32.mrf.mxu0
  %4387 = vmatprep.mubr.f32.mxu0 0.0
  %v4388 = vand.u32 %v2358, 4294901760
  %4389 = vmatmul.mubr.f32.gmra.mxu0 %v4388
  %v4390 = vpop.f32.mrf.mxu0
  %v4391 = vadd.f32 %v4094, %v4390
  %v4392 = vpop.f32.mrf.mxu0
  %4393 = vmatprep.mubr.f32.mxu0 0.0
  %v4394 = vand.u32 %v2361, 4294901760
  %4395 = vmatmul.mubr.f32.gmra.mxu0 %v4394
  %v4396 = vpop.f32.mrf.mxu0
  %v4397 = vadd.f32 %v4100, %v4396
  %v4398 = vpop.f32.mrf.mxu0
  %4399 = vmatprep.mubr.f32.mxu0 0.0
  %v4400 = vand.u32 %v2364, 4294901760
  %4401 = vmatmul.mubr.f32.gmra.mxu0 %v4400
  %v4402 = vpop.f32.mrf.mxu0
  %v4403 = vadd.f32 %v4106, %v4402
  %v4404 = vpop.f32.mrf.mxu0
  %4405 = vmatprep.mubr.f32.mxu0 0.0
  %v4406 = vand.u32 %v2367, 4294901760
  %4407 = vmatmul.mubr.f32.gmra.mxu0 %v4406
  %v4408 = vpop.f32.mrf.mxu0
  %v4409 = vadd.f32 %v4112, %v4408
  %v4410 = vpop.f32.mrf.mxu0
  %4411 = vmatprep.mubr.f32.mxu0 0.0
  %v4412 = vand.u32 %v2370, 4294901760
  %4413 = vmatmul.mubr.f32.gmra.mxu0 %v4412
  %v4414 = vpop.f32.mrf.mxu0
  %v4415 = vadd.f32 %v4118, %v4414
  %v4416 = vpop.f32.mrf.mxu0
  %4417 = vmatprep.mubr.f32.mxu0 0.0
  %v4418 = vand.u32 %v2373, 4294901760
  %4419 = vmatmul.mubr.f32.gmra.mxu0 %v4418
  %v4420 = vpop.f32.mrf.mxu0
  %v4421 = vadd.f32 %v4124, %v4420
  %v4422 = vpop.f32.mrf.mxu0
  %4423 = vmatprep.mubr.f32.mxu0 0.0
  %v4424 = vand.u32 %v2376, 4294901760
  %4425 = vmatmul.mubr.f32.gmra.mxu0 %v4424
  %v4426 = vpop.f32.mrf.mxu0
  %v4427 = vadd.f32 %v4130, %v4426
  %v4428 = vpop.f32.mrf.mxu0
  %4429 = vmatprep.mubr.f32.mxu0 0.0
  %v4430 = vand.u32 %v2379, 4294901760
  %4431 = vmatmul.mubr.f32.gmra.mxu0 %v4430
  %v4432 = vpop.f32.mrf.mxu0
  %v4433 = vadd.f32 %v4136, %v4432
  %v4434 = vpop.f32.mrf.mxu0
  %4435 = vmatprep.mubr.f32.mxu0 0.0
  %v4436 = vand.u32 %v2382, 4294901760
  %4437 = vmatmul.mubr.f32.gmra.mxu0 %v4436
  %v4438 = vpop.f32.mrf.mxu0
  %v4439 = vadd.f32 %v4142, %v4438
  %v4440 = vpop.f32.mrf.mxu0
  %4441 = vmatprep.mubr.f32.mxu0 0.0
  %v4442 = vand.u32 %v2385, 4294901760
  %4443 = vmatmul.mubr.f32.gmra.mxu0 %v4442
  %v4444 = vpop.f32.mrf.mxu0
  %v4445 = vadd.f32 %v4148, %v4444
  %v4446 = vpop.f32.mrf.mxu0
  %4447 = vmatprep.mubr.f32.mxu0 0.0
  %v4448 = vand.u32 %v2388, 4294901760
  %4449 = vmatmul.mubr.f32.gmra.mxu0 %v4448
  %v4450 = vpop.f32.mrf.mxu0
  %v4451 = vadd.f32 %v4154, %v4450
  %v4452 = vpop.f32.mrf.mxu0
  %4453 = vmatprep.mubr.f32.mxu0 0.0
  %v4454 = vand.u32 %v2391, 4294901760
  %4455 = vmatmul.mubr.f32.gmra.mxu0 %v4454
  %v4456 = vpop.f32.mrf.mxu0
  %v4457 = vadd.f32 %v4160, %v4456
  %v4458 = vpop.f32.mrf.mxu0
  %4459 = vmatprep.mubr.f32.mxu0 0.0
  %v4460 = vand.u32 %v2394, 4294901760
  %4461 = vmatmul.mubr.f32.gmra.mxu0 %v4460
  %v4462 = vpop.f32.mrf.mxu0
  %v4463 = vadd.f32 %v4166, %v4462
  %v4464 = vpop.f32.mrf.mxu0
  %4465 = vmatprep.mubr.f32.mxu0 0.0
  %v4466 = vand.u32 %v2397, 4294901760
  %4467 = vmatmul.mubr.f32.gmra.mxu0 %v4466
  %v4468 = vpop.f32.mrf.mxu0
  %v4469 = vadd.f32 %v4172, %v4468
  %v4470 = vpop.f32.mrf.mxu0
  %4471 = vmatprep.mubr.f32.mxu0 0.0
  %v4472 = vand.u32 %v2400, 4294901760
  %4473 = vmatmul.mubr.f32.gmra.mxu0 %v4472
  %v4474 = vpop.f32.mrf.mxu0
  %v4475 = vadd.f32 %v4178, %v4474
  %v4476 = vpop.f32.mrf.mxu0
  %4477 = vdwg.mxu0
  %v4478 = vmax.f32 %v4253, 0.0
  %v4479 = vmax.f32 %v4259, 0.0
  %v4480 = vmax.f32 %v4265, 0.0
  %v4481 = vmax.f32 %v4271, 0.0
  %v4482 = vmax.f32 %v4277, 0.0
  %v4483 = vmax.f32 %v4283, 0.0
  %v4484 = vmax.f32 %v4289, 0.0
  %v4485 = vmax.f32 %v4295, 0.0
  %v4486 = vmax.f32 %v4301, 0.0
  %v4487 = vmax.f32 %v4307, 0.0
  %v4488 = vmax.f32 %v4313, 0.0
  %v4489 = vmax.f32 %v4319, 0.0
  %v4490 = vmax.f32 %v4325, 0.0
  %v4491 = vmax.f32 %v4331, 0.0
  %v4492 = vmax.f32 %v4337, 0.0
  %v4493 = vmax.f32 %v4343, 0.0
  %v4494 = vmax.f32 %v4349, 0.0
  %v4495 = vmax.f32 %v4355, 0.0
  %v4496 = vmax.f32 %v4361, 0.0
  %v4497 = vmax.f32 %v4367, 0.0
  %v4498 = vmax.f32 %v4373, 0.0
  %v4499 = vmax.f32 %v4379, 0.0
  %v4500 = vmax.f32 %v4385, 0.0
  %v4501 = vmax.f32 %v4391, 0.0
  %v4502 = vmax.f32 %v4397, 0.0
  %v4503 = vmax.f32 %v4403, 0.0
  %v4504 = vmax.f32 %v4409, 0.0
  %v4505 = vmax.f32 %v4415, 0.0
  %v4506 = vmax.f32 %v4421, 0.0
  %v4507 = vmax.f32 %v4427, 0.0
  %v4508 = vmax.f32 %v4433, 0.0
  %v4509 = vmax.f32 %v4439, 0.0
  %v4510 = vmax.f32 %v4445, 0.0
  %v4511 = vmax.f32 %v4451, 0.0
  %v4512 = vmax.f32 %v4457, 0.0
  %v4513 = vmax.f32 %v4463, 0.0
  %v4514 = vmax.f32 %v4469, 0.0
  %v4515 = vmax.f32 %v4475, 0.0
  %v4516 = vld [vmem:[%s5] sm:$0xff]
  %v4517 = vld [vmem:[%s5 + $0x8] sm:$0xff]
  %v4518 = vld [vmem:[%s5 + $0x10] sm:$0xff]
  %v4519 = vld [vmem:[%s5 + $0x18] sm:$0xff]
  %v4520 = vld [vmem:[%s6] sm:$0x1]
  %v4522 = vlaneseq
  %v4523 = vshrl.u32 %v4522, 7
  %v4524 = vsub.s32 0, %v4523
  %v4525 = vrot.slane %v4520, %v4524
  %v4528 = vsel %vm2287, %v4478, 0
  %v4531 = vsel %vm2287, %v4479, 0
  %v4534 = vsel %vm2287, %v4480, 0
  %v4537 = vsel %vm2287, %v4481, 0
  %v4540 = vsel %vm2287, %v4482, 0
  %v4543 = vsel %vm2287, %v4483, 0
  %v4546 = vsel %vm2287, %v4484, 0
  %v4549 = vsel %vm2287, %v4485, 0
  %v4552 = vsel %vm2287, %v4486, 0
  %v4555 = vsel %vm2287, %v4487, 0
  %v4558 = vsel %vm2287, %v4488, 0
  %v4561 = vsel %vm2287, %v4489, 0
  %v4564 = vsel %vm2287, %v4490, 0
  %v4567 = vsel %vm2287, %v4491, 0
  %v4570 = vsel %vm2287, %v4492, 0
  %v4573 = vsel %vm2287, %v4493, 0
  %v4576 = vsel %vm2287, %v4494, 0
  %v4579 = vsel %vm2287, %v4495, 0
  %v4582 = vsel %vm2287, %v4496, 0
  %v4585 = vsel %vm2287, %v4497, 0
  %v4588 = vsel %vm2287, %v4498, 0
  %v4591 = vsel %vm2287, %v4499, 0
  %v4594 = vsel %vm2287, %v4500, 0
  %v4597 = vsel %vm2287, %v4501, 0
  %v4600 = vsel %vm2287, %v4502, 0
  %v4603 = vsel %vm2287, %v4503, 0
  %v4606 = vsel %vm2287, %v4504, 0
  %v4609 = vsel %vm2287, %v4505, 0
  %v4612 = vsel %vm2287, %v4506, 0
  %v4615 = vsel %vm2287, %v4507, 0
  %v4618 = vsel %vm2287, %v4508, 0
  %v4621 = vsel %vm2287, %v4509, 0
  %v4624 = vsel %vm2287, %v4510, 0
  %v4627 = vsel %vm2287, %v4511, 0
  %v4630 = vsel %vm2287, %v4512, 0
  %v4633 = vsel %vm2287, %v4513, 0
  %v4636 = vsel %vm2287, %v4514, 0
  %v4639 = vsel %vm2287, %v4515, 0
  %4641 = vmatprep.subr.mxu0 0.0
  %4642 = vmatpush1.msra.mxu0 0.0
  %4643 = vmatprep.subr.mxu0 0.0
  %4644 = vmatpush1.msra.mxu0 0.0
  %4645 = vmatprep.subr.mxu0 0.0
  %4646 = vmatpush1.msra.mxu0 0.0
  %4647 = vmatprep.subr.mxu0 0.0
  %4648 = vmatpush1.msra.mxu0 0.0
  %4649 = vmatprep.subr.mxu0 0.0
  %4650 = vmatpush1.msra.mxu0 0.0
  %4651 = vmatprep.subr.mxu0 0.0
  %4652 = vmatpush1.msra.mxu0 0.0
  %4653 = vmatprep.subr.mxu0 0.0
  %4654 = vmatpush1.msra.mxu0 0.0
  %4655 = vmatprep.subr.mxu0 0.0
  %4656 = vmatpush1.msra.mxu0 0.0
  %4657 = vmatprep.subr.mxu0 0.0
  %4658 = vmatpush1.msra.mxu0 0.0
  %4659 = vmatprep.subr.mxu0 0.0
  %4660 = vmatpush1.msra.mxu0 0.0
  %4661 = vmatprep.subr.mxu0 0.0
  %4662 = vmatpush1.msra.mxu0 0.0
  %4663 = vmatprep.subr.mxu0 0.0
  %4664 = vmatpush1.msra.mxu0 0.0
  %4665 = vmatprep.subr.mxu0 0.0
  %v4666 = vand.u32 %v4519, 4294901760
  %4667 = vmatpush1.msra.mxu0 %v4666
  %4668 = vmatprep.subr.mxu0 0.0
  %v4669 = vand.u32 %v4518, 4294901760
  %4670 = vmatpush1.msra.mxu0 %v4669
  %4671 = vmatprep.subr.mxu0 0.0
  %v4672 = vand.u32 %v4517, 4294901760
  %4673 = vmatpush1.msra.mxu0 %v4672
  %4674 = vmatprep.subr.mxu0 0.0
  %v4675 = vand.u32 %v4516, 4294901760
  %4676 = vmatpush1.msra.mxu0 %v4675
  %4677 = vmatprep.subr.mxu0 0.0
  %4678 = vmatpush2.msra.mxu0 0.0
  %4679 = vmatprep.subr.mxu0 0.0
  %4680 = vmatpush2.msra.mxu0 0.0
  %4681 = vmatprep.subr.mxu0 0.0
  %4682 = vmatpush2.msra.mxu0 0.0
  %4683 = vmatprep.subr.mxu0 0.0
  %4684 = vmatpush2.msra.mxu0 0.0
  %4685 = vmatprep.subr.mxu0 0.0
  %4686 = vmatpush2.msra.mxu0 0.0
  %4687 = vmatprep.subr.mxu0 0.0
  %4688 = vmatpush2.msra.mxu0 0.0
  %4689 = vmatprep.subr.mxu0 0.0
  %4690 = vmatpush2.msra.mxu0 0.0
  %4691 = vmatprep.subr.mxu0 0.0
  %4692 = vmatpush2.msra.mxu0 0.0
  %4693 = vmatprep.subr.mxu0 0.0
  %4694 = vmatpush2.msra.mxu0 0.0
  %4695 = vmatprep.subr.mxu0 0.0
  %4696 = vmatpush2.msra.mxu0 0.0
  %4697 = vmatprep.subr.mxu0 0.0
  %4698 = vmatpush2.msra.mxu0 0.0
  %4699 = vmatprep.subr.mxu0 0.0
  %4700 = vmatpush2.msra.mxu0 0.0
  %4701 = vmatprep.subr.mxu0 0.0
  %4702 = vmatpush2.msra.mxu0 0.0
  %4703 = vmatprep.subr.mxu0 0.0
  %4704 = vmatpush2.msra.mxu0 0.0
  %4705 = vmatprep.subr.mxu0 0.0
  %4706 = vmatpush2.msra.mxu0 0.0
  %4707 = vmatprep.subr.mxu0 0.0
  %4708 = vmatpush2.msra.mxu0 0.0
  %4709 = vmatprep.mubr.f32.mxu0 0.0
  %v4710 = vand.u32 %v4528, 4294901760
  %v4711 = vsub.f32 %v4528, %v4710
  %v4712 = vand.u32 %v4711, 4294901760
  %v4713 = vsub.f32 %v4711, %v4712
  %v4714 = vand.u32 %v4713, 4294901760
  %4715 = vmatmul.mubr.f32.gmra.mxu0 %v4714
  %v4716 = vpop.f32.mrf.mxu0
  %v4717 = vadd.f32 %v4525, %v4716
  %v4718 = vpop.f32.mrf.mxu0
  %4719 = vmatprep.mubr.f32.mxu0 0.0
  %v4720 = vand.u32 %v4531, 4294901760
  %v4721 = vsub.f32 %v4531, %v4720
  %v4722 = vand.u32 %v4721, 4294901760
  %v4723 = vsub.f32 %v4721, %v4722
  %v4724 = vand.u32 %v4723, 4294901760
  %4725 = vmatmul.mubr.f32.gmra.mxu0 %v4724
  %v4726 = vpop.f32.mrf.mxu0
  %v4727 = vadd.f32 %v4525, %v4726
  %v4728 = vpop.f32.mrf.mxu0
  %4729 = vmatprep.mubr.f32.mxu0 0.0
  %v4730 = vand.u32 %v4534, 4294901760
  %v4731 = vsub.f32 %v4534, %v4730
  %v4732 = vand.u32 %v4731, 4294901760
  %v4733 = vsub.f32 %v4731, %v4732
  %v4734 = vand.u32 %v4733, 4294901760
  %4735 = vmatmul.mubr.f32.gmra.mxu0 %v4734
  %v4736 = vpop.f32.mrf.mxu0
  %v4737 = vadd.f32 %v4525, %v4736
  %v4738 = vpop.f32.mrf.mxu0
  %4739 = vmatprep.mubr.f32.mxu0 0.0
  %v4740 = vand.u32 %v4537, 4294901760
  %v4741 = vsub.f32 %v4537, %v4740
  %v4742 = vand.u32 %v4741, 4294901760
  %v4743 = vsub.f32 %v4741, %v4742
  %v4744 = vand.u32 %v4743, 4294901760
  %4745 = vmatmul.mubr.f32.gmra.mxu0 %v4744
  %v4746 = vpop.f32.mrf.mxu0
  %v4747 = vadd.f32 %v4525, %v4746
  %v4748 = vpop.f32.mrf.mxu0
  %4749 = vmatprep.mubr.f32.mxu0 0.0
  %v4750 = vand.u32 %v4540, 4294901760
  %v4751 = vsub.f32 %v4540, %v4750
  %v4752 = vand.u32 %v4751, 4294901760
  %v4753 = vsub.f32 %v4751, %v4752
  %v4754 = vand.u32 %v4753, 4294901760
  %4755 = vmatmul.mubr.f32.gmra.mxu0 %v4754
  %v4756 = vpop.f32.mrf.mxu0
  %v4757 = vadd.f32 %v4525, %v4756
  %v4758 = vpop.f32.mrf.mxu0
  %4759 = vmatprep.mubr.f32.mxu0 0.0
  %v4760 = vand.u32 %v4543, 4294901760
  %v4761 = vsub.f32 %v4543, %v4760
  %v4762 = vand.u32 %v4761, 4294901760
  %v4763 = vsub.f32 %v4761, %v4762
  %v4764 = vand.u32 %v4763, 4294901760
  %4765 = vmatmul.mubr.f32.gmra.mxu0 %v4764
  %v4766 = vpop.f32.mrf.mxu0
  %v4767 = vadd.f32 %v4525, %v4766
  %v4768 = vpop.f32.mrf.mxu0
  %4769 = vmatprep.mubr.f32.mxu0 0.0
  %v4770 = vand.u32 %v4546, 4294901760
  %v4771 = vsub.f32 %v4546, %v4770
  %v4772 = vand.u32 %v4771, 4294901760
  %v4773 = vsub.f32 %v4771, %v4772
  %v4774 = vand.u32 %v4773, 4294901760
  %4775 = vmatmul.mubr.f32.gmra.mxu0 %v4774
  %v4776 = vpop.f32.mrf.mxu0
  %v4777 = vadd.f32 %v4525, %v4776
  %v4778 = vpop.f32.mrf.mxu0
  %4779 = vmatprep.mubr.f32.mxu0 0.0
  %v4780 = vand.u32 %v4549, 4294901760
  %v4781 = vsub.f32 %v4549, %v4780
  %v4782 = vand.u32 %v4781, 4294901760
  %v4783 = vsub.f32 %v4781, %v4782
  %v4784 = vand.u32 %v4783, 4294901760
  %4785 = vmatmul.mubr.f32.gmra.mxu0 %v4784
  %v4786 = vpop.f32.mrf.mxu0
  %v4787 = vadd.f32 %v4525, %v4786
  %v4788 = vpop.f32.mrf.mxu0
  %4789 = vmatprep.mubr.f32.mxu0 0.0
  %v4790 = vand.u32 %v4552, 4294901760
  %v4791 = vsub.f32 %v4552, %v4790
  %v4792 = vand.u32 %v4791, 4294901760
  %v4793 = vsub.f32 %v4791, %v4792
  %v4794 = vand.u32 %v4793, 4294901760
  %4795 = vmatmul.mubr.f32.gmra.mxu0 %v4794
  %v4796 = vpop.f32.mrf.mxu0
  %v4797 = vadd.f32 %v4525, %v4796
  %v4798 = vpop.f32.mrf.mxu0
  %4799 = vmatprep.mubr.f32.mxu0 0.0
  %v4800 = vand.u32 %v4555, 4294901760
  %v4801 = vsub.f32 %v4555, %v4800
  %v4802 = vand.u32 %v4801, 4294901760
  %v4803 = vsub.f32 %v4801, %v4802
  %v4804 = vand.u32 %v4803, 4294901760
  %4805 = vmatmul.mubr.f32.gmra.mxu0 %v4804
  %v4806 = vpop.f32.mrf.mxu0
  %v4807 = vadd.f32 %v4525, %v4806
  %v4808 = vpop.f32.mrf.mxu0
  %4809 = vmatprep.mubr.f32.mxu0 0.0
  %v4810 = vand.u32 %v4558, 4294901760
  %v4811 = vsub.f32 %v4558, %v4810
  %v4812 = vand.u32 %v4811, 4294901760
  %v4813 = vsub.f32 %v4811, %v4812
  %v4814 = vand.u32 %v4813, 4294901760
  %4815 = vmatmul.mubr.f32.gmra.mxu0 %v4814
  %v4816 = vpop.f32.mrf.mxu0
  %v4817 = vadd.f32 %v4525, %v4816
  %v4818 = vpop.f32.mrf.mxu0
  %4819 = vmatprep.mubr.f32.mxu0 0.0
  %v4820 = vand.u32 %v4561, 4294901760
  %v4821 = vsub.f32 %v4561, %v4820
  %v4822 = vand.u32 %v4821, 4294901760
  %v4823 = vsub.f32 %v4821, %v4822
  %v4824 = vand.u32 %v4823, 4294901760
  %4825 = vmatmul.mubr.f32.gmra.mxu0 %v4824
  %v4826 = vpop.f32.mrf.mxu0
  %v4827 = vadd.f32 %v4525, %v4826
  %v4828 = vpop.f32.mrf.mxu0
  %4829 = vmatprep.mubr.f32.mxu0 0.0
  %v4830 = vand.u32 %v4564, 4294901760
  %v4831 = vsub.f32 %v4564, %v4830
  %v4832 = vand.u32 %v4831, 4294901760
  %v4833 = vsub.f32 %v4831, %v4832
  %v4834 = vand.u32 %v4833, 4294901760
  %4835 = vmatmul.mubr.f32.gmra.mxu0 %v4834
  %v4836 = vpop.f32.mrf.mxu0
  %v4837 = vadd.f32 %v4525, %v4836
  %v4838 = vpop.f32.mrf.mxu0
  %4839 = vmatprep.mubr.f32.mxu0 0.0
  %v4840 = vand.u32 %v4567, 4294901760
  %v4841 = vsub.f32 %v4567, %v4840
  %v4842 = vand.u32 %v4841, 4294901760
  %v4843 = vsub.f32 %v4841, %v4842
  %v4844 = vand.u32 %v4843, 4294901760
  %4845 = vmatmul.mubr.f32.gmra.mxu0 %v4844
  %v4846 = vpop.f32.mrf.mxu0
  %v4847 = vadd.f32 %v4525, %v4846
  %v4848 = vpop.f32.mrf.mxu0
  %4849 = vmatprep.mubr.f32.mxu0 0.0
  %v4850 = vand.u32 %v4570, 4294901760
  %v4851 = vsub.f32 %v4570, %v4850
  %v4852 = vand.u32 %v4851, 4294901760
  %v4853 = vsub.f32 %v4851, %v4852
  %v4854 = vand.u32 %v4853, 4294901760
  %4855 = vmatmul.mubr.f32.gmra.mxu0 %v4854
  %v4856 = vpop.f32.mrf.mxu0
  %v4857 = vadd.f32 %v4525, %v4856
  %v4858 = vpop.f32.mrf.mxu0
  %4859 = vmatprep.mubr.f32.mxu0 0.0
  %v4860 = vand.u32 %v4573, 4294901760
  %v4861 = vsub.f32 %v4573, %v4860
  %v4862 = vand.u32 %v4861, 4294901760
  %v4863 = vsub.f32 %v4861, %v4862
  %v4864 = vand.u32 %v4863, 4294901760
  %4865 = vmatmul.mubr.f32.gmra.mxu0 %v4864
  %v4866 = vpop.f32.mrf.mxu0
  %v4867 = vadd.f32 %v4525, %v4866
  %v4868 = vpop.f32.mrf.mxu0
  %4869 = vmatprep.mubr.f32.mxu0 0.0
  %v4870 = vand.u32 %v4576, 4294901760
  %v4871 = vsub.f32 %v4576, %v4870
  %v4872 = vand.u32 %v4871, 4294901760
  %v4873 = vsub.f32 %v4871, %v4872
  %v4874 = vand.u32 %v4873, 4294901760
  %4875 = vmatmul.mubr.f32.gmra.mxu0 %v4874
  %v4876 = vpop.f32.mrf.mxu0
  %v4877 = vadd.f32 %v4525, %v4876
  %v4878 = vpop.f32.mrf.mxu0
  %4879 = vmatprep.mubr.f32.mxu0 0.0
  %v4880 = vand.u32 %v4579, 4294901760
  %v4881 = vsub.f32 %v4579, %v4880
  %v4882 = vand.u32 %v4881, 4294901760
  %v4883 = vsub.f32 %v4881, %v4882
  %v4884 = vand.u32 %v4883, 4294901760
  %4885 = vmatmul.mubr.f32.gmra.mxu0 %v4884
  %v4886 = vpop.f32.mrf.mxu0
  %v4887 = vadd.f32 %v4525, %v4886
  %v4888 = vpop.f32.mrf.mxu0
  %4889 = vmatprep.mubr.f32.mxu0 0.0
  %v4890 = vand.u32 %v4582, 4294901760
  %v4891 = vsub.f32 %v4582, %v4890
  %v4892 = vand.u32 %v4891, 4294901760
  %v4893 = vsub.f32 %v4891, %v4892
  %v4894 = vand.u32 %v4893, 4294901760
  %4895 = vmatmul.mubr.f32.gmra.mxu0 %v4894
  %v4896 = vpop.f32.mrf.mxu0
  %v4897 = vadd.f32 %v4525, %v4896
  %v4898 = vpop.f32.mrf.mxu0
  %4899 = vmatprep.mubr.f32.mxu0 0.0
  %v4900 = vand.u32 %v4585, 4294901760
  %v4901 = vsub.f32 %v4585, %v4900
  %v4902 = vand.u32 %v4901, 4294901760
  %v4903 = vsub.f32 %v4901, %v4902
  %v4904 = vand.u32 %v4903, 4294901760
  %4905 = vmatmul.mubr.f32.gmra.mxu0 %v4904
  %v4906 = vpop.f32.mrf.mxu0
  %v4907 = vadd.f32 %v4525, %v4906
  %v4908 = vpop.f32.mrf.mxu0
  %4909 = vmatprep.mubr.f32.mxu0 0.0
  %v4910 = vand.u32 %v4588, 4294901760
  %v4911 = vsub.f32 %v4588, %v4910
  %v4912 = vand.u32 %v4911, 4294901760
  %v4913 = vsub.f32 %v4911, %v4912
  %v4914 = vand.u32 %v4913, 4294901760
  %4915 = vmatmul.mubr.f32.gmra.mxu0 %v4914
  %v4916 = vpop.f32.mrf.mxu0
  %v4917 = vadd.f32 %v4525, %v4916
  %v4918 = vpop.f32.mrf.mxu0
  %4919 = vmatprep.mubr.f32.mxu0 0.0
  %v4920 = vand.u32 %v4591, 4294901760
  %v4921 = vsub.f32 %v4591, %v4920
  %v4922 = vand.u32 %v4921, 4294901760
  %v4923 = vsub.f32 %v4921, %v4922
  %v4924 = vand.u32 %v4923, 4294901760
  %4925 = vmatmul.mubr.f32.gmra.mxu0 %v4924
  %v4926 = vpop.f32.mrf.mxu0
  %v4927 = vadd.f32 %v4525, %v4926
  %v4928 = vpop.f32.mrf.mxu0
  %4929 = vmatprep.mubr.f32.mxu0 0.0
  %v4930 = vand.u32 %v4594, 4294901760
  %v4931 = vsub.f32 %v4594, %v4930
  %v4932 = vand.u32 %v4931, 4294901760
  %v4933 = vsub.f32 %v4931, %v4932
  %v4934 = vand.u32 %v4933, 4294901760
  %4935 = vmatmul.mubr.f32.gmra.mxu0 %v4934
  %v4936 = vpop.f32.mrf.mxu0
  %v4937 = vadd.f32 %v4525, %v4936
  %v4938 = vpop.f32.mrf.mxu0
  %4939 = vmatprep.mubr.f32.mxu0 0.0
  %v4940 = vand.u32 %v4597, 4294901760
  %v4941 = vsub.f32 %v4597, %v4940
  %v4942 = vand.u32 %v4941, 4294901760
  %v4943 = vsub.f32 %v4941, %v4942
  %v4944 = vand.u32 %v4943, 4294901760
  %4945 = vmatmul.mubr.f32.gmra.mxu0 %v4944
  %v4946 = vpop.f32.mrf.mxu0
  %v4947 = vadd.f32 %v4525, %v4946
  %v4948 = vpop.f32.mrf.mxu0
  %4949 = vmatprep.mubr.f32.mxu0 0.0
  %v4950 = vand.u32 %v4600, 4294901760
  %v4951 = vsub.f32 %v4600, %v4950
  %v4952 = vand.u32 %v4951, 4294901760
  %v4953 = vsub.f32 %v4951, %v4952
  %v4954 = vand.u32 %v4953, 4294901760
  %4955 = vmatmul.mubr.f32.gmra.mxu0 %v4954
  %v4956 = vpop.f32.mrf.mxu0
  %v4957 = vadd.f32 %v4525, %v4956
  %v4958 = vpop.f32.mrf.mxu0
  %4959 = vmatprep.mubr.f32.mxu0 0.0
  %v4960 = vand.u32 %v4603, 4294901760
  %v4961 = vsub.f32 %v4603, %v4960
  %v4962 = vand.u32 %v4961, 4294901760
  %v4963 = vsub.f32 %v4961, %v4962
  %v4964 = vand.u32 %v4963, 4294901760
  %4965 = vmatmul.mubr.f32.gmra.mxu0 %v4964
  %v4966 = vpop.f32.mrf.mxu0
  %v4967 = vadd.f32 %v4525, %v4966
  %v4968 = vpop.f32.mrf.mxu0
  %4969 = vmatprep.mubr.f32.mxu0 0.0
  %v4970 = vand.u32 %v4606, 4294901760
  %v4971 = vsub.f32 %v4606, %v4970
  %v4972 = vand.u32 %v4971, 4294901760
  %v4973 = vsub.f32 %v4971, %v4972
  %v4974 = vand.u32 %v4973, 4294901760
  %4975 = vmatmul.mubr.f32.gmra.mxu0 %v4974
  %v4976 = vpop.f32.mrf.mxu0
  %v4977 = vadd.f32 %v4525, %v4976
  %v4978 = vpop.f32.mrf.mxu0
  %4979 = vmatprep.mubr.f32.mxu0 0.0
  %v4980 = vand.u32 %v4609, 4294901760
  %v4981 = vsub.f32 %v4609, %v4980
  %v4982 = vand.u32 %v4981, 4294901760
  %v4983 = vsub.f32 %v4981, %v4982
  %v4984 = vand.u32 %v4983, 4294901760
  %4985 = vmatmul.mubr.f32.gmra.mxu0 %v4984
  %v4986 = vpop.f32.mrf.mxu0
  %v4987 = vadd.f32 %v4525, %v4986
  %v4988 = vpop.f32.mrf.mxu0
  %4989 = vmatprep.mubr.f32.mxu0 0.0
  %v4990 = vand.u32 %v4612, 4294901760
  %v4991 = vsub.f32 %v4612, %v4990
  %v4992 = vand.u32 %v4991, 4294901760
  %v4993 = vsub.f32 %v4991, %v4992
  %v4994 = vand.u32 %v4993, 4294901760
  %4995 = vmatmul.mubr.f32.gmra.mxu0 %v4994
  %v4996 = vpop.f32.mrf.mxu0
  %v4997 = vadd.f32 %v4525, %v4996
  %v4998 = vpop.f32.mrf.mxu0
  %4999 = vmatprep.mubr.f32.mxu0 0.0
  %v5000 = vand.u32 %v4615, 4294901760
  %v5001 = vsub.f32 %v4615, %v5000
  %v5002 = vand.u32 %v5001, 4294901760
  %v5003 = vsub.f32 %v5001, %v5002
  %v5004 = vand.u32 %v5003, 4294901760
  %5005 = vmatmul.mubr.f32.gmra.mxu0 %v5004
  %v5006 = vpop.f32.mrf.mxu0
  %v5007 = vadd.f32 %v4525, %v5006
  %v5008 = vpop.f32.mrf.mxu0
  %5009 = vmatprep.mubr.f32.mxu0 0.0
  %v5010 = vand.u32 %v4618, 4294901760
  %v5011 = vsub.f32 %v4618, %v5010
  %v5012 = vand.u32 %v5011, 4294901760
  %v5013 = vsub.f32 %v5011, %v5012
  %v5014 = vand.u32 %v5013, 4294901760
  %5015 = vmatmul.mubr.f32.gmra.mxu0 %v5014
  %v5016 = vpop.f32.mrf.mxu0
  %v5017 = vadd.f32 %v4525, %v5016
  %v5018 = vpop.f32.mrf.mxu0
  %5019 = vmatprep.mubr.f32.mxu0 0.0
  %v5020 = vand.u32 %v4621, 4294901760
  %v5021 = vsub.f32 %v4621, %v5020
  %v5022 = vand.u32 %v5021, 4294901760
  %v5023 = vsub.f32 %v5021, %v5022
  %v5024 = vand.u32 %v5023, 4294901760
  %5025 = vmatmul.mubr.f32.gmra.mxu0 %v5024
  %v5026 = vpop.f32.mrf.mxu0
  %v5027 = vadd.f32 %v4525, %v5026
  %v5028 = vpop.f32.mrf.mxu0
  %5029 = vmatprep.mubr.f32.mxu0 0.0
  %v5030 = vand.u32 %v4624, 4294901760
  %v5031 = vsub.f32 %v4624, %v5030
  %v5032 = vand.u32 %v5031, 4294901760
  %v5033 = vsub.f32 %v5031, %v5032
  %v5034 = vand.u32 %v5033, 4294901760
  %5035 = vmatmul.mubr.f32.gmra.mxu0 %v5034
  %v5036 = vpop.f32.mrf.mxu0
  %v5037 = vadd.f32 %v4525, %v5036
  %v5038 = vpop.f32.mrf.mxu0
  %5039 = vmatprep.mubr.f32.mxu0 0.0
  %v5040 = vand.u32 %v4627, 4294901760
  %v5041 = vsub.f32 %v4627, %v5040
  %v5042 = vand.u32 %v5041, 4294901760
  %v5043 = vsub.f32 %v5041, %v5042
  %v5044 = vand.u32 %v5043, 4294901760
  %5045 = vmatmul.mubr.f32.gmra.mxu0 %v5044
  %v5046 = vpop.f32.mrf.mxu0
  %v5047 = vadd.f32 %v4525, %v5046
  %v5048 = vpop.f32.mrf.mxu0
  %5049 = vmatprep.mubr.f32.mxu0 0.0
  %v5050 = vand.u32 %v4630, 4294901760
  %v5051 = vsub.f32 %v4630, %v5050
  %v5052 = vand.u32 %v5051, 4294901760
  %v5053 = vsub.f32 %v5051, %v5052
  %v5054 = vand.u32 %v5053, 4294901760
  %5055 = vmatmul.mubr.f32.gmra.mxu0 %v5054
  %v5056 = vpop.f32.mrf.mxu0
  %v5057 = vadd.f32 %v4525, %v5056
  %v5058 = vpop.f32.mrf.mxu0
  %5059 = vmatprep.mubr.f32.mxu0 0.0
  %v5060 = vand.u32 %v4633, 4294901760
  %v5061 = vsub.f32 %v4633, %v5060
  %v5062 = vand.u32 %v5061, 4294901760
  %v5063 = vsub.f32 %v5061, %v5062
  %v5064 = vand.u32 %v5063, 4294901760
  %5065 = vmatmul.mubr.f32.gmra.mxu0 %v5064
  %v5066 = vpop.f32.mrf.mxu0
  %v5067 = vadd.f32 %v4525, %v5066
  %v5068 = vpop.f32.mrf.mxu0
  %5069 = vmatprep.mubr.f32.mxu0 0.0
  %v5070 = vand.u32 %v4636, 4294901760
  %v5071 = vsub.f32 %v4636, %v5070
  %v5072 = vand.u32 %v5071, 4294901760
  %v5073 = vsub.f32 %v5071, %v5072
  %v5074 = vand.u32 %v5073, 4294901760
  %5075 = vmatmul.mubr.f32.gmra.mxu0 %v5074
  %v5076 = vpop.f32.mrf.mxu0
  %v5077 = vadd.f32 %v4525, %v5076
  %v5078 = vpop.f32.mrf.mxu0
  %5079 = vmatprep.mubr.f32.mxu0 0.0
  %v5080 = vand.u32 %v4639, 4294901760
  %v5081 = vsub.f32 %v4639, %v5080
  %v5082 = vand.u32 %v5081, 4294901760
  %v5083 = vsub.f32 %v5081, %v5082
  %v5084 = vand.u32 %v5083, 4294901760
  %5085 = vmatmul.mubr.f32.gmra.mxu0 %v5084
  %v5086 = vpop.f32.mrf.mxu0
  %v5087 = vadd.f32 %v4525, %v5086
  %v5088 = vpop.f32.mrf.mxu0
  %5089 = vdwg.mxu0
  %5090 = vmatprep.subr.mxu0 0.0
  %5091 = vmatpush1.msra.mxu0 0.0
  %5092 = vmatprep.subr.mxu0 0.0
  %5093 = vmatpush1.msra.mxu0 0.0
  %5094 = vmatprep.subr.mxu0 0.0
  %5095 = vmatpush1.msra.mxu0 0.0
  %5096 = vmatprep.subr.mxu0 0.0
  %5097 = vmatpush1.msra.mxu0 0.0
  %5098 = vmatprep.subr.mxu0 0.0
  %5099 = vmatpush1.msra.mxu0 0.0
  %5100 = vmatprep.subr.mxu0 0.0
  %5101 = vmatpush1.msra.mxu0 0.0
  %5102 = vmatprep.subr.mxu0 0.0
  %5103 = vmatpush1.msra.mxu0 0.0
  %5104 = vmatprep.subr.mxu0 0.0
  %5105 = vmatpush1.msra.mxu0 0.0
  %5106 = vmatprep.subr.mxu0 0.0
  %5107 = vmatpush1.msra.mxu0 0.0
  %5108 = vmatprep.subr.mxu0 0.0
  %5109 = vmatpush1.msra.mxu0 0.0
  %5110 = vmatprep.subr.mxu0 0.0
  %5111 = vmatpush1.msra.mxu0 0.0
  %5112 = vmatprep.subr.mxu0 0.0
  %5113 = vmatpush1.msra.mxu0 0.0
  %5114 = vmatprep.subr.mxu0 0.0
  %v5115 = vand.u32 %v4519, 4294901760
  %v5116 = vsub.f32 %v4519, %v5115
  %v5117 = vand.u32 %v5116, 4294901760
  %v5118 = vsub.f32 %v5116, %v5117
  %v5119 = vand.u32 %v5118, 4294901760
  %5120 = vmatpush1.msra.mxu0 %v5119
  %5121 = vmatprep.subr.mxu0 0.0
  %v5122 = vand.u32 %v4518, 4294901760
  %v5123 = vsub.f32 %v4518, %v5122
  %v5124 = vand.u32 %v5123, 4294901760
  %v5125 = vsub.f32 %v5123, %v5124
  %v5126 = vand.u32 %v5125, 4294901760
  %5127 = vmatpush1.msra.mxu0 %v5126
  %5128 = vmatprep.subr.mxu0 0.0
  %v5129 = vand.u32 %v4517, 4294901760
  %v5130 = vsub.f32 %v4517, %v5129
  %v5131 = vand.u32 %v5130, 4294901760
  %v5132 = vsub.f32 %v5130, %v5131
  %v5133 = vand.u32 %v5132, 4294901760
  %5134 = vmatpush1.msra.mxu0 %v5133
  %5135 = vmatprep.subr.mxu0 0.0
  %v5136 = vand.u32 %v4516, 4294901760
  %v5137 = vsub.f32 %v4516, %v5136
  %v5138 = vand.u32 %v5137, 4294901760
  %v5139 = vsub.f32 %v5137, %v5138
  %v5140 = vand.u32 %v5139, 4294901760
  %5141 = vmatpush1.msra.mxu0 %v5140
  %5142 = vmatprep.subr.mxu0 0.0
  %5143 = vmatpush2.msra.mxu0 0.0
  %5144 = vmatprep.subr.mxu0 0.0
  %5145 = vmatpush2.msra.mxu0 0.0
  %5146 = vmatprep.subr.mxu0 0.0
  %5147 = vmatpush2.msra.mxu0 0.0
  %5148 = vmatprep.subr.mxu0 0.0
  %5149 = vmatpush2.msra.mxu0 0.0
  %5150 = vmatprep.subr.mxu0 0.0
  %5151 = vmatpush2.msra.mxu0 0.0
  %5152 = vmatprep.subr.mxu0 0.0
  %5153 = vmatpush2.msra.mxu0 0.0
  %5154 = vmatprep.subr.mxu0 0.0
  %5155 = vmatpush2.msra.mxu0 0.0
  %5156 = vmatprep.subr.mxu0 0.0
  %5157 = vmatpush2.msra.mxu0 0.0
  %5158 = vmatprep.subr.mxu0 0.0
  %5159 = vmatpush2.msra.mxu0 0.0
  %5160 = vmatprep.subr.mxu0 0.0
  %5161 = vmatpush2.msra.mxu0 0.0
  %5162 = vmatprep.subr.mxu0 0.0
  %5163 = vmatpush2.msra.mxu0 0.0
  %5164 = vmatprep.subr.mxu0 0.0
  %5165 = vmatpush2.msra.mxu0 0.0
  %5166 = vmatprep.subr.mxu0 0.0
  %5167 = vmatpush2.msra.mxu0 0.0
  %5168 = vmatprep.subr.mxu0 0.0
  %5169 = vmatpush2.msra.mxu0 0.0
  %5170 = vmatprep.subr.mxu0 0.0
  %5171 = vmatpush2.msra.mxu0 0.0
  %5172 = vmatprep.subr.mxu0 0.0
  %5173 = vmatpush2.msra.mxu0 0.0
  %5174 = vmatprep.mubr.f32.mxu0 0.0
  %v5175 = vand.u32 %v4528, 4294901760
  %5176 = vmatmul.mubr.f32.gmra.mxu0 %v5175
  %v5177 = vpop.f32.mrf.mxu0
  %v5178 = vadd.f32 %v4717, %v5177
  %v5179 = vpop.f32.mrf.mxu0
  %5180 = vmatprep.mubr.f32.mxu0 0.0
  %v5181 = vand.u32 %v4531, 4294901760
  %5182 = vmatmul.mubr.f32.gmra.mxu0 %v5181
  %v5183 = vpop.f32.mrf.mxu0
  %v5184 = vadd.f32 %v4727, %v5183
  %v5185 = vpop.f32.mrf.mxu0
  %5186 = vmatprep.mubr.f32.mxu0 0.0
  %v5187 = vand.u32 %v4534, 4294901760
  %5188 = vmatmul.mubr.f32.gmra.mxu0 %v5187
  %v5189 = vpop.f32.mrf.mxu0
  %v5190 = vadd.f32 %v4737, %v5189
  %v5191 = vpop.f32.mrf.mxu0
  %5192 = vmatprep.mubr.f32.mxu0 0.0
  %v5193 = vand.u32 %v4537, 4294901760
  %5194 = vmatmul.mubr.f32.gmra.mxu0 %v5193
  %v5195 = vpop.f32.mrf.mxu0
  %v5196 = vadd.f32 %v4747, %v5195
  %v5197 = vpop.f32.mrf.mxu0
  %5198 = vmatprep.mubr.f32.mxu0 0.0
  %v5199 = vand.u32 %v4540, 4294901760
  %5200 = vmatmul.mubr.f32.gmra.mxu0 %v5199
  %v5201 = vpop.f32.mrf.mxu0
  %v5202 = vadd.f32 %v4757, %v5201
  %v5203 = vpop.f32.mrf.mxu0
  %5204 = vmatprep.mubr.f32.mxu0 0.0
  %v5205 = vand.u32 %v4543, 4294901760
  %5206 = vmatmul.mubr.f32.gmra.mxu0 %v5205
  %v5207 = vpop.f32.mrf.mxu0
  %v5208 = vadd.f32 %v4767, %v5207
  %v5209 = vpop.f32.mrf.mxu0
  %5210 = vmatprep.mubr.f32.mxu0 0.0
  %v5211 = vand.u32 %v4546, 4294901760
  %5212 = vmatmul.mubr.f32.gmra.mxu0 %v5211
  %v5213 = vpop.f32.mrf.mxu0
  %v5214 = vadd.f32 %v4777, %v5213
  %v5215 = vpop.f32.mrf.mxu0
  %5216 = vmatprep.mubr.f32.mxu0 0.0
  %v5217 = vand.u32 %v4549, 4294901760
  %5218 = vmatmul.mubr.f32.gmra.mxu0 %v5217
  %v5219 = vpop.f32.mrf.mxu0
  %v5220 = vadd.f32 %v4787, %v5219
  %v5221 = vpop.f32.mrf.mxu0
  %5222 = vmatprep.mubr.f32.mxu0 0.0
  %v5223 = vand.u32 %v4552, 4294901760
  %5224 = vmatmul.mubr.f32.gmra.mxu0 %v5223
  %v5225 = vpop.f32.mrf.mxu0
  %v5226 = vadd.f32 %v4797, %v5225
  %v5227 = vpop.f32.mrf.mxu0
  %5228 = vmatprep.mubr.f32.mxu0 0.0
  %v5229 = vand.u32 %v4555, 4294901760
  %5230 = vmatmul.mubr.f32.gmra.mxu0 %v5229
  %v5231 = vpop.f32.mrf.mxu0
  %v5232 = vadd.f32 %v4807, %v5231
  %v5233 = vpop.f32.mrf.mxu0
  %5234 = vmatprep.mubr.f32.mxu0 0.0
  %v5235 = vand.u32 %v4558, 4294901760
  %5236 = vmatmul.mubr.f32.gmra.mxu0 %v5235
  %v5237 = vpop.f32.mrf.mxu0
  %v5238 = vadd.f32 %v4817, %v5237
  %v5239 = vpop.f32.mrf.mxu0
  %5240 = vmatprep.mubr.f32.mxu0 0.0
  %v5241 = vand.u32 %v4561, 4294901760
  %5242 = vmatmul.mubr.f32.gmra.mxu0 %v5241
  %v5243 = vpop.f32.mrf.mxu0
  %v5244 = vadd.f32 %v4827, %v5243
  %v5245 = vpop.f32.mrf.mxu0
  %5246 = vmatprep.mubr.f32.mxu0 0.0
  %v5247 = vand.u32 %v4564, 4294901760
  %5248 = vmatmul.mubr.f32.gmra.mxu0 %v5247
  %v5249 = vpop.f32.mrf.mxu0
  %v5250 = vadd.f32 %v4837, %v5249
  %v5251 = vpop.f32.mrf.mxu0
  %5252 = vmatprep.mubr.f32.mxu0 0.0
  %v5253 = vand.u32 %v4567, 4294901760
  %5254 = vmatmul.mubr.f32.gmra.mxu0 %v5253
  %v5255 = vpop.f32.mrf.mxu0
  %v5256 = vadd.f32 %v4847, %v5255
  %v5257 = vpop.f32.mrf.mxu0
  %5258 = vmatprep.mubr.f32.mxu0 0.0
  %v5259 = vand.u32 %v4570, 4294901760
  %5260 = vmatmul.mubr.f32.gmra.mxu0 %v5259
  %v5261 = vpop.f32.mrf.mxu0
  %v5262 = vadd.f32 %v4857, %v5261
  %v5263 = vpop.f32.mrf.mxu0
  %5264 = vmatprep.mubr.f32.mxu0 0.0
  %v5265 = vand.u32 %v4573, 4294901760
  %5266 = vmatmul.mubr.f32.gmra.mxu0 %v5265
  %v5267 = vpop.f32.mrf.mxu0
  %v5268 = vadd.f32 %v4867, %v5267
  %v5269 = vpop.f32.mrf.mxu0
  %5270 = vmatprep.mubr.f32.mxu0 0.0
  %v5271 = vand.u32 %v4576, 4294901760
  %5272 = vmatmul.mubr.f32.gmra.mxu0 %v5271
  %v5273 = vpop.f32.mrf.mxu0
  %v5274 = vadd.f32 %v4877, %v5273
  %v5275 = vpop.f32.mrf.mxu0
  %5276 = vmatprep.mubr.f32.mxu0 0.0
  %v5277 = vand.u32 %v4579, 4294901760
  %5278 = vmatmul.mubr.f32.gmra.mxu0 %v5277
  %v5279 = vpop.f32.mrf.mxu0
  %v5280 = vadd.f32 %v4887, %v5279
  %v5281 = vpop.f32.mrf.mxu0
  %5282 = vmatprep.mubr.f32.mxu0 0.0
  %v5283 = vand.u32 %v4582, 4294901760
  %5284 = vmatmul.mubr.f32.gmra.mxu0 %v5283
  %v5285 = vpop.f32.mrf.mxu0
  %v5286 = vadd.f32 %v4897, %v5285
  %v5287 = vpop.f32.mrf.mxu0
  %5288 = vmatprep.mubr.f32.mxu0 0.0
  %v5289 = vand.u32 %v4585, 4294901760
  %5290 = vmatmul.mubr.f32.gmra.mxu0 %v5289
  %v5291 = vpop.f32.mrf.mxu0
  %v5292 = vadd.f32 %v4907, %v5291
  %v5293 = vpop.f32.mrf.mxu0
  %5294 = vmatprep.mubr.f32.mxu0 0.0
  %v5295 = vand.u32 %v4588, 4294901760
  %5296 = vmatmul.mubr.f32.gmra.mxu0 %v5295
  %v5297 = vpop.f32.mrf.mxu0
  %v5298 = vadd.f32 %v4917, %v5297
  %v5299 = vpop.f32.mrf.mxu0
  %5300 = vmatprep.mubr.f32.mxu0 0.0
  %v5301 = vand.u32 %v4591, 4294901760
  %5302 = vmatmul.mubr.f32.gmra.mxu0 %v5301
  %v5303 = vpop.f32.mrf.mxu0
  %v5304 = vadd.f32 %v4927, %v5303
  %v5305 = vpop.f32.mrf.mxu0
  %5306 = vmatprep.mubr.f32.mxu0 0.0
  %v5307 = vand.u32 %v4594, 4294901760
  %5308 = vmatmul.mubr.f32.gmra.mxu0 %v5307
  %v5309 = vpop.f32.mrf.mxu0
  %v5310 = vadd.f32 %v4937, %v5309
  %v5311 = vpop.f32.mrf.mxu0
  %5312 = vmatprep.mubr.f32.mxu0 0.0
  %v5313 = vand.u32 %v4597, 4294901760
  %5314 = vmatmul.mubr.f32.gmra.mxu0 %v5313
  %v5315 = vpop.f32.mrf.mxu0
  %v5316 = vadd.f32 %v4947, %v5315
  %v5317 = vpop.f32.mrf.mxu0
  %5318 = vmatprep.mubr.f32.mxu0 0.0
  %v5319 = vand.u32 %v4600, 4294901760
  %5320 = vmatmul.mubr.f32.gmra.mxu0 %v5319
  %v5321 = vpop.f32.mrf.mxu0
  %v5322 = vadd.f32 %v4957, %v5321
  %v5323 = vpop.f32.mrf.mxu0
  %5324 = vmatprep.mubr.f32.mxu0 0.0
  %v5325 = vand.u32 %v4603, 4294901760
  %5326 = vmatmul.mubr.f32.gmra.mxu0 %v5325
  %v5327 = vpop.f32.mrf.mxu0
  %v5328 = vadd.f32 %v4967, %v5327
  %v5329 = vpop.f32.mrf.mxu0
  %5330 = vmatprep.mubr.f32.mxu0 0.0
  %v5331 = vand.u32 %v4606, 4294901760
  %5332 = vmatmul.mubr.f32.gmra.mxu0 %v5331
  %v5333 = vpop.f32.mrf.mxu0
  %v5334 = vadd.f32 %v4977, %v5333
  %v5335 = vpop.f32.mrf.mxu0
  %5336 = vmatprep.mubr.f32.mxu0 0.0
  %v5337 = vand.u32 %v4609, 4294901760
  %5338 = vmatmul.mubr.f32.gmra.mxu0 %v5337
  %v5339 = vpop.f32.mrf.mxu0
  %v5340 = vadd.f32 %v4987, %v5339
  %v5341 = vpop.f32.mrf.mxu0
  %5342 = vmatprep.mubr.f32.mxu0 0.0
  %v5343 = vand.u32 %v4612, 4294901760
  %5344 = vmatmul.mubr.f32.gmra.mxu0 %v5343
  %v5345 = vpop.f32.mrf.mxu0
  %v5346 = vadd.f32 %v4997, %v5345
  %v5347 = vpop.f32.mrf.mxu0
  %5348 = vmatprep.mubr.f32.mxu0 0.0
  %v5349 = vand.u32 %v4615, 4294901760
  %5350 = vmatmul.mubr.f32.gmra.mxu0 %v5349
  %v5351 = vpop.f32.mrf.mxu0
  %v5352 = vadd.f32 %v5007, %v5351
  %v5353 = vpop.f32.mrf.mxu0
  %5354 = vmatprep.mubr.f32.mxu0 0.0
  %v5355 = vand.u32 %v4618, 4294901760
  %5356 = vmatmul.mubr.f32.gmra.mxu0 %v5355
  %v5357 = vpop.f32.mrf.mxu0
  %v5358 = vadd.f32 %v5017, %v5357
  %v5359 = vpop.f32.mrf.mxu0
  %5360 = vmatprep.mubr.f32.mxu0 0.0
  %v5361 = vand.u32 %v4621, 4294901760
  %5362 = vmatmul.mubr.f32.gmra.mxu0 %v5361
  %v5363 = vpop.f32.mrf.mxu0
  %v5364 = vadd.f32 %v5027, %v5363
  %v5365 = vpop.f32.mrf.mxu0
  %5366 = vmatprep.mubr.f32.mxu0 0.0
  %v5367 = vand.u32 %v4624, 4294901760
  %5368 = vmatmul.mubr.f32.gmra.mxu0 %v5367
  %v5369 = vpop.f32.mrf.mxu0
  %v5370 = vadd.f32 %v5037, %v5369
  %v5371 = vpop.f32.mrf.mxu0
  %5372 = vmatprep.mubr.f32.mxu0 0.0
  %v5373 = vand.u32 %v4627, 4294901760
  %5374 = vmatmul.mubr.f32.gmra.mxu0 %v5373
  %v5375 = vpop.f32.mrf.mxu0
  %v5376 = vadd.f32 %v5047, %v5375
  %v5377 = vpop.f32.mrf.mxu0
  %5378 = vmatprep.mubr.f32.mxu0 0.0
  %v5379 = vand.u32 %v4630, 4294901760
  %5380 = vmatmul.mubr.f32.gmra.mxu0 %v5379
  %v5381 = vpop.f32.mrf.mxu0
  %v5382 = vadd.f32 %v5057, %v5381
  %v5383 = vpop.f32.mrf.mxu0
  %5384 = vmatprep.mubr.f32.mxu0 0.0
  %v5385 = vand.u32 %v4633, 4294901760
  %5386 = vmatmul.mubr.f32.gmra.mxu0 %v5385
  %v5387 = vpop.f32.mrf.mxu0
  %v5388 = vadd.f32 %v5067, %v5387
  %v5389 = vpop.f32.mrf.mxu0
  %5390 = vmatprep.mubr.f32.mxu0 0.0
  %v5391 = vand.u32 %v4636, 4294901760
  %5392 = vmatmul.mubr.f32.gmra.mxu0 %v5391
  %v5393 = vpop.f32.mrf.mxu0
  %v5394 = vadd.f32 %v5077, %v5393
  %v5395 = vpop.f32.mrf.mxu0
  %5396 = vmatprep.mubr.f32.mxu0 0.0
  %v5397 = vand.u32 %v4639, 4294901760
  %5398 = vmatmul.mubr.f32.gmra.mxu0 %v5397
  %v5399 = vpop.f32.mrf.mxu0
  %v5400 = vadd.f32 %v5087, %v5399
  %v5401 = vpop.f32.mrf.mxu0
  %5402 = vdwg.mxu0
  %5403 = vmatprep.subr.mxu0 0.0
  %5404 = vmatpush1.msra.mxu0 0.0
  %5405 = vmatprep.subr.mxu0 0.0
  %5406 = vmatpush1.msra.mxu0 0.0
  %5407 = vmatprep.subr.mxu0 0.0
  %5408 = vmatpush1.msra.mxu0 0.0
  %5409 = vmatprep.subr.mxu0 0.0
  %5410 = vmatpush1.msra.mxu0 0.0
  %5411 = vmatprep.subr.mxu0 0.0
  %5412 = vmatpush1.msra.mxu0 0.0
  %5413 = vmatprep.subr.mxu0 0.0
  %5414 = vmatpush1.msra.mxu0 0.0
  %5415 = vmatprep.subr.mxu0 0.0
  %5416 = vmatpush1.msra.mxu0 0.0
  %5417 = vmatprep.subr.mxu0 0.0
  %5418 = vmatpush1.msra.mxu0 0.0
  %5419 = vmatprep.subr.mxu0 0.0
  %5420 = vmatpush1.msra.mxu0 0.0
  %5421 = vmatprep.subr.mxu0 0.0
  %5422 = vmatpush1.msra.mxu0 0.0
  %5423 = vmatprep.subr.mxu0 0.0
  %5424 = vmatpush1.msra.mxu0 0.0
  %5425 = vmatprep.subr.mxu0 0.0
  %5426 = vmatpush1.msra.mxu0 0.0
  %5427 = vmatprep.subr.mxu0 0.0
  %v5428 = vand.u32 %v4519, 4294901760
  %v5429 = vsub.f32 %v4519, %v5428
  %5430 = vmatpush1.msra.mxu0 %v5429
  %5431 = vmatprep.subr.mxu0 0.0
  %v5432 = vand.u32 %v4518, 4294901760
  %v5433 = vsub.f32 %v4518, %v5432
  %5434 = vmatpush1.msra.mxu0 %v5433
  %5435 = vmatprep.subr.mxu0 0.0
  %v5436 = vand.u32 %v4517, 4294901760
  %v5437 = vsub.f32 %v4517, %v5436
  %5438 = vmatpush1.msra.mxu0 %v5437
  %5439 = vmatprep.subr.mxu0 0.0
  %v5440 = vand.u32 %v4516, 4294901760
  %v5441 = vsub.f32 %v4516, %v5440
  %5442 = vmatpush1.msra.mxu0 %v5441
  %5443 = vmatprep.subr.mxu0 0.0
  %5444 = vmatpush2.msra.mxu0 0.0
  %5445 = vmatprep.subr.mxu0 0.0
  %5446 = vmatpush2.msra.mxu0 0.0
  %5447 = vmatprep.subr.mxu0 0.0
  %5448 = vmatpush2.msra.mxu0 0.0
  %5449 = vmatprep.subr.mxu0 0.0
  %5450 = vmatpush2.msra.mxu0 0.0
  %5451 = vmatprep.subr.mxu0 0.0
  %5452 = vmatpush2.msra.mxu0 0.0
  %5453 = vmatprep.subr.mxu0 0.0
  %5454 = vmatpush2.msra.mxu0 0.0
  %5455 = vmatprep.subr.mxu0 0.0
  %5456 = vmatpush2.msra.mxu0 0.0
  %5457 = vmatprep.subr.mxu0 0.0
  %5458 = vmatpush2.msra.mxu0 0.0
  %5459 = vmatprep.subr.mxu0 0.0
  %5460 = vmatpush2.msra.mxu0 0.0
  %5461 = vmatprep.subr.mxu0 0.0
  %5462 = vmatpush2.msra.mxu0 0.0
  %5463 = vmatprep.subr.mxu0 0.0
  %5464 = vmatpush2.msra.mxu0 0.0
  %5465 = vmatprep.subr.mxu0 0.0
  %5466 = vmatpush2.msra.mxu0 0.0
  %5467 = vmatprep.subr.mxu0 0.0
  %5468 = vmatpush2.msra.mxu0 0.0
  %5469 = vmatprep.subr.mxu0 0.0
  %5470 = vmatpush2.msra.mxu0 0.0
  %5471 = vmatprep.subr.mxu0 0.0
  %5472 = vmatpush2.msra.mxu0 0.0
  %5473 = vmatprep.subr.mxu0 0.0
  %5474 = vmatpush2.msra.mxu0 0.0
  %5475 = vmatprep.mubr.f32.mxu0 0.0
  %v5476 = vand.u32 %v4528, 4294901760
  %v5477 = vsub.f32 %v4528, %v5476
  %5478 = vmatmul.mubr.f32.gmra.mxu0 %v5477
  %v5479 = vpop.f32.mrf.mxu0
  %v5480 = vadd.f32 %v5178, %v5479
  %v5481 = vpop.f32.mrf.mxu0
  %5482 = vmatprep.mubr.f32.mxu0 0.0
  %v5483 = vand.u32 %v4531, 4294901760
  %v5484 = vsub.f32 %v4531, %v5483
  %5485 = vmatmul.mubr.f32.gmra.mxu0 %v5484
  %v5486 = vpop.f32.mrf.mxu0
  %v5487 = vadd.f32 %v5184, %v5486
  %v5488 = vpop.f32.mrf.mxu0
  %5489 = vmatprep.mubr.f32.mxu0 0.0
  %v5490 = vand.u32 %v4534, 4294901760
  %v5491 = vsub.f32 %v4534, %v5490
  %5492 = vmatmul.mubr.f32.gmra.mxu0 %v5491
  %v5493 = vpop.f32.mrf.mxu0
  %v5494 = vadd.f32 %v5190, %v5493
  %v5495 = vpop.f32.mrf.mxu0
  %5496 = vmatprep.mubr.f32.mxu0 0.0
  %v5497 = vand.u32 %v4537, 4294901760
  %v5498 = vsub.f32 %v4537, %v5497
  %5499 = vmatmul.mubr.f32.gmra.mxu0 %v5498
  %v5500 = vpop.f32.mrf.mxu0
  %v5501 = vadd.f32 %v5196, %v5500
  %v5502 = vpop.f32.mrf.mxu0
  %5503 = vmatprep.mubr.f32.mxu0 0.0
  %v5504 = vand.u32 %v4540, 4294901760
  %v5505 = vsub.f32 %v4540, %v5504
  %5506 = vmatmul.mubr.f32.gmra.mxu0 %v5505
  %v5507 = vpop.f32.mrf.mxu0
  %v5508 = vadd.f32 %v5202, %v5507
  %v5509 = vpop.f32.mrf.mxu0
  %5510 = vmatprep.mubr.f32.mxu0 0.0
  %v5511 = vand.u32 %v4543, 4294901760
  %v5512 = vsub.f32 %v4543, %v5511
  %5513 = vmatmul.mubr.f32.gmra.mxu0 %v5512
  %v5514 = vpop.f32.mrf.mxu0
  %v5515 = vadd.f32 %v5208, %v5514
  %v5516 = vpop.f32.mrf.mxu0
  %5517 = vmatprep.mubr.f32.mxu0 0.0
  %v5518 = vand.u32 %v4546, 4294901760
  %v5519 = vsub.f32 %v4546, %v5518
  %5520 = vmatmul.mubr.f32.gmra.mxu0 %v5519
  %v5521 = vpop.f32.mrf.mxu0
  %v5522 = vadd.f32 %v5214, %v5521
  %v5523 = vpop.f32.mrf.mxu0
  %5524 = vmatprep.mubr.f32.mxu0 0.0
  %v5525 = vand.u32 %v4549, 4294901760
  %v5526 = vsub.f32 %v4549, %v5525
  %5527 = vmatmul.mubr.f32.gmra.mxu0 %v5526
  %v5528 = vpop.f32.mrf.mxu0
  %v5529 = vadd.f32 %v5220, %v5528
  %v5530 = vpop.f32.mrf.mxu0
  %5531 = vmatprep.mubr.f32.mxu0 0.0
  %v5532 = vand.u32 %v4552, 4294901760
  %v5533 = vsub.f32 %v4552, %v5532
  %5534 = vmatmul.mubr.f32.gmra.mxu0 %v5533
  %v5535 = vpop.f32.mrf.mxu0
  %v5536 = vadd.f32 %v5226, %v5535
  %v5537 = vpop.f32.mrf.mxu0
  %5538 = vmatprep.mubr.f32.mxu0 0.0
  %v5539 = vand.u32 %v4555, 4294901760
  %v5540 = vsub.f32 %v4555, %v5539
  %5541 = vmatmul.mubr.f32.gmra.mxu0 %v5540
  %v5542 = vpop.f32.mrf.mxu0
  %v5543 = vadd.f32 %v5232, %v5542
  %v5544 = vpop.f32.mrf.mxu0
  %5545 = vmatprep.mubr.f32.mxu0 0.0
  %v5546 = vand.u32 %v4558, 4294901760
  %v5547 = vsub.f32 %v4558, %v5546
  %5548 = vmatmul.mubr.f32.gmra.mxu0 %v5547
  %v5549 = vpop.f32.mrf.mxu0
  %v5550 = vadd.f32 %v5238, %v5549
  %v5551 = vpop.f32.mrf.mxu0
  %5552 = vmatprep.mubr.f32.mxu0 0.0
  %v5553 = vand.u32 %v4561, 4294901760
  %v5554 = vsub.f32 %v4561, %v5553
  %5555 = vmatmul.mubr.f32.gmra.mxu0 %v5554
  %v5556 = vpop.f32.mrf.mxu0
  %v5557 = vadd.f32 %v5244, %v5556
  %v5558 = vpop.f32.mrf.mxu0
  %5559 = vmatprep.mubr.f32.mxu0 0.0
  %v5560 = vand.u32 %v4564, 4294901760
  %v5561 = vsub.f32 %v4564, %v5560
  %5562 = vmatmul.mubr.f32.gmra.mxu0 %v5561
  %v5563 = vpop.f32.mrf.mxu0
  %v5564 = vadd.f32 %v5250, %v5563
  %v5565 = vpop.f32.mrf.mxu0
  %5566 = vmatprep.mubr.f32.mxu0 0.0
  %v5567 = vand.u32 %v4567, 4294901760
  %v5568 = vsub.f32 %v4567, %v5567
  %5569 = vmatmul.mubr.f32.gmra.mxu0 %v5568
  %v5570 = vpop.f32.mrf.mxu0
  %v5571 = vadd.f32 %v5256, %v5570
  %v5572 = vpop.f32.mrf.mxu0
  %5573 = vmatprep.mubr.f32.mxu0 0.0
  %v5574 = vand.u32 %v4570, 4294901760
  %v5575 = vsub.f32 %v4570, %v5574
  %5576 = vmatmul.mubr.f32.gmra.mxu0 %v5575
  %v5577 = vpop.f32.mrf.mxu0
  %v5578 = vadd.f32 %v5262, %v5577
  %v5579 = vpop.f32.mrf.mxu0
  %5580 = vmatprep.mubr.f32.mxu0 0.0
  %v5581 = vand.u32 %v4573, 4294901760
  %v5582 = vsub.f32 %v4573, %v5581
  %5583 = vmatmul.mubr.f32.gmra.mxu0 %v5582
  %v5584 = vpop.f32.mrf.mxu0
  %v5585 = vadd.f32 %v5268, %v5584
  %v5586 = vpop.f32.mrf.mxu0
  %5587 = vmatprep.mubr.f32.mxu0 0.0
  %v5588 = vand.u32 %v4576, 4294901760
  %v5589 = vsub.f32 %v4576, %v5588
  %5590 = vmatmul.mubr.f32.gmra.mxu0 %v5589
  %v5591 = vpop.f32.mrf.mxu0
  %v5592 = vadd.f32 %v5274, %v5591
  %v5593 = vpop.f32.mrf.mxu0
  %5594 = vmatprep.mubr.f32.mxu0 0.0
  %v5595 = vand.u32 %v4579, 4294901760
  %v5596 = vsub.f32 %v4579, %v5595
  %5597 = vmatmul.mubr.f32.gmra.mxu0 %v5596
  %v5598 = vpop.f32.mrf.mxu0
  %v5599 = vadd.f32 %v5280, %v5598
  %v5600 = vpop.f32.mrf.mxu0
  %5601 = vmatprep.mubr.f32.mxu0 0.0
  %v5602 = vand.u32 %v4582, 4294901760
  %v5603 = vsub.f32 %v4582, %v5602
  %5604 = vmatmul.mubr.f32.gmra.mxu0 %v5603
  %v5605 = vpop.f32.mrf.mxu0
  %v5606 = vadd.f32 %v5286, %v5605
  %v5607 = vpop.f32.mrf.mxu0
  %5608 = vmatprep.mubr.f32.mxu0 0.0
  %v5609 = vand.u32 %v4585, 4294901760
  %v5610 = vsub.f32 %v4585, %v5609
  %5611 = vmatmul.mubr.f32.gmra.mxu0 %v5610
  %v5612 = vpop.f32.mrf.mxu0
  %v5613 = vadd.f32 %v5292, %v5612
  %v5614 = vpop.f32.mrf.mxu0
  %5615 = vmatprep.mubr.f32.mxu0 0.0
  %v5616 = vand.u32 %v4588, 4294901760
  %v5617 = vsub.f32 %v4588, %v5616
  %5618 = vmatmul.mubr.f32.gmra.mxu0 %v5617
  %v5619 = vpop.f32.mrf.mxu0
  %v5620 = vadd.f32 %v5298, %v5619
  %v5621 = vpop.f32.mrf.mxu0
  %5622 = vmatprep.mubr.f32.mxu0 0.0
  %v5623 = vand.u32 %v4591, 4294901760
  %v5624 = vsub.f32 %v4591, %v5623
  %5625 = vmatmul.mubr.f32.gmra.mxu0 %v5624
  %v5626 = vpop.f32.mrf.mxu0
  %v5627 = vadd.f32 %v5304, %v5626
  %v5628 = vpop.f32.mrf.mxu0
  %5629 = vmatprep.mubr.f32.mxu0 0.0
  %v5630 = vand.u32 %v4594, 4294901760
  %v5631 = vsub.f32 %v4594, %v5630
  %5632 = vmatmul.mubr.f32.gmra.mxu0 %v5631
  %v5633 = vpop.f32.mrf.mxu0
  %v5634 = vadd.f32 %v5310, %v5633
  %v5635 = vpop.f32.mrf.mxu0
  %5636 = vmatprep.mubr.f32.mxu0 0.0
  %v5637 = vand.u32 %v4597, 4294901760
  %v5638 = vsub.f32 %v4597, %v5637
  %5639 = vmatmul.mubr.f32.gmra.mxu0 %v5638
  %v5640 = vpop.f32.mrf.mxu0
  %v5641 = vadd.f32 %v5316, %v5640
  %v5642 = vpop.f32.mrf.mxu0
  %5643 = vmatprep.mubr.f32.mxu0 0.0
  %v5644 = vand.u32 %v4600, 4294901760
  %v5645 = vsub.f32 %v4600, %v5644
  %5646 = vmatmul.mubr.f32.gmra.mxu0 %v5645
  %v5647 = vpop.f32.mrf.mxu0
  %v5648 = vadd.f32 %v5322, %v5647
  %v5649 = vpop.f32.mrf.mxu0
  %5650 = vmatprep.mubr.f32.mxu0 0.0
  %v5651 = vand.u32 %v4603, 4294901760
  %v5652 = vsub.f32 %v4603, %v5651
  %5653 = vmatmul.mubr.f32.gmra.mxu0 %v5652
  %v5654 = vpop.f32.mrf.mxu0
  %v5655 = vadd.f32 %v5328, %v5654
  %v5656 = vpop.f32.mrf.mxu0
  %5657 = vmatprep.mubr.f32.mxu0 0.0
  %v5658 = vand.u32 %v4606, 4294901760
  %v5659 = vsub.f32 %v4606, %v5658
  %5660 = vmatmul.mubr.f32.gmra.mxu0 %v5659
  %v5661 = vpop.f32.mrf.mxu0
  %v5662 = vadd.f32 %v5334, %v5661
  %v5663 = vpop.f32.mrf.mxu0
  %5664 = vmatprep.mubr.f32.mxu0 0.0
  %v5665 = vand.u32 %v4609, 4294901760
  %v5666 = vsub.f32 %v4609, %v5665
  %5667 = vmatmul.mubr.f32.gmra.mxu0 %v5666
  %v5668 = vpop.f32.mrf.mxu0
  %v5669 = vadd.f32 %v5340, %v5668
  %v5670 = vpop.f32.mrf.mxu0
  %5671 = vmatprep.mubr.f32.mxu0 0.0
  %v5672 = vand.u32 %v4612, 4294901760
  %v5673 = vsub.f32 %v4612, %v5672
  %5674 = vmatmul.mubr.f32.gmra.mxu0 %v5673
  %v5675 = vpop.f32.mrf.mxu0
  %v5676 = vadd.f32 %v5346, %v5675
  %v5677 = vpop.f32.mrf.mxu0
  %5678 = vmatprep.mubr.f32.mxu0 0.0
  %v5679 = vand.u32 %v4615, 4294901760
  %v5680 = vsub.f32 %v4615, %v5679
  %5681 = vmatmul.mubr.f32.gmra.mxu0 %v5680
  %v5682 = vpop.f32.mrf.mxu0
  %v5683 = vadd.f32 %v5352, %v5682
  %v5684 = vpop.f32.mrf.mxu0
  %5685 = vmatprep.mubr.f32.mxu0 0.0
  %v5686 = vand.u32 %v4618, 4294901760
  %v5687 = vsub.f32 %v4618, %v5686
  %5688 = vmatmul.mubr.f32.gmra.mxu0 %v5687
  %v5689 = vpop.f32.mrf.mxu0
  %v5690 = vadd.f32 %v5358, %v5689
  %v5691 = vpop.f32.mrf.mxu0
  %5692 = vmatprep.mubr.f32.mxu0 0.0
  %v5693 = vand.u32 %v4621, 4294901760
  %v5694 = vsub.f32 %v4621, %v5693
  %5695 = vmatmul.mubr.f32.gmra.mxu0 %v5694
  %v5696 = vpop.f32.mrf.mxu0
  %v5697 = vadd.f32 %v5364, %v5696
  %v5698 = vpop.f32.mrf.mxu0
  %5699 = vmatprep.mubr.f32.mxu0 0.0
  %v5700 = vand.u32 %v4624, 4294901760
  %v5701 = vsub.f32 %v4624, %v5700
  %5702 = vmatmul.mubr.f32.gmra.mxu0 %v5701
  %v5703 = vpop.f32.mrf.mxu0
  %v5704 = vadd.f32 %v5370, %v5703
  %v5705 = vpop.f32.mrf.mxu0
  %5706 = vmatprep.mubr.f32.mxu0 0.0
  %v5707 = vand.u32 %v4627, 4294901760
  %v5708 = vsub.f32 %v4627, %v5707
  %5709 = vmatmul.mubr.f32.gmra.mxu0 %v5708
  %v5710 = vpop.f32.mrf.mxu0
  %v5711 = vadd.f32 %v5376, %v5710
  %v5712 = vpop.f32.mrf.mxu0
  %5713 = vmatprep.mubr.f32.mxu0 0.0
  %v5714 = vand.u32 %v4630, 4294901760
  %v5715 = vsub.f32 %v4630, %v5714
  %5716 = vmatmul.mubr.f32.gmra.mxu0 %v5715
  %v5717 = vpop.f32.mrf.mxu0
  %v5718 = vadd.f32 %v5382, %v5717
  %v5719 = vpop.f32.mrf.mxu0
  %5720 = vmatprep.mubr.f32.mxu0 0.0
  %v5721 = vand.u32 %v4633, 4294901760
  %v5722 = vsub.f32 %v4633, %v5721
  %5723 = vmatmul.mubr.f32.gmra.mxu0 %v5722
  %v5724 = vpop.f32.mrf.mxu0
  %v5725 = vadd.f32 %v5388, %v5724
  %v5726 = vpop.f32.mrf.mxu0
  %5727 = vmatprep.mubr.f32.mxu0 0.0
  %v5728 = vand.u32 %v4636, 4294901760
  %v5729 = vsub.f32 %v4636, %v5728
  %5730 = vmatmul.mubr.f32.gmra.mxu0 %v5729
  %v5731 = vpop.f32.mrf.mxu0
  %v5732 = vadd.f32 %v5394, %v5731
  %v5733 = vpop.f32.mrf.mxu0
  %5734 = vmatprep.mubr.f32.mxu0 0.0
  %v5735 = vand.u32 %v4639, 4294901760
  %v5736 = vsub.f32 %v4639, %v5735
  %5737 = vmatmul.mubr.f32.gmra.mxu0 %v5736
  %v5738 = vpop.f32.mrf.mxu0
  %v5739 = vadd.f32 %v5400, %v5738
  %v5740 = vpop.f32.mrf.mxu0
  %5741 = vdwg.mxu0
  %5742 = vmatprep.subr.mxu0 0.0
  %5743 = vmatpush1.msra.mxu0 0.0
  %5744 = vmatprep.subr.mxu0 0.0
  %5745 = vmatpush1.msra.mxu0 0.0
  %5746 = vmatprep.subr.mxu0 0.0
  %5747 = vmatpush1.msra.mxu0 0.0
  %5748 = vmatprep.subr.mxu0 0.0
  %5749 = vmatpush1.msra.mxu0 0.0
  %5750 = vmatprep.subr.mxu0 0.0
  %5751 = vmatpush1.msra.mxu0 0.0
  %5752 = vmatprep.subr.mxu0 0.0
  %5753 = vmatpush1.msra.mxu0 0.0
  %5754 = vmatprep.subr.mxu0 0.0
  %5755 = vmatpush1.msra.mxu0 0.0
  %5756 = vmatprep.subr.mxu0 0.0
  %5757 = vmatpush1.msra.mxu0 0.0
  %5758 = vmatprep.subr.mxu0 0.0
  %5759 = vmatpush1.msra.mxu0 0.0
  %5760 = vmatprep.subr.mxu0 0.0
  %5761 = vmatpush1.msra.mxu0 0.0
  %5762 = vmatprep.subr.mxu0 0.0
  %5763 = vmatpush1.msra.mxu0 0.0
  %5764 = vmatprep.subr.mxu0 0.0
  %5765 = vmatpush1.msra.mxu0 0.0
  %5766 = vmatprep.subr.mxu0 0.0
  %v5767 = vand.u32 %v4519, 4294901760
  %5768 = vmatpush1.msra.mxu0 %v5767
  %5769 = vmatprep.subr.mxu0 0.0
  %v5770 = vand.u32 %v4518, 4294901760
  %5771 = vmatpush1.msra.mxu0 %v5770
  %5772 = vmatprep.subr.mxu0 0.0
  %v5773 = vand.u32 %v4517, 4294901760
  %5774 = vmatpush1.msra.mxu0 %v5773
  %5775 = vmatprep.subr.mxu0 0.0
  %v5776 = vand.u32 %v4516, 4294901760
  %5777 = vmatpush1.msra.mxu0 %v5776
  %5778 = vmatprep.subr.mxu0 0.0
  %5779 = vmatpush2.msra.mxu0 0.0
  %5780 = vmatprep.subr.mxu0 0.0
  %5781 = vmatpush2.msra.mxu0 0.0
  %5782 = vmatprep.subr.mxu0 0.0
  %5783 = vmatpush2.msra.mxu0 0.0
  %5784 = vmatprep.subr.mxu0 0.0
  %5785 = vmatpush2.msra.mxu0 0.0
  %5786 = vmatprep.subr.mxu0 0.0
  %5787 = vmatpush2.msra.mxu0 0.0
  %5788 = vmatprep.subr.mxu0 0.0
  %5789 = vmatpush2.msra.mxu0 0.0
  %5790 = vmatprep.subr.mxu0 0.0
  %5791 = vmatpush2.msra.mxu0 0.0
  %5792 = vmatprep.subr.mxu0 0.0
  %5793 = vmatpush2.msra.mxu0 0.0
  %5794 = vmatprep.subr.mxu0 0.0
  %5795 = vmatpush2.msra.mxu0 0.0
  %5796 = vmatprep.subr.mxu0 0.0
  %5797 = vmatpush2.msra.mxu0 0.0
  %5798 = vmatprep.subr.mxu0 0.0
  %5799 = vmatpush2.msra.mxu0 0.0
  %5800 = vmatprep.subr.mxu0 0.0
  %5801 = vmatpush2.msra.mxu0 0.0
  %5802 = vmatprep.subr.mxu0 0.0
  %5803 = vmatpush2.msra.mxu0 0.0
  %5804 = vmatprep.subr.mxu0 0.0
  %5805 = vmatpush2.msra.mxu0 0.0
  %5806 = vmatprep.subr.mxu0 0.0
  %5807 = vmatpush2.msra.mxu0 0.0
  %5808 = vmatprep.subr.mxu0 0.0
  %5809 = vmatpush2.msra.mxu0 0.0
  %5810 = vmatprep.mubr.f32.mxu0 0.0
  %v5811 = vand.u32 %v4528, 4294901760
  %v5812 = vsub.f32 %v4528, %v5811
  %v5813 = vand.u32 %v5812, 4294901760
  %5814 = vmatmul.mubr.f32.gmra.mxu0 %v5813
  %v5815 = vpop.f32.mrf.mxu0
  %v5816 = vadd.f32 %v5480, %v5815
  %v5817 = vpop.f32.mrf.mxu0
  %5818 = vmatprep.mubr.f32.mxu0 0.0
  %v5819 = vand.u32 %v4531, 4294901760
  %v5820 = vsub.f32 %v4531, %v5819
  %v5821 = vand.u32 %v5820, 4294901760
  %5822 = vmatmul.mubr.f32.gmra.mxu0 %v5821
  %v5823 = vpop.f32.mrf.mxu0
  %v5824 = vadd.f32 %v5487, %v5823
  %v5825 = vpop.f32.mrf.mxu0
  %5826 = vmatprep.mubr.f32.mxu0 0.0
  %v5827 = vand.u32 %v4534, 4294901760
  %v5828 = vsub.f32 %v4534, %v5827
  %v5829 = vand.u32 %v5828, 4294901760
  %5830 = vmatmul.mubr.f32.gmra.mxu0 %v5829
  %v5831 = vpop.f32.mrf.mxu0
  %v5832 = vadd.f32 %v5494, %v5831
  %v5833 = vpop.f32.mrf.mxu0
  %5834 = vmatprep.mubr.f32.mxu0 0.0
  %v5835 = vand.u32 %v4537, 4294901760
  %v5836 = vsub.f32 %v4537, %v5835
  %v5837 = vand.u32 %v5836, 4294901760
  %5838 = vmatmul.mubr.f32.gmra.mxu0 %v5837
  %v5839 = vpop.f32.mrf.mxu0
  %v5840 = vadd.f32 %v5501, %v5839
  %v5841 = vpop.f32.mrf.mxu0
  %5842 = vmatprep.mubr.f32.mxu0 0.0
  %v5843 = vand.u32 %v4540, 4294901760
  %v5844 = vsub.f32 %v4540, %v5843
  %v5845 = vand.u32 %v5844, 4294901760
  %5846 = vmatmul.mubr.f32.gmra.mxu0 %v5845
  %v5847 = vpop.f32.mrf.mxu0
  %v5848 = vadd.f32 %v5508, %v5847
  %v5849 = vpop.f32.mrf.mxu0
  %5850 = vmatprep.mubr.f32.mxu0 0.0
  %v5851 = vand.u32 %v4543, 4294901760
  %v5852 = vsub.f32 %v4543, %v5851
  %v5853 = vand.u32 %v5852, 4294901760
  %5854 = vmatmul.mubr.f32.gmra.mxu0 %v5853
  %v5855 = vpop.f32.mrf.mxu0
  %v5856 = vadd.f32 %v5515, %v5855
  %v5857 = vpop.f32.mrf.mxu0
  %5858 = vmatprep.mubr.f32.mxu0 0.0
  %v5859 = vand.u32 %v4546, 4294901760
  %v5860 = vsub.f32 %v4546, %v5859
  %v5861 = vand.u32 %v5860, 4294901760
  %5862 = vmatmul.mubr.f32.gmra.mxu0 %v5861
  %v5863 = vpop.f32.mrf.mxu0
  %v5864 = vadd.f32 %v5522, %v5863
  %v5865 = vpop.f32.mrf.mxu0
  %5866 = vmatprep.mubr.f32.mxu0 0.0
  %v5867 = vand.u32 %v4549, 4294901760
  %v5868 = vsub.f32 %v4549, %v5867
  %v5869 = vand.u32 %v5868, 4294901760
  %5870 = vmatmul.mubr.f32.gmra.mxu0 %v5869
  %v5871 = vpop.f32.mrf.mxu0
  %v5872 = vadd.f32 %v5529, %v5871
  %v5873 = vpop.f32.mrf.mxu0
  %5874 = vmatprep.mubr.f32.mxu0 0.0
  %v5875 = vand.u32 %v4552, 4294901760
  %v5876 = vsub.f32 %v4552, %v5875
  %v5877 = vand.u32 %v5876, 4294901760
  %5878 = vmatmul.mubr.f32.gmra.mxu0 %v5877
  %v5879 = vpop.f32.mrf.mxu0
  %v5880 = vadd.f32 %v5536, %v5879
  %v5881 = vpop.f32.mrf.mxu0
  %5882 = vmatprep.mubr.f32.mxu0 0.0
  %v5883 = vand.u32 %v4555, 4294901760
  %v5884 = vsub.f32 %v4555, %v5883
  %v5885 = vand.u32 %v5884, 4294901760
  %5886 = vmatmul.mubr.f32.gmra.mxu0 %v5885
  %v5887 = vpop.f32.mrf.mxu0
  %v5888 = vadd.f32 %v5543, %v5887
  %v5889 = vpop.f32.mrf.mxu0
  %5890 = vmatprep.mubr.f32.mxu0 0.0
  %v5891 = vand.u32 %v4558, 4294901760
  %v5892 = vsub.f32 %v4558, %v5891
  %v5893 = vand.u32 %v5892, 4294901760
  %5894 = vmatmul.mubr.f32.gmra.mxu0 %v5893
  %v5895 = vpop.f32.mrf.mxu0
  %v5896 = vadd.f32 %v5550, %v5895
  %v5897 = vpop.f32.mrf.mxu0
  %5898 = vmatprep.mubr.f32.mxu0 0.0
  %v5899 = vand.u32 %v4561, 4294901760
  %v5900 = vsub.f32 %v4561, %v5899
  %v5901 = vand.u32 %v5900, 4294901760
  %5902 = vmatmul.mubr.f32.gmra.mxu0 %v5901
  %v5903 = vpop.f32.mrf.mxu0
  %v5904 = vadd.f32 %v5557, %v5903
  %v5905 = vpop.f32.mrf.mxu0
  %5906 = vmatprep.mubr.f32.mxu0 0.0
  %v5907 = vand.u32 %v4564, 4294901760
  %v5908 = vsub.f32 %v4564, %v5907
  %v5909 = vand.u32 %v5908, 4294901760
  %5910 = vmatmul.mubr.f32.gmra.mxu0 %v5909
  %v5911 = vpop.f32.mrf.mxu0
  %v5912 = vadd.f32 %v5564, %v5911
  %v5913 = vpop.f32.mrf.mxu0
  %5914 = vmatprep.mubr.f32.mxu0 0.0
  %v5915 = vand.u32 %v4567, 4294901760
  %v5916 = vsub.f32 %v4567, %v5915
  %v5917 = vand.u32 %v5916, 4294901760
  %5918 = vmatmul.mubr.f32.gmra.mxu0 %v5917
  %v5919 = vpop.f32.mrf.mxu0
  %v5920 = vadd.f32 %v5571, %v5919
  %v5921 = vpop.f32.mrf.mxu0
  %5922 = vmatprep.mubr.f32.mxu0 0.0
  %v5923 = vand.u32 %v4570, 4294901760
  %v5924 = vsub.f32 %v4570, %v5923
  %v5925 = vand.u32 %v5924, 4294901760
  %5926 = vmatmul.mubr.f32.gmra.mxu0 %v5925
  %v5927 = vpop.f32.mrf.mxu0
  %v5928 = vadd.f32 %v5578, %v5927
  %v5929 = vpop.f32.mrf.mxu0
  %5930 = vmatprep.mubr.f32.mxu0 0.0
  %v5931 = vand.u32 %v4573, 4294901760
  %v5932 = vsub.f32 %v4573, %v5931
  %v5933 = vand.u32 %v5932, 4294901760
  %5934 = vmatmul.mubr.f32.gmra.mxu0 %v5933
  %v5935 = vpop.f32.mrf.mxu0
  %v5936 = vadd.f32 %v5585, %v5935
  %v5937 = vpop.f32.mrf.mxu0
  %5938 = vmatprep.mubr.f32.mxu0 0.0
  %v5939 = vand.u32 %v4576, 4294901760
  %v5940 = vsub.f32 %v4576, %v5939
  %v5941 = vand.u32 %v5940, 4294901760
  %5942 = vmatmul.mubr.f32.gmra.mxu0 %v5941
  %v5943 = vpop.f32.mrf.mxu0
  %v5944 = vadd.f32 %v5592, %v5943
  %v5945 = vpop.f32.mrf.mxu0
  %5946 = vmatprep.mubr.f32.mxu0 0.0
  %v5947 = vand.u32 %v4579, 4294901760
  %v5948 = vsub.f32 %v4579, %v5947
  %v5949 = vand.u32 %v5948, 4294901760
  %5950 = vmatmul.mubr.f32.gmra.mxu0 %v5949
  %v5951 = vpop.f32.mrf.mxu0
  %v5952 = vadd.f32 %v5599, %v5951
  %v5953 = vpop.f32.mrf.mxu0
  %5954 = vmatprep.mubr.f32.mxu0 0.0
  %v5955 = vand.u32 %v4582, 4294901760
  %v5956 = vsub.f32 %v4582, %v5955
  %v5957 = vand.u32 %v5956, 4294901760
  %5958 = vmatmul.mubr.f32.gmra.mxu0 %v5957
  %v5959 = vpop.f32.mrf.mxu0
  %v5960 = vadd.f32 %v5606, %v5959
  %v5961 = vpop.f32.mrf.mxu0
  %5962 = vmatprep.mubr.f32.mxu0 0.0
  %v5963 = vand.u32 %v4585, 4294901760
  %v5964 = vsub.f32 %v4585, %v5963
  %v5965 = vand.u32 %v5964, 4294901760
  %5966 = vmatmul.mubr.f32.gmra.mxu0 %v5965
  %v5967 = vpop.f32.mrf.mxu0
  %v5968 = vadd.f32 %v5613, %v5967
  %v5969 = vpop.f32.mrf.mxu0
  %5970 = vmatprep.mubr.f32.mxu0 0.0
  %v5971 = vand.u32 %v4588, 4294901760
  %v5972 = vsub.f32 %v4588, %v5971
  %v5973 = vand.u32 %v5972, 4294901760
  %5974 = vmatmul.mubr.f32.gmra.mxu0 %v5973
  %v5975 = vpop.f32.mrf.mxu0
  %v5976 = vadd.f32 %v5620, %v5975
  %v5977 = vpop.f32.mrf.mxu0
  %5978 = vmatprep.mubr.f32.mxu0 0.0
  %v5979 = vand.u32 %v4591, 4294901760
  %v5980 = vsub.f32 %v4591, %v5979
  %v5981 = vand.u32 %v5980, 4294901760
  %5982 = vmatmul.mubr.f32.gmra.mxu0 %v5981
  %v5983 = vpop.f32.mrf.mxu0
  %v5984 = vadd.f32 %v5627, %v5983
  %v5985 = vpop.f32.mrf.mxu0
  %5986 = vmatprep.mubr.f32.mxu0 0.0
  %v5987 = vand.u32 %v4594, 4294901760
  %v5988 = vsub.f32 %v4594, %v5987
  %v5989 = vand.u32 %v5988, 4294901760
  %5990 = vmatmul.mubr.f32.gmra.mxu0 %v5989
  %v5991 = vpop.f32.mrf.mxu0
  %v5992 = vadd.f32 %v5634, %v5991
  %v5993 = vpop.f32.mrf.mxu0
  %5994 = vmatprep.mubr.f32.mxu0 0.0
  %v5995 = vand.u32 %v4597, 4294901760
  %v5996 = vsub.f32 %v4597, %v5995
  %v5997 = vand.u32 %v5996, 4294901760
  %5998 = vmatmul.mubr.f32.gmra.mxu0 %v5997
  %v5999 = vpop.f32.mrf.mxu0
  %v6000 = vadd.f32 %v5641, %v5999
  %v6001 = vpop.f32.mrf.mxu0
  %6002 = vmatprep.mubr.f32.mxu0 0.0
  %v6003 = vand.u32 %v4600, 4294901760
  %v6004 = vsub.f32 %v4600, %v6003
  %v6005 = vand.u32 %v6004, 4294901760
  %6006 = vmatmul.mubr.f32.gmra.mxu0 %v6005
  %v6007 = vpop.f32.mrf.mxu0
  %v6008 = vadd.f32 %v5648, %v6007
  %v6009 = vpop.f32.mrf.mxu0
  %6010 = vmatprep.mubr.f32.mxu0 0.0
  %v6011 = vand.u32 %v4603, 4294901760
  %v6012 = vsub.f32 %v4603, %v6011
  %v6013 = vand.u32 %v6012, 4294901760
  %6014 = vmatmul.mubr.f32.gmra.mxu0 %v6013
  %v6015 = vpop.f32.mrf.mxu0
  %v6016 = vadd.f32 %v5655, %v6015
  %v6017 = vpop.f32.mrf.mxu0
  %6018 = vmatprep.mubr.f32.mxu0 0.0
  %v6019 = vand.u32 %v4606, 4294901760
  %v6020 = vsub.f32 %v4606, %v6019
  %v6021 = vand.u32 %v6020, 4294901760
  %6022 = vmatmul.mubr.f32.gmra.mxu0 %v6021
  %v6023 = vpop.f32.mrf.mxu0
  %v6024 = vadd.f32 %v5662, %v6023
  %v6025 = vpop.f32.mrf.mxu0
  %6026 = vmatprep.mubr.f32.mxu0 0.0
  %v6027 = vand.u32 %v4609, 4294901760
  %v6028 = vsub.f32 %v4609, %v6027
  %v6029 = vand.u32 %v6028, 4294901760
  %6030 = vmatmul.mubr.f32.gmra.mxu0 %v6029
  %v6031 = vpop.f32.mrf.mxu0
  %v6032 = vadd.f32 %v5669, %v6031
  %v6033 = vpop.f32.mrf.mxu0
  %6034 = vmatprep.mubr.f32.mxu0 0.0
  %v6035 = vand.u32 %v4612, 4294901760
  %v6036 = vsub.f32 %v4612, %v6035
  %v6037 = vand.u32 %v6036, 4294901760
  %6038 = vmatmul.mubr.f32.gmra.mxu0 %v6037
  %v6039 = vpop.f32.mrf.mxu0
  %v6040 = vadd.f32 %v5676, %v6039
  %v6041 = vpop.f32.mrf.mxu0
  %6042 = vmatprep.mubr.f32.mxu0 0.0
  %v6043 = vand.u32 %v4615, 4294901760
  %v6044 = vsub.f32 %v4615, %v6043
  %v6045 = vand.u32 %v6044, 4294901760
  %6046 = vmatmul.mubr.f32.gmra.mxu0 %v6045
  %v6047 = vpop.f32.mrf.mxu0
  %v6048 = vadd.f32 %v5683, %v6047
  %v6049 = vpop.f32.mrf.mxu0
  %6050 = vmatprep.mubr.f32.mxu0 0.0
  %v6051 = vand.u32 %v4618, 4294901760
  %v6052 = vsub.f32 %v4618, %v6051
  %v6053 = vand.u32 %v6052, 4294901760
  %6054 = vmatmul.mubr.f32.gmra.mxu0 %v6053
  %v6055 = vpop.f32.mrf.mxu0
  %v6056 = vadd.f32 %v5690, %v6055
  %v6057 = vpop.f32.mrf.mxu0
  %6058 = vmatprep.mubr.f32.mxu0 0.0
  %v6059 = vand.u32 %v4621, 4294901760
  %v6060 = vsub.f32 %v4621, %v6059
  %v6061 = vand.u32 %v6060, 4294901760
  %6062 = vmatmul.mubr.f32.gmra.mxu0 %v6061
  %v6063 = vpop.f32.mrf.mxu0
  %v6064 = vadd.f32 %v5697, %v6063
  %v6065 = vpop.f32.mrf.mxu0
  %6066 = vmatprep.mubr.f32.mxu0 0.0
  %v6067 = vand.u32 %v4624, 4294901760
  %v6068 = vsub.f32 %v4624, %v6067
  %v6069 = vand.u32 %v6068, 4294901760
  %6070 = vmatmul.mubr.f32.gmra.mxu0 %v6069
  %v6071 = vpop.f32.mrf.mxu0
  %v6072 = vadd.f32 %v5704, %v6071
  %v6073 = vpop.f32.mrf.mxu0
  %6074 = vmatprep.mubr.f32.mxu0 0.0
  %v6075 = vand.u32 %v4627, 4294901760
  %v6076 = vsub.f32 %v4627, %v6075
  %v6077 = vand.u32 %v6076, 4294901760
  %6078 = vmatmul.mubr.f32.gmra.mxu0 %v6077
  %v6079 = vpop.f32.mrf.mxu0
  %v6080 = vadd.f32 %v5711, %v6079
  %v6081 = vpop.f32.mrf.mxu0
  %6082 = vmatprep.mubr.f32.mxu0 0.0
  %v6083 = vand.u32 %v4630, 4294901760
  %v6084 = vsub.f32 %v4630, %v6083
  %v6085 = vand.u32 %v6084, 4294901760
  %6086 = vmatmul.mubr.f32.gmra.mxu0 %v6085
  %v6087 = vpop.f32.mrf.mxu0
  %v6088 = vadd.f32 %v5718, %v6087
  %v6089 = vpop.f32.mrf.mxu0
  %6090 = vmatprep.mubr.f32.mxu0 0.0
  %v6091 = vand.u32 %v4633, 4294901760
  %v6092 = vsub.f32 %v4633, %v6091
  %v6093 = vand.u32 %v6092, 4294901760
  %6094 = vmatmul.mubr.f32.gmra.mxu0 %v6093
  %v6095 = vpop.f32.mrf.mxu0
  %v6096 = vadd.f32 %v5725, %v6095
  %v6097 = vpop.f32.mrf.mxu0
  %6098 = vmatprep.mubr.f32.mxu0 0.0
  %v6099 = vand.u32 %v4636, 4294901760
  %v6100 = vsub.f32 %v4636, %v6099
  %v6101 = vand.u32 %v6100, 4294901760
  %6102 = vmatmul.mubr.f32.gmra.mxu0 %v6101
  %v6103 = vpop.f32.mrf.mxu0
  %v6104 = vadd.f32 %v5732, %v6103
  %v6105 = vpop.f32.mrf.mxu0
  %6106 = vmatprep.mubr.f32.mxu0 0.0
  %v6107 = vand.u32 %v4639, 4294901760
  %v6108 = vsub.f32 %v4639, %v6107
  %v6109 = vand.u32 %v6108, 4294901760
  %6110 = vmatmul.mubr.f32.gmra.mxu0 %v6109
  %v6111 = vpop.f32.mrf.mxu0
  %v6112 = vadd.f32 %v5739, %v6111
  %v6113 = vpop.f32.mrf.mxu0
  %6114 = vdwg.mxu0
  %6115 = vmatprep.subr.mxu0 0.0
  %6116 = vmatpush1.msra.mxu0 0.0
  %6117 = vmatprep.subr.mxu0 0.0
  %6118 = vmatpush1.msra.mxu0 0.0
  %6119 = vmatprep.subr.mxu0 0.0
  %6120 = vmatpush1.msra.mxu0 0.0
  %6121 = vmatprep.subr.mxu0 0.0
  %6122 = vmatpush1.msra.mxu0 0.0
  %6123 = vmatprep.subr.mxu0 0.0
  %6124 = vmatpush1.msra.mxu0 0.0
  %6125 = vmatprep.subr.mxu0 0.0
  %6126 = vmatpush1.msra.mxu0 0.0
  %6127 = vmatprep.subr.mxu0 0.0
  %6128 = vmatpush1.msra.mxu0 0.0
  %6129 = vmatprep.subr.mxu0 0.0
  %6130 = vmatpush1.msra.mxu0 0.0
  %6131 = vmatprep.subr.mxu0 0.0
  %6132 = vmatpush1.msra.mxu0 0.0
  %6133 = vmatprep.subr.mxu0 0.0
  %6134 = vmatpush1.msra.mxu0 0.0
  %6135 = vmatprep.subr.mxu0 0.0
  %6136 = vmatpush1.msra.mxu0 0.0
  %6137 = vmatprep.subr.mxu0 0.0
  %6138 = vmatpush1.msra.mxu0 0.0
  %6139 = vmatprep.subr.mxu0 0.0
  %v6140 = vand.u32 %v4519, 4294901760
  %v6141 = vsub.f32 %v4519, %v6140
  %v6142 = vand.u32 %v6141, 4294901760
  %6143 = vmatpush1.msra.mxu0 %v6142
  %6144 = vmatprep.subr.mxu0 0.0
  %v6145 = vand.u32 %v4518, 4294901760
  %v6146 = vsub.f32 %v4518, %v6145
  %v6147 = vand.u32 %v6146, 4294901760
  %6148 = vmatpush1.msra.mxu0 %v6147
  %6149 = vmatprep.subr.mxu0 0.0
  %v6150 = vand.u32 %v4517, 4294901760
  %v6151 = vsub.f32 %v4517, %v6150
  %v6152 = vand.u32 %v6151, 4294901760
  %6153 = vmatpush1.msra.mxu0 %v6152
  %6154 = vmatprep.subr.mxu0 0.0
  %v6155 = vand.u32 %v4516, 4294901760
  %v6156 = vsub.f32 %v4516, %v6155
  %v6157 = vand.u32 %v6156, 4294901760
  %6158 = vmatpush1.msra.mxu0 %v6157
  %6159 = vmatprep.subr.mxu0 0.0
  %6160 = vmatpush2.msra.mxu0 0.0
  %6161 = vmatprep.subr.mxu0 0.0
  %6162 = vmatpush2.msra.mxu0 0.0
  %6163 = vmatprep.subr.mxu0 0.0
  %6164 = vmatpush2.msra.mxu0 0.0
  %6165 = vmatprep.subr.mxu0 0.0
  %6166 = vmatpush2.msra.mxu0 0.0
  %6167 = vmatprep.subr.mxu0 0.0
  %6168 = vmatpush2.msra.mxu0 0.0
  %6169 = vmatprep.subr.mxu0 0.0
  %6170 = vmatpush2.msra.mxu0 0.0
  %6171 = vmatprep.subr.mxu0 0.0
  %6172 = vmatpush2.msra.mxu0 0.0
  %6173 = vmatprep.subr.mxu0 0.0
  %6174 = vmatpush2.msra.mxu0 0.0
  %6175 = vmatprep.subr.mxu0 0.0
  %6176 = vmatpush2.msra.mxu0 0.0
  %6177 = vmatprep.subr.mxu0 0.0
  %6178 = vmatpush2.msra.mxu0 0.0
  %6179 = vmatprep.subr.mxu0 0.0
  %6180 = vmatpush2.msra.mxu0 0.0
  %6181 = vmatprep.subr.mxu0 0.0
  %6182 = vmatpush2.msra.mxu0 0.0
  %6183 = vmatprep.subr.mxu0 0.0
  %6184 = vmatpush2.msra.mxu0 0.0
  %6185 = vmatprep.subr.mxu0 0.0
  %6186 = vmatpush2.msra.mxu0 0.0
  %6187 = vmatprep.subr.mxu0 0.0
  %6188 = vmatpush2.msra.mxu0 0.0
  %6189 = vmatprep.subr.mxu0 0.0
  %6190 = vmatpush2.msra.mxu0 0.0
  %6191 = vmatprep.mubr.f32.mxu0 0.0
  %v6192 = vand.u32 %v4528, 4294901760
  %6193 = vmatmul.mubr.f32.gmra.mxu0 %v6192
  %v6194 = vpop.f32.mrf.mxu0
  %v6195 = vadd.f32 %v5816, %v6194
  %v6196 = vpop.f32.mrf.mxu0
  %6197 = vmatprep.mubr.f32.mxu0 0.0
  %v6198 = vand.u32 %v4531, 4294901760
  %6199 = vmatmul.mubr.f32.gmra.mxu0 %v6198
  %v6200 = vpop.f32.mrf.mxu0
  %v6201 = vadd.f32 %v5824, %v6200
  %v6202 = vpop.f32.mrf.mxu0
  %6203 = vmatprep.mubr.f32.mxu0 0.0
  %v6204 = vand.u32 %v4534, 4294901760
  %6205 = vmatmul.mubr.f32.gmra.mxu0 %v6204
  %v6206 = vpop.f32.mrf.mxu0
  %v6207 = vadd.f32 %v5832, %v6206
  %v6208 = vpop.f32.mrf.mxu0
  %6209 = vmatprep.mubr.f32.mxu0 0.0
  %v6210 = vand.u32 %v4537, 4294901760
  %6211 = vmatmul.mubr.f32.gmra.mxu0 %v6210
  %v6212 = vpop.f32.mrf.mxu0
  %v6213 = vadd.f32 %v5840, %v6212
  %v6214 = vpop.f32.mrf.mxu0
  %6215 = vmatprep.mubr.f32.mxu0 0.0
  %v6216 = vand.u32 %v4540, 4294901760
  %6217 = vmatmul.mubr.f32.gmra.mxu0 %v6216
  %v6218 = vpop.f32.mrf.mxu0
  %v6219 = vadd.f32 %v5848, %v6218
  %v6220 = vpop.f32.mrf.mxu0
  %6221 = vmatprep.mubr.f32.mxu0 0.0
  %v6222 = vand.u32 %v4543, 4294901760
  %6223 = vmatmul.mubr.f32.gmra.mxu0 %v6222
  %v6224 = vpop.f32.mrf.mxu0
  %v6225 = vadd.f32 %v5856, %v6224
  %v6226 = vpop.f32.mrf.mxu0
  %6227 = vmatprep.mubr.f32.mxu0 0.0
  %v6228 = vand.u32 %v4546, 4294901760
  %6229 = vmatmul.mubr.f32.gmra.mxu0 %v6228
  %v6230 = vpop.f32.mrf.mxu0
  %v6231 = vadd.f32 %v5864, %v6230
  %v6232 = vpop.f32.mrf.mxu0
  %6233 = vmatprep.mubr.f32.mxu0 0.0
  %v6234 = vand.u32 %v4549, 4294901760
  %6235 = vmatmul.mubr.f32.gmra.mxu0 %v6234
  %v6236 = vpop.f32.mrf.mxu0
  %v6237 = vadd.f32 %v5872, %v6236
  %v6238 = vpop.f32.mrf.mxu0
  %6239 = vmatprep.mubr.f32.mxu0 0.0
  %v6240 = vand.u32 %v4552, 4294901760
  %6241 = vmatmul.mubr.f32.gmra.mxu0 %v6240
  %v6242 = vpop.f32.mrf.mxu0
  %v6243 = vadd.f32 %v5880, %v6242
  %v6244 = vpop.f32.mrf.mxu0
  %6245 = vmatprep.mubr.f32.mxu0 0.0
  %v6246 = vand.u32 %v4555, 4294901760
  %6247 = vmatmul.mubr.f32.gmra.mxu0 %v6246
  %v6248 = vpop.f32.mrf.mxu0
  %v6249 = vadd.f32 %v5888, %v6248
  %v6250 = vpop.f32.mrf.mxu0
  %6251 = vmatprep.mubr.f32.mxu0 0.0
  %v6252 = vand.u32 %v4558, 4294901760
  %6253 = vmatmul.mubr.f32.gmra.mxu0 %v6252
  %v6254 = vpop.f32.mrf.mxu0
  %v6255 = vadd.f32 %v5896, %v6254
  %v6256 = vpop.f32.mrf.mxu0
  %6257 = vmatprep.mubr.f32.mxu0 0.0
  %v6258 = vand.u32 %v4561, 4294901760
  %6259 = vmatmul.mubr.f32.gmra.mxu0 %v6258
  %v6260 = vpop.f32.mrf.mxu0
  %v6261 = vadd.f32 %v5904, %v6260
  %v6262 = vpop.f32.mrf.mxu0
  %6263 = vmatprep.mubr.f32.mxu0 0.0
  %v6264 = vand.u32 %v4564, 4294901760
  %6265 = vmatmul.mubr.f32.gmra.mxu0 %v6264
  %v6266 = vpop.f32.mrf.mxu0
  %v6267 = vadd.f32 %v5912, %v6266
  %v6268 = vpop.f32.mrf.mxu0
  %6269 = vmatprep.mubr.f32.mxu0 0.0
  %v6270 = vand.u32 %v4567, 4294901760
  %6271 = vmatmul.mubr.f32.gmra.mxu0 %v6270
  %v6272 = vpop.f32.mrf.mxu0
  %v6273 = vadd.f32 %v5920, %v6272
  %v6274 = vpop.f32.mrf.mxu0
  %6275 = vmatprep.mubr.f32.mxu0 0.0
  %v6276 = vand.u32 %v4570, 4294901760
  %6277 = vmatmul.mubr.f32.gmra.mxu0 %v6276
  %v6278 = vpop.f32.mrf.mxu0
  %v6279 = vadd.f32 %v5928, %v6278
  %v6280 = vpop.f32.mrf.mxu0
  %6281 = vmatprep.mubr.f32.mxu0 0.0
  %v6282 = vand.u32 %v4573, 4294901760
  %6283 = vmatmul.mubr.f32.gmra.mxu0 %v6282
  %v6284 = vpop.f32.mrf.mxu0
  %v6285 = vadd.f32 %v5936, %v6284
  %v6286 = vpop.f32.mrf.mxu0
  %6287 = vmatprep.mubr.f32.mxu0 0.0
  %v6288 = vand.u32 %v4576, 4294901760
  %6289 = vmatmul.mubr.f32.gmra.mxu0 %v6288
  %v6290 = vpop.f32.mrf.mxu0
  %v6291 = vadd.f32 %v5944, %v6290
  %v6292 = vpop.f32.mrf.mxu0
  %6293 = vmatprep.mubr.f32.mxu0 0.0
  %v6294 = vand.u32 %v4579, 4294901760
  %6295 = vmatmul.mubr.f32.gmra.mxu0 %v6294
  %v6296 = vpop.f32.mrf.mxu0
  %v6297 = vadd.f32 %v5952, %v6296
  %v6298 = vpop.f32.mrf.mxu0
  %6299 = vmatprep.mubr.f32.mxu0 0.0
  %v6300 = vand.u32 %v4582, 4294901760
  %6301 = vmatmul.mubr.f32.gmra.mxu0 %v6300
  %v6302 = vpop.f32.mrf.mxu0
  %v6303 = vadd.f32 %v5960, %v6302
  %v6304 = vpop.f32.mrf.mxu0
  %6305 = vmatprep.mubr.f32.mxu0 0.0
  %v6306 = vand.u32 %v4585, 4294901760
  %6307 = vmatmul.mubr.f32.gmra.mxu0 %v6306
  %v6308 = vpop.f32.mrf.mxu0
  %v6309 = vadd.f32 %v5968, %v6308
  %v6310 = vpop.f32.mrf.mxu0
  %6311 = vmatprep.mubr.f32.mxu0 0.0
  %v6312 = vand.u32 %v4588, 4294901760
  %6313 = vmatmul.mubr.f32.gmra.mxu0 %v6312
  %v6314 = vpop.f32.mrf.mxu0
  %v6315 = vadd.f32 %v5976, %v6314
  %v6316 = vpop.f32.mrf.mxu0
  %6317 = vmatprep.mubr.f32.mxu0 0.0
  %v6318 = vand.u32 %v4591, 4294901760
  %6319 = vmatmul.mubr.f32.gmra.mxu0 %v6318
  %v6320 = vpop.f32.mrf.mxu0
  %v6321 = vadd.f32 %v5984, %v6320
  %v6322 = vpop.f32.mrf.mxu0
  %6323 = vmatprep.mubr.f32.mxu0 0.0
  %v6324 = vand.u32 %v4594, 4294901760
  %6325 = vmatmul.mubr.f32.gmra.mxu0 %v6324
  %v6326 = vpop.f32.mrf.mxu0
  %v6327 = vadd.f32 %v5992, %v6326
  %v6328 = vpop.f32.mrf.mxu0
  %6329 = vmatprep.mubr.f32.mxu0 0.0
  %v6330 = vand.u32 %v4597, 4294901760
  %6331 = vmatmul.mubr.f32.gmra.mxu0 %v6330
  %v6332 = vpop.f32.mrf.mxu0
  %v6333 = vadd.f32 %v6000, %v6332
  %v6334 = vpop.f32.mrf.mxu0
  %6335 = vmatprep.mubr.f32.mxu0 0.0
  %v6336 = vand.u32 %v4600, 4294901760
  %6337 = vmatmul.mubr.f32.gmra.mxu0 %v6336
  %v6338 = vpop.f32.mrf.mxu0
  %v6339 = vadd.f32 %v6008, %v6338
  %v6340 = vpop.f32.mrf.mxu0
  %6341 = vmatprep.mubr.f32.mxu0 0.0
  %v6342 = vand.u32 %v4603, 4294901760
  %6343 = vmatmul.mubr.f32.gmra.mxu0 %v6342
  %v6344 = vpop.f32.mrf.mxu0
  %v6345 = vadd.f32 %v6016, %v6344
  %v6346 = vpop.f32.mrf.mxu0
  %6347 = vmatprep.mubr.f32.mxu0 0.0
  %v6348 = vand.u32 %v4606, 4294901760
  %6349 = vmatmul.mubr.f32.gmra.mxu0 %v6348
  %v6350 = vpop.f32.mrf.mxu0
  %v6351 = vadd.f32 %v6024, %v6350
  %v6352 = vpop.f32.mrf.mxu0
  %6353 = vmatprep.mubr.f32.mxu0 0.0
  %v6354 = vand.u32 %v4609, 4294901760
  %6355 = vmatmul.mubr.f32.gmra.mxu0 %v6354
  %v6356 = vpop.f32.mrf.mxu0
  %v6357 = vadd.f32 %v6032, %v6356
  %v6358 = vpop.f32.mrf.mxu0
  %6359 = vmatprep.mubr.f32.mxu0 0.0
  %v6360 = vand.u32 %v4612, 4294901760
  %6361 = vmatmul.mubr.f32.gmra.mxu0 %v6360
  %v6362 = vpop.f32.mrf.mxu0
  %v6363 = vadd.f32 %v6040, %v6362
  %v6364 = vpop.f32.mrf.mxu0
  %6365 = vmatprep.mubr.f32.mxu0 0.0
  %v6366 = vand.u32 %v4615, 4294901760
  %6367 = vmatmul.mubr.f32.gmra.mxu0 %v6366
  %v6368 = vpop.f32.mrf.mxu0
  %v6369 = vadd.f32 %v6048, %v6368
  %v6370 = vpop.f32.mrf.mxu0
  %6371 = vmatprep.mubr.f32.mxu0 0.0
  %v6372 = vand.u32 %v4618, 4294901760
  %6373 = vmatmul.mubr.f32.gmra.mxu0 %v6372
  %v6374 = vpop.f32.mrf.mxu0
  %v6375 = vadd.f32 %v6056, %v6374
  %v6376 = vpop.f32.mrf.mxu0
  %6377 = vmatprep.mubr.f32.mxu0 0.0
  %v6378 = vand.u32 %v4621, 4294901760
  %6379 = vmatmul.mubr.f32.gmra.mxu0 %v6378
  %v6380 = vpop.f32.mrf.mxu0
  %v6381 = vadd.f32 %v6064, %v6380
  %v6382 = vpop.f32.mrf.mxu0
  %6383 = vmatprep.mubr.f32.mxu0 0.0
  %v6384 = vand.u32 %v4624, 4294901760
  %6385 = vmatmul.mubr.f32.gmra.mxu0 %v6384
  %v6386 = vpop.f32.mrf.mxu0
  %v6387 = vadd.f32 %v6072, %v6386
  %v6388 = vpop.f32.mrf.mxu0
  %6389 = vmatprep.mubr.f32.mxu0 0.0
  %v6390 = vand.u32 %v4627, 4294901760
  %6391 = vmatmul.mubr.f32.gmra.mxu0 %v6390
  %v6392 = vpop.f32.mrf.mxu0
  %v6393 = vadd.f32 %v6080, %v6392
  %v6394 = vpop.f32.mrf.mxu0
  %6395 = vmatprep.mubr.f32.mxu0 0.0
  %v6396 = vand.u32 %v4630, 4294901760
  %6397 = vmatmul.mubr.f32.gmra.mxu0 %v6396
  %v6398 = vpop.f32.mrf.mxu0
  %v6399 = vadd.f32 %v6088, %v6398
  %v6400 = vpop.f32.mrf.mxu0
  %6401 = vmatprep.mubr.f32.mxu0 0.0
  %v6402 = vand.u32 %v4633, 4294901760
  %6403 = vmatmul.mubr.f32.gmra.mxu0 %v6402
  %v6404 = vpop.f32.mrf.mxu0
  %v6405 = vadd.f32 %v6096, %v6404
  %v6406 = vpop.f32.mrf.mxu0
  %6407 = vmatprep.mubr.f32.mxu0 0.0
  %v6408 = vand.u32 %v4636, 4294901760
  %6409 = vmatmul.mubr.f32.gmra.mxu0 %v6408
  %v6410 = vpop.f32.mrf.mxu0
  %v6411 = vadd.f32 %v6104, %v6410
  %v6412 = vpop.f32.mrf.mxu0
  %6413 = vmatprep.mubr.f32.mxu0 0.0
  %v6414 = vand.u32 %v4639, 4294901760
  %6415 = vmatmul.mubr.f32.gmra.mxu0 %v6414
  %v6416 = vpop.f32.mrf.mxu0
  %v6417 = vadd.f32 %v6112, %v6416
  %v6418 = vpop.f32.mrf.mxu0
  %6419 = vdwg.mxu0
  %6420 = vmatprep.subr.mxu0 0.0
  %6421 = vmatpush1.msra.mxu0 0.0
  %6422 = vmatprep.subr.mxu0 0.0
  %6423 = vmatpush1.msra.mxu0 0.0
  %6424 = vmatprep.subr.mxu0 0.0
  %6425 = vmatpush1.msra.mxu0 0.0
  %6426 = vmatprep.subr.mxu0 0.0
  %6427 = vmatpush1.msra.mxu0 0.0
  %6428 = vmatprep.subr.mxu0 0.0
  %6429 = vmatpush1.msra.mxu0 0.0
  %6430 = vmatprep.subr.mxu0 0.0
  %6431 = vmatpush1.msra.mxu0 0.0
  %6432 = vmatprep.subr.mxu0 0.0
  %6433 = vmatpush1.msra.mxu0 0.0
  %6434 = vmatprep.subr.mxu0 0.0
  %6435 = vmatpush1.msra.mxu0 0.0
  %6436 = vmatprep.subr.mxu0 0.0
  %6437 = vmatpush1.msra.mxu0 0.0
  %6438 = vmatprep.subr.mxu0 0.0
  %6439 = vmatpush1.msra.mxu0 0.0
  %6440 = vmatprep.subr.mxu0 0.0
  %6441 = vmatpush1.msra.mxu0 0.0
  %6442 = vmatprep.subr.mxu0 0.0
  %6443 = vmatpush1.msra.mxu0 0.0
  %6444 = vmatprep.subr.mxu0 0.0
  %v6445 = vand.u32 %v4519, 4294901760
  %6446 = vmatpush1.msra.mxu0 %v6445
  %6447 = vmatprep.subr.mxu0 0.0
  %v6448 = vand.u32 %v4518, 4294901760
  %6449 = vmatpush1.msra.mxu0 %v6448
  %6450 = vmatprep.subr.mxu0 0.0
  %v6451 = vand.u32 %v4517, 4294901760
  %6452 = vmatpush1.msra.mxu0 %v6451
  %6453 = vmatprep.subr.mxu0 0.0
  %v6454 = vand.u32 %v4516, 4294901760
  %6455 = vmatpush1.msra.mxu0 %v6454
  %6456 = vmatprep.subr.mxu0 0.0
  %6457 = vmatpush2.msra.mxu0 0.0
  %6458 = vmatprep.subr.mxu0 0.0
  %6459 = vmatpush2.msra.mxu0 0.0
  %6460 = vmatprep.subr.mxu0 0.0
  %6461 = vmatpush2.msra.mxu0 0.0
  %6462 = vmatprep.subr.mxu0 0.0
  %6463 = vmatpush2.msra.mxu0 0.0
  %6464 = vmatprep.subr.mxu0 0.0
  %6465 = vmatpush2.msra.mxu0 0.0
  %6466 = vmatprep.subr.mxu0 0.0
  %6467 = vmatpush2.msra.mxu0 0.0
  %6468 = vmatprep.subr.mxu0 0.0
  %6469 = vmatpush2.msra.mxu0 0.0
  %6470 = vmatprep.subr.mxu0 0.0
  %6471 = vmatpush2.msra.mxu0 0.0
  %6472 = vmatprep.subr.mxu0 0.0
  %6473 = vmatpush2.msra.mxu0 0.0
  %6474 = vmatprep.subr.mxu0 0.0
  %6475 = vmatpush2.msra.mxu0 0.0
  %6476 = vmatprep.subr.mxu0 0.0
  %6477 = vmatpush2.msra.mxu0 0.0
  %6478 = vmatprep.subr.mxu0 0.0
  %6479 = vmatpush2.msra.mxu0 0.0
  %6480 = vmatprep.subr.mxu0 0.0
  %6481 = vmatpush2.msra.mxu0 0.0
  %6482 = vmatprep.subr.mxu0 0.0
  %6483 = vmatpush2.msra.mxu0 0.0
  %6484 = vmatprep.subr.mxu0 0.0
  %6485 = vmatpush2.msra.mxu0 0.0
  %6486 = vmatprep.subr.mxu0 0.0
  %6487 = vmatpush2.msra.mxu0 0.0
  %6488 = vmatprep.mubr.f32.mxu0 0.0
  %v6489 = vand.u32 %v4528, 4294901760
  %6490 = vmatmul.mubr.f32.gmra.mxu0 %v6489
  %v6491 = vpop.f32.mrf.mxu0
  %v6492 = vadd.f32 %v6195, %v6491
  %v6493 = vpop.f32.mrf.mxu0
  %6494 = vmatprep.mubr.f32.mxu0 0.0
  %v6495 = vand.u32 %v4531, 4294901760
  %6496 = vmatmul.mubr.f32.gmra.mxu0 %v6495
  %v6497 = vpop.f32.mrf.mxu0
  %v6498 = vadd.f32 %v6201, %v6497
  %v6499 = vpop.f32.mrf.mxu0
  %6500 = vmatprep.mubr.f32.mxu0 0.0
  %v6501 = vand.u32 %v4534, 4294901760
  %6502 = vmatmul.mubr.f32.gmra.mxu0 %v6501
  %v6503 = vpop.f32.mrf.mxu0
  %v6504 = vadd.f32 %v6207, %v6503
  %v6505 = vpop.f32.mrf.mxu0
  %6506 = vmatprep.mubr.f32.mxu0 0.0
  %v6507 = vand.u32 %v4537, 4294901760
  %6508 = vmatmul.mubr.f32.gmra.mxu0 %v6507
  %v6509 = vpop.f32.mrf.mxu0
  %v6510 = vadd.f32 %v6213, %v6509
  %v6511 = vpop.f32.mrf.mxu0
  %6512 = vmatprep.mubr.f32.mxu0 0.0
  %v6513 = vand.u32 %v4540, 4294901760
  %6514 = vmatmul.mubr.f32.gmra.mxu0 %v6513
  %v6515 = vpop.f32.mrf.mxu0
  %v6516 = vadd.f32 %v6219, %v6515
  %v6517 = vpop.f32.mrf.mxu0
  %6518 = vmatprep.mubr.f32.mxu0 0.0
  %v6519 = vand.u32 %v4543, 4294901760
  %6520 = vmatmul.mubr.f32.gmra.mxu0 %v6519
  %v6521 = vpop.f32.mrf.mxu0
  %v6522 = vadd.f32 %v6225, %v6521
  %v6523 = vpop.f32.mrf.mxu0
  %6524 = vmatprep.mubr.f32.mxu0 0.0
  %v6525 = vand.u32 %v4546, 4294901760
  %6526 = vmatmul.mubr.f32.gmra.mxu0 %v6525
  %v6527 = vpop.f32.mrf.mxu0
  %v6528 = vadd.f32 %v6231, %v6527
  %v6529 = vpop.f32.mrf.mxu0
  %6530 = vmatprep.mubr.f32.mxu0 0.0
  %v6531 = vand.u32 %v4549, 4294901760
  %6532 = vmatmul.mubr.f32.gmra.mxu0 %v6531
  %v6533 = vpop.f32.mrf.mxu0
  %v6534 = vadd.f32 %v6237, %v6533
  %v6535 = vpop.f32.mrf.mxu0
  %6536 = vmatprep.mubr.f32.mxu0 0.0
  %v6537 = vand.u32 %v4552, 4294901760
  %6538 = vmatmul.mubr.f32.gmra.mxu0 %v6537
  %v6539 = vpop.f32.mrf.mxu0
  %v6540 = vadd.f32 %v6243, %v6539
  %v6541 = vpop.f32.mrf.mxu0
  %6542 = vmatprep.mubr.f32.mxu0 0.0
  %v6543 = vand.u32 %v4555, 4294901760
  %6544 = vmatmul.mubr.f32.gmra.mxu0 %v6543
  %v6545 = vpop.f32.mrf.mxu0
  %v6546 = vadd.f32 %v6249, %v6545
  %v6547 = vpop.f32.mrf.mxu0
  %6548 = vmatprep.mubr.f32.mxu0 0.0
  %v6549 = vand.u32 %v4558, 4294901760
  %6550 = vmatmul.mubr.f32.gmra.mxu0 %v6549
  %v6551 = vpop.f32.mrf.mxu0
  %v6552 = vadd.f32 %v6255, %v6551
  %v6553 = vpop.f32.mrf.mxu0
  %6554 = vmatprep.mubr.f32.mxu0 0.0
  %v6555 = vand.u32 %v4561, 4294901760
  %6556 = vmatmul.mubr.f32.gmra.mxu0 %v6555
  %v6557 = vpop.f32.mrf.mxu0
  %v6558 = vadd.f32 %v6261, %v6557
  %v6559 = vpop.f32.mrf.mxu0
  %6560 = vmatprep.mubr.f32.mxu0 0.0
  %v6561 = vand.u32 %v4564, 4294901760
  %6562 = vmatmul.mubr.f32.gmra.mxu0 %v6561
  %v6563 = vpop.f32.mrf.mxu0
  %v6564 = vadd.f32 %v6267, %v6563
  %v6565 = vpop.f32.mrf.mxu0
  %6566 = vmatprep.mubr.f32.mxu0 0.0
  %v6567 = vand.u32 %v4567, 4294901760
  %6568 = vmatmul.mubr.f32.gmra.mxu0 %v6567
  %v6569 = vpop.f32.mrf.mxu0
  %v6570 = vadd.f32 %v6273, %v6569
  %v6571 = vpop.f32.mrf.mxu0
  %6572 = vmatprep.mubr.f32.mxu0 0.0
  %v6573 = vand.u32 %v4570, 4294901760
  %6574 = vmatmul.mubr.f32.gmra.mxu0 %v6573
  %v6575 = vpop.f32.mrf.mxu0
  %v6576 = vadd.f32 %v6279, %v6575
  %v6577 = vpop.f32.mrf.mxu0
  %6578 = vmatprep.mubr.f32.mxu0 0.0
  %v6579 = vand.u32 %v4573, 4294901760
  %6580 = vmatmul.mubr.f32.gmra.mxu0 %v6579
  %v6581 = vpop.f32.mrf.mxu0
  %v6582 = vadd.f32 %v6285, %v6581
  %v6583 = vpop.f32.mrf.mxu0
  %6584 = vmatprep.mubr.f32.mxu0 0.0
  %v6585 = vand.u32 %v4576, 4294901760
  %6586 = vmatmul.mubr.f32.gmra.mxu0 %v6585
  %v6587 = vpop.f32.mrf.mxu0
  %v6588 = vadd.f32 %v6291, %v6587
  %v6589 = vpop.f32.mrf.mxu0
  %6590 = vmatprep.mubr.f32.mxu0 0.0
  %v6591 = vand.u32 %v4579, 4294901760
  %6592 = vmatmul.mubr.f32.gmra.mxu0 %v6591
  %v6593 = vpop.f32.mrf.mxu0
  %v6594 = vadd.f32 %v6297, %v6593
  %v6595 = vpop.f32.mrf.mxu0
  %6596 = vmatprep.mubr.f32.mxu0 0.0
  %v6597 = vand.u32 %v4582, 4294901760
  %6598 = vmatmul.mubr.f32.gmra.mxu0 %v6597
  %v6599 = vpop.f32.mrf.mxu0
  %v6600 = vadd.f32 %v6303, %v6599
  %v6601 = vpop.f32.mrf.mxu0
  %6602 = vmatprep.mubr.f32.mxu0 0.0
  %v6603 = vand.u32 %v4585, 4294901760
  %6604 = vmatmul.mubr.f32.gmra.mxu0 %v6603
  %v6605 = vpop.f32.mrf.mxu0
  %v6606 = vadd.f32 %v6309, %v6605
  %v6607 = vpop.f32.mrf.mxu0
  %6608 = vmatprep.mubr.f32.mxu0 0.0
  %v6609 = vand.u32 %v4588, 4294901760
  %6610 = vmatmul.mubr.f32.gmra.mxu0 %v6609
  %v6611 = vpop.f32.mrf.mxu0
  %v6612 = vadd.f32 %v6315, %v6611
  %v6613 = vpop.f32.mrf.mxu0
  %6614 = vmatprep.mubr.f32.mxu0 0.0
  %v6615 = vand.u32 %v4591, 4294901760
  %6616 = vmatmul.mubr.f32.gmra.mxu0 %v6615
  %v6617 = vpop.f32.mrf.mxu0
  %v6618 = vadd.f32 %v6321, %v6617
  %v6619 = vpop.f32.mrf.mxu0
  %6620 = vmatprep.mubr.f32.mxu0 0.0
  %v6621 = vand.u32 %v4594, 4294901760
  %6622 = vmatmul.mubr.f32.gmra.mxu0 %v6621
  %v6623 = vpop.f32.mrf.mxu0
  %v6624 = vadd.f32 %v6327, %v6623
  %v6625 = vpop.f32.mrf.mxu0
  %6626 = vmatprep.mubr.f32.mxu0 0.0
  %v6627 = vand.u32 %v4597, 4294901760
  %6628 = vmatmul.mubr.f32.gmra.mxu0 %v6627
  %v6629 = vpop.f32.mrf.mxu0
  %v6630 = vadd.f32 %v6333, %v6629
  %v6631 = vpop.f32.mrf.mxu0
  %6632 = vmatprep.mubr.f32.mxu0 0.0
  %v6633 = vand.u32 %v4600, 4294901760
  %6634 = vmatmul.mubr.f32.gmra.mxu0 %v6633
  %v6635 = vpop.f32.mrf.mxu0
  %v6636 = vadd.f32 %v6339, %v6635
  %v6637 = vpop.f32.mrf.mxu0
  %6638 = vmatprep.mubr.f32.mxu0 0.0
  %v6639 = vand.u32 %v4603, 4294901760
  %6640 = vmatmul.mubr.f32.gmra.mxu0 %v6639
  %v6641 = vpop.f32.mrf.mxu0
  %v6642 = vadd.f32 %v6345, %v6641
  %v6643 = vpop.f32.mrf.mxu0
  %6644 = vmatprep.mubr.f32.mxu0 0.0
  %v6645 = vand.u32 %v4606, 4294901760
  %6646 = vmatmul.mubr.f32.gmra.mxu0 %v6645
  %v6647 = vpop.f32.mrf.mxu0
  %v6648 = vadd.f32 %v6351, %v6647
  %v6649 = vpop.f32.mrf.mxu0
  %6650 = vmatprep.mubr.f32.mxu0 0.0
  %v6651 = vand.u32 %v4609, 4294901760
  %6652 = vmatmul.mubr.f32.gmra.mxu0 %v6651
  %v6653 = vpop.f32.mrf.mxu0
  %v6654 = vadd.f32 %v6357, %v6653
  %v6655 = vpop.f32.mrf.mxu0
  %6656 = vmatprep.mubr.f32.mxu0 0.0
  %v6657 = vand.u32 %v4612, 4294901760
  %6658 = vmatmul.mubr.f32.gmra.mxu0 %v6657
  %v6659 = vpop.f32.mrf.mxu0
  %v6660 = vadd.f32 %v6363, %v6659
  %v6661 = vpop.f32.mrf.mxu0
  %6662 = vmatprep.mubr.f32.mxu0 0.0
  %v6663 = vand.u32 %v4615, 4294901760
  %6664 = vmatmul.mubr.f32.gmra.mxu0 %v6663
  %v6665 = vpop.f32.mrf.mxu0
  %v6666 = vadd.f32 %v6369, %v6665
  %v6667 = vpop.f32.mrf.mxu0
  %6668 = vmatprep.mubr.f32.mxu0 0.0
  %v6669 = vand.u32 %v4618, 4294901760
  %6670 = vmatmul.mubr.f32.gmra.mxu0 %v6669
  %v6671 = vpop.f32.mrf.mxu0
  %v6672 = vadd.f32 %v6375, %v6671
  %v6673 = vpop.f32.mrf.mxu0
  %6674 = vmatprep.mubr.f32.mxu0 0.0
  %v6675 = vand.u32 %v4621, 4294901760
  %6676 = vmatmul.mubr.f32.gmra.mxu0 %v6675
  %v6677 = vpop.f32.mrf.mxu0
  %v6678 = vadd.f32 %v6381, %v6677
  %v6679 = vpop.f32.mrf.mxu0
  %6680 = vmatprep.mubr.f32.mxu0 0.0
  %v6681 = vand.u32 %v4624, 4294901760
  %6682 = vmatmul.mubr.f32.gmra.mxu0 %v6681
  %v6683 = vpop.f32.mrf.mxu0
  %v6684 = vadd.f32 %v6387, %v6683
  %v6685 = vpop.f32.mrf.mxu0
  %6686 = vmatprep.mubr.f32.mxu0 0.0
  %v6687 = vand.u32 %v4627, 4294901760
  %6688 = vmatmul.mubr.f32.gmra.mxu0 %v6687
  %v6689 = vpop.f32.mrf.mxu0
  %v6690 = vadd.f32 %v6393, %v6689
  %v6691 = vpop.f32.mrf.mxu0
  %6692 = vmatprep.mubr.f32.mxu0 0.0
  %v6693 = vand.u32 %v4630, 4294901760
  %6694 = vmatmul.mubr.f32.gmra.mxu0 %v6693
  %v6695 = vpop.f32.mrf.mxu0
  %v6696 = vadd.f32 %v6399, %v6695
  %v6697 = vpop.f32.mrf.mxu0
  %6698 = vmatprep.mubr.f32.mxu0 0.0
  %v6699 = vand.u32 %v4633, 4294901760
  %6700 = vmatmul.mubr.f32.gmra.mxu0 %v6699
  %v6701 = vpop.f32.mrf.mxu0
  %v6702 = vadd.f32 %v6405, %v6701
  %v6703 = vpop.f32.mrf.mxu0
  %6704 = vmatprep.mubr.f32.mxu0 0.0
  %v6705 = vand.u32 %v4636, 4294901760
  %6706 = vmatmul.mubr.f32.gmra.mxu0 %v6705
  %v6707 = vpop.f32.mrf.mxu0
  %v6708 = vadd.f32 %v6411, %v6707
  %v6709 = vpop.f32.mrf.mxu0
  %6710 = vmatprep.mubr.f32.mxu0 0.0
  %v6711 = vand.u32 %v4639, 4294901760
  %6712 = vmatmul.mubr.f32.gmra.mxu0 %v6711
  %v6713 = vpop.f32.mrf.mxu0
  %v6714 = vadd.f32 %v6417, %v6713
  %v6715 = vpop.f32.mrf.mxu0
  %6716 = vdwg.mxu0
  %v6717 = vxor.u32 %v6492, 2147483648
  %v6718 = vxor.u32 %v6498, 2147483648
  %v6719 = vxor.u32 %v6504, 2147483648
  %v6720 = vxor.u32 %v6510, 2147483648
  %v6721 = vxor.u32 %v6516, 2147483648
  %v6722 = vxor.u32 %v6522, 2147483648
  %v6723 = vxor.u32 %v6528, 2147483648
  %v6724 = vxor.u32 %v6534, 2147483648
  %v6725 = vxor.u32 %v6540, 2147483648
  %v6726 = vxor.u32 %v6546, 2147483648
  %v6727 = vxor.u32 %v6552, 2147483648
  %v6728 = vxor.u32 %v6558, 2147483648
  %v6729 = vxor.u32 %v6564, 2147483648
  %v6730 = vxor.u32 %v6570, 2147483648
  %v6731 = vxor.u32 %v6576, 2147483648
  %v6732 = vxor.u32 %v6582, 2147483648
  %v6733 = vxor.u32 %v6588, 2147483648
  %v6734 = vxor.u32 %v6594, 2147483648
  %v6735 = vxor.u32 %v6600, 2147483648
  %v6736 = vxor.u32 %v6606, 2147483648
  %v6737 = vxor.u32 %v6612, 2147483648
  %v6738 = vxor.u32 %v6618, 2147483648
  %v6739 = vxor.u32 %v6624, 2147483648
  %v6740 = vxor.u32 %v6630, 2147483648
  %v6741 = vxor.u32 %v6636, 2147483648
  %v6742 = vxor.u32 %v6642, 2147483648
  %v6743 = vxor.u32 %v6648, 2147483648
  %v6744 = vxor.u32 %v6654, 2147483648
  %v6745 = vxor.u32 %v6660, 2147483648
  %v6746 = vxor.u32 %v6666, 2147483648
  %v6747 = vxor.u32 %v6672, 2147483648
  %v6748 = vxor.u32 %v6678, 2147483648
  %v6749 = vxor.u32 %v6684, 2147483648
  %v6750 = vxor.u32 %v6690, 2147483648
  %v6751 = vxor.u32 %v6696, 2147483648
  %v6752 = vxor.u32 %v6702, 2147483648
  %v6753 = vxor.u32 %v6708, 2147483648
  %v6754 = vxor.u32 %v6714, 2147483648
  %v6755 = vmul.f32 %v6717, 1.442695
  %v6756 = vpow.pop %v6755
  %v6757 = vmul.f32 %v6718, 1.442695
  %v6758 = vpow.pop %v6757
  %v6759 = vmul.f32 %v6719, 1.442695
  %v6760 = vpow.pop %v6759
  %v6761 = vmul.f32 %v6720, 1.442695
  %v6762 = vpow.pop %v6761
  %v6763 = vmul.f32 %v6721, 1.442695
  %v6764 = vpow.pop %v6763
  %v6765 = vmul.f32 %v6722, 1.442695
  %v6766 = vpow.pop %v6765
  %v6767 = vmul.f32 %v6723, 1.442695
  %v6768 = vpow.pop %v6767
  %v6769 = vmul.f32 %v6724, 1.442695
  %v6770 = vpow.pop %v6769
  %v6771 = vmul.f32 %v6725, 1.442695
  %v6772 = vpow.pop %v6771
  %v6773 = vmul.f32 %v6726, 1.442695
  %v6774 = vpow.pop %v6773
  %v6775 = vmul.f32 %v6727, 1.442695
  %v6776 = vpow.pop %v6775
  %v6777 = vmul.f32 %v6728, 1.442695
  %v6778 = vpow.pop %v6777
  %v6779 = vmul.f32 %v6729, 1.442695
  %v6780 = vpow.pop %v6779
  %v6781 = vmul.f32 %v6730, 1.442695
  %v6782 = vpow.pop %v6781
  %v6783 = vmul.f32 %v6731, 1.442695
  %v6784 = vpow.pop %v6783
  %v6785 = vmul.f32 %v6732, 1.442695
  %v6786 = vpow.pop %v6785
  %v6787 = vmul.f32 %v6733, 1.442695
  %v6788 = vpow.pop %v6787
  %v6789 = vmul.f32 %v6734, 1.442695
  %v6790 = vpow.pop %v6789
  %v6791 = vmul.f32 %v6735, 1.442695
  %v6792 = vpow.pop %v6791
  %v6793 = vmul.f32 %v6736, 1.442695
  %v6794 = vpow.pop %v6793
  %v6795 = vmul.f32 %v6737, 1.442695
  %v6796 = vpow.pop %v6795
  %v6797 = vmul.f32 %v6738, 1.442695
  %v6798 = vpow.pop %v6797
  %v6799 = vmul.f32 %v6739, 1.442695
  %v6800 = vpow.pop %v6799
  %v6801 = vmul.f32 %v6740, 1.442695
  %v6802 = vpow.pop %v6801
  %v6803 = vmul.f32 %v6741, 1.442695
  %v6804 = vpow.pop %v6803
  %v6805 = vmul.f32 %v6742, 1.442695
  %v6806 = vpow.pop %v6805
  %v6807 = vmul.f32 %v6743, 1.442695
  %v6808 = vpow.pop %v6807
  %v6809 = vmul.f32 %v6744, 1.442695
  %v6810 = vpow.pop %v6809
  %v6811 = vmul.f32 %v6745, 1.442695
  %v6812 = vpow.pop %v6811
  %v6813 = vmul.f32 %v6746, 1.442695
  %v6814 = vpow.pop %v6813
  %v6815 = vmul.f32 %v6747, 1.442695
  %v6816 = vpow.pop %v6815
  %v6817 = vmul.f32 %v6748, 1.442695
  %v6818 = vpow.pop %v6817
  %v6819 = vmul.f32 %v6749, 1.442695
  %v6820 = vpow.pop %v6819
  %v6821 = vmul.f32 %v6750, 1.442695
  %v6822 = vpow.pop %v6821
  %v6823 = vmul.f32 %v6751, 1.442695
  %v6824 = vpow.pop %v6823
  %v6825 = vmul.f32 %v6752, 1.442695
  %v6826 = vpow.pop %v6825
  %v6827 = vmul.f32 %v6753, 1.442695
  %v6828 = vpow.pop %v6827
  %v6829 = vmul.f32 %v6754, 1.442695
  %v6830 = vpow.pop %v6829
  %v6831 = vadd.f32 %v6756, 1.0
  %v6832 = vadd.f32 %v6758, 1.0
  %v6833 = vadd.f32 %v6760, 1.0
  %v6834 = vadd.f32 %v6762, 1.0
  %v6835 = vadd.f32 %v6764, 1.0
  %v6836 = vadd.f32 %v6766, 1.0
  %v6837 = vadd.f32 %v6768, 1.0
  %v6838 = vadd.f32 %v6770, 1.0
  %v6839 = vadd.f32 %v6772, 1.0
  %v6840 = vadd.f32 %v6774, 1.0
  %v6841 = vadd.f32 %v6776, 1.0
  %v6842 = vadd.f32 %v6778, 1.0
  %v6843 = vadd.f32 %v6780, 1.0
  %v6844 = vadd.f32 %v6782, 1.0
  %v6845 = vadd.f32 %v6784, 1.0
  %v6846 = vadd.f32 %v6786, 1.0
  %v6847 = vadd.f32 %v6788, 1.0
  %v6848 = vadd.f32 %v6790, 1.0
  %v6849 = vadd.f32 %v6792, 1.0
  %v6850 = vadd.f32 %v6794, 1.0
  %v6851 = vadd.f32 %v6796, 1.0
  %v6852 = vadd.f32 %v6798, 1.0
  %v6853 = vadd.f32 %v6800, 1.0
  %v6854 = vadd.f32 %v6802, 1.0
  %v6855 = vadd.f32 %v6804, 1.0
  %v6856 = vadd.f32 %v6806, 1.0
  %v6857 = vadd.f32 %v6808, 1.0
  %v6858 = vadd.f32 %v6810, 1.0
  %v6859 = vadd.f32 %v6812, 1.0
  %v6860 = vadd.f32 %v6814, 1.0
  %v6861 = vadd.f32 %v6816, 1.0
  %v6862 = vadd.f32 %v6818, 1.0
  %v6863 = vadd.f32 %v6820, 1.0
  %v6864 = vadd.f32 %v6822, 1.0
  %v6865 = vadd.f32 %v6824, 1.0
  %v6866 = vadd.f32 %v6826, 1.0
  %v6867 = vadd.f32 %v6828, 1.0
  %v6868 = vadd.f32 %v6830, 1.0
  %v6869 = vrcp.pop %v6831
  %v6870 = vmul.f32 1.0, %v6869
  %v6871 = vrcp.pop %v6832
  %v6872 = vmul.f32 1.0, %v6871
  %v6873 = vrcp.pop %v6833
  %v6874 = vmul.f32 1.0, %v6873
  %v6875 = vrcp.pop %v6834
  %v6876 = vmul.f32 1.0, %v6875
  %v6877 = vrcp.pop %v6835
  %v6878 = vmul.f32 1.0, %v6877
  %v6879 = vrcp.pop %v6836
  %v6880 = vmul.f32 1.0, %v6879
  %v6881 = vrcp.pop %v6837
  %v6882 = vmul.f32 1.0, %v6881
  %v6883 = vrcp.pop %v6838
  %v6884 = vmul.f32 1.0, %v6883
  %v6885 = vrcp.pop %v6839
  %v6886 = vmul.f32 1.0, %v6885
  %v6887 = vrcp.pop %v6840
  %v6888 = vmul.f32 1.0, %v6887
  %v6889 = vrcp.pop %v6841
  %v6890 = vmul.f32 1.0, %v6889
  %v6891 = vrcp.pop %v6842
  %v6892 = vmul.f32 1.0, %v6891
  %v6893 = vrcp.pop %v6843
  %v6894 = vmul.f32 1.0, %v6893
  %v6895 = vrcp.pop %v6844
  %v6896 = vmul.f32 1.0, %v6895
  %v6897 = vrcp.pop %v6845
  %v6898 = vmul.f32 1.0, %v6897
  %v6899 = vrcp.pop %v6846
  %v6900 = vmul.f32 1.0, %v6899
  %v6901 = vrcp.pop %v6847
  %v6902 = vmul.f32 1.0, %v6901
  %v6903 = vrcp.pop %v6848
  %v6904 = vmul.f32 1.0, %v6903
  %v6905 = vrcp.pop %v6849
  %v6906 = vmul.f32 1.0, %v6905
  %v6907 = vrcp.pop %v6850
  %v6908 = vmul.f32 1.0, %v6907
  %v6909 = vrcp.pop %v6851
  %v6910 = vmul.f32 1.0, %v6909
  %v6911 = vrcp.pop %v6852
  %v6912 = vmul.f32 1.0, %v6911
  %v6913 = vrcp.pop %v6853
  %v6914 = vmul.f32 1.0, %v6913
  %v6915 = vrcp.pop %v6854
  %v6916 = vmul.f32 1.0, %v6915
  %v6917 = vrcp.pop %v6855
  %v6918 = vmul.f32 1.0, %v6917
  %v6919 = vrcp.pop %v6856
  %v6920 = vmul.f32 1.0, %v6919
  %v6921 = vrcp.pop %v6857
  %v6922 = vmul.f32 1.0, %v6921
  %v6923 = vrcp.pop %v6858
  %v6924 = vmul.f32 1.0, %v6923
  %v6925 = vrcp.pop %v6859
  %v6926 = vmul.f32 1.0, %v6925
  %v6927 = vrcp.pop %v6860
  %v6928 = vmul.f32 1.0, %v6927
  %v6929 = vrcp.pop %v6861
  %v6930 = vmul.f32 1.0, %v6929
  %v6931 = vrcp.pop %v6862
  %v6932 = vmul.f32 1.0, %v6931
  %v6933 = vrcp.pop %v6863
  %v6934 = vmul.f32 1.0, %v6933
  %v6935 = vrcp.pop %v6864
  %v6936 = vmul.f32 1.0, %v6935
  %v6937 = vrcp.pop %v6865
  %v6938 = vmul.f32 1.0, %v6937
  %v6939 = vrcp.pop %v6866
  %v6940 = vmul.f32 1.0, %v6939
  %v6941 = vrcp.pop %v6867
  %v6942 = vmul.f32 1.0, %v6941
  %v6943 = vrcp.pop %v6868
  %v6944 = vmul.f32 1.0, %v6943
  %vm6945 = vcmask 64512
  %6946 = vst.msk [vmem:[%s7] sm:$0xff] %vm6945, %v6870
  %6947 = vst.msk [vmem:[%s7 + $0x8] sm:$0xff] %vm6945, %v6872
  %6948 = vst.msk [vmem:[%s7 + $0x10] sm:$0xff] %vm6945, %v6874
  %6949 = vst.msk [vmem:[%s7 + $0x18] sm:$0xff] %vm6945, %v6876
  %6950 = vst.msk [vmem:[%s7 + $0x20] sm:$0xff] %vm6945, %v6878
  %6951 = vst.msk [vmem:[%s7 + $0x28] sm:$0xff] %vm6945, %v6880
  %6952 = vst.msk [vmem:[%s7 + $0x30] sm:$0xff] %vm6945, %v6882
  %6953 = vst.msk [vmem:[%s7 + $0x38] sm:$0xff] %vm6945, %v6884
  %6954 = vst.msk [vmem:[%s7 + $0x40] sm:$0xff] %vm6945, %v6886
  %6955 = vst.msk [vmem:[%s7 + $0x48] sm:$0xff] %vm6945, %v6888
  %6956 = vst.msk [vmem:[%s7 + $0x50] sm:$0xff] %vm6945, %v6890
  %6957 = vst.msk [vmem:[%s7 + $0x58] sm:$0xff] %vm6945, %v6892
  %6958 = vst.msk [vmem:[%s7 + $0x60] sm:$0xff] %vm6945, %v6894
  %6959 = vst.msk [vmem:[%s7 + $0x68] sm:$0xff] %vm6945, %v6896
  %6960 = vst.msk [vmem:[%s7 + $0x70] sm:$0xff] %vm6945, %v6898
  %6961 = vst.msk [vmem:[%s7 + $0x78] sm:$0xff] %vm6945, %v6900
  %6962 = vst.msk [vmem:[%s7 + $0x80] sm:$0xff] %vm6945, %v6902
  %6963 = vst.msk [vmem:[%s7 + $0x88] sm:$0xff] %vm6945, %v6904
  %6964 = vst.msk [vmem:[%s7 + $0x90] sm:$0xff] %vm6945, %v6906
  %6965 = vst.msk [vmem:[%s7 + $0x98] sm:$0xff] %vm6945, %v6908
  %6966 = vst.msk [vmem:[%s7 + $0xa0] sm:$0xff] %vm6945, %v6910
  %6967 = vst.msk [vmem:[%s7 + $0xa8] sm:$0xff] %vm6945, %v6912
  %6968 = vst.msk [vmem:[%s7 + $0xb0] sm:$0xff] %vm6945, %v6914
  %6969 = vst.msk [vmem:[%s7 + $0xb8] sm:$0xff] %vm6945, %v6916
  %6970 = vst.msk [vmem:[%s7 + $0xc0] sm:$0xff] %vm6945, %v6918
  %6971 = vst.msk [vmem:[%s7 + $0xc8] sm:$0xff] %vm6945, %v6920
  %6972 = vst.msk [vmem:[%s7 + $0xd0] sm:$0xff] %vm6945, %v6922
  %6973 = vst.msk [vmem:[%s7 + $0xd8] sm:$0xff] %vm6945, %v6924
  %6974 = vst.msk [vmem:[%s7 + $0xe0] sm:$0xff] %vm6945, %v6926
  %6975 = vst.msk [vmem:[%s7 + $0xe8] sm:$0xff] %vm6945, %v6928
  %6976 = vst.msk [vmem:[%s7 + $0xf0] sm:$0xff] %vm6945, %v6930
  %6977 = vst.msk [vmem:[%s7 + $0xf8] sm:$0xff] %vm6945, %v6932
  %6978 = vst.msk [vmem:[%s7 + $0x100] sm:$0xff] %vm6945, %v6934
  %6979 = vst.msk [vmem:[%s7 + $0x108] sm:$0xff] %vm6945, %v6936
  %6980 = vst.msk [vmem:[%s7 + $0x110] sm:$0xff] %vm6945, %v6938
  %6981 = vst.msk [vmem:[%s7 + $0x118] sm:$0xff] %vm6945, %v6940
  %6982 = vst.msk [vmem:[%s7 + $0x120] sm:$0xff] %vm6945, %v6942
  %6983 = vst.msk [vmem:[%s7 + $0x128] sm:$0xff] %vm6945, %v6944
  // Predicated region
  $region30: #{tpu_custom_call.1} parent=0 // pred_check
    _
  $region31: #{tpu_custom_call.1} parent=0 // pred_check_branch
    %6985 = sbr.rel (0) target = $region33
  $region32: #{tpu_custom_call.1} parent=0 // pred_region
    _
  $region33: #{tpu_custom_call.1} parent=0 // pred_fallthru
    _
  // Predicated region
  $region34: #{tpu_custom_call.1} parent=0 // pred_check
    _
  $region35: #{tpu_custom_call.1} parent=0 // pred_check_branch
    %6987 = sbr.rel (0) target = $region37
  $region36: #{tpu_custom_call.1} parent=0 // pred_region
    _
  $region37: #{tpu_custom_call.1} parent=0 // pred_fallthru
    _

</llo_original>
